<compile_context>
chip_gen: v7x
topology: tpu7x:2x2x1
jax: 0.10.0
libtpu: 0.0.40
codegen_flags: <defaults>
</compile_context>

<pallas_src>
import functools

import jax
import jax.numpy as jnp
from jax.experimental import pallas as pl
from jax.experimental.pallas import tpu as pltpu

_VMEM_LIMIT = 48 * 1024 * 1024  # leaves headroom on v7x (64 MiB physical); plenty on v5e/v6e.


def _batch_tile(b, cap):
    """Largest divisor of b that is <= cap, while keeping >=2 grid steps when b >= 2 (megacore)."""
    cap = max(1, min(cap, b // 2 if b >= 2 else b))
    t = min(b, cap)
    while b % t:
        t -= 1
    return t


def _fc_tile(b, cap):
    """Batch tile for the FC kernel: second-minor block dim must be a multiple of 8 or == b."""
    if b <= cap:
        return b
    t = (cap // 8) * 8
    while t >= 8 and b % t:
        t -= 8
    return t if (t >= 8 and b % t == 0) else b


# ----------------------------- Pallas kernels ------------------------------ #

def _block_kernel(x_ref, scale_ref, shift_ref, w_ref, b_ref, out_ref, stats_ref,
                  hmax_scr, *, first_block):
    """Fused block: [prev BN affine] -> pad -> 3x3 conv -> bias -> ReLU -> 2x2 max-pool -> BN stats.

    first_block=True:
      x_ref: (TN, H, W, 9*Cin) bf16 pre-im2col'd patches; w_ref: (1, 9*Cin, Cout); single matmul.
    first_block=False:
      x_ref: (TN, H, W, Cin) f32 pre-BN pooled activations of the previous block;
      scale/shift: (1, Cin) BN affine of the previous block;
      w_ref: (3, 3*Cin, Cout) conv taps with kw merged into K.
    out_ref:   (TN, H/2, W/2, Cout)  pooled, pre-BN activations (f32)
    stats_ref: (1, 2, Cout)          per-tile [sum, sum_sq] over pooled pixels
    hmax_scr:  VMEM (TN, H/2, W, Cout) f32 scratch holding the H-pooled conv output
    """
    tn = x_ref.shape[0]
    cout = w_ref.shape[-1]
    ho, wo = out_ref.shape[1], out_ref.shape[2]
    h, w = 2 * ho, 2 * wo

    if first_block:
        xs = x_ref[...].reshape(tn * h * w, x_ref.shape[-1])
        acc = jnp.dot(xs, w_ref[0], preferred_element_type=jnp.float32)
    else:
        cin = x_ref.shape[-1]
        # BatchNorm affine of the previous block (training-mode batch stats), then cast for the MXU.
        xb = (x_ref[...] * scale_ref[...].reshape(1, 1, 1, cin)
              + shift_ref[...].reshape(1, 1, 1, cin)).astype(w_ref.dtype)
        # kw-merged operand: columns [kw=0 | kw=1 | kw=2] of the spatially zero-padded input,
        # built once from in-register concatenates (no padded scratch, no per-tap relayout).
        zc = jnp.zeros((tn, h, 1, cin), xb.dtype)
        left = jnp.concatenate([zc, xb[:, :, :w - 1, :]], axis=2)     # padded column c-1
        right = jnp.concatenate([xb[:, :, 1:, :], zc], axis=2)        # padded column c+1
        xrow = jnp.concatenate([left, xb, right], axis=-1)            # (tn, h, w, 3*cin)
        zr = jnp.zeros((tn, 1, w, 3 * cin), xb.dtype)
        xcat = jnp.concatenate([zr, xrow, zr], axis=1)                # (tn, h+2, w, 3*cin)
        acc = jnp.zeros((tn * h * w, cout), jnp.float32)
        for kh in range(3):                                           # 3 matmuls, K = 3*Cin
            xs = xcat[:, kh:kh + h].reshape(tn * h * w, 3 * cin)
            acc = acc + jnp.dot(xs, w_ref[kh], preferred_element_type=jnp.float32)

    conv = jnp.maximum(acc + b_ref[...], 0.0)                         # bias + ReLU (f32)

    # 2x2 / stride-2 max-pool.  H-direction: free leading-dim reshape + elementwise max.
    c5 = conv.reshape(tn, ho, 2, w, cout)
    hmax_scr[...] = jnp.maximum(c5[:, :, 0], c5[:, :, 1])             # (tn, ho, w, cout)
    # W-direction: two sublane-strided reads of the half-sized scratch.
    pooled = jnp.maximum(hmax_scr[:, :, pl.ds(0, wo, stride=2), :],
                         hmax_scr[:, :, pl.ds(1, wo, stride=2), :])   # (tn, ho, wo, cout)
    out_ref[...] = pooled.astype(out_ref.dtype)

    # Per-tile partial BatchNorm statistics (stepwise reductions, layout-friendly).
    s = jnp.sum(pooled, axis=0)
    s = jnp.sum(s, axis=0)
    ssum = jnp.sum(s, axis=0, keepdims=True)                          # (1, cout)
    q = jnp.sum(pooled * pooled, axis=0)
    q = jnp.sum(q, axis=0)
    ssq = jnp.sum(q, axis=0, keepdims=True)                           # (1, cout)
    stats_ref[...] = jnp.concatenate([ssum, ssq], axis=0).reshape(1, 2, cout)


def _mlp_kernel(x_ref, scale_ref, shift_ref, w1_ref, b1_ref, w2_ref, b2_ref, w3_ref, b3_ref, o_ref):
    """Fused classifier: (last-block BN affine) -> Linear -> ReLU -> Linear -> ReLU -> Linear."""
    x = x_ref[...] * scale_ref[...] + shift_ref[...]                  # BN of block 3, f32
    h = jnp.dot(x.astype(w1_ref.dtype), w1_ref[...],
                preferred_element_type=jnp.float32) + b1_ref[...]
    h = jnp.maximum(h, 0.0)
    h = jnp.dot(h.astype(w2_ref.dtype), w2_ref[...],
                preferred_element_type=jnp.float32) + b2_ref[...]
    h = jnp.maximum(h, 0.0)
    out = jnp.dot(h.astype(w3_ref.dtype), w3_ref[...],
                  preferred_element_type=jnp.float32) + b3_ref[...]
    o_ref[...] = out.astype(o_ref.dtype)


# ------------------------------ host wrappers ------------------------------ #

def conv_block(x, scale, shift, taps, bias, *, tile_cap, first_block):
    B, H, W, _ = x.shape
    cout = taps.shape[-1]
    ho, wo = H // 2, W // 2
    tn = _batch_tile(B, tile_cap)
    t = B // tn
    kernel = functools.partial(_block_kernel, first_block=first_block)
    return pl.pallas_call(
        kernel,
        out_shape=(jax.ShapeDtypeStruct((B, ho, wo, cout), jnp.float32),
                   jax.ShapeDtypeStruct((t, 2, cout), jnp.float32)),
        grid_spec=pltpu.PrefetchScalarGridSpec(
            num_scalar_prefetch=0,
            grid=(t,),
            in_specs=[
                pl.BlockSpec((tn, H, W, x.shape[-1]), lambda n: (n, 0, 0, 0)),
                pl.BlockSpec(scale.shape, lambda n: (0, 0)),
                pl.BlockSpec(shift.shape, lambda n: (0, 0)),
                pl.BlockSpec(taps.shape, lambda n: (0, 0, 0)),
                pl.BlockSpec(bias.shape, lambda n: (0, 0)),
            ],
            out_specs=[
                pl.BlockSpec((tn, ho, wo, cout), lambda n: (n, 0, 0, 0)),
                pl.BlockSpec((1, 2, cout), lambda n: (n, 0, 0)),
            ],
            scratch_shapes=[pltpu.VMEM((tn, ho, W, cout), jnp.float32)],
        ),
        compiler_params=pltpu.CompilerParams(
            dimension_semantics=("parallel",),
            vmem_limit_bytes=_VMEM_LIMIT),
    )(x, scale, shift, taps, bias)


def mlp(x, scale, shift, w1, b1, w2, b2, w3, b3, *, tile_cap=256):
    B, fin = x.shape
    nc = w3.shape[1]
    tb = _fc_tile(B, tile_cap)
    t = B // tb
    return pl.pallas_call(
        _mlp_kernel,
        out_shape=jax.ShapeDtypeStruct((B, nc), jnp.float32),
        grid_spec=pltpu.PrefetchScalarGridSpec(
            num_scalar_prefetch=0,
            grid=(t,),
            in_specs=[
                pl.BlockSpec((tb, fin), lambda n: (n, 0)),
                pl.BlockSpec(scale.shape, lambda n: (0, 0)),
                pl.BlockSpec(shift.shape, lambda n: (0, 0)),
                pl.BlockSpec(w1.shape, lambda n: (0, 0)),
                pl.BlockSpec(b1.shape, lambda n: (0, 0)),
                pl.BlockSpec(w2.shape, lambda n: (0, 0)),
                pl.BlockSpec(b2.shape, lambda n: (0, 0)),
                pl.BlockSpec(w3.shape, lambda n: (0, 0)),
                pl.BlockSpec(b3.shape, lambda n: (0, 0)),
            ],
            out_specs=pl.BlockSpec((tb, nc), lambda n: (n, 0)),
        ),
        compiler_params=pltpu.CompilerParams(
            dimension_semantics=("parallel",),
            vmem_limit_bytes=_VMEM_LIMIT),
    )(x, scale, shift, w1, b1, w2, b2, w3, b3)


# ------------------------------- model glue --------------------------------- #

def _bn_scale_shift(stats, gamma, beta, count, eps=1e-5):
    """Reduce per-tile partial stats (t,2,C) to the per-channel BN affine (tiny, done in XLA)."""
    tot = jnp.sum(stats, axis=0)                                      # (2, C)
    mean = tot[0] / count
    var = jnp.maximum(tot[1] / count - mean * mean, 0.0)              # biased variance (PyTorch BN)
    scale = gamma * jax.lax.rsqrt(var + eps)
    shift = beta - mean * scale
    return scale.reshape(1, -1), shift.reshape(1, -1)


def init_params(key, image_channels=3, num_classes=10):
    # TODO(synk): BatchNorm running_mean/running_var buffer updates are not modeled; the forward
    # always uses batch statistics, matching PyTorch .train() forward numerics.
    params = {"blocks": [], "fcs": []}
    for idx, (cin, cout) in enumerate([(image_channels, 32), (32, 64), (64, 128)]):
        key, kw_, kb_ = jax.random.split(key, 3)
        w = jax.random.normal(kw_, (cout, cin, 3, 3), jnp.float32) * (1.0 / (cin * 9) ** 0.5)
        b = jax.random.normal(kb_, (cout,), jnp.float32) * 0.01
        wt = jnp.transpose(w, (2, 3, 1, 0))                           # (kh, kw, cin, cout)
        if idx == 0:
            taps = wt.reshape(1, 9 * cin, cout)                       # block 0: single K=27 matmul
        else:
            taps = wt.reshape(3, 3 * cin, cout)                       # kw merged into K
        # bf16 MXU operands where the conv-input width is a multiple of 16 (blocks 0,1);
        # block 2 (W=8) stays f32 to keep its flatten-friendly layout.
        tap_dtype = jnp.bfloat16 if idx < 2 else jnp.float32
        params["blocks"].append((taps.astype(tap_dtype), b.reshape(1, cout),
                                 jnp.ones((cout,), jnp.float32),      # BN gamma (PyTorch default)
                                 jnp.zeros((cout,), jnp.float32)))    # BN beta
    for idx, (fin, fout) in enumerate([(4 * 4 * 128, 128), (128, 64), (64, num_classes)]):
        key, kw_, kb_ = jax.random.split(key, 3)
        w = jax.random.normal(kw_, (fout, fin), jnp.float32) * (1.0 / fin ** 0.5)  # torch (out, in)
        b = jax.random.normal(kb_, (fout,), jnp.float32) * 0.01
        wt = w.T                                                      # (fin, fout): x @ wt == x @ W.T
        if idx == 0:
            # Activations are flattened in NHWC (h, w, c) order; permute fc1 rows once at init so
            # the result matches torch.flatten on an NCHW tensor.
            wt = wt.reshape(128, 4, 4, fout).transpose(1, 2, 0, 3).reshape(fin, fout)
        params["fcs"].append((wt.astype(jnp.bfloat16), b.reshape(1, fout)))
    return params


def model_forward(params, x, num_classes=10):
    """x: (B, 3, 32, 32) float32, NCHW (PyTorch convention)."""
    batch = x.shape[0]
    # Entry-only prep (tiny tensors): NCHW -> NHWC, pad, and im2col patches for block 0 (K=27),
    # which fixes the Cin=3 lane-utilization problem inside the kernel.
    xh = jnp.transpose(x, (0, 2, 3, 1))
    xp = jnp.pad(xh, ((0, 0), (1, 1), (1, 1), (0, 0)))
    hh, ww = xh.shape[1], xh.shape[2]
    patches = jnp.concatenate(
        [xp[:, kh:kh + hh, kw:kw + ww, :] for kh in range(3) for kw in range(3)],
        axis=-1).astype(jnp.bfloat16)                                 # (B, 32, 32, 27)

    caps = (8, 32, 64)                                                # batch-tile caps, v7x-safe
    cur = patches
    scale = jnp.ones((1, patches.shape[-1]), jnp.float32)             # identity affine for block 0
    shift = jnp.zeros((1, patches.shape[-1]), jnp.float32)
    for i, (taps, bias, gamma, beta) in enumerate(params["blocks"]):
        pooled, stats = conv_block(cur, scale, shift, taps, bias,
                                   tile_cap=caps[i], first_block=(i == 0))
        count = float(batch * pooled.shape[1] * pooled.shape[2])
        scale, shift = _bn_scale_shift(stats, gamma, beta, count)
        cur = pooled

    # Last block's BN affine is fused into the classifier kernel (feature order is (h, w, c)).
    feats = cur.reshape(batch, -1)                                    # (B, 2048)
    rep = cur.shape[1] * cur.shape[2]
    scale_flat = jnp.tile(scale, (1, rep))                            # (1, 2048)
    shift_flat = jnp.tile(shift, (1, rep))
    (w1, b1), (w2, b2), (w3, b3) = params["fcs"]
    out = mlp(feats, scale_flat, shift_flat, w1, b1, w2, b2, w3, b3)
    assert out.shape == (batch, num_classes)
    return out


if __name__ == "__main__":
    key = jax.random.PRNGKey(0)
    key, kx = jax.random.split(key)
    batch, image_channels, num_classes = 2, 3, 10
    x = jax.random.normal(kx, (batch, image_channels, 32, 32), jnp.float32)
    params = init_params(key, image_channels=image_channels, num_classes=num_classes)

    fwd = jax.jit(functools.partial(model_forward, num_classes=num_classes))
    out = fwd(params, x)
    jax.block_until_ready(out)
    assert out.shape == (batch, num_classes) and out.dtype == jnp.float32
    print("KERNEL_OK")
</pallas_src>

<mosaic_0001>
module attributes {stable_mosaic.version = 11 : i64} {
  func.func @_block_kernel(%arg0: i32, %arg1: memref<1x32x32x27xbf16, #tpu.memory_space<vmem>>, %arg2: memref<1x27xf32, #tpu.memory_space<vmem>>, %arg3: memref<1x27xf32, #tpu.memory_space<vmem>>, %arg4: memref<1x27x32xbf16, #tpu.memory_space<vmem>>, %arg5: memref<1x32xf32, #tpu.memory_space<vmem>>, %arg6: memref<1x16x16x32xf32, #tpu.memory_space<vmem>>, %arg7: memref<1x2x32xf32, #tpu.memory_space<vmem>>, %arg8: memref<1x16x32x32xf32, #tpu.memory_space<vmem>>) attributes {dimension_semantics = [#tpu.dimension_semantics<parallel>], iteration_bounds = array<i64: 2>, scalar_prefetch = 0 : i64, scratch_operands = 1 : i64, tpu.core_type = #tpu.core_type<tc>, window_params = [{transform_indices = @transform_0, window_bounds = array<i64: 1, 32, 32, 27>}, {pipeline_mode = #tpu.pipeline_mode<synchronous>, transform_indices = @transform_1, window_bounds = array<i64: 1, 27>}, {pipeline_mode = #tpu.pipeline_mode<synchronous>, transform_indices = @transform_2, window_bounds = array<i64: 1, 27>}, {pipeline_mode = #tpu.pipeline_mode<synchronous>, transform_indices = @transform_3, window_bounds = array<i64: 1, 27, 32>}, {pipeline_mode = #tpu.pipeline_mode<synchronous>, transform_indices = @transform_4, window_bounds = array<i64: 1, 32>}, {transform_indices = @transform_5, window_bounds = array<i64: 1, 16, 16, 32>}, {transform_indices = @transform_6, window_bounds = array<i64: 1, 2, 32>}]} {
    %c0 = arith.constant 0 : index
    %c0_0 = arith.constant 0 : index
    %c0_1 = arith.constant 0 : index
    %c0_2 = arith.constant 0 : index
    %0 = vector.load %arg1[%c0, %c0_0, %c0_1, %c0_2] : memref<1x32x32x27xbf16, #tpu.memory_space<vmem>>, vector<1x32x32x27xbf16>
    %1 = vector.shape_cast %0 : vector<1x32x32x27xbf16> to vector<1024x27xbf16>
    %c0_3 = arith.constant 0 : index
    %c0_4 = arith.constant 0 : index
    %c0_5 = arith.constant 0 : index
    %2 = vector.load %arg4[%c0_3, %c0_4, %c0_5] : memref<1x27x32xbf16, #tpu.memory_space<vmem>>, vector<1x27x32xbf16>
    %3 = vector.shape_cast %2 : vector<1x27x32xbf16> to vector<27x32xbf16>
    %cst = arith.constant dense<0.000000e+00> : vector<1024x32xf32>
    %4 = tpu.matmul %1, %3, %cst {dimension_numbers = #tpu.dot_dimension_numbers<[1], [0], [0], [1], [0, 0, 1, 1], [], []>} : vector<1024x27xbf16>, vector<27x32xbf16>, vector<1024x32xf32> -> vector<1024x32xf32>
    %c0_6 = arith.constant 0 : index
    %c0_7 = arith.constant 0 : index
    %5 = vector.load %arg5[%c0_6, %c0_7] : memref<1x32xf32, #tpu.memory_space<vmem>>, vector<1x32xf32>
    %6 = vector.broadcast %5 : vector<1x32xf32> to vector<1024x32xf32>
    %7 = arith.addf %4, %6 : vector<1024x32xf32>
    %cst_8 = arith.constant 0.000000e+00 : f32
    %8 = vector.broadcast %cst_8 : f32 to vector<1024x32xf32>
    %9 = arith.maximumf %7, %8 : vector<1024x32xf32>
    %10 = vector.shape_cast %9 : vector<1024x32xf32> to vector<1x16x2x32x32xf32>
    %11 = vector.extract_strided_slice %10 {offsets = [0, 0, 0, 0, 0], sizes = [1, 16, 1, 32, 32], strides = [1, 1, 1, 1, 1]} : vector<1x16x2x32x32xf32> to vector<1x16x1x32x32xf32>
    %12 = vector.shape_cast %11 : vector<1x16x1x32x32xf32> to vector<1x16x32x32xf32>
    %13 = vector.extract_strided_slice %10 {offsets = [0, 0, 1, 0, 0], sizes = [1, 16, 1, 32, 32], strides = [1, 1, 1, 1, 1]} : vector<1x16x2x32x32xf32> to vector<1x16x1x32x32xf32>
    %14 = vector.shape_cast %13 : vector<1x16x1x32x32xf32> to vector<1x16x32x32xf32>
    %15 = arith.maximumf %12, %14 : vector<1x16x32x32xf32>
    %c0_9 = arith.constant 0 : index
    %c0_10 = arith.constant 0 : index
    %c0_11 = arith.constant 0 : index
    %c0_12 = arith.constant 0 : index
    %16 = vector.load %arg8[%c0_9, %c0_10, %c0_11, %c0_12] : memref<1x16x32x32xf32, #tpu.memory_space<vmem>>, vector<1x16x32x32xf32>
    tpu.vector_store %arg8[%c0_9, %c0_10, %c0_11, %c0_12], %15 {strides = array<i32>} : memref<1x16x32x32xf32, #tpu.memory_space<vmem>>, vector<1x16x32x32xf32>,
    %c0_13 = arith.constant 0 : index
    %c0_14 = arith.constant 0 : index
    %c0_15 = arith.constant 0 : index
    %c0_16 = arith.constant 0 : index
    %17 = tpu.strided_load %arg8[%c0_13, %c0_14, %c0_15, %c0_16] {strides = array<i32: 1, 1, 2, 1>} : memref<1x16x32x32xf32, #tpu.memory_space<vmem>>, vector<1x16x16x32xf32>
    %c0_17 = arith.constant 0 : index
    %c0_18 = arith.constant 0 : index
    %c1 = arith.constant 1 : index
    %c0_19 = arith.constant 0 : index
    %18 = tpu.strided_load %arg8[%c0_17, %c0_18, %c1, %c0_19] {strides = array<i32: 1, 1, 2, 1>} : memref<1x16x32x32xf32, #tpu.memory_space<vmem>>, vector<1x16x16x32xf32>
    %19 = arith.maximumf %17, %18 : vector<1x16x16x32xf32>
    %c0_20 = arith.constant 0 : index
    %c0_21 = arith.constant 0 : index
    %c0_22 = arith.constant 0 : index
    %c0_23 = arith.constant 0 : index
    %20 = vector.load %arg6[%c0_20, %c0_21, %c0_22, %c0_23] : memref<1x16x16x32xf32, #tpu.memory_space<vmem>>, vector<1x16x16x32xf32>
    tpu.vector_store %arg6[%c0_20, %c0_21, %c0_22, %c0_23], %19 {strides = array<i32>} : memref<1x16x16x32xf32, #tpu.memory_space<vmem>>, vector<1x16x16x32xf32>,
    %cst_24 = arith.constant dense<0.000000e+00> : vector<16x16x32xf32>
    %21 = vector.multi_reduction <add>, %19, %cst_24 [0] : vector<1x16x16x32xf32> to vector<16x16x32xf32>
    %cst_25 = arith.constant dense<0.000000e+00> : vector<16x32xf32>
    %22 = vector.multi_reduction <add>, %21, %cst_25 [0] : vector<16x16x32xf32> to vector<16x32xf32>
    %cst_26 = arith.constant dense<0.000000e+00> : vector<32xf32>
    %23 = vector.multi_reduction <add>, %22, %cst_26 [0] : vector<16x32xf32> to vector<32xf32>
    %24 = vector.shape_cast %23 : vector<32xf32> to vector<1x32xf32>
    %25 = arith.mulf %19, %19 : vector<1x16x16x32xf32>
    %cst_27 = arith.constant dense<0.000000e+00> : vector<16x16x32xf32>
    %26 = vector.multi_reduction <add>, %25, %cst_27 [0] : vector<1x16x16x32xf32> to vector<16x16x32xf32>
    %cst_28 = arith.constant dense<0.000000e+00> : vector<16x32xf32>
    %27 = vector.multi_reduction <add>, %26, %cst_28 [0] : vector<16x16x32xf32> to vector<16x32xf32>
    %cst_29 = arith.constant dense<0.000000e+00> : vector<32xf32>
    %28 = vector.multi_reduction <add>, %27, %cst_29 [0] : vector<16x32xf32> to vector<32xf32>
    %29 = vector.shape_cast %28 : vector<32xf32> to vector<1x32xf32>
    %30 = tpu.concatenate %24, %29 in 0 : vector<1x32xf32>, vector<1x32xf32> -> vector<2x32xf32>
    %31 = vector.shape_cast %30 : vector<2x32xf32> to vector<1x2x32xf32>
    %c0_30 = arith.constant 0 : index
    %c0_31 = arith.constant 0 : index
    %c0_32 = arith.constant 0 : index
    %32 = vector.load %arg7[%c0_30, %c0_31, %c0_32] : memref<1x2x32xf32, #tpu.memory_space<vmem>>, vector<1x2x32xf32>
    tpu.vector_store %arg7[%c0_30, %c0_31, %c0_32], %31 {strides = array<i32>} : memref<1x2x32xf32, #tpu.memory_space<vmem>>, vector<1x2x32xf32>,
    return
  }
  func.func @transform_0(%arg0: i32) -> (i32, i32, i32, i32) {
    %c0_i32 = arith.constant 0 : i32
    %c0_i32_0 = arith.constant 0 : i32
    %c0_i32_1 = arith.constant 0 : i32
    %c0_i32_2 = arith.constant 0 : i32
    return %arg0, %c0_i32, %c0_i32_0, %c0_i32_1 : i32, i32, i32, i32
  }
  func.func @transform_1(%arg0: i32) -> (i32, i32) {
    %c0_i32 = arith.constant 0 : i32
    %c0_i32_0 = arith.constant 0 : i32
    %c0_i32_1 = arith.constant 0 : i32
    return %c0_i32, %c0_i32_0 : i32, i32
  }
  func.func @transform_2(%arg0: i32) -> (i32, i32) {
    %c0_i32 = arith.constant 0 : i32
    %c0_i32_0 = arith.constant 0 : i32
    %c0_i32_1 = arith.constant 0 : i32
    return %c0_i32, %c0_i32_0 : i32, i32
  }
  func.func @transform_3(%arg0: i32) -> (i32, i32, i32) {
    %c0_i32 = arith.constant 0 : i32
    %c0_i32_0 = arith.constant 0 : i32
    %c0_i32_1 = arith.constant 0 : i32
    %c0_i32_2 = arith.constant 0 : i32
    return %c0_i32, %c0_i32_0, %c0_i32_1 : i32, i32, i32
  }
  func.func @transform_4(%arg0: i32) -> (i32, i32) {
    %c0_i32 = arith.constant 0 : i32
    %c0_i32_0 = arith.constant 0 : i32
    %c0_i32_1 = arith.constant 0 : i32
    return %c0_i32, %c0_i32_0 : i32, i32
  }
  func.func @transform_5(%arg0: i32) -> (i32, i32, i32, i32) {
    %c0_i32 = arith.constant 0 : i32
    %c0_i32_0 = arith.constant 0 : i32
    %c0_i32_1 = arith.constant 0 : i32
    %c0_i32_2 = arith.constant 0 : i32
    return %arg0, %c0_i32, %c0_i32_0, %c0_i32_1 : i32, i32, i32, i32
  }
  func.func @transform_6(%arg0: i32) -> (i32, i32, i32) {
    %c0_i32 = arith.constant 0 : i32
    %c0_i32_0 = arith.constant 0 : i32
    %c0_i32_1 = arith.constant 0 : i32
    return %arg0, %c0_i32, %c0_i32_0 : i32, i32, i32
  }
}

module attributes {stable_mosaic.version = 11 : i64} {
  func.func @_block_kernel(%arg0: i32, %arg1: memref<1x16x16x32xf32, #tpu.memory_space<vmem>>, %arg2: memref<1x32xf32, #tpu.memory_space<vmem>>, %arg3: memref<1x32xf32, #tpu.memory_space<vmem>>, %arg4: memref<3x96x64xbf16, #tpu.memory_space<vmem>>, %arg5: memref<1x64xf32, #tpu.memory_space<vmem>>, %arg6: memref<1x8x8x64xf32, #tpu.memory_space<vmem>>, %arg7: memref<1x2x64xf32, #tpu.memory_space<vmem>>, %arg8: memref<1x8x16x64xf32, #tpu.memory_space<vmem>>) attributes {dimension_semantics = [#tpu.dimension_semantics<parallel>], iteration_bounds = array<i64: 2>, scalar_prefetch = 0 : i64, scratch_operands = 1 : i64, tpu.core_type = #tpu.core_type<tc>, window_params = [{transform_indices = @transform_0, window_bounds = array<i64: 1, 16, 16, 32>}, {pipeline_mode = #tpu.pipeline_mode<synchronous>, transform_indices = @transform_1, window_bounds = array<i64: 1, 32>}, {pipeline_mode = #tpu.pipeline_mode<synchronous>, transform_indices = @transform_2, window_bounds = array<i64: 1, 32>}, {pipeline_mode = #tpu.pipeline_mode<synchronous>, transform_indices = @transform_3, window_bounds = array<i64: 3, 96, 64>}, {pipeline_mode = #tpu.pipeline_mode<synchronous>, transform_indices = @transform_4, window_bounds = array<i64: 1, 64>}, {transform_indices = @transform_5, window_bounds = array<i64: 1, 8, 8, 64>}, {transform_indices = @transform_6, window_bounds = array<i64: 1, 2, 64>}]} {
    %c0 = arith.constant 0 : index
    %c0_0 = arith.constant 0 : index
    %c0_1 = arith.constant 0 : index
    %c0_2 = arith.constant 0 : index
    %0 = vector.load %arg1[%c0, %c0_0, %c0_1, %c0_2] : memref<1x16x16x32xf32, #tpu.memory_space<vmem>>, vector<1x16x16x32xf32>
    %c0_3 = arith.constant 0 : index
    %c0_4 = arith.constant 0 : index
    %1 = vector.load %arg2[%c0_3, %c0_4] : memref<1x32xf32, #tpu.memory_space<vmem>>, vector<1x32xf32>
    %2 = vector.shape_cast %1 : vector<1x32xf32> to vector<1x1x1x32xf32>
    %3 = vector.broadcast %2 : vector<1x1x1x32xf32> to vector<1x16x16x32xf32>
    %4 = arith.mulf %0, %3 : vector<1x16x16x32xf32>
    %c0_5 = arith.constant 0 : index
    %c0_6 = arith.constant 0 : index
    %5 = vector.load %arg3[%c0_5, %c0_6] : memref<1x32xf32, #tpu.memory_space<vmem>>, vector<1x32xf32>
    %6 = vector.shape_cast %5 : vector<1x32xf32> to vector<1x1x1x32xf32>
    %7 = vector.broadcast %6 : vector<1x1x1x32xf32> to vector<1x16x16x32xf32>
    %8 = arith.addf %4, %7 : vector<1x16x16x32xf32>
    %9 = arith.truncf %8 : vector<1x16x16x32xf32> to vector<1x16x16x32xbf16>
    %cst = arith.constant 0.000000e+00 : bf16
    %10 = vector.broadcast %cst : bf16 to vector<1x16x1x32xbf16>
    %11 = vector.extract_strided_slice %9 {offsets = [0, 0, 0, 0], sizes = [1, 16, 15, 32], strides = [1, 1, 1, 1]} : vector<1x16x16x32xbf16> to vector<1x16x15x32xbf16>
    %12 = tpu.concatenate %10, %11 in 2 : vector<1x16x1x32xbf16>, vector<1x16x15x32xbf16> -> vector<1x16x16x32xbf16>
    %13 = vector.extract_strided_slice %9 {offsets = [0, 0, 1, 0], sizes = [1, 16, 15, 32], strides = [1, 1, 1, 1]} : vector<1x16x16x32xbf16> to vector<1x16x15x32xbf16>
    %14 = tpu.concatenate %13, %10 in 2 : vector<1x16x15x32xbf16>, vector<1x16x1x32xbf16> -> vector<1x16x16x32xbf16>
    %15 = tpu.concatenate %12, %9, %14 in 3 : vector<1x16x16x32xbf16>, vector<1x16x16x32xbf16>, vector<1x16x16x32xbf16> -> vector<1x16x16x96xbf16>
    %cst_7 = arith.constant 0.000000e+00 : bf16
    %16 = vector.broadcast %cst_7 : bf16 to vector<1x1x16x96xbf16>
    %17 = tpu.concatenate %16, %15, %16 in 1 : vector<1x1x16x96xbf16>, vector<1x16x16x96xbf16>, vector<1x1x16x96xbf16> -> vector<1x18x16x96xbf16>
    %cst_8 = arith.constant 0.000000e+00 : f32
    %18 = vector.broadcast %cst_8 : f32 to vector<256x64xf32>
    %19 = vector.extract_strided_slice %17 {offsets = [0, 0, 0, 0], sizes = [1, 16, 16, 96], strides = [1, 1, 1, 1]} : vector<1x18x16x96xbf16> to vector<1x16x16x96xbf16>
    %20 = vector.shape_cast %19 : vector<1x16x16x96xbf16> to vector<256x96xbf16>
    %c0_9 = arith.constant 0 : index
    %c0_10 = arith.constant 0 : index
    %c0_11 = arith.constant 0 : index
    %21 = vector.load %arg4[%c0_9, %c0_10, %c0_11] : memref<3x96x64xbf16, #tpu.memory_space<vmem>>, vector<1x96x64xbf16>
    %22 = vector.shape_cast %21 : vector<1x96x64xbf16> to vector<96x64xbf16>
    %cst_12 = arith.constant dense<0.000000e+00> : vector<256x64xf32>
    %23 = tpu.matmul %20, %22, %cst_12 {dimension_numbers = #tpu.dot_dimension_numbers<[1], [0], [0], [1], [0, 0, 1, 1], [], []>} : vector<256x96xbf16>, vector<96x64xbf16>, vector<256x64xf32> -> vector<256x64xf32>
    %24 = arith.addf %18, %23 : vector<256x64xf32>
    %25 = vector.extract_strided_slice %17 {offsets = [0, 1, 0, 0], sizes = [1, 16, 16, 96], strides = [1, 1, 1, 1]} : vector<1x18x16x96xbf16> to vector<1x16x16x96xbf16>
    %26 = vector.shape_cast %25 : vector<1x16x16x96xbf16> to vector<256x96xbf16>
    %c1 = arith.constant 1 : index
    %c0_13 = arith.constant 0 : index
    %c0_14 = arith.constant 0 : index
    %27 = vector.load %arg4[%c1, %c0_13, %c0_14] : memref<3x96x64xbf16, #tpu.memory_space<vmem>>, vector<1x96x64xbf16>
    %28 = vector.shape_cast %27 : vector<1x96x64xbf16> to vector<96x64xbf16>
    %cst_15 = arith.constant dense<0.000000e+00> : vector<256x64xf32>
    %29 = tpu.matmul %26, %28, %cst_15 {dimension_numbers = #tpu.dot_dimension_numbers<[1], [0], [0], [1], [0, 0, 1, 1], [], []>} : vector<256x96xbf16>, vector<96x64xbf16>, vector<256x64xf32> -> vector<256x64xf32>
    %30 = arith.addf %24, %29 : vector<256x64xf32>
    %31 = vector.extract_strided_slice %17 {offsets = [0, 2, 0, 0], sizes = [1, 16, 16, 96], strides = [1, 1, 1, 1]} : vector<1x18x16x96xbf16> to vector<1x16x16x96xbf16>
    %32 = vector.shape_cast %31 : vector<1x16x16x96xbf16> to vector<256x96xbf16>
    %c2 = arith.constant 2 : index
    %c0_16 = arith.constant 0 : index
    %c0_17 = arith.constant 0 : index
    %33 = vector.load %arg4[%c2, %c0_16, %c0_17] : memref<3x96x64xbf16, #tpu.memory_space<vmem>>, vector<1x96x64xbf16>
    %34 = vector.shape_cast %33 : vector<1x96x64xbf16> to vector<96x64xbf16>
    %cst_18 = arith.constant dense<0.000000e+00> : vector<256x64xf32>
    %35 = tpu.matmul %32, %34, %cst_18 {dimension_numbers = #tpu.dot_dimension_numbers<[1], [0], [0], [1], [0, 0, 1, 1], [], []>} : vector<256x96xbf16>, vector<96x64xbf16>, vector<256x64xf32> -> vector<256x64xf32>
    %36 = arith.addf %30, %35 : vector<256x64xf32>
    %c0_19 = arith.constant 0 : index
    %c0_20 = arith.constant 0 : index
    %37 = vector.load %arg5[%c0_19, %c0_20] : memref<1x64xf32, #tpu.memory_space<vmem>>, vector<1x64xf32>
    %38 = vector.broadcast %37 : vector<1x64xf32> to vector<256x64xf32>
    %39 = arith.addf %36, %38 : vector<256x64xf32>
    %cst_21 = arith.constant 0.000000e+00 : f32
    %40 = vector.broadcast %cst_21 : f32 to vector<256x64xf32>
    %41 = arith.maximumf %39, %40 : vector<256x64xf32>
    %42 = vector.shape_cast %41 : vector<256x64xf32> to vector<1x8x2x16x64xf32>
    %43 = vector.extract_strided_slice %42 {offsets = [0, 0, 0, 0, 0], sizes = [1, 8, 1, 16, 64], strides = [1, 1, 1, 1, 1]} : vector<1x8x2x16x64xf32> to vector<1x8x1x16x64xf32>
    %44 = vector.shape_cast %43 : vector<1x8x1x16x64xf32> to vector<1x8x16x64xf32>
    %45 = vector.extract_strided_slice %42 {offsets = [0, 0, 1, 0, 0], sizes = [1, 8, 1, 16, 64], strides = [1, 1, 1, 1, 1]} : vector<1x8x2x16x64xf32> to vector<1x8x1x16x64xf32>
    %46 = vector.shape_cast %45 : vector<1x8x1x16x64xf32> to vector<1x8x16x64xf32>
    %47 = arith.maximumf %44, %46 : vector<1x8x16x64xf32>
    %c0_22 = arith.constant 0 : index
    %c0_23 = arith.constant 0 : index
    %c0_24 = arith.constant 0 : index
    %c0_25 = arith.constant 0 : index
    %48 = vector.load %arg8[%c0_22, %c0_23, %c0_24, %c0_25] : memref<1x8x16x64xf32, #tpu.memory_space<vmem>>, vector<1x8x16x64xf32>
    tpu.vector_store %arg8[%c0_22, %c0_23, %c0_24, %c0_25], %47 {strides = array<i32>} : memref<1x8x16x64xf32, #tpu.memory_space<vmem>>, vector<1x8x16x64xf32>,
    %c0_26 = arith.constant 0 : index
    %c0_27 = arith.constant 0 : index
    %c0_28 = arith.constant 0 : index
    %c0_29 = arith.constant 0 : index
    %49 = tpu.strided_load %arg8[%c0_26, %c0_27, %c0_28, %c0_29] {strides = array<i32: 1, 1, 2, 1>} : memref<1x8x16x64xf32, #tpu.memory_space<vmem>>, vector<1x8x8x64xf32>
    %c0_30 = arith.constant 0 : index
    %c0_31 = arith.constant 0 : index
    %c1_32 = arith.constant 1 : index
    %c0_33 = arith.constant 0 : index
    %50 = tpu.strided_load %arg8[%c0_30, %c0_31, %c1_32, %c0_33] {strides = array<i32: 1, 1, 2, 1>} : memref<1x8x16x64xf32, #tpu.memory_space<vmem>>, vector<1x8x8x64xf32>
    %51 = arith.maximumf %49, %50 : vector<1x8x8x64xf32>
    %c0_34 = arith.constant 0 : index
    %c0_35 = arith.constant 0 : index
    %c0_36 = arith.constant 0 : index
    %c0_37 = arith.constant 0 : index
    %52 = vector.load %arg6[%c0_34, %c0_35, %c0_36, %c0_37] : memref<1x8x8x64xf32, #tpu.memory_space<vmem>>, vector<1x8x8x64xf32>
    tpu.vector_store %arg6[%c0_34, %c0_35, %c0_36, %c0_37], %51 {strides = array<i32>} : memref<1x8x8x64xf32, #tpu.memory_space<vmem>>, vector<1x8x8x64xf32>,
    %cst_38 = arith.constant dense<0.000000e+00> : vector<8x8x64xf32>
    %53 = vector.multi_reduction <add>, %51, %cst_38 [0] : vector<1x8x8x64xf32> to vector<8x8x64xf32>
    %cst_39 = arith.constant dense<0.000000e+00> : vector<8x64xf32>
    %54 = vector.multi_reduction <add>, %53, %cst_39 [0] : vector<8x8x64xf32> to vector<8x64xf32>
    %cst_40 = arith.constant dense<0.000000e+00> : vector<64xf32>
    %55 = vector.multi_reduction <add>, %54, %cst_40 [0] : vector<8x64xf32> to vector<64xf32>
    %56 = vector.shape_cast %55 : vector<64xf32> to vector<1x64xf32>
    %57 = arith.mulf %51, %51 : vector<1x8x8x64xf32>
    %cst_41 = arith.constant dense<0.000000e+00> : vector<8x8x64xf32>
    %58 = vector.multi_reduction <add>, %57, %cst_41 [0] : vector<1x8x8x64xf32> to vector<8x8x64xf32>
    %cst_42 = arith.constant dense<0.000000e+00> : vector<8x64xf32>
    %59 = vector.multi_reduction <add>, %58, %cst_42 [0] : vector<8x8x64xf32> to vector<8x64xf32>
    %cst_43 = arith.constant dense<0.000000e+00> : vector<64xf32>
    %60 = vector.multi_reduction <add>, %59, %cst_43 [0] : vector<8x64xf32> to vector<64xf32>
    %61 = vector.shape_cast %60 : vector<64xf32> to vector<1x64xf32>
    %62 = tpu.concatenate %56, %61 in 0 : vector<1x64xf32>, vector<1x64xf32> -> vector<2x64xf32>
    %63 = vector.shape_cast %62 : vector<2x64xf32> to vector<1x2x64xf32>
    %c0_44 = arith.constant 0 : index
    %c0_45 = arith.constant 0 : index
    %c0_46 = arith.constant 0 : index
    %64 = vector.load %arg7[%c0_44, %c0_45, %c0_46] : memref<1x2x64xf32, #tpu.memory_space<vmem>>, vector<1x2x64xf32>
    tpu.vector_store %arg7[%c0_44, %c0_45, %c0_46], %63 {strides = array<i32>} : memref<1x2x64xf32, #tpu.memory_space<vmem>>, vector<1x2x64xf32>,
    return
  }
  func.func @transform_0(%arg0: i32) -> (i32, i32, i32, i32) {
    %c0_i32 = arith.constant 0 : i32
    %c0_i32_0 = arith.constant 0 : i32
    %c0_i32_1 = arith.constant 0 : i32
    %c0_i32_2 = arith.constant 0 : i32
    return %arg0, %c0_i32, %c0_i32_0, %c0_i32_1 : i32, i32, i32, i32
  }
  func.func @transform_1(%arg0: i32) -> (i32, i32) {
    %c0_i32 = arith.constant 0 : i32
    %c0_i32_0 = arith.constant 0 : i32
    %c0_i32_1 = arith.constant 0 : i32
    return %c0_i32, %c0_i32_0 : i32, i32
  }
  func.func @transform_2(%arg0: i32) -> (i32, i32) {
    %c0_i32 = arith.constant 0 : i32
    %c0_i32_0 = arith.constant 0 : i32
    %c0_i32_1 = arith.constant 0 : i32
    return %c0_i32, %c0_i32_0 : i32, i32
  }
  func.func @transform_3(%arg0: i32) -> (i32, i32, i32) {
    %c0_i32 = arith.constant 0 : i32
    %c0_i32_0 = arith.constant 0 : i32
    %c0_i32_1 = arith.constant 0 : i32
    %c0_i32_2 = arith.constant 0 : i32
    return %c0_i32, %c0_i32_0, %c0_i32_1 : i32, i32, i32
  }
  func.func @transform_4(%arg0: i32) -> (i32, i32) {
    %c0_i32 = arith.constant 0 : i32
    %c0_i32_0 = arith.constant 0 : i32
    %c0_i32_1 = arith.constant 0 : i32
    return %c0_i32, %c0_i32_0 : i32, i32
  }
  func.func @transform_5(%arg0: i32) -> (i32, i32, i32, i32) {
    %c0_i32 = arith.constant 0 : i32
    %c0_i32_0 = arith.constant 0 : i32
    %c0_i32_1 = arith.constant 0 : i32
    %c0_i32_2 = arith.constant 0 : i32
    return %arg0, %c0_i32, %c0_i32_0, %c0_i32_1 : i32, i32, i32, i32
  }
  func.func @transform_6(%arg0: i32) -> (i32, i32, i32) {
    %c0_i32 = arith.constant 0 : i32
    %c0_i32_0 = arith.constant 0 : i32
    %c0_i32_1 = arith.constant 0 : i32
    return %arg0, %c0_i32, %c0_i32_0 : i32, i32, i32
  }
}

module attributes {stable_mosaic.version = 11 : i64} {
  func.func @_block_kernel(%arg0: i32, %arg1: memref<1x8x8x64xf32, #tpu.memory_space<vmem>>, %arg2: memref<1x64xf32, #tpu.memory_space<vmem>>, %arg3: memref<1x64xf32, #tpu.memory_space<vmem>>, %arg4: memref<3x192x128xf32, #tpu.memory_space<vmem>>, %arg5: memref<1x128xf32, #tpu.memory_space<vmem>>, %arg6: memref<1x4x4x128xf32, #tpu.memory_space<vmem>>, %arg7: memref<1x2x128xf32, #tpu.memory_space<vmem>>, %arg8: memref<1x4x8x128xf32, #tpu.memory_space<vmem>>) attributes {dimension_semantics = [#tpu.dimension_semantics<parallel>], iteration_bounds = array<i64: 2>, scalar_prefetch = 0 : i64, scratch_operands = 1 : i64, tpu.core_type = #tpu.core_type<tc>, window_params = [{transform_indices = @transform_0, window_bounds = array<i64: 1, 8, 8, 64>}, {pipeline_mode = #tpu.pipeline_mode<synchronous>, transform_indices = @transform_1, window_bounds = array<i64: 1, 64>}, {pipeline_mode = #tpu.pipeline_mode<synchronous>, transform_indices = @transform_2, window_bounds = array<i64: 1, 64>}, {pipeline_mode = #tpu.pipeline_mode<synchronous>, transform_indices = @transform_3, window_bounds = array<i64: 3, 192, 128>}, {pipeline_mode = #tpu.pipeline_mode<synchronous>, transform_indices = @transform_4, window_bounds = array<i64: 1, 128>}, {transform_indices = @transform_5, window_bounds = array<i64: 1, 4, 4, 128>}, {transform_indices = @transform_6, window_bounds = array<i64: 1, 2, 128>}]} {
    %c0 = arith.constant 0 : index
    %c0_0 = arith.constant 0 : index
    %c0_1 = arith.constant 0 : index
    %c0_2 = arith.constant 0 : index
    %0 = vector.load %arg1[%c0, %c0_0, %c0_1, %c0_2] : memref<1x8x8x64xf32, #tpu.memory_space<vmem>>, vector<1x8x8x64xf32>
    %c0_3 = arith.constant 0 : index
    %c0_4 = arith.constant 0 : index
    %1 = vector.load %arg2[%c0_3, %c0_4] : memref<1x64xf32, #tpu.memory_space<vmem>>, vector<1x64xf32>
    %2 = vector.shape_cast %1 : vector<1x64xf32> to vector<1x1x1x64xf32>
    %3 = vector.broadcast %2 : vector<1x1x1x64xf32> to vector<1x8x8x64xf32>
    %4 = arith.mulf %0, %3 : vector<1x8x8x64xf32>
    %c0_5 = arith.constant 0 : index
    %c0_6 = arith.constant 0 : index
    %5 = vector.load %arg3[%c0_5, %c0_6] : memref<1x64xf32, #tpu.memory_space<vmem>>, vector<1x64xf32>
    %6 = vector.shape_cast %5 : vector<1x64xf32> to vector<1x1x1x64xf32>
    %7 = vector.broadcast %6 : vector<1x1x1x64xf32> to vector<1x8x8x64xf32>
    %8 = arith.addf %4, %7 : vector<1x8x8x64xf32>
    %cst = arith.constant 0.000000e+00 : f32
    %9 = vector.broadcast %cst : f32 to vector<1x8x1x64xf32>
    %10 = vector.extract_strided_slice %8 {offsets = [0, 0, 0, 0], sizes = [1, 8, 7, 64], strides = [1, 1, 1, 1]} : vector<1x8x8x64xf32> to vector<1x8x7x64xf32>
    %11 = tpu.concatenate %9, %10 in 2 : vector<1x8x1x64xf32>, vector<1x8x7x64xf32> -> vector<1x8x8x64xf32>
    %12 = vector.extract_strided_slice %8 {offsets = [0, 0, 1, 0], sizes = [1, 8, 7, 64], strides = [1, 1, 1, 1]} : vector<1x8x8x64xf32> to vector<1x8x7x64xf32>
    %13 = tpu.concatenate %12, %9 in 2 : vector<1x8x7x64xf32>, vector<1x8x1x64xf32> -> vector<1x8x8x64xf32>
    %14 = tpu.concatenate %11, %8, %13 in 3 : vector<1x8x8x64xf32>, vector<1x8x8x64xf32>, vector<1x8x8x64xf32> -> vector<1x8x8x192xf32>
    %cst_7 = arith.constant 0.000000e+00 : f32
    %15 = vector.broadcast %cst_7 : f32 to vector<1x1x8x192xf32>
    %16 = tpu.concatenate %15, %14, %15 in 1 : vector<1x1x8x192xf32>, vector<1x8x8x192xf32>, vector<1x1x8x192xf32> -> vector<1x10x8x192xf32>
    %cst_8 = arith.constant 0.000000e+00 : f32
    %17 = vector.broadcast %cst_8 : f32 to vector<64x128xf32>
    %18 = vector.extract_strided_slice %16 {offsets = [0, 0, 0, 0], sizes = [1, 8, 8, 192], strides = [1, 1, 1, 1]} : vector<1x10x8x192xf32> to vector<1x8x8x192xf32>
    %19 = vector.shape_cast %18 : vector<1x8x8x192xf32> to vector<64x192xf32>
    %c0_9 = arith.constant 0 : index
    %c0_10 = arith.constant 0 : index
    %c0_11 = arith.constant 0 : index
    %20 = vector.load %arg4[%c0_9, %c0_10, %c0_11] : memref<3x192x128xf32, #tpu.memory_space<vmem>>, vector<1x192x128xf32>
    %21 = vector.shape_cast %20 : vector<1x192x128xf32> to vector<192x128xf32>
    %cst_12 = arith.constant dense<0.000000e+00> : vector<64x128xf32>
    %22 = tpu.matmul %19, %21, %cst_12 {dimension_numbers = #tpu.dot_dimension_numbers<[1], [0], [0], [1], [0, 0, 1, 1], [], []>} : vector<64x192xf32>, vector<192x128xf32>, vector<64x128xf32> -> vector<64x128xf32>
    %23 = arith.addf %17, %22 : vector<64x128xf32>
    %24 = vector.extract_strided_slice %16 {offsets = [0, 1, 0, 0], sizes = [1, 8, 8, 192], strides = [1, 1, 1, 1]} : vector<1x10x8x192xf32> to vector<1x8x8x192xf32>
    %25 = vector.shape_cast %24 : vector<1x8x8x192xf32> to vector<64x192xf32>
    %c1 = arith.constant 1 : index
    %c0_13 = arith.constant 0 : index
    %c0_14 = arith.constant 0 : index
    %26 = vector.load %arg4[%c1, %c0_13, %c0_14] : memref<3x192x128xf32, #tpu.memory_space<vmem>>, vector<1x192x128xf32>
    %27 = vector.shape_cast %26 : vector<1x192x128xf32> to vector<192x128xf32>
    %cst_15 = arith.constant dense<0.000000e+00> : vector<64x128xf32>
    %28 = tpu.matmul %25, %27, %cst_15 {dimension_numbers = #tpu.dot_dimension_numbers<[1], [0], [0], [1], [0, 0, 1, 1], [], []>} : vector<64x192xf32>, vector<192x128xf32>, vector<64x128xf32> -> vector<64x128xf32>
    %29 = arith.addf %23, %28 : vector<64x128xf32>
    %30 = vector.extract_strided_slice %16 {offsets = [0, 2, 0, 0], sizes = [1, 8, 8, 192], strides = [1, 1, 1, 1]} : vector<1x10x8x192xf32> to vector<1x8x8x192xf32>
    %31 = vector.shape_cast %30 : vector<1x8x8x192xf32> to vector<64x192xf32>
    %c2 = arith.constant 2 : index
    %c0_16 = arith.constant 0 : index
    %c0_17 = arith.constant 0 : index
    %32 = vector.load %arg4[%c2, %c0_16, %c0_17] : memref<3x192x128xf32, #tpu.memory_space<vmem>>, vector<1x192x128xf32>
    %33 = vector.shape_cast %32 : vector<1x192x128xf32> to vector<192x128xf32>
    %cst_18 = arith.constant dense<0.000000e+00> : vector<64x128xf32>
    %34 = tpu.matmul %31, %33, %cst_18 {dimension_numbers = #tpu.dot_dimension_numbers<[1], [0], [0], [1], [0, 0, 1, 1], [], []>} : vector<64x192xf32>, vector<192x128xf32>, vector<64x128xf32> -> vector<64x128xf32>
    %35 = arith.addf %29, %34 : vector<64x128xf32>
    %c0_19 = arith.constant 0 : index
    %c0_20 = arith.constant 0 : index
    %36 = vector.load %arg5[%c0_19, %c0_20] : memref<1x128xf32, #tpu.memory_space<vmem>>, vector<1x128xf32>
    %37 = vector.broadcast %36 : vector<1x128xf32> to vector<64x128xf32>
    %38 = arith.addf %35, %37 : vector<64x128xf32>
    %cst_21 = arith.constant 0.000000e+00 : f32
    %39 = vector.broadcast %cst_21 : f32 to vector<64x128xf32>
    %40 = arith.maximumf %38, %39 : vector<64x128xf32>
    %41 = vector.shape_cast %40 : vector<64x128xf32> to vector<1x4x2x8x128xf32>
    %42 = vector.extract_strided_slice %41 {offsets = [0, 0, 0, 0, 0], sizes = [1, 4, 1, 8, 128], strides = [1, 1, 1, 1, 1]} : vector<1x4x2x8x128xf32> to vector<1x4x1x8x128xf32>
    %43 = vector.shape_cast %42 : vector<1x4x1x8x128xf32> to vector<1x4x8x128xf32>
    %44 = vector.extract_strided_slice %41 {offsets = [0, 0, 1, 0, 0], sizes = [1, 4, 1, 8, 128], strides = [1, 1, 1, 1, 1]} : vector<1x4x2x8x128xf32> to vector<1x4x1x8x128xf32>
    %45 = vector.shape_cast %44 : vector<1x4x1x8x128xf32> to vector<1x4x8x128xf32>
    %46 = arith.maximumf %43, %45 : vector<1x4x8x128xf32>
    %c0_22 = arith.constant 0 : index
    %c0_23 = arith.constant 0 : index
    %c0_24 = arith.constant 0 : index
    %c0_25 = arith.constant 0 : index
    %47 = vector.load %arg8[%c0_22, %c0_23, %c0_24, %c0_25] : memref<1x4x8x128xf32, #tpu.memory_space<vmem>>, vector<1x4x8x128xf32>
    tpu.vector_store %arg8[%c0_22, %c0_23, %c0_24, %c0_25], %46 {strides = array<i32>} : memref<1x4x8x128xf32, #tpu.memory_space<vmem>>, vector<1x4x8x128xf32>,
    %c0_26 = arith.constant 0 : index
    %c0_27 = arith.constant 0 : index
    %c0_28 = arith.constant 0 : index
    %c0_29 = arith.constant 0 : index
    %48 = tpu.strided_load %arg8[%c0_26, %c0_27, %c0_28, %c0_29] {strides = array<i32: 1, 1, 2, 1>} : memref<1x4x8x128xf32, #tpu.memory_space<vmem>>, vector<1x4x4x128xf32>
    %c0_30 = arith.constant 0 : index
    %c0_31 = arith.constant 0 : index
    %c1_32 = arith.constant 1 : index
    %c0_33 = arith.constant 0 : index
    %49 = tpu.strided_load %arg8[%c0_30, %c0_31, %c1_32, %c0_33] {strides = array<i32: 1, 1, 2, 1>} : memref<1x4x8x128xf32, #tpu.memory_space<vmem>>, vector<1x4x4x128xf32>
    %50 = arith.maximumf %48, %49 : vector<1x4x4x128xf32>
    %c0_34 = arith.constant 0 : index
    %c0_35 = arith.constant 0 : index
    %c0_36 = arith.constant 0 : index
    %c0_37 = arith.constant 0 : index
    %51 = vector.load %arg6[%c0_34, %c0_35, %c0_36, %c0_37] : memref<1x4x4x128xf32, #tpu.memory_space<vmem>>, vector<1x4x4x128xf32>
    tpu.vector_store %arg6[%c0_34, %c0_35, %c0_36, %c0_37], %50 {strides = array<i32>} : memref<1x4x4x128xf32, #tpu.memory_space<vmem>>, vector<1x4x4x128xf32>,
    %cst_38 = arith.constant dense<0.000000e+00> : vector<4x4x128xf32>
    %52 = vector.multi_reduction <add>, %50, %cst_38 [0] : vector<1x4x4x128xf32> to vector<4x4x128xf32>
    %cst_39 = arith.constant dense<0.000000e+00> : vector<4x128xf32>
    %53 = vector.multi_reduction <add>, %52, %cst_39 [0] : vector<4x4x128xf32> to vector<4x128xf32>
    %cst_40 = arith.constant dense<0.000000e+00> : vector<128xf32>
    %54 = vector.multi_reduction <add>, %53, %cst_40 [0] : vector<4x128xf32> to vector<128xf32>
    %55 = vector.shape_cast %54 : vector<128xf32> to vector<1x128xf32>
    %56 = arith.mulf %50, %50 : vector<1x4x4x128xf32>
    %cst_41 = arith.constant dense<0.000000e+00> : vector<4x4x128xf32>
    %57 = vector.multi_reduction <add>, %56, %cst_41 [0] : vector<1x4x4x128xf32> to vector<4x4x128xf32>
    %cst_42 = arith.constant dense<0.000000e+00> : vector<4x128xf32>
    %58 = vector.multi_reduction <add>, %57, %cst_42 [0] : vector<4x4x128xf32> to vector<4x128xf32>
    %cst_43 = arith.constant dense<0.000000e+00> : vector<128xf32>
    %59 = vector.multi_reduction <add>, %58, %cst_43 [0] : vector<4x128xf32> to vector<128xf32>
    %60 = vector.shape_cast %59 : vector<128xf32> to vector<1x128xf32>
    %61 = tpu.concatenate %55, %60 in 0 : vector<1x128xf32>, vector<1x128xf32> -> vector<2x128xf32>
    %62 = vector.shape_cast %61 : vector<2x128xf32> to vector<1x2x128xf32>
    %c0_44 = arith.constant 0 : index
    %c0_45 = arith.constant 0 : index
    %c0_46 = arith.constant 0 : index
    %63 = vector.load %arg7[%c0_44, %c0_45, %c0_46] : memref<1x2x128xf32, #tpu.memory_space<vmem>>, vector<1x2x128xf32>
    tpu.vector_store %arg7[%c0_44, %c0_45, %c0_46], %62 {strides = array<i32>} : memref<1x2x128xf32, #tpu.memory_space<vmem>>, vector<1x2x128xf32>,
    return
  }
  func.func @transform_0(%arg0: i32) -> (i32, i32, i32, i32) {
    %c0_i32 = arith.constant 0 : i32
    %c0_i32_0 = arith.constant 0 : i32
    %c0_i32_1 = arith.constant 0 : i32
    %c0_i32_2 = arith.constant 0 : i32
    return %arg0, %c0_i32, %c0_i32_0, %c0_i32_1 : i32, i32, i32, i32
  }
  func.func @transform_1(%arg0: i32) -> (i32, i32) {
    %c0_i32 = arith.constant 0 : i32
    %c0_i32_0 = arith.constant 0 : i32
    %c0_i32_1 = arith.constant 0 : i32
    return %c0_i32, %c0_i32_0 : i32, i32
  }
  func.func @transform_2(%arg0: i32) -> (i32, i32) {
    %c0_i32 = arith.constant 0 : i32
    %c0_i32_0 = arith.constant 0 : i32
    %c0_i32_1 = arith.constant 0 : i32
    return %c0_i32, %c0_i32_0 : i32, i32
  }
  func.func @transform_3(%arg0: i32) -> (i32, i32, i32) {
    %c0_i32 = arith.constant 0 : i32
    %c0_i32_0 = arith.constant 0 : i32
    %c0_i32_1 = arith.constant 0 : i32
    %c0_i32_2 = arith.constant 0 : i32
    return %c0_i32, %c0_i32_0, %c0_i32_1 : i32, i32, i32
  }
  func.func @transform_4(%arg0: i32) -> (i32, i32) {
    %c0_i32 = arith.constant 0 : i32
    %c0_i32_0 = arith.constant 0 : i32
    %c0_i32_1 = arith.constant 0 : i32
    return %c0_i32, %c0_i32_0 : i32, i32
  }
  func.func @transform_5(%arg0: i32) -> (i32, i32, i32, i32) {
    %c0_i32 = arith.constant 0 : i32
    %c0_i32_0 = arith.constant 0 : i32
    %c0_i32_1 = arith.constant 0 : i32
    %c0_i32_2 = arith.constant 0 : i32
    return %arg0, %c0_i32, %c0_i32_0, %c0_i32_1 : i32, i32, i32, i32
  }
  func.func @transform_6(%arg0: i32) -> (i32, i32, i32) {
    %c0_i32 = arith.constant 0 : i32
    %c0_i32_0 = arith.constant 0 : i32
    %c0_i32_1 = arith.constant 0 : i32
    return %arg0, %c0_i32, %c0_i32_0 : i32, i32, i32
  }
}

module attributes {stable_mosaic.version = 11 : i64} {
  func.func @_mlp_kernel(%arg0: i32, %arg1: memref<2x2048xf32, #tpu.memory_space<vmem>>, %arg2: memref<1x2048xf32, #tpu.memory_space<vmem>>, %arg3: memref<1x2048xf32, #tpu.memory_space<vmem>>, %arg4: memref<2048x128xbf16, #tpu.memory_space<vmem>>, %arg5: memref<1x128xf32, #tpu.memory_space<vmem>>, %arg6: memref<128x64xbf16, #tpu.memory_space<vmem>>, %arg7: memref<1x64xf32, #tpu.memory_space<vmem>>, %arg8: memref<64x10xbf16, #tpu.memory_space<vmem>>, %arg9: memref<1x10xf32, #tpu.memory_space<vmem>>, %arg10: memref<2x10xf32, #tpu.memory_space<vmem>>) attributes {dimension_semantics = [#tpu.dimension_semantics<parallel>], iteration_bounds = array<i64: 1>, scalar_prefetch = 0 : i64, scratch_operands = 0 : i64, tpu.core_type = #tpu.core_type<tc>, window_params = [{transform_indices = @transform_0, window_bounds = array<i64: 2, 2048>}, {pipeline_mode = #tpu.pipeline_mode<synchronous>, transform_indices = @transform_1, window_bounds = array<i64: 1, 2048>}, {pipeline_mode = #tpu.pipeline_mode<synchronous>, transform_indices = @transform_2, window_bounds = array<i64: 1, 2048>}, {pipeline_mode = #tpu.pipeline_mode<synchronous>, transform_indices = @transform_3, window_bounds = array<i64: 2048, 128>}, {pipeline_mode = #tpu.pipeline_mode<synchronous>, transform_indices = @transform_4, window_bounds = array<i64: 1, 128>}, {pipeline_mode = #tpu.pipeline_mode<synchronous>, transform_indices = @transform_5, window_bounds = array<i64: 128, 64>}, {pipeline_mode = #tpu.pipeline_mode<synchronous>, transform_indices = @transform_6, window_bounds = array<i64: 1, 64>}, {pipeline_mode = #tpu.pipeline_mode<synchronous>, transform_indices = @transform_7, window_bounds = array<i64: 64, 10>}, {pipeline_mode = #tpu.pipeline_mode<synchronous>, transform_indices = @transform_8, window_bounds = array<i64: 1, 10>}, {transform_indices = @transform_9, window_bounds = array<i64: 2, 10>}]} {
    %c0 = arith.constant 0 : index
    %c0_0 = arith.constant 0 : index
    %0 = vector.load %arg1[%c0, %c0_0] : memref<2x2048xf32, #tpu.memory_space<vmem>>, vector<2x2048xf32>
    %c0_1 = arith.constant 0 : index
    %c0_2 = arith.constant 0 : index
    %1 = vector.load %arg2[%c0_1, %c0_2] : memref<1x2048xf32, #tpu.memory_space<vmem>>, vector<1x2048xf32>
    %2 = vector.broadcast %1 : vector<1x2048xf32> to vector<2x2048xf32>
    %3 = arith.mulf %0, %2 : vector<2x2048xf32>
    %c0_3 = arith.constant 0 : index
    %c0_4 = arith.constant 0 : index
    %4 = vector.load %arg3[%c0_3, %c0_4] : memref<1x2048xf32, #tpu.memory_space<vmem>>, vector<1x2048xf32>
    %5 = vector.broadcast %4 : vector<1x2048xf32> to vector<2x2048xf32>
    %6 = arith.addf %3, %5 : vector<2x2048xf32>
    %7 = arith.truncf %6 : vector<2x2048xf32> to vector<2x2048xbf16>
    %c0_5 = arith.constant 0 : index
    %c0_6 = arith.constant 0 : index
    %8 = vector.load %arg4[%c0_5, %c0_6] : memref<2048x128xbf16, #tpu.memory_space<vmem>>, vector<2048x128xbf16>
    %cst = arith.constant dense<0.000000e+00> : vector<2x128xf32>
    %9 = tpu.matmul %7, %8, %cst {dimension_numbers = #tpu.dot_dimension_numbers<[1], [0], [0], [1], [0, 0, 1, 1], [], []>} : vector<2x2048xbf16>, vector<2048x128xbf16>, vector<2x128xf32> -> vector<2x128xf32>
    %c0_7 = arith.constant 0 : index
    %c0_8 = arith.constant 0 : index
    %10 = vector.load %arg5[%c0_7, %c0_8] : memref<1x128xf32, #tpu.memory_space<vmem>>, vector<1x128xf32>
    %11 = vector.broadcast %10 : vector<1x128xf32> to vector<2x128xf32>
    %12 = arith.addf %9, %11 : vector<2x128xf32>
    %cst_9 = arith.constant 0.000000e+00 : f32
    %13 = vector.broadcast %cst_9 : f32 to vector<2x128xf32>
    %14 = arith.maximumf %12, %13 : vector<2x128xf32>
    %15 = arith.truncf %14 : vector<2x128xf32> to vector<2x128xbf16>
    %c0_10 = arith.constant 0 : index
    %c0_11 = arith.constant 0 : index
    %16 = vector.load %arg6[%c0_10, %c0_11] : memref<128x64xbf16, #tpu.memory_space<vmem>>, vector<128x64xbf16>
    %cst_12 = arith.constant dense<0.000000e+00> : vector<2x64xf32>
    %17 = tpu.matmul %15, %16, %cst_12 {dimension_numbers = #tpu.dot_dimension_numbers<[1], [0], [0], [1], [0, 0, 1, 1], [], []>} : vector<2x128xbf16>, vector<128x64xbf16>, vector<2x64xf32> -> vector<2x64xf32>
    %c0_13 = arith.constant 0 : index
    %c0_14 = arith.constant 0 : index
    %18 = vector.load %arg7[%c0_13, %c0_14] : memref<1x64xf32, #tpu.memory_space<vmem>>, vector<1x64xf32>
    %19 = vector.broadcast %18 : vector<1x64xf32> to vector<2x64xf32>
    %20 = arith.addf %17, %19 : vector<2x64xf32>
    %cst_15 = arith.constant 0.000000e+00 : f32
    %21 = vector.broadcast %cst_15 : f32 to vector<2x64xf32>
    %22 = arith.maximumf %20, %21 : vector<2x64xf32>
    %23 = arith.truncf %22 : vector<2x64xf32> to vector<2x64xbf16>
    %c0_16 = arith.constant 0 : index
    %c0_17 = arith.constant 0 : index
    %24 = vector.load %arg8[%c0_16, %c0_17] : memref<64x10xbf16, #tpu.memory_space<vmem>>, vector<64x10xbf16>
    %cst_18 = arith.constant dense<0.000000e+00> : vector<2x10xf32>
    %25 = tpu.matmul %23, %24, %cst_18 {dimension_numbers = #tpu.dot_dimension_numbers<[1], [0], [0], [1], [0, 0, 1, 1], [], []>} : vector<2x64xbf16>, vector<64x10xbf16>, vector<2x10xf32> -> vector<2x10xf32>
    %c0_19 = arith.constant 0 : index
    %c0_20 = arith.constant 0 : index
    %26 = vector.load %arg9[%c0_19, %c0_20] : memref<1x10xf32, #tpu.memory_space<vmem>>, vector<1x10xf32>
    %27 = vector.broadcast %26 : vector<1x10xf32> to vector<2x10xf32>
    %28 = arith.addf %25, %27 : vector<2x10xf32>
    %c0_21 = arith.constant 0 : index
    %c0_22 = arith.constant 0 : index
    %29 = vector.load %arg10[%c0_21, %c0_22] : memref<2x10xf32, #tpu.memory_space<vmem>>, vector<2x10xf32>
    tpu.vector_store %arg10[%c0_21, %c0_22], %28 {strides = array<i32>} : memref<2x10xf32, #tpu.memory_space<vmem>>, vector<2x10xf32>,
    return
  }
  func.func @transform_0(%arg0: i32) -> (i32, i32) {
    %c0_i32 = arith.constant 0 : i32
    %c0_i32_0 = arith.constant 0 : i32
    return %arg0, %c0_i32 : i32, i32
  }
  func.func @transform_1(%arg0: i32) -> (i32, i32) {
    %c0_i32 = arith.constant 0 : i32
    %c0_i32_0 = arith.constant 0 : i32
    %c0_i32_1 = arith.constant 0 : i32
    return %c0_i32, %c0_i32_0 : i32, i32
  }
  func.func @transform_2(%arg0: i32) -> (i32, i32) {
    %c0_i32 = arith.constant 0 : i32
    %c0_i32_0 = arith.constant 0 : i32
    %c0_i32_1 = arith.constant 0 : i32
    return %c0_i32, %c0_i32_0 : i32, i32
  }
  func.func @transform_3(%arg0: i32) -> (i32, i32) {
    %c0_i32 = arith.constant 0 : i32
    %c0_i32_0 = arith.constant 0 : i32
    %c0_i32_1 = arith.constant 0 : i32
    return %c0_i32, %c0_i32_0 : i32, i32
  }
  func.func @transform_4(%arg0: i32) -> (i32, i32) {
    %c0_i32 = arith.constant 0 : i32
    %c0_i32_0 = arith.constant 0 : i32
    %c0_i32_1 = arith.constant 0 : i32
    return %c0_i32, %c0_i32_0 : i32, i32
  }
  func.func @transform_5(%arg0: i32) -> (i32, i32) {
    %c0_i32 = arith.constant 0 : i32
    %c0_i32_0 = arith.constant 0 : i32
    %c0_i32_1 = arith.constant 0 : i32
    return %c0_i32, %c0_i32_0 : i32, i32
  }
  func.func @transform_6(%arg0: i32) -> (i32, i32) {
    %c0_i32 = arith.constant 0 : i32
    %c0_i32_0 = arith.constant 0 : i32
    %c0_i32_1 = arith.constant 0 : i32
    return %c0_i32, %c0_i32_0 : i32, i32
  }
  func.func @transform_7(%arg0: i32) -> (i32, i32) {
    %c0_i32 = arith.constant 0 : i32
    %c0_i32_0 = arith.constant 0 : i32
    %c0_i32_1 = arith.constant 0 : i32
    return %c0_i32, %c0_i32_0 : i32, i32
  }
  func.func @transform_8(%arg0: i32) -> (i32, i32) {
    %c0_i32 = arith.constant 0 : i32
    %c0_i32_0 = arith.constant 0 : i32
    %c0_i32_1 = arith.constant 0 : i32
    return %c0_i32, %c0_i32_0 : i32, i32
  }
  func.func @transform_9(%arg0: i32) -> (i32, i32) {
    %c0_i32 = arith.constant 0 : i32
    %c0_i32_0 = arith.constant 0 : i32
    return %arg0, %c0_i32 : i32, i32
  }
}

</mosaic_0001>

<llo_original>
// kernel: model_forward.5
$region0: #{model_forward.5}
  #allocation0 [shape = 'u32[]', space=smem, size = 0x4, offset = 0x4, fixed_abs, tag = 'smem constant byte address 0x4 - core index']
  #allocation1 [shape = 'u32[144,128]{1,0:T(1,128)}', space=vmem, size = 0x12000, scoped, tag = 'internal scratch']
  #allocation2 [shape = 'f32[1,8,16,64]{3,2,1,0:T(8,128)}', space=vmem, size = 0x10000, scoped, tag = 'scratch operand']
  %s0 = inlined_call_operand.vmem [shape: f32[2,16,16,32], index: 0, kind: input, shape index: {}]
  %s1 = inlined_call_operand.vmem [shape: f32[1,32], index: 1, kind: input, shape index: {}]
  %s2 = inlined_call_operand.vmem [shape: f32[1,32], index: 2, kind: input, shape index: {}]
  %s3 = inlined_call_operand.vmem [shape: bf16[3,96,64], index: 3, kind: input, shape index: {}]
  %s4 = inlined_call_operand.vmem [shape: f32[1,64], index: 4, kind: input, shape index: {}]
  %s5 = inlined_call_operand.vmem [shape: f32[2,8,8,64], index: 5, kind: output, shape index: {0}]
  %s6 = inlined_call_operand.vmem [shape: f32[2,2,64], index: 6, kind: output, shape index: {1}]
  %7 = xla_tuple %s5, %s6
  %s8 = sld [smem:[#allocation0]]
  $region61: #{model_forward.5} parent=0
    _
  %s10 = ssub.s32 1, %s8
  %s11 = scalar_select 0, %s10, %s8
  loop: start=0, step=1, limit=4
  $region2: #{model_forward.5} parent=0 // loop_pre_header
    _
  $region3: #{model_forward.5} parent=0 // loop_header
    %s13 = sphi 0, %s17
    %p14 = scmp.ge.s32.totalorder %s13, 4
    %s23 = sphi 0, %s25
    %s26 = sphi 0, %s23
    %s27 = sphi 0, %s26
    %s43 = sphi 0, %s27
    %s47 = sphi 0, %s47
    %s49 = sphi 0, %s47
    %s50 = sphi 0, %s49
    %s64 = sphi 0, %s50
    %s68 = sphi 0, %s68
    %s70 = sphi 0, %s68
    %s71 = sphi 0, %s70
    %s85 = sphi 0, %s71
    %s89 = sphi 0, %s89
    %s91 = sphi 0, %s89
    %s92 = sphi 0, %s91
    %s106 = sphi 0, %s92
    %s110 = sphi 0, %s110
    %s112 = sphi 0, %s110
    %s113 = sphi 0, %s112
    %s127 = sphi 0, %s113
    %s133 = sphi 0, %s135
    %s136 = sphi 0, %s133
    %s137 = sphi 0, %s136
    %s153 = sphi 0, %s137
    %s159 = sphi 0, %s161
    %s162 = sphi 0, %s159
    %s163 = sphi 0, %s162
    %s179 = sphi 0, %s163
  $region4: #{model_forward.5} parent=0 // loop_header_branch
    %16 = sbr.rel (%p14) target = $region8
  $region5: #{model_forward.5} parent=0 // loop_body
    %s18 = ssub.s32 %s13, 1
    %s19 = ssub.s32 %s13, 2
    %s20 = sadd.s32 %s13, 1
    %s21 = ssub.s32 %s13, %s20
    %p22 = scmp.eq.s32.totalorder %s21, 0
    %s24 = sadd.s32 %s23, 1
    %s25 = scalar_select %p22, %s23, %s24
    %p28 = pneg %p22
    %p29 = scmp.eq.s32.totalorder %s13, 1
    %p30 = por %p28, %p29
    %p31 = scmp.ne.s32.totalorder %s23, %s26
    %p32 = scmp.eq.s32.totalorder %s13, 0
    %p33 = por %p31, %p32
    %p34 = scmp.ne.s32.totalorder %s23, %s26
    %p35 = scmp.eq.s32.totalorder %s18, 1
    %p36 = por %p34, %p35
    %p37 = scmp.ne.s32.totalorder %s26, %s27
    %p38 = scmp.eq.s32.totalorder %s18, 0
    %p39 = por %p37, %p38
    %p40 = scmp.ne.s32.totalorder %s26, %s27
    %p41 = scmp.eq.s32.totalorder %s19, 1
    %p42 = por %p40, %p41
    %p44 = scmp.ne.s32.totalorder %s27, %s43
    %p45 = scmp.eq.s32.totalorder %s19, 0
    %p46 = por %p44, %p45
    %s48 = sadd.s32 %s47, 1
    %p51 = scmp.eq.s32.totalorder %s13, 1
    %p52 = scmp.ne.s32.totalorder %s47, %s49
    %p53 = scmp.eq.s32.totalorder %s13, 0
    %p54 = por %p52, %p53
    %p55 = scmp.ne.s32.totalorder %s47, %s49
    %p56 = scmp.eq.s32.totalorder %s18, 1
    %p57 = por %p55, %p56
    %p58 = scmp.ne.s32.totalorder %s49, %s50
    %p59 = scmp.eq.s32.totalorder %s18, 0
    %p60 = por %p58, %p59
    %p61 = scmp.ne.s32.totalorder %s49, %s50
    %p62 = scmp.eq.s32.totalorder %s19, 1
    %p63 = por %p61, %p62
    %p65 = scmp.ne.s32.totalorder %s50, %s64
    %p66 = scmp.eq.s32.totalorder %s19, 0
    %p67 = por %p65, %p66
    %s69 = sadd.s32 %s68, 1
    %p72 = scmp.eq.s32.totalorder %s13, 1
    %p73 = scmp.ne.s32.totalorder %s68, %s70
    %p74 = scmp.eq.s32.totalorder %s13, 0
    %p75 = por %p73, %p74
    %p76 = scmp.ne.s32.totalorder %s68, %s70
    %p77 = scmp.eq.s32.totalorder %s18, 1
    %p78 = por %p76, %p77
    %p79 = scmp.ne.s32.totalorder %s70, %s71
    %p80 = scmp.eq.s32.totalorder %s18, 0
    %p81 = por %p79, %p80
    %p82 = scmp.ne.s32.totalorder %s70, %s71
    %p83 = scmp.eq.s32.totalorder %s19, 1
    %p84 = por %p82, %p83
    %p86 = scmp.ne.s32.totalorder %s71, %s85
    %p87 = scmp.eq.s32.totalorder %s19, 0
    %p88 = por %p86, %p87
    %s90 = sadd.s32 %s89, 1
    %p93 = scmp.eq.s32.totalorder %s13, 1
    %p94 = scmp.ne.s32.totalorder %s89, %s91
    %p95 = scmp.eq.s32.totalorder %s13, 0
    %p96 = por %p94, %p95
    %p97 = scmp.ne.s32.totalorder %s89, %s91
    %p98 = scmp.eq.s32.totalorder %s18, 1
    %p99 = por %p97, %p98
    %p100 = scmp.ne.s32.totalorder %s91, %s92
    %p101 = scmp.eq.s32.totalorder %s18, 0
    %p102 = por %p100, %p101
    %p103 = scmp.ne.s32.totalorder %s91, %s92
    %p104 = scmp.eq.s32.totalorder %s19, 1
    %p105 = por %p103, %p104
    %p107 = scmp.ne.s32.totalorder %s92, %s106
    %p108 = scmp.eq.s32.totalorder %s19, 0
    %p109 = por %p107, %p108
    %s111 = sadd.s32 %s110, 1
    %p114 = scmp.eq.s32.totalorder %s13, 1
    %p115 = scmp.ne.s32.totalorder %s110, %s112
    %p116 = scmp.eq.s32.totalorder %s13, 0
    %p117 = por %p115, %p116
    %p118 = scmp.ne.s32.totalorder %s110, %s112
    %p119 = scmp.eq.s32.totalorder %s18, 1
    %p120 = por %p118, %p119
    %p121 = scmp.ne.s32.totalorder %s112, %s113
    %p122 = scmp.eq.s32.totalorder %s18, 0
    %p123 = por %p121, %p122
    %p124 = scmp.ne.s32.totalorder %s112, %s113
    %p125 = scmp.eq.s32.totalorder %s19, 1
    %p126 = por %p124, %p125
    %p128 = scmp.ne.s32.totalorder %s113, %s127
    %p129 = scmp.eq.s32.totalorder %s19, 0
    %p130 = por %p128, %p129
    %s131 = ssub.s32 %s13, %s20
    %p132 = scmp.eq.s32.totalorder %s131, 0
    %s134 = sadd.s32 %s133, 1
    %s135 = scalar_select %p132, %s133, %s134
    %p138 = pneg %p132
    %p139 = scmp.eq.s32.totalorder %s13, 1
    %p140 = por %p138, %p139
    %p141 = scmp.ne.s32.totalorder %s133, %s136
    %p142 = scmp.eq.s32.totalorder %s13, 0
    %p143 = por %p141, %p142
    %p144 = scmp.ne.s32.totalorder %s133, %s136
    %p145 = scmp.eq.s32.totalorder %s18, 1
    %p146 = por %p144, %p145
    %p147 = scmp.ne.s32.totalorder %s136, %s137
    %p148 = scmp.eq.s32.totalorder %s18, 0
    %p149 = por %p147, %p148
    %p150 = scmp.ne.s32.totalorder %s136, %s137
    %p151 = scmp.eq.s32.totalorder %s19, 1
    %p152 = por %p150, %p151
    %p154 = scmp.ne.s32.totalorder %s137, %s153
    %p155 = scmp.eq.s32.totalorder %s19, 0
    %p156 = por %p154, %p155
    %s157 = ssub.s32 %s13, %s20
    %p158 = scmp.eq.s32.totalorder %s157, 0
    %s160 = sadd.s32 %s159, 1
    %s161 = scalar_select %p158, %s159, %s160
    %p164 = pneg %p158
    %p165 = scmp.eq.s32.totalorder %s13, 1
    %p166 = por %p164, %p165
    %p167 = scmp.ne.s32.totalorder %s159, %s162
    %p168 = scmp.eq.s32.totalorder %s13, 0
    %p169 = por %p167, %p168
    %p170 = scmp.ne.s32.totalorder %s159, %s162
    %p171 = scmp.eq.s32.totalorder %s18, 1
    %p172 = por %p170, %p171
    %p173 = scmp.ne.s32.totalorder %s162, %s163
    %p174 = scmp.eq.s32.totalorder %s18, 0
    %p175 = por %p173, %p174
    %p176 = scmp.ne.s32.totalorder %s162, %s163
    %p177 = scmp.eq.s32.totalorder %s19, 1
    %p178 = por %p176, %p177
    %p180 = scmp.ne.s32.totalorder %s163, %s179
    %p181 = scmp.eq.s32.totalorder %s19, 0
    %p182 = por %p180, %p181
    %p183 = scmp.le.s32.totalorder 1, %s13
    %p184 = scmp.lt.s32.totalorder %s13, 3
    %p185 = pnand %p183, %p184
    %p186 = pneg %p185
    // Predicated region
    $region9: #{model_forward.5} parent=5 // pred_check
      _
    $region10: #{model_forward.5} parent=5 // pred_check_branch
      %188 = sbr.rel (%p185) target = $region12
    $region11: #{model_forward.5} parent=5 // pred_region
      %s189 = ssub.s32 %s13, 1
      // Predicated region
      $region13: #{model_forward.5} parent=11 // pred_check
        %p190 = pneg %p60
      $region14: #{model_forward.5} parent=11 // pred_check_branch
        %192 = sbr.rel (%p190) target = $region16
      $region15: #{model_forward.5} parent=11 // pred_region
        _
      $region16: #{model_forward.5} parent=11 // pred_fallthru
        _
      // Predicated region
      $region17: #{model_forward.5} parent=11 // pred_check
        %p193 = pneg %p81
      $region18: #{model_forward.5} parent=11 // pred_check_branch
        %195 = sbr.rel (%p193) target = $region20
      $region19: #{model_forward.5} parent=11 // pred_region
        _
      $region20: #{model_forward.5} parent=11 // pred_fallthru
        _
      // Predicated region
      $region21: #{model_forward.5} parent=11 // pred_check
        %p196 = pneg %p102
      $region22: #{model_forward.5} parent=11 // pred_check_branch
        %198 = sbr.rel (%p196) target = $region24
      $region23: #{model_forward.5} parent=11 // pred_region
        _
      $region24: #{model_forward.5} parent=11 // pred_fallthru
        _
      // Predicated region
      $region25: #{model_forward.5} parent=11 // pred_check
        %p199 = pneg %p123
      $region26: #{model_forward.5} parent=11 // pred_check_branch
        %201 = sbr.rel (%p199) target = $region28
      $region27: #{model_forward.5} parent=11 // pred_region
        _
      $region28: #{model_forward.5} parent=11 // pred_fallthru
        _
    $region12: #{model_forward.5} parent=5 // pred_fallthru
      _
    %p202 = scmp.lt.s32.totalorder %s13, 2
    // Predicated region
    $region29: #{model_forward.5} parent=5 // pred_check
      %p203 = pneg %p202
    $region30: #{model_forward.5} parent=5 // pred_check_branch
      %205 = sbr.rel (%p203) target = $region32
    $region31: #{model_forward.5} parent=5 // pred_region
      // Predicated region
      $region33: #{model_forward.5} parent=31 // pred_check
        %p206 = pneg %p33
      $region34: #{model_forward.5} parent=31 // pred_check_branch
        %208 = sbr.rel (%p206) target = $region36
      $region35: #{model_forward.5} parent=31 // pred_region
        %p209 = scmp.lt.s32.totalorder %s13, 1
        %s210 = scalar_select %p209, %s13, 1
        %s211 = smul.addr %s210, 32
        %s212 = smul.addr %s211, 8
        %s213 = scalar_lea.vmem %s0, %s212
      $region36: #{model_forward.5} parent=31 // pred_fallthru
        _
    $region32: #{model_forward.5} parent=5 // pred_fallthru
      _
    %p214 = scmp.le.s32.totalorder 1, %s13
    %p215 = scmp.lt.s32.totalorder %s13, 3
    %p216 = pnand %p214, %p215
    %p217 = pneg %p216
    // Predicated region
    $region37: #{model_forward.5} parent=5 // pred_check
      _
    $region38: #{model_forward.5} parent=5 // pred_check_branch
      %219 = sbr.rel (%p216) target = $region40
    $region39: #{model_forward.5} parent=5 // pred_region
      %s220 = ssub.s32 %s13, 1
      %p221 = scmp.lt.s32.totalorder %s18, 1
      %s222 = scalar_select %p221, %s18, 1
      %s223 = smul.addr %s222, 32
      %s224 = smul.addr %s223, 8
      %s225 = scalar_lea.vmem %s0, %s224
      %p226 = pneg %p39
      %p227 = pneg %p36
      %p228 = pneg %p60
      %p229 = pneg %p57
      %p230 = pneg %p81
      %p231 = pneg %p78
      %p232 = pneg %p102
      %p233 = pneg %p99
      %p234 = pneg %p123
      %p235 = pneg %p120
      %p236 = pneg %p149
      %p237 = pneg %p146
      %p238 = scmp.lt.s32.totalorder %s18, 1
      %s239 = scalar_select %p238, %s18, 1
      %s240 = smul.addr %s239, 8
      %s241 = smul.addr %s240, 8
      %s242 = scalar_lea.vmem %s5, %s241
      %p243 = pneg %p175
      %p244 = pneg %p172
      %p245 = scmp.lt.s32.totalorder %s18, 1
      %s246 = scalar_select %p245, %s18, 1
      %s247 = smul.addr %s246, 2
      %s248 = scalar_lea.vmem %s6, %s247
      %p249 = scmp.lt.s32.totalorder %s18, 1
      %s250 = scalar_select %p249, %s18, 1
      %s251 = smul.addr %s250, 32
      %s252 = smul.addr %s251, 8
      %s253 = scalar_lea.vmem %s0, %s252
      %p254 = scmp.lt.s32.totalorder %s18, 1
      %s255 = scalar_select %p254, %s18, 1
      %s256 = smul.addr %s255, 8
      %s257 = smul.addr %s256, 8
      %s258 = scalar_lea.vmem %s5, %s257
      %p259 = scmp.lt.s32.totalorder %s18, 1
      %s260 = scalar_select %p259, %s18, 1
      %s261 = smul.addr %s260, 2
      %s262 = scalar_lea.vmem %s6, %s261
      %v264 = vld [vmem:[%s253] sm:$0xff]
      %v265 = vld [vmem:[%s253 + $0x8] sm:$0xff]
      %v266 = vld [vmem:[%s253 + $0x10] sm:$0xff]
      %v267 = vld [vmem:[%s253 + $0x18] sm:$0xff]
      %v268 = vld [vmem:[%s253 + $0x20] sm:$0xff]
      %v269 = vld [vmem:[%s253 + $0x28] sm:$0xff]
      %v270 = vld [vmem:[%s253 + $0x30] sm:$0xff]
      %v271 = vld [vmem:[%s253 + $0x38] sm:$0xff]
      %v272 = vld [vmem:[%s253 + $0x40] sm:$0xff]
      %v273 = vld [vmem:[%s253 + $0x48] sm:$0xff]
      %v274 = vld [vmem:[%s253 + $0x50] sm:$0xff]
      %v275 = vld [vmem:[%s253 + $0x58] sm:$0xff]
      %v276 = vld [vmem:[%s253 + $0x60] sm:$0xff]
      %v277 = vld [vmem:[%s253 + $0x68] sm:$0xff]
      %v278 = vld [vmem:[%s253 + $0x70] sm:$0xff]
      %v279 = vld [vmem:[%s253 + $0x78] sm:$0xff]
      %v280 = vld [vmem:[%s253 + $0x80] sm:$0xff]
      %v281 = vld [vmem:[%s253 + $0x88] sm:$0xff]
      %v282 = vld [vmem:[%s253 + $0x90] sm:$0xff]
      %v283 = vld [vmem:[%s253 + $0x98] sm:$0xff]
      %v284 = vld [vmem:[%s253 + $0xa0] sm:$0xff]
      %v285 = vld [vmem:[%s253 + $0xa8] sm:$0xff]
      %v286 = vld [vmem:[%s253 + $0xb0] sm:$0xff]
      %v287 = vld [vmem:[%s253 + $0xb8] sm:$0xff]
      %v288 = vld [vmem:[%s253 + $0xc0] sm:$0xff]
      %v289 = vld [vmem:[%s253 + $0xc8] sm:$0xff]
      %v290 = vld [vmem:[%s253 + $0xd0] sm:$0xff]
      %v291 = vld [vmem:[%s253 + $0xd8] sm:$0xff]
      %v292 = vld [vmem:[%s253 + $0xe0] sm:$0xff]
      %v293 = vld [vmem:[%s253 + $0xe8] sm:$0xff]
      %v294 = vld [vmem:[%s253 + $0xf0] sm:$0xff]
      %v295 = vld [vmem:[%s253 + $0xf8] sm:$0xff]
      %v296 = vld [vmem:[%s1] sm:$0x1]
      %v298 = vlaneseq
      %v299 = vshrl.u32 %v298, 7
      %v300 = vsub.s32 0, %v299
      %v301 = vrot.slane %v296, %v300
      %v303 = vmul.f32 %v264, %v301
      %v304 = vmul.f32 %v265, %v301
      %v305 = vmul.f32 %v266, %v301
      %v306 = vmul.f32 %v267, %v301
      %v307 = vmul.f32 %v268, %v301
      %v308 = vmul.f32 %v269, %v301
      %v309 = vmul.f32 %v270, %v301
      %v310 = vmul.f32 %v271, %v301
      %v311 = vmul.f32 %v272, %v301
      %v312 = vmul.f32 %v273, %v301
      %v313 = vmul.f32 %v274, %v301
      %v314 = vmul.f32 %v275, %v301
      %v315 = vmul.f32 %v276, %v301
      %v316 = vmul.f32 %v277, %v301
      %v317 = vmul.f32 %v278, %v301
      %v318 = vmul.f32 %v279, %v301
      %v319 = vmul.f32 %v280, %v301
      %v320 = vmul.f32 %v281, %v301
      %v321 = vmul.f32 %v282, %v301
      %v322 = vmul.f32 %v283, %v301
      %v323 = vmul.f32 %v284, %v301
      %v324 = vmul.f32 %v285, %v301
      %v325 = vmul.f32 %v286, %v301
      %v326 = vmul.f32 %v287, %v301
      %v327 = vmul.f32 %v288, %v301
      %v328 = vmul.f32 %v289, %v301
      %v329 = vmul.f32 %v290, %v301
      %v330 = vmul.f32 %v291, %v301
      %v331 = vmul.f32 %v292, %v301
      %v332 = vmul.f32 %v293, %v301
      %v333 = vmul.f32 %v294, %v301
      %v334 = vmul.f32 %v295, %v301
      %v335 = vld [vmem:[%s2] sm:$0x1]
      %v337 = vlaneseq
      %v338 = vshrl.u32 %v337, 7
      %v339 = vsub.s32 0, %v338
      %v340 = vrot.slane %v335, %v339
      %v342 = vadd.f32 %v303, %v340
      %v343 = vadd.f32 %v304, %v340
      %v344 = vadd.f32 %v305, %v340
      %v345 = vadd.f32 %v306, %v340
      %v346 = vadd.f32 %v307, %v340
      %v347 = vadd.f32 %v308, %v340
      %v348 = vadd.f32 %v309, %v340
      %v349 = vadd.f32 %v310, %v340
      %v350 = vadd.f32 %v311, %v340
      %v351 = vadd.f32 %v312, %v340
      %v352 = vadd.f32 %v313, %v340
      %v353 = vadd.f32 %v314, %v340
      %v354 = vadd.f32 %v315, %v340
      %v355 = vadd.f32 %v316, %v340
      %v356 = vadd.f32 %v317, %v340
      %v357 = vadd.f32 %v318, %v340
      %v358 = vadd.f32 %v319, %v340
      %v359 = vadd.f32 %v320, %v340
      %v360 = vadd.f32 %v321, %v340
      %v361 = vadd.f32 %v322, %v340
      %v362 = vadd.f32 %v323, %v340
      %v363 = vadd.f32 %v324, %v340
      %v364 = vadd.f32 %v325, %v340
      %v365 = vadd.f32 %v326, %v340
      %v366 = vadd.f32 %v327, %v340
      %v367 = vadd.f32 %v328, %v340
      %v368 = vadd.f32 %v329, %v340
      %v369 = vadd.f32 %v330, %v340
      %v370 = vadd.f32 %v331, %v340
      %v371 = vadd.f32 %v332, %v340
      %v372 = vadd.f32 %v333, %v340
      %v373 = vadd.f32 %v334, %v340
      %v374 = vpack.c.bf16 %v343, %v342
      %v375 = vpack.c.bf16 %v345, %v344
      %v376 = vpack.c.bf16 %v347, %v346
      %v377 = vpack.c.bf16 %v349, %v348
      %v378 = vpack.c.bf16 %v351, %v350
      %v379 = vpack.c.bf16 %v353, %v352
      %v380 = vpack.c.bf16 %v355, %v354
      %v381 = vpack.c.bf16 %v357, %v356
      %v382 = vpack.c.bf16 %v359, %v358
      %v383 = vpack.c.bf16 %v361, %v360
      %v384 = vpack.c.bf16 %v363, %v362
      %v385 = vpack.c.bf16 %v365, %v364
      %v386 = vpack.c.bf16 %v367, %v366
      %v387 = vpack.c.bf16 %v369, %v368
      %v388 = vpack.c.bf16 %v371, %v370
      %v389 = vpack.c.bf16 %v373, %v372
      %v391 = vshrl.u32 %v374, 16
      %v393 = vrot.slane %v391, 7
      %v394 = vshll.u32 %v374, 16
      %v396 = vor.u32 %v393, %v394
      %v398 = vshrl.u32 %v375, 16
      %v400 = vrot.slane %v398, 7
      %v401 = vshll.u32 %v375, 16
      %v403 = vor.u32 %v400, %v401
      %v405 = vshrl.u32 %v376, 16
      %v407 = vrot.slane %v405, 7
      %v408 = vshll.u32 %v376, 16
      %v410 = vor.u32 %v407, %v408
      %v412 = vshrl.u32 %v377, 16
      %v414 = vrot.slane %v412, 7
      %v415 = vshll.u32 %v377, 16
      %v417 = vor.u32 %v414, %v415
      %v419 = vshrl.u32 %v378, 16
      %v421 = vrot.slane %v419, 7
      %v422 = vshll.u32 %v378, 16
      %v424 = vor.u32 %v421, %v422
      %v426 = vshrl.u32 %v379, 16
      %v428 = vrot.slane %v426, 7
      %v429 = vshll.u32 %v379, 16
      %v431 = vor.u32 %v428, %v429
      %v433 = vshrl.u32 %v380, 16
      %v435 = vrot.slane %v433, 7
      %v436 = vshll.u32 %v380, 16
      %v438 = vor.u32 %v435, %v436
      %v440 = vshrl.u32 %v381, 16
      %v442 = vrot.slane %v440, 7
      %v443 = vshll.u32 %v381, 16
      %v445 = vor.u32 %v442, %v443
      %v447 = vshrl.u32 %v382, 16
      %v449 = vrot.slane %v447, 7
      %v450 = vshll.u32 %v382, 16
      %v452 = vor.u32 %v449, %v450
      %v454 = vshrl.u32 %v383, 16
      %v456 = vrot.slane %v454, 7
      %v457 = vshll.u32 %v383, 16
      %v459 = vor.u32 %v456, %v457
      %v461 = vshrl.u32 %v384, 16
      %v463 = vrot.slane %v461, 7
      %v464 = vshll.u32 %v384, 16
      %v466 = vor.u32 %v463, %v464
      %v468 = vshrl.u32 %v385, 16
      %v470 = vrot.slane %v468, 7
      %v471 = vshll.u32 %v385, 16
      %v473 = vor.u32 %v470, %v471
      %v475 = vshrl.u32 %v386, 16
      %v477 = vrot.slane %v475, 7
      %v478 = vshll.u32 %v386, 16
      %v480 = vor.u32 %v477, %v478
      %v482 = vshrl.u32 %v387, 16
      %v484 = vrot.slane %v482, 7
      %v485 = vshll.u32 %v387, 16
      %v487 = vor.u32 %v484, %v485
      %v489 = vshrl.u32 %v388, 16
      %v491 = vrot.slane %v489, 7
      %v492 = vshll.u32 %v388, 16
      %v494 = vor.u32 %v491, %v492
      %v496 = vshrl.u32 %v389, 16
      %v498 = vrot.slane %v496, 7
      %v499 = vshll.u32 %v389, 16
      %v501 = vor.u32 %v498, %v499
      %vm518 = vcmask 1040384
      %vm519 = vsmask.f32 256
      %vm520 = vmand %vm518, %vm519
      %v521 = vsel %vm520, 0, %v396
      %v522 = vsel %vm520, 0, %v403
      %v523 = vsel %vm520, 0, %v410
      %v524 = vsel %vm520, 0, %v417
      %v525 = vsel %vm520, 0, %v424
      %v526 = vsel %vm520, 0, %v431
      %v527 = vsel %vm520, 0, %v438
      %v528 = vsel %vm520, 0, %v445
      %v529 = vsel %vm520, 0, %v452
      %v530 = vsel %vm520, 0, %v459
      %v531 = vsel %vm520, 0, %v466
      %v532 = vsel %vm520, 0, %v473
      %v533 = vsel %vm520, 0, %v480
      %v534 = vsel %vm520, 0, %v487
      %v535 = vsel %vm520, 0, %v494
      %v536 = vsel %vm520, 0, %v501
      %v537 = vrot.slane %v394, 1
      %v538 = vor.u32 %v391, %v537
      %v539 = vrot.slane %v401, 1
      %v540 = vor.u32 %v398, %v539
      %v541 = vrot.slane %v408, 1
      %v542 = vor.u32 %v405, %v541
      %v543 = vrot.slane %v415, 1
      %v544 = vor.u32 %v412, %v543
      %v545 = vrot.slane %v422, 1
      %v546 = vor.u32 %v419, %v545
      %v547 = vrot.slane %v429, 1
      %v548 = vor.u32 %v426, %v547
      %v549 = vrot.slane %v436, 1
      %v550 = vor.u32 %v433, %v549
      %v551 = vrot.slane %v443, 1
      %v552 = vor.u32 %v440, %v551
      %v553 = vrot.slane %v450, 1
      %v554 = vor.u32 %v447, %v553
      %v555 = vrot.slane %v457, 1
      %v556 = vor.u32 %v454, %v555
      %v557 = vrot.slane %v464, 1
      %v558 = vor.u32 %v461, %v557
      %v559 = vrot.slane %v471, 1
      %v560 = vor.u32 %v468, %v559
      %v561 = vrot.slane %v478, 1
      %v562 = vor.u32 %v475, %v561
      %v563 = vrot.slane %v485, 1
      %v564 = vor.u32 %v482, %v563
      %v565 = vrot.slane %v492, 1
      %v566 = vor.u32 %v489, %v565
      %v567 = vrot.slane %v499, 1
      %v568 = vor.u32 %v496, %v567
      %vm585 = vcmask 1047552
      %vm586 = vsmask.f32 7424
      %vm587 = vmand %vm585, %vm586
      %v588 = vsel %vm587, %v538, 0
      %v589 = vsel %vm587, %v540, 0
      %v590 = vsel %vm587, %v542, 0
      %v591 = vsel %vm587, %v544, 0
      %v592 = vsel %vm587, %v546, 0
      %v593 = vsel %vm587, %v548, 0
      %v594 = vsel %vm587, %v550, 0
      %v595 = vsel %vm587, %v552, 0
      %v596 = vsel %vm587, %v554, 0
      %v597 = vsel %vm587, %v556, 0
      %v598 = vsel %vm587, %v558, 0
      %v599 = vsel %vm587, %v560, 0
      %v600 = vsel %vm587, %v562, 0
      %v601 = vsel %vm587, %v564, 0
      %v602 = vsel %vm587, %v566, 0
      %v603 = vsel %vm587, %v568, 0
      %620 = vrot.lane.b32.xlu0 %v374, 32
      %v621 = vpop.permute.xlu0 %620
      %622 = vrot.lane.b32.xlu0 %v375, 32
      %v623 = vpop.permute.xlu0 %622
      %624 = vrot.lane.b32.xlu0 %v376, 32
      %v625 = vpop.permute.xlu0 %624
      %626 = vrot.lane.b32.xlu0 %v377, 32
      %v627 = vpop.permute.xlu0 %626
      %628 = vrot.lane.b32.xlu0 %v378, 32
      %v629 = vpop.permute.xlu0 %628
      %630 = vrot.lane.b32.xlu0 %v379, 32
      %v631 = vpop.permute.xlu0 %630
      %632 = vrot.lane.b32.xlu0 %v380, 32
      %v633 = vpop.permute.xlu0 %632
      %634 = vrot.lane.b32.xlu0 %v381, 32
      %v635 = vpop.permute.xlu0 %634
      %636 = vrot.lane.b32.xlu0 %v382, 32
      %v637 = vpop.permute.xlu0 %636
      %638 = vrot.lane.b32.xlu0 %v383, 32
      %v639 = vpop.permute.xlu0 %638
      %640 = vrot.lane.b32.xlu0 %v384, 32
      %v641 = vpop.permute.xlu0 %640
      %642 = vrot.lane.b32.xlu0 %v385, 32
      %v643 = vpop.permute.xlu0 %642
      %644 = vrot.lane.b32.xlu0 %v386, 32
      %v645 = vpop.permute.xlu0 %644
      %646 = vrot.lane.b32.xlu0 %v387, 32
      %v647 = vpop.permute.xlu0 %646
      %648 = vrot.lane.b32.xlu0 %v388, 32
      %v649 = vpop.permute.xlu0 %648
      %650 = vrot.lane.b32.xlu0 %v389, 32
      %v651 = vpop.permute.xlu0 %650
      %668 = vrot.lane.b32.xlu0 %v588, 64
      %v669 = vpop.permute.xlu0 %668
      %670 = vrot.lane.b32.xlu0 %v589, 64
      %v671 = vpop.permute.xlu0 %670
      %672 = vrot.lane.b32.xlu0 %v590, 64
      %v673 = vpop.permute.xlu0 %672
      %674 = vrot.lane.b32.xlu0 %v591, 64
      %v675 = vpop.permute.xlu0 %674
      %676 = vrot.lane.b32.xlu0 %v592, 64
      %v677 = vpop.permute.xlu0 %676
      %678 = vrot.lane.b32.xlu0 %v593, 64
      %v679 = vpop.permute.xlu0 %678
      %680 = vrot.lane.b32.xlu0 %v594, 64
      %v681 = vpop.permute.xlu0 %680
      %682 = vrot.lane.b32.xlu0 %v595, 64
      %v683 = vpop.permute.xlu0 %682
      %684 = vrot.lane.b32.xlu0 %v596, 64
      %v685 = vpop.permute.xlu0 %684
      %686 = vrot.lane.b32.xlu0 %v597, 64
      %v687 = vpop.permute.xlu0 %686
      %688 = vrot.lane.b32.xlu0 %v598, 64
      %v689 = vpop.permute.xlu0 %688
      %690 = vrot.lane.b32.xlu0 %v599, 64
      %v691 = vpop.permute.xlu0 %690
      %692 = vrot.lane.b32.xlu0 %v600, 64
      %v693 = vpop.permute.xlu0 %692
      %694 = vrot.lane.b32.xlu0 %v601, 64
      %v695 = vpop.permute.xlu0 %694
      %696 = vrot.lane.b32.xlu0 %v602, 64
      %v697 = vpop.permute.xlu0 %696
      %698 = vrot.lane.b32.xlu0 %v603, 64
      %v699 = vpop.permute.xlu0 %698
      %vm700 = vcmask 261120
      %v703 = vsel %vm700, %v521, %v621
      %v706 = vsel %vm700, %v522, %v623
      %v709 = vsel %vm700, %v523, %v625
      %v712 = vsel %vm700, %v524, %v627
      %v715 = vsel %vm700, %v525, %v629
      %v718 = vsel %vm700, %v526, %v631
      %v721 = vsel %vm700, %v527, %v633
      %v724 = vsel %vm700, %v528, %v635
      %v727 = vsel %vm700, %v529, %v637
      %v730 = vsel %vm700, %v530, %v639
      %v733 = vsel %vm700, %v531, %v641
      %v736 = vsel %vm700, %v532, %v643
      %v739 = vsel %vm700, %v533, %v645
      %v742 = vsel %vm700, %v534, %v647
      %v745 = vsel %vm700, %v535, %v649
      %v748 = vsel %vm700, %v536, %v651
      %vm749 = vcmask 523264
      %v751 = vsel %vm749, %v703, %v669
      %v753 = vsel %vm749, %v706, %v671
      %v755 = vsel %vm749, %v709, %v673
      %v757 = vsel %vm749, %v712, %v675
      %v759 = vsel %vm749, %v715, %v677
      %v761 = vsel %vm749, %v718, %v679
      %v763 = vsel %vm749, %v721, %v681
      %v765 = vsel %vm749, %v724, %v683
      %v767 = vsel %vm749, %v727, %v685
      %v769 = vsel %vm749, %v730, %v687
      %v771 = vsel %vm749, %v733, %v689
      %v773 = vsel %vm749, %v736, %v691
      %v775 = vsel %vm749, %v739, %v693
      %v777 = vsel %vm749, %v742, %v695
      %v779 = vsel %vm749, %v745, %v697
      %v781 = vsel %vm749, %v748, %v699
      %v782 = vld [vmem:[%s3] sm:$0xf]
      %v783 = vld [vmem:[%s3 + $0x4] sm:$0xf]
      %v784 = vld [vmem:[%s3 + $0x8] sm:$0xf]
      %v785 = vld [vmem:[%s3 + $0xc] sm:$0xf]
      %v786 = vld [vmem:[%s3 + $0x10] sm:$0xf]
      %v787 = vld [vmem:[%s3 + $0x14] sm:$0xf]
      %v788 = vld [vmem:[%s3 + $0x18] sm:$0xf]
      %v789 = vld [vmem:[%s3 + $0x1c] sm:$0xf]
      %v790 = vld [vmem:[%s3 + $0x20] sm:$0xf]
      %v791 = vld [vmem:[%s3 + $0x24] sm:$0xf]
      %v792 = vld [vmem:[%s3 + $0x28] sm:$0xf]
      %v793 = vld [vmem:[%s3 + $0x2c] sm:$0xf]
      %s794 = scalar_lea.vmem %s3, 48
      %v795 = vld [vmem:[%s794] sm:$0xf]
      %v796 = vld [vmem:[%s794 + $0x4] sm:$0xf]
      %v797 = vld [vmem:[%s794 + $0x8] sm:$0xf]
      %v798 = vld [vmem:[%s794 + $0xc] sm:$0xf]
      %v799 = vld [vmem:[%s794 + $0x10] sm:$0xf]
      %v800 = vld [vmem:[%s794 + $0x14] sm:$0xf]
      %v801 = vld [vmem:[%s794 + $0x18] sm:$0xf]
      %v802 = vld [vmem:[%s794 + $0x1c] sm:$0xf]
      %v803 = vld [vmem:[%s794 + $0x20] sm:$0xf]
      %v804 = vld [vmem:[%s794 + $0x24] sm:$0xf]
      %v805 = vld [vmem:[%s794 + $0x28] sm:$0xf]
      %v806 = vld [vmem:[%s794 + $0x2c] sm:$0xf]
      %v819 = vunpack.c.l.b16 %v795
      %v820 = vunpack.c.l.b16 %v796
      %v821 = vunpack.c.l.b16 %v797
      %v822 = vunpack.c.l.b16 %v798
      %v823 = vunpack.c.l.b16 %v799
      %v824 = vunpack.c.l.b16 %v800
      %v825 = vunpack.c.l.b16 %v801
      %v826 = vunpack.c.l.b16 %v802
      %v827 = vunpack.c.l.b16 %v803
      %v828 = vunpack.c.l.b16 %v804
      %v829 = vunpack.c.l.b16 %v805
      %v830 = vunpack.c.l.b16 %v806
      %v831 = vpack.c.b16 %v820, %v819
      %v832 = vpack.c.b16 %v822, %v821
      %v833 = vpack.c.b16 %v824, %v823
      %v834 = vpack.c.b16 %v826, %v825
      %v835 = vpack.c.b16 %v828, %v827
      %v836 = vpack.c.b16 %v830, %v829
      %vm843 = vcmask 785408
      %v844 = vsel %vm843, %v751, 0
      %v846 = vsel %vm843, %v753, 0
      %v848 = vsel %vm843, %v755, 0
      %v850 = vsel %vm843, %v757, 0
      %v852 = vsel %vm843, %v759, 0
      %v854 = vsel %vm843, %v761, 0
      %v856 = vsel %vm843, %v763, 0
      %v858 = vsel %vm843, %v765, 0
      %v860 = vsel %vm843, %v767, 0
      %v862 = vsel %vm843, %v769, 0
      %v864 = vsel %vm843, %v771, 0
      %v866 = vsel %vm843, %v773, 0
      %v868 = vsel %vm843, %v775, 0
      %v870 = vsel %vm843, %v777, 0
      %v872 = vsel %vm843, %v779, 0
      %v874 = vsel %vm843, %v781, 0
      %876 = vmatprep.subr.bf16.mxu0 0
      %877 = vmatpush1.bf16.msra.mxu0 %v831
      %878 = vmatprep.subr.bf16.mxu0 0
      %879 = vmatpush1.bf16.msra.mxu0 %v832
      %880 = vmatprep.subr.bf16.mxu0 0
      %881 = vmatpush1.bf16.msra.mxu0 %v833
      %882 = vmatprep.subr.bf16.mxu0 0
      %883 = vmatpush1.bf16.msra.mxu0 %v834
      %884 = vmatprep.subr.bf16.mxu0 0
      %885 = vmatpush1.bf16.msra.mxu0 %v835
      %886 = vmatprep.subr.bf16.mxu0 0
      %887 = vmatpush1.bf16.msra.mxu0 %v836
      %888 = vmatprep.subr.bf16.mxu0 0
      %889 = vmatpush1.bf16.msra.mxu0 0
      %890 = vmatprep.subr.bf16.mxu0 0
      %891 = vmatpush1.bf16.msra.mxu0 0
      %892 = vmatprep.subr.bf16.mxu0 0
      %893 = vmatpush1.bf16.msra.mxu0 0
      %894 = vmatprep.subr.bf16.mxu0 0
      %895 = vmatpush1.bf16.msra.mxu0 0
      %896 = vmatprep.subr.bf16.mxu0 0
      %897 = vmatpush1.bf16.msra.mxu0 0
      %898 = vmatprep.subr.bf16.mxu0 0
      %899 = vmatpush1.bf16.msra.mxu0 0
      %900 = vmatprep.subr.bf16.mxu0 0
      %901 = vmatpush1.bf16.msra.mxu0 0
      %902 = vmatprep.subr.bf16.mxu0 0
      %903 = vmatpush1.bf16.msra.mxu0 0
      %904 = vmatprep.subr.bf16.mxu0 0
      %905 = vmatpush1.bf16.msra.mxu0 0
      %906 = vmatprep.subr.bf16.mxu0 0
      %907 = vmatpush1.bf16.msra.mxu0 0
      %908 = vmatprep.mubr.bf16.mxu0 0
      %909 = vmatmul.mubr.bf16.gmra.mrb[0].mxu0 %v844
      %v910 = vpop.f32.mrb[0].mxu0
      %v911 = vadd.f32 0.0, %v910
      %v912 = vpop.f32.mrb[0].mxu0
      %v913 = vpop.f32.mrb[0].mxu0
      %v914 = vadd.f32 0.0, %v913
      %v915 = vpop.f32.mrb[0].mxu0
      %916 = vmatprep.mubr.bf16.mxu0 0
      %917 = vmatmul.mubr.bf16.gmra.mrb[0].mxu0 %v846
      %v918 = vpop.f32.mrb[0].mxu0
      %v919 = vadd.f32 0.0, %v918
      %v920 = vpop.f32.mrb[0].mxu0
      %v921 = vpop.f32.mrb[0].mxu0
      %v922 = vadd.f32 0.0, %v921
      %v923 = vpop.f32.mrb[0].mxu0
      %924 = vmatprep.mubr.bf16.mxu0 0
      %925 = vmatmul.mubr.bf16.gmra.mrb[0].mxu0 %v848
      %v926 = vpop.f32.mrb[0].mxu0
      %v927 = vadd.f32 0.0, %v926
      %v928 = vpop.f32.mrb[0].mxu0
      %v929 = vpop.f32.mrb[0].mxu0
      %v930 = vadd.f32 0.0, %v929
      %v931 = vpop.f32.mrb[0].mxu0
      %932 = vmatprep.mubr.bf16.mxu0 0
      %933 = vmatmul.mubr.bf16.gmra.mrb[0].mxu0 %v850
      %v934 = vpop.f32.mrb[0].mxu0
      %v935 = vadd.f32 0.0, %v934
      %v936 = vpop.f32.mrb[0].mxu0
      %v937 = vpop.f32.mrb[0].mxu0
      %v938 = vadd.f32 0.0, %v937
      %v939 = vpop.f32.mrb[0].mxu0
      %940 = vmatprep.mubr.bf16.mxu0 0
      %941 = vmatmul.mubr.bf16.gmra.mrb[0].mxu0 %v852
      %v942 = vpop.f32.mrb[0].mxu0
      %v943 = vadd.f32 0.0, %v942
      %v944 = vpop.f32.mrb[0].mxu0
      %v945 = vpop.f32.mrb[0].mxu0
      %v946 = vadd.f32 0.0, %v945
      %v947 = vpop.f32.mrb[0].mxu0
      %948 = vmatprep.mubr.bf16.mxu0 0
      %949 = vmatmul.mubr.bf16.gmra.mrb[0].mxu0 %v854
      %v950 = vpop.f32.mrb[0].mxu0
      %v951 = vadd.f32 0.0, %v950
      %v952 = vpop.f32.mrb[0].mxu0
      %v953 = vpop.f32.mrb[0].mxu0
      %v954 = vadd.f32 0.0, %v953
      %v955 = vpop.f32.mrb[0].mxu0
      %956 = vmatprep.mubr.bf16.mxu0 0
      %957 = vmatmul.mubr.bf16.gmra.mrb[0].mxu0 %v856
      %v958 = vpop.f32.mrb[0].mxu0
      %v959 = vadd.f32 0.0, %v958
      %v960 = vpop.f32.mrb[0].mxu0
      %v961 = vpop.f32.mrb[0].mxu0
      %v962 = vadd.f32 0.0, %v961
      %v963 = vpop.f32.mrb[0].mxu0
      %964 = vmatprep.mubr.bf16.mxu0 0
      %965 = vmatmul.mubr.bf16.gmra.mrb[0].mxu0 %v858
      %v966 = vpop.f32.mrb[0].mxu0
      %v967 = vadd.f32 0.0, %v966
      %v968 = vpop.f32.mrb[0].mxu0
      %v969 = vpop.f32.mrb[0].mxu0
      %v970 = vadd.f32 0.0, %v969
      %v971 = vpop.f32.mrb[0].mxu0
      %972 = vmatprep.mubr.bf16.mxu0 0
      %973 = vmatmul.mubr.bf16.gmra.mrb[0].mxu0 %v860
      %v974 = vpop.f32.mrb[0].mxu0
      %v975 = vadd.f32 0.0, %v974
      %v976 = vpop.f32.mrb[0].mxu0
      %v977 = vpop.f32.mrb[0].mxu0
      %v978 = vadd.f32 0.0, %v977
      %v979 = vpop.f32.mrb[0].mxu0
      %980 = vmatprep.mubr.bf16.mxu0 0
      %981 = vmatmul.mubr.bf16.gmra.mrb[0].mxu0 %v862
      %v982 = vpop.f32.mrb[0].mxu0
      %v983 = vadd.f32 0.0, %v982
      %v984 = vpop.f32.mrb[0].mxu0
      %v985 = vpop.f32.mrb[0].mxu0
      %v986 = vadd.f32 0.0, %v985
      %v987 = vpop.f32.mrb[0].mxu0
      %988 = vmatprep.mubr.bf16.mxu0 0
      %989 = vmatmul.mubr.bf16.gmra.mrb[0].mxu0 %v864
      %v990 = vpop.f32.mrb[0].mxu0
      %v991 = vadd.f32 0.0, %v990
      %v992 = vpop.f32.mrb[0].mxu0
      %v993 = vpop.f32.mrb[0].mxu0
      %v994 = vadd.f32 0.0, %v993
      %v995 = vpop.f32.mrb[0].mxu0
      %996 = vmatprep.mubr.bf16.mxu0 0
      %997 = vmatmul.mubr.bf16.gmra.mrb[0].mxu0 %v866
      %v998 = vpop.f32.mrb[0].mxu0
      %v999 = vadd.f32 0.0, %v998
      %v1000 = vpop.f32.mrb[0].mxu0
      %v1001 = vpop.f32.mrb[0].mxu0
      %v1002 = vadd.f32 0.0, %v1001
      %v1003 = vpop.f32.mrb[0].mxu0
      %1004 = vmatprep.mubr.bf16.mxu0 0
      %1005 = vmatmul.mubr.bf16.gmra.mrb[0].mxu0 %v868
      %v1006 = vpop.f32.mrb[0].mxu0
      %v1007 = vadd.f32 0.0, %v1006
      %v1008 = vpop.f32.mrb[0].mxu0
      %v1009 = vpop.f32.mrb[0].mxu0
      %v1010 = vadd.f32 0.0, %v1009
      %v1011 = vpop.f32.mrb[0].mxu0
      %1012 = vmatprep.mubr.bf16.mxu0 0
      %1013 = vmatmul.mubr.bf16.gmra.mrb[0].mxu0 %v870
      %v1014 = vpop.f32.mrb[0].mxu0
      %v1015 = vadd.f32 0.0, %v1014
      %v1016 = vpop.f32.mrb[0].mxu0
      %v1017 = vpop.f32.mrb[0].mxu0
      %v1018 = vadd.f32 0.0, %v1017
      %v1019 = vpop.f32.mrb[0].mxu0
      %1020 = vmatprep.mubr.bf16.mxu0 0
      %1021 = vmatmul.mubr.bf16.gmra.mrb[0].mxu0 %v872
      %v1022 = vpop.f32.mrb[0].mxu0
      %v1023 = vadd.f32 0.0, %v1022
      %v1024 = vpop.f32.mrb[0].mxu0
      %v1025 = vpop.f32.mrb[0].mxu0
      %v1026 = vadd.f32 0.0, %v1025
      %v1027 = vpop.f32.mrb[0].mxu0
      %1028 = vmatprep.mubr.bf16.mxu0 0
      %1029 = vmatmul.mubr.bf16.gmra.mrb[0].mxu0 %v874
      %v1030 = vpop.f32.mrb[0].mxu0
      %v1031 = vadd.f32 0.0, %v1030
      %v1032 = vpop.f32.mrb[0].mxu0
      %v1033 = vpop.f32.mrb[0].mxu0
      %v1034 = vadd.f32 0.0, %v1033
      %v1035 = vpop.f32.mrb[0].mxu0
      %1036 = vdwg.mxu0
      %v1049 = vunpack.c.l.b16 %v782
      %v1050 = vunpack.c.l.b16 %v783
      %v1051 = vunpack.c.l.b16 %v784
      %v1052 = vunpack.c.l.b16 %v785
      %v1053 = vunpack.c.l.b16 %v786
      %v1054 = vunpack.c.l.b16 %v787
      %v1055 = vunpack.c.l.b16 %v788
      %v1056 = vunpack.c.l.b16 %v789
      %v1057 = vunpack.c.l.b16 %v790
      %v1058 = vunpack.c.l.b16 %v791
      %v1059 = vunpack.c.l.b16 %v792
      %v1060 = vunpack.c.l.b16 %v793
      %v1061 = vpack.c.b16 %v1050, %v1049
      %v1062 = vpack.c.b16 %v1052, %v1051
      %v1063 = vpack.c.b16 %v1054, %v1053
      %v1064 = vpack.c.b16 %v1056, %v1055
      %v1065 = vpack.c.b16 %v1058, %v1057
      %v1066 = vpack.c.b16 %v1060, %v1059
      %v1074 = vsel %vm843, 0, 0
      %1076 = vmatprep.subr.bf16.mxu0 0
      %1077 = vmatpush1.bf16.msra.mxu0 %v1061
      %1078 = vmatprep.subr.bf16.mxu0 0
      %1079 = vmatpush1.bf16.msra.mxu0 %v1062
      %1080 = vmatprep.subr.bf16.mxu0 0
      %1081 = vmatpush1.bf16.msra.mxu0 %v1063
      %1082 = vmatprep.subr.bf16.mxu0 0
      %1083 = vmatpush1.bf16.msra.mxu0 %v1064
      %1084 = vmatprep.subr.bf16.mxu0 0
      %1085 = vmatpush1.bf16.msra.mxu0 %v1065
      %1086 = vmatprep.subr.bf16.mxu0 0
      %1087 = vmatpush1.bf16.msra.mxu0 %v1066
      %1088 = vmatprep.subr.bf16.mxu0 0
      %1089 = vmatpush1.bf16.msra.mxu0 0
      %1090 = vmatprep.subr.bf16.mxu0 0
      %1091 = vmatpush1.bf16.msra.mxu0 0
      %1092 = vmatprep.subr.bf16.mxu0 0
      %1093 = vmatpush1.bf16.msra.mxu0 0
      %1094 = vmatprep.subr.bf16.mxu0 0
      %1095 = vmatpush1.bf16.msra.mxu0 0
      %1096 = vmatprep.subr.bf16.mxu0 0
      %1097 = vmatpush1.bf16.msra.mxu0 0
      %1098 = vmatprep.subr.bf16.mxu0 0
      %1099 = vmatpush1.bf16.msra.mxu0 0
      %1100 = vmatprep.subr.bf16.mxu0 0
      %1101 = vmatpush1.bf16.msra.mxu0 0
      %1102 = vmatprep.subr.bf16.mxu0 0
      %1103 = vmatpush1.bf16.msra.mxu0 0
      %1104 = vmatprep.subr.bf16.mxu0 0
      %1105 = vmatpush1.bf16.msra.mxu0 0
      %1106 = vmatprep.subr.bf16.mxu0 0
      %1107 = vmatpush1.bf16.msra.mxu0 0
      %1108 = vmatprep.mubr.bf16.mxu0 0
      %1109 = vmatmul.mubr.bf16.gmra.mrb[0].mxu0 %v1074
      %v1110 = vpop.f32.mrb[0].mxu0
      %v1111 = vadd.f32 %v911, %v1110
      %v1112 = vpop.f32.mrb[0].mxu0
      %v1113 = vpop.f32.mrb[0].mxu0
      %v1114 = vadd.f32 %v914, %v1113
      %v1115 = vpop.f32.mrb[0].mxu0
      %1116 = vmatprep.mubr.bf16.mxu0 0
      %1117 = vmatmul.mubr.bf16.gmra.mrb[0].mxu0 %v844
      %v1118 = vpop.f32.mrb[0].mxu0
      %v1119 = vadd.f32 %v919, %v1118
      %v1120 = vpop.f32.mrb[0].mxu0
      %v1121 = vpop.f32.mrb[0].mxu0
      %v1122 = vadd.f32 %v922, %v1121
      %v1123 = vpop.f32.mrb[0].mxu0
      %1124 = vmatprep.mubr.bf16.mxu0 0
      %1125 = vmatmul.mubr.bf16.gmra.mrb[0].mxu0 %v846
      %v1126 = vpop.f32.mrb[0].mxu0
      %v1127 = vadd.f32 %v927, %v1126
      %v1128 = vpop.f32.mrb[0].mxu0
      %v1129 = vpop.f32.mrb[0].mxu0
      %v1130 = vadd.f32 %v930, %v1129
      %v1131 = vpop.f32.mrb[0].mxu0
      %1132 = vmatprep.mubr.bf16.mxu0 0
      %1133 = vmatmul.mubr.bf16.gmra.mrb[0].mxu0 %v848
      %v1134 = vpop.f32.mrb[0].mxu0
      %v1135 = vadd.f32 %v935, %v1134
      %v1136 = vpop.f32.mrb[0].mxu0
      %v1137 = vpop.f32.mrb[0].mxu0
      %v1138 = vadd.f32 %v938, %v1137
      %v1139 = vpop.f32.mrb[0].mxu0
      %1140 = vmatprep.mubr.bf16.mxu0 0
      %1141 = vmatmul.mubr.bf16.gmra.mrb[0].mxu0 %v850
      %v1142 = vpop.f32.mrb[0].mxu0
      %v1143 = vadd.f32 %v943, %v1142
      %v1144 = vpop.f32.mrb[0].mxu0
      %v1145 = vpop.f32.mrb[0].mxu0
      %v1146 = vadd.f32 %v946, %v1145
      %v1147 = vpop.f32.mrb[0].mxu0
      %1148 = vmatprep.mubr.bf16.mxu0 0
      %1149 = vmatmul.mubr.bf16.gmra.mrb[0].mxu0 %v852
      %v1150 = vpop.f32.mrb[0].mxu0
      %v1151 = vadd.f32 %v951, %v1150
      %v1152 = vpop.f32.mrb[0].mxu0
      %v1153 = vpop.f32.mrb[0].mxu0
      %v1154 = vadd.f32 %v954, %v1153
      %v1155 = vpop.f32.mrb[0].mxu0
      %1156 = vmatprep.mubr.bf16.mxu0 0
      %1157 = vmatmul.mubr.bf16.gmra.mrb[0].mxu0 %v854
      %v1158 = vpop.f32.mrb[0].mxu0
      %v1159 = vadd.f32 %v959, %v1158
      %v1160 = vpop.f32.mrb[0].mxu0
      %v1161 = vpop.f32.mrb[0].mxu0
      %v1162 = vadd.f32 %v962, %v1161
      %v1163 = vpop.f32.mrb[0].mxu0
      %1164 = vmatprep.mubr.bf16.mxu0 0
      %1165 = vmatmul.mubr.bf16.gmra.mrb[0].mxu0 %v856
      %v1166 = vpop.f32.mrb[0].mxu0
      %v1167 = vadd.f32 %v967, %v1166
      %v1168 = vpop.f32.mrb[0].mxu0
      %v1169 = vpop.f32.mrb[0].mxu0
      %v1170 = vadd.f32 %v970, %v1169
      %v1171 = vpop.f32.mrb[0].mxu0
      %1172 = vmatprep.mubr.bf16.mxu0 0
      %1173 = vmatmul.mubr.bf16.gmra.mrb[0].mxu0 %v858
      %v1174 = vpop.f32.mrb[0].mxu0
      %v1175 = vadd.f32 %v975, %v1174
      %v1176 = vpop.f32.mrb[0].mxu0
      %v1177 = vpop.f32.mrb[0].mxu0
      %v1178 = vadd.f32 %v978, %v1177
      %v1179 = vpop.f32.mrb[0].mxu0
      %1180 = vmatprep.mubr.bf16.mxu0 0
      %1181 = vmatmul.mubr.bf16.gmra.mrb[0].mxu0 %v860
      %v1182 = vpop.f32.mrb[0].mxu0
      %v1183 = vadd.f32 %v983, %v1182
      %v1184 = vpop.f32.mrb[0].mxu0
      %v1185 = vpop.f32.mrb[0].mxu0
      %v1186 = vadd.f32 %v986, %v1185
      %v1187 = vpop.f32.mrb[0].mxu0
      %1188 = vmatprep.mubr.bf16.mxu0 0
      %1189 = vmatmul.mubr.bf16.gmra.mrb[0].mxu0 %v862
      %v1190 = vpop.f32.mrb[0].mxu0
      %v1191 = vadd.f32 %v991, %v1190
      %v1192 = vpop.f32.mrb[0].mxu0
      %v1193 = vpop.f32.mrb[0].mxu0
      %v1194 = vadd.f32 %v994, %v1193
      %v1195 = vpop.f32.mrb[0].mxu0
      %1196 = vmatprep.mubr.bf16.mxu0 0
      %1197 = vmatmul.mubr.bf16.gmra.mrb[0].mxu0 %v864
      %v1198 = vpop.f32.mrb[0].mxu0
      %v1199 = vadd.f32 %v999, %v1198
      %v1200 = vpop.f32.mrb[0].mxu0
      %v1201 = vpop.f32.mrb[0].mxu0
      %v1202 = vadd.f32 %v1002, %v1201
      %v1203 = vpop.f32.mrb[0].mxu0
      %1204 = vmatprep.mubr.bf16.mxu0 0
      %1205 = vmatmul.mubr.bf16.gmra.mrb[0].mxu0 %v866
      %v1206 = vpop.f32.mrb[0].mxu0
      %v1207 = vadd.f32 %v1007, %v1206
      %v1208 = vpop.f32.mrb[0].mxu0
      %v1209 = vpop.f32.mrb[0].mxu0
      %v1210 = vadd.f32 %v1010, %v1209
      %v1211 = vpop.f32.mrb[0].mxu0
      %1212 = vmatprep.mubr.bf16.mxu0 0
      %1213 = vmatmul.mubr.bf16.gmra.mrb[0].mxu0 %v868
      %v1214 = vpop.f32.mrb[0].mxu0
      %v1215 = vadd.f32 %v1015, %v1214
      %v1216 = vpop.f32.mrb[0].mxu0
      %v1217 = vpop.f32.mrb[0].mxu0
      %v1218 = vadd.f32 %v1018, %v1217
      %v1219 = vpop.f32.mrb[0].mxu0
      %1220 = vmatprep.mubr.bf16.mxu0 0
      %1221 = vmatmul.mubr.bf16.gmra.mrb[0].mxu0 %v870
      %v1222 = vpop.f32.mrb[0].mxu0
      %v1223 = vadd.f32 %v1023, %v1222
      %v1224 = vpop.f32.mrb[0].mxu0
      %v1225 = vpop.f32.mrb[0].mxu0
      %v1226 = vadd.f32 %v1026, %v1225
      %v1227 = vpop.f32.mrb[0].mxu0
      %1228 = vmatprep.mubr.bf16.mxu0 0
      %1229 = vmatmul.mubr.bf16.gmra.mrb[0].mxu0 %v872
      %v1230 = vpop.f32.mrb[0].mxu0
      %v1231 = vadd.f32 %v1031, %v1230
      %v1232 = vpop.f32.mrb[0].mxu0
      %v1233 = vpop.f32.mrb[0].mxu0
      %v1234 = vadd.f32 %v1034, %v1233
      %v1235 = vpop.f32.mrb[0].mxu0
      %1236 = vdwg.mxu0
      %s1237 = scalar_lea.vmem %s3, 96
      %v1238 = vld [vmem:[%s1237] sm:$0xf]
      %v1239 = vld [vmem:[%s1237 + $0x4] sm:$0xf]
      %v1240 = vld [vmem:[%s1237 + $0x8] sm:$0xf]
      %v1241 = vld [vmem:[%s1237 + $0xc] sm:$0xf]
      %v1242 = vld [vmem:[%s1237 + $0x10] sm:$0xf]
      %v1243 = vld [vmem:[%s1237 + $0x14] sm:$0xf]
      %v1244 = vld [vmem:[%s1237 + $0x18] sm:$0xf]
      %v1245 = vld [vmem:[%s1237 + $0x1c] sm:$0xf]
      %v1246 = vld [vmem:[%s1237 + $0x20] sm:$0xf]
      %v1247 = vld [vmem:[%s1237 + $0x24] sm:$0xf]
      %v1248 = vld [vmem:[%s1237 + $0x28] sm:$0xf]
      %v1249 = vld [vmem:[%s1237 + $0x2c] sm:$0xf]
      %v1262 = vunpack.c.l.b16 %v1238
      %v1263 = vunpack.c.l.b16 %v1239
      %v1264 = vunpack.c.l.b16 %v1240
      %v1265 = vunpack.c.l.b16 %v1241
      %v1266 = vunpack.c.l.b16 %v1242
      %v1267 = vunpack.c.l.b16 %v1243
      %v1268 = vunpack.c.l.b16 %v1244
      %v1269 = vunpack.c.l.b16 %v1245
      %v1270 = vunpack.c.l.b16 %v1246
      %v1271 = vunpack.c.l.b16 %v1247
      %v1272 = vunpack.c.l.b16 %v1248
      %v1273 = vunpack.c.l.b16 %v1249
      %v1274 = vpack.c.b16 %v1263, %v1262
      %v1275 = vpack.c.b16 %v1265, %v1264
      %v1276 = vpack.c.b16 %v1267, %v1266
      %v1277 = vpack.c.b16 %v1269, %v1268
      %v1278 = vpack.c.b16 %v1271, %v1270
      %v1279 = vpack.c.b16 %v1273, %v1272
      %1286 = vmatprep.subr.bf16.mxu0 0
      %1287 = vmatpush1.bf16.msra.mxu0 %v1274
      %1288 = vmatprep.subr.bf16.mxu0 0
      %1289 = vmatpush1.bf16.msra.mxu0 %v1275
      %1290 = vmatprep.subr.bf16.mxu0 0
      %1291 = vmatpush1.bf16.msra.mxu0 %v1276
      %1292 = vmatprep.subr.bf16.mxu0 0
      %1293 = vmatpush1.bf16.msra.mxu0 %v1277
      %1294 = vmatprep.subr.bf16.mxu0 0
      %1295 = vmatpush1.bf16.msra.mxu0 %v1278
      %1296 = vmatprep.subr.bf16.mxu0 0
      %1297 = vmatpush1.bf16.msra.mxu0 %v1279
      %1298 = vmatprep.subr.bf16.mxu0 0
      %1299 = vmatpush1.bf16.msra.mxu0 0
      %1300 = vmatprep.subr.bf16.mxu0 0
      %1301 = vmatpush1.bf16.msra.mxu0 0
      %1302 = vmatprep.subr.bf16.mxu0 0
      %1303 = vmatpush1.bf16.msra.mxu0 0
      %1304 = vmatprep.subr.bf16.mxu0 0
      %1305 = vmatpush1.bf16.msra.mxu0 0
      %1306 = vmatprep.subr.bf16.mxu0 0
      %1307 = vmatpush1.bf16.msra.mxu0 0
      %1308 = vmatprep.subr.bf16.mxu0 0
      %1309 = vmatpush1.bf16.msra.mxu0 0
      %1310 = vmatprep.subr.bf16.mxu0 0
      %1311 = vmatpush1.bf16.msra.mxu0 0
      %1312 = vmatprep.subr.bf16.mxu0 0
      %1313 = vmatpush1.bf16.msra.mxu0 0
      %1314 = vmatprep.subr.bf16.mxu0 0
      %1315 = vmatpush1.bf16.msra.mxu0 0
      %1316 = vmatprep.subr.bf16.mxu0 0
      %1317 = vmatpush1.bf16.msra.mxu0 0
      %1318 = vmatprep.mubr.bf16.mxu0 0
      %1319 = vmatmul.mubr.bf16.gmra.mrb[0].mxu0 %v846
      %v1320 = vpop.f32.mrb[0].mxu0
      %v1321 = vadd.f32 0.0, %v1320
      %v1322 = vpop.f32.mrb[0].mxu0
      %v1323 = vpop.f32.mrb[0].mxu0
      %v1324 = vadd.f32 0.0, %v1323
      %v1325 = vpop.f32.mrb[0].mxu0
      %1326 = vmatprep.mubr.bf16.mxu0 0
      %1327 = vmatmul.mubr.bf16.gmra.mrb[0].mxu0 %v848
      %v1328 = vpop.f32.mrb[0].mxu0
      %v1329 = vadd.f32 0.0, %v1328
      %v1330 = vpop.f32.mrb[0].mxu0
      %v1331 = vpop.f32.mrb[0].mxu0
      %v1332 = vadd.f32 0.0, %v1331
      %v1333 = vpop.f32.mrb[0].mxu0
      %1334 = vmatprep.mubr.bf16.mxu0 0
      %1335 = vmatmul.mubr.bf16.gmra.mrb[0].mxu0 %v850
      %v1336 = vpop.f32.mrb[0].mxu0
      %v1337 = vadd.f32 0.0, %v1336
      %v1338 = vpop.f32.mrb[0].mxu0
      %v1339 = vpop.f32.mrb[0].mxu0
      %v1340 = vadd.f32 0.0, %v1339
      %v1341 = vpop.f32.mrb[0].mxu0
      %1342 = vmatprep.mubr.bf16.mxu0 0
      %1343 = vmatmul.mubr.bf16.gmra.mrb[0].mxu0 %v852
      %v1344 = vpop.f32.mrb[0].mxu0
      %v1345 = vadd.f32 0.0, %v1344
      %v1346 = vpop.f32.mrb[0].mxu0
      %v1347 = vpop.f32.mrb[0].mxu0
      %v1348 = vadd.f32 0.0, %v1347
      %v1349 = vpop.f32.mrb[0].mxu0
      %1350 = vmatprep.mubr.bf16.mxu0 0
      %1351 = vmatmul.mubr.bf16.gmra.mrb[0].mxu0 %v854
      %v1352 = vpop.f32.mrb[0].mxu0
      %v1353 = vadd.f32 0.0, %v1352
      %v1354 = vpop.f32.mrb[0].mxu0
      %v1355 = vpop.f32.mrb[0].mxu0
      %v1356 = vadd.f32 0.0, %v1355
      %v1357 = vpop.f32.mrb[0].mxu0
      %1358 = vmatprep.mubr.bf16.mxu0 0
      %1359 = vmatmul.mubr.bf16.gmra.mrb[0].mxu0 %v856
      %v1360 = vpop.f32.mrb[0].mxu0
      %v1361 = vadd.f32 0.0, %v1360
      %v1362 = vpop.f32.mrb[0].mxu0
      %v1363 = vpop.f32.mrb[0].mxu0
      %v1364 = vadd.f32 0.0, %v1363
      %v1365 = vpop.f32.mrb[0].mxu0
      %1366 = vmatprep.mubr.bf16.mxu0 0
      %1367 = vmatmul.mubr.bf16.gmra.mrb[0].mxu0 %v858
      %v1368 = vpop.f32.mrb[0].mxu0
      %v1369 = vadd.f32 0.0, %v1368
      %v1370 = vpop.f32.mrb[0].mxu0
      %v1371 = vpop.f32.mrb[0].mxu0
      %v1372 = vadd.f32 0.0, %v1371
      %v1373 = vpop.f32.mrb[0].mxu0
      %1374 = vmatprep.mubr.bf16.mxu0 0
      %1375 = vmatmul.mubr.bf16.gmra.mrb[0].mxu0 %v860
      %v1376 = vpop.f32.mrb[0].mxu0
      %v1377 = vadd.f32 0.0, %v1376
      %v1378 = vpop.f32.mrb[0].mxu0
      %v1379 = vpop.f32.mrb[0].mxu0
      %v1380 = vadd.f32 0.0, %v1379
      %v1381 = vpop.f32.mrb[0].mxu0
      %1382 = vmatprep.mubr.bf16.mxu0 0
      %1383 = vmatmul.mubr.bf16.gmra.mrb[0].mxu0 %v862
      %v1384 = vpop.f32.mrb[0].mxu0
      %v1385 = vadd.f32 0.0, %v1384
      %v1386 = vpop.f32.mrb[0].mxu0
      %v1387 = vpop.f32.mrb[0].mxu0
      %v1388 = vadd.f32 0.0, %v1387
      %v1389 = vpop.f32.mrb[0].mxu0
      %1390 = vmatprep.mubr.bf16.mxu0 0
      %1391 = vmatmul.mubr.bf16.gmra.mrb[0].mxu0 %v864
      %v1392 = vpop.f32.mrb[0].mxu0
      %v1393 = vadd.f32 0.0, %v1392
      %v1394 = vpop.f32.mrb[0].mxu0
      %v1395 = vpop.f32.mrb[0].mxu0
      %v1396 = vadd.f32 0.0, %v1395
      %v1397 = vpop.f32.mrb[0].mxu0
      %1398 = vmatprep.mubr.bf16.mxu0 0
      %1399 = vmatmul.mubr.bf16.gmra.mrb[0].mxu0 %v866
      %v1400 = vpop.f32.mrb[0].mxu0
      %v1401 = vadd.f32 0.0, %v1400
      %v1402 = vpop.f32.mrb[0].mxu0
      %v1403 = vpop.f32.mrb[0].mxu0
      %v1404 = vadd.f32 0.0, %v1403
      %v1405 = vpop.f32.mrb[0].mxu0
      %1406 = vmatprep.mubr.bf16.mxu0 0
      %1407 = vmatmul.mubr.bf16.gmra.mrb[0].mxu0 %v868
      %v1408 = vpop.f32.mrb[0].mxu0
      %v1409 = vadd.f32 0.0, %v1408
      %v1410 = vpop.f32.mrb[0].mxu0
      %v1411 = vpop.f32.mrb[0].mxu0
      %v1412 = vadd.f32 0.0, %v1411
      %v1413 = vpop.f32.mrb[0].mxu0
      %1414 = vmatprep.mubr.bf16.mxu0 0
      %1415 = vmatmul.mubr.bf16.gmra.mrb[0].mxu0 %v870
      %v1416 = vpop.f32.mrb[0].mxu0
      %v1417 = vadd.f32 0.0, %v1416
      %v1418 = vpop.f32.mrb[0].mxu0
      %v1419 = vpop.f32.mrb[0].mxu0
      %v1420 = vadd.f32 0.0, %v1419
      %v1421 = vpop.f32.mrb[0].mxu0
      %1422 = vmatprep.mubr.bf16.mxu0 0
      %1423 = vmatmul.mubr.bf16.gmra.mrb[0].mxu0 %v872
      %v1424 = vpop.f32.mrb[0].mxu0
      %v1425 = vadd.f32 0.0, %v1424
      %v1426 = vpop.f32.mrb[0].mxu0
      %v1427 = vpop.f32.mrb[0].mxu0
      %v1428 = vadd.f32 0.0, %v1427
      %v1429 = vpop.f32.mrb[0].mxu0
      %1430 = vmatprep.mubr.bf16.mxu0 0
      %1431 = vmatmul.mubr.bf16.gmra.mrb[0].mxu0 %v874
      %v1432 = vpop.f32.mrb[0].mxu0
      %v1433 = vadd.f32 0.0, %v1432
      %v1434 = vpop.f32.mrb[0].mxu0
      %v1435 = vpop.f32.mrb[0].mxu0
      %v1436 = vadd.f32 0.0, %v1435
      %v1437 = vpop.f32.mrb[0].mxu0
      %1438 = vmatprep.mubr.bf16.mxu0 0
      %1439 = vmatmul.mubr.bf16.gmra.mrb[0].mxu0 %v1074
      %v1440 = vpop.f32.mrb[0].mxu0
      %v1441 = vadd.f32 0.0, %v1440
      %v1442 = vpop.f32.mrb[0].mxu0
      %v1443 = vpop.f32.mrb[0].mxu0
      %v1444 = vadd.f32 0.0, %v1443
      %v1445 = vpop.f32.mrb[0].mxu0
      %1446 = vdwg.mxu0
      %v1447 = vadd.f32 %v1111, %v1321
      %v1448 = vadd.f32 %v1114, %v1324
      %v1449 = vadd.f32 %v1119, %v1329
      %v1450 = vadd.f32 %v1122, %v1332
      %v1451 = vadd.f32 %v1127, %v1337
      %v1452 = vadd.f32 %v1130, %v1340
      %v1453 = vadd.f32 %v1135, %v1345
      %v1454 = vadd.f32 %v1138, %v1348
      %v1455 = vadd.f32 %v1143, %v1353
      %v1456 = vadd.f32 %v1146, %v1356
      %v1457 = vadd.f32 %v1151, %v1361
      %v1458 = vadd.f32 %v1154, %v1364
      %v1459 = vadd.f32 %v1159, %v1369
      %v1460 = vadd.f32 %v1162, %v1372
      %v1461 = vadd.f32 %v1167, %v1377
      %v1462 = vadd.f32 %v1170, %v1380
      %v1463 = vadd.f32 %v1175, %v1385
      %v1464 = vadd.f32 %v1178, %v1388
      %v1465 = vadd.f32 %v1183, %v1393
      %v1466 = vadd.f32 %v1186, %v1396
      %v1467 = vadd.f32 %v1191, %v1401
      %v1468 = vadd.f32 %v1194, %v1404
      %v1469 = vadd.f32 %v1199, %v1409
      %v1470 = vadd.f32 %v1202, %v1412
      %v1471 = vadd.f32 %v1207, %v1417
      %v1472 = vadd.f32 %v1210, %v1420
      %v1473 = vadd.f32 %v1215, %v1425
      %v1474 = vadd.f32 %v1218, %v1428
      %v1475 = vadd.f32 %v1223, %v1433
      %v1476 = vadd.f32 %v1226, %v1436
      %v1477 = vadd.f32 %v1231, %v1441
      %v1478 = vadd.f32 %v1234, %v1444
      %v1479 = vld [vmem:[%s4] sm:$0x1]
      %v1481 = vlaneseq
      %v1482 = vshrl.u32 %v1481, 7
      %v1483 = vsub.s32 0, %v1482
      %v1484 = vrot.slane %v1479, %v1483
      %v1486 = vadd.f32 %v1447, %v1484
      %v1487 = vadd.f32 %v1448, %v1484
      %v1488 = vadd.f32 %v1449, %v1484
      %v1489 = vadd.f32 %v1450, %v1484
      %v1490 = vadd.f32 %v1451, %v1484
      %v1491 = vadd.f32 %v1452, %v1484
      %v1492 = vadd.f32 %v1453, %v1484
      %v1493 = vadd.f32 %v1454, %v1484
      %v1494 = vadd.f32 %v1455, %v1484
      %v1495 = vadd.f32 %v1456, %v1484
      %v1496 = vadd.f32 %v1457, %v1484
      %v1497 = vadd.f32 %v1458, %v1484
      %v1498 = vadd.f32 %v1459, %v1484
      %v1499 = vadd.f32 %v1460, %v1484
      %v1500 = vadd.f32 %v1461, %v1484
      %v1501 = vadd.f32 %v1462, %v1484
      %v1502 = vadd.f32 %v1463, %v1484
      %v1503 = vadd.f32 %v1464, %v1484
      %v1504 = vadd.f32 %v1465, %v1484
      %v1505 = vadd.f32 %v1466, %v1484
      %v1506 = vadd.f32 %v1467, %v1484
      %v1507 = vadd.f32 %v1468, %v1484
      %v1508 = vadd.f32 %v1469, %v1484
      %v1509 = vadd.f32 %v1470, %v1484
      %v1510 = vadd.f32 %v1471, %v1484
      %v1511 = vadd.f32 %v1472, %v1484
      %v1512 = vadd.f32 %v1473, %v1484
      %v1513 = vadd.f32 %v1474, %v1484
      %v1514 = vadd.f32 %v1475, %v1484
      %v1515 = vadd.f32 %v1476, %v1484
      %v1516 = vadd.f32 %v1477, %v1484
      %v1517 = vadd.f32 %v1478, %v1484
      %v1518 = vmax.f32 %v1486, 0.0
      %v1519 = vmax.f32 %v1487, 0.0
      %v1520 = vmax.f32 %v1488, 0.0
      %v1521 = vmax.f32 %v1489, 0.0
      %v1522 = vmax.f32 %v1490, 0.0
      %v1523 = vmax.f32 %v1491, 0.0
      %v1524 = vmax.f32 %v1492, 0.0
      %v1525 = vmax.f32 %v1493, 0.0
      %v1526 = vmax.f32 %v1494, 0.0
      %v1527 = vmax.f32 %v1495, 0.0
      %v1528 = vmax.f32 %v1496, 0.0
      %v1529 = vmax.f32 %v1497, 0.0
      %v1530 = vmax.f32 %v1498, 0.0
      %v1531 = vmax.f32 %v1499, 0.0
      %v1532 = vmax.f32 %v1500, 0.0
      %v1533 = vmax.f32 %v1501, 0.0
      %v1534 = vmax.f32 %v1502, 0.0
      %v1535 = vmax.f32 %v1503, 0.0
      %v1536 = vmax.f32 %v1504, 0.0
      %v1537 = vmax.f32 %v1505, 0.0
      %v1538 = vmax.f32 %v1506, 0.0
      %v1539 = vmax.f32 %v1507, 0.0
      %v1540 = vmax.f32 %v1508, 0.0
      %v1541 = vmax.f32 %v1509, 0.0
      %v1542 = vmax.f32 %v1510, 0.0
      %v1543 = vmax.f32 %v1511, 0.0
      %v1544 = vmax.f32 %v1512, 0.0
      %v1545 = vmax.f32 %v1513, 0.0
      %v1546 = vmax.f32 %v1514, 0.0
      %v1547 = vmax.f32 %v1515, 0.0
      %v1548 = vmax.f32 %v1516, 0.0
      %v1549 = vmax.f32 %v1517, 0.0
      %v1550 = vmax.f32 %v1518, %v1520
      %v1551 = vmax.f32 %v1519, %v1521
      %v1552 = vmax.f32 %v1522, %v1524
      %v1553 = vmax.f32 %v1523, %v1525
      %v1554 = vmax.f32 %v1526, %v1528
      %v1555 = vmax.f32 %v1527, %v1529
      %v1556 = vmax.f32 %v1530, %v1532
      %v1557 = vmax.f32 %v1531, %v1533
      %v1558 = vmax.f32 %v1534, %v1536
      %v1559 = vmax.f32 %v1535, %v1537
      %v1560 = vmax.f32 %v1538, %v1540
      %v1561 = vmax.f32 %v1539, %v1541
      %v1562 = vmax.f32 %v1542, %v1544
      %v1563 = vmax.f32 %v1543, %v1545
      %v1564 = vmax.f32 %v1546, %v1548
      %v1565 = vmax.f32 %v1547, %v1549
      %1566 = vst.msk [vmem:[#allocation2] sm:$0xff] %vm749, %v1550
      %1567 = vst.msk [vmem:[#allocation2 + $0x8] sm:$0xff] %vm749, %v1551
      %1568 = vst.msk [vmem:[#allocation2 + $0x10] sm:$0xff] %vm749, %v1552
      %1569 = vst.msk [vmem:[#allocation2 + $0x18] sm:$0xff] %vm749, %v1553
      %1570 = vst.msk [vmem:[#allocation2 + $0x20] sm:$0xff] %vm749, %v1554
      %1571 = vst.msk [vmem:[#allocation2 + $0x28] sm:$0xff] %vm749, %v1555
      %1572 = vst.msk [vmem:[#allocation2 + $0x30] sm:$0xff] %vm749, %v1556
      %1573 = vst.msk [vmem:[#allocation2 + $0x38] sm:$0xff] %vm749, %v1557
      %1574 = vst.msk [vmem:[#allocation2 + $0x40] sm:$0xff] %vm749, %v1558
      %1575 = vst.msk [vmem:[#allocation2 + $0x48] sm:$0xff] %vm749, %v1559
      %1576 = vst.msk [vmem:[#allocation2 + $0x50] sm:$0xff] %vm749, %v1560
      %1577 = vst.msk [vmem:[#allocation2 + $0x58] sm:$0xff] %vm749, %v1561
      %1578 = vst.msk [vmem:[#allocation2 + $0x60] sm:$0xff] %vm749, %v1562
      %1579 = vst.msk [vmem:[#allocation2 + $0x68] sm:$0xff] %vm749, %v1563
      %1580 = vst.msk [vmem:[#allocation2 + $0x70] sm:$0xff] %vm749, %v1564
      %1581 = vst.msk [vmem:[#allocation2 + $0x78] sm:$0xff] %vm749, %v1565
      %v1582 = vld [vmem:[#allocation2] ss:$2 sm:$0xff]
      %s1583 = scalar_lea.vmem [#allocation2], 16
      %v1584 = vld [vmem:[%s1583] ss:$2 sm:$0xff]
      %s1585 = scalar_lea.vmem [#allocation2], 32
      %v1586 = vld [vmem:[%s1585] ss:$2 sm:$0xff]
      %s1587 = scalar_lea.vmem [#allocation2], 48
      %v1588 = vld [vmem:[%s1587] ss:$2 sm:$0xff]
      %s1589 = scalar_lea.vmem [#allocation2], 64
      %v1590 = vld [vmem:[%s1589] ss:$2 sm:$0xff]
      %s1591 = scalar_lea.vmem [#allocation2], 80
      %v1592 = vld [vmem:[%s1591] ss:$2 sm:$0xff]
      %s1593 = scalar_lea.vmem [#allocation2], 96
      %v1594 = vld [vmem:[%s1593] ss:$2 sm:$0xff]
      %s1595 = scalar_lea.vmem [#allocation2], 112
      %v1596 = vld [vmem:[%s1595] ss:$2 sm:$0xff]
      %s1597 = scalar_lea.vmem [#allocation2], 1
      %v1598 = vld [vmem:[%s1597] ss:$2 sm:$0xff]
      %s1599 = scalar_lea.vmem [#allocation2], 17
      %v1600 = vld [vmem:[%s1599] ss:$2 sm:$0xff]
      %s1601 = scalar_lea.vmem [#allocation2], 33
      %v1602 = vld [vmem:[%s1601] ss:$2 sm:$0xff]
      %s1603 = scalar_lea.vmem [#allocation2], 49
      %v1604 = vld [vmem:[%s1603] ss:$2 sm:$0xff]
      %s1605 = scalar_lea.vmem [#allocation2], 65
      %v1606 = vld [vmem:[%s1605] ss:$2 sm:$0xff]
      %s1607 = scalar_lea.vmem [#allocation2], 81
      %v1608 = vld [vmem:[%s1607] ss:$2 sm:$0xff]
      %s1609 = scalar_lea.vmem [#allocation2], 97
      %v1610 = vld [vmem:[%s1609] ss:$2 sm:$0xff]
      %s1611 = scalar_lea.vmem [#allocation2], 113
      %v1612 = vld [vmem:[%s1611] ss:$2 sm:$0xff]
      %v1613 = vmax.f32 %v1582, %v1598
      %v1614 = vmax.f32 %v1584, %v1600
      %v1615 = vmax.f32 %v1586, %v1602
      %v1616 = vmax.f32 %v1588, %v1604
      %v1617 = vmax.f32 %v1590, %v1606
      %v1618 = vmax.f32 %v1592, %v1608
      %v1619 = vmax.f32 %v1594, %v1610
      %v1620 = vmax.f32 %v1596, %v1612
      %1621 = vst.msk [vmem:[%s258] sm:$0xff] %vm749, %v1613
      %1622 = vst.msk [vmem:[%s258 + $0x8] sm:$0xff] %vm749, %v1614
      %1623 = vst.msk [vmem:[%s258 + $0x10] sm:$0xff] %vm749, %v1615
      %1624 = vst.msk [vmem:[%s258 + $0x18] sm:$0xff] %vm749, %v1616
      %1625 = vst.msk [vmem:[%s258 + $0x20] sm:$0xff] %vm749, %v1617
      %1626 = vst.msk [vmem:[%s258 + $0x28] sm:$0xff] %vm749, %v1618
      %1627 = vst.msk [vmem:[%s258 + $0x30] sm:$0xff] %vm749, %v1619
      %1628 = vst.msk [vmem:[%s258 + $0x38] sm:$0xff] %vm749, %v1620
      %v1629 = vadd.f32 %v1613, 0.0
      %v1630 = vadd.f32 %v1614, 0.0
      %v1631 = vadd.f32 %v1615, 0.0
      %v1632 = vadd.f32 %v1616, 0.0
      %v1633 = vadd.f32 %v1617, 0.0
      %v1634 = vadd.f32 %v1618, 0.0
      %v1635 = vadd.f32 %v1619, 0.0
      %v1636 = vadd.f32 %v1620, 0.0
      %v1637 = vsel %vm749, %v1629, 0.0
      %v1638 = vsel %vm749, %v1630, 0.0
      %v1639 = vadd.f32 %v1637, %v1638
      %v1640 = vsel %vm749, %v1631, 0.0
      %v1641 = vadd.f32 %v1639, %v1640
      %v1642 = vsel %vm749, %v1632, 0.0
      %v1643 = vadd.f32 %v1641, %v1642
      %v1644 = vsel %vm749, %v1633, 0.0
      %v1645 = vadd.f32 %v1643, %v1644
      %v1646 = vsel %vm749, %v1634, 0.0
      %v1647 = vadd.f32 %v1645, %v1646
      %v1648 = vsel %vm749, %v1635, 0.0
      %v1649 = vadd.f32 %v1647, %v1648
      %v1650 = vsel %vm749, %v1636, 0.0
      %v1651 = vadd.f32 %v1649, %v1650
      %v1652 = vsel %vm749, %v1651, 0.0
      %v1653 = vrot.slane %v1652, 4
      %v1654 = vadd.f32 %v1652, %v1653
      %v1655 = vrot.slane %v1654, 2
      %v1656 = vadd.f32 %v1654, %v1655
      %v1657 = vrot.slane %v1656, 1
      %v1658 = vadd.f32 %v1656, %v1657
      %v1659 = vmul.f32 %v1613, %v1613
      %v1660 = vmul.f32 %v1614, %v1614
      %v1661 = vmul.f32 %v1615, %v1615
      %v1662 = vmul.f32 %v1616, %v1616
      %v1663 = vmul.f32 %v1617, %v1617
      %v1664 = vmul.f32 %v1618, %v1618
      %v1665 = vmul.f32 %v1619, %v1619
      %v1666 = vmul.f32 %v1620, %v1620
      %v1667 = vadd.f32 %v1659, 0.0
      %v1668 = vadd.f32 %v1660, 0.0
      %v1669 = vadd.f32 %v1661, 0.0
      %v1670 = vadd.f32 %v1662, 0.0
      %v1671 = vadd.f32 %v1663, 0.0
      %v1672 = vadd.f32 %v1664, 0.0
      %v1673 = vadd.f32 %v1665, 0.0
      %v1674 = vadd.f32 %v1666, 0.0
      %v1675 = vsel %vm749, %v1667, 0.0
      %v1676 = vsel %vm749, %v1668, 0.0
      %v1677 = vadd.f32 %v1675, %v1676
      %v1678 = vsel %vm749, %v1669, 0.0
      %v1679 = vadd.f32 %v1677, %v1678
      %v1680 = vsel %vm749, %v1670, 0.0
      %v1681 = vadd.f32 %v1679, %v1680
      %v1682 = vsel %vm749, %v1671, 0.0
      %v1683 = vadd.f32 %v1681, %v1682
      %v1684 = vsel %vm749, %v1672, 0.0
      %v1685 = vadd.f32 %v1683, %v1684
      %v1686 = vsel %vm749, %v1673, 0.0
      %v1687 = vadd.f32 %v1685, %v1686
      %v1688 = vsel %vm749, %v1674, 0.0
      %v1689 = vadd.f32 %v1687, %v1688
      %v1690 = vsel %vm749, %v1689, 0.0
      %v1691 = vrot.slane %v1690, 4
      %v1692 = vadd.f32 %v1690, %v1691
      %v1693 = vrot.slane %v1692, 2
      %v1694 = vadd.f32 %v1692, %v1693
      %v1695 = vrot.slane %v1694, 1
      %v1696 = vadd.f32 %v1694, %v1695
      %vm1697 = vcmask 1040384
      %v1698 = vsel %vm1697, %v1658, %v1696
      %vm1699 = vcmask 517120
      %1700 = vst.msk [vmem:[%s262] sm:$0x3] %vm1699, %v1698
      %p1701 = scmp.lt.s32.totalorder %s18, 1
      %s1702 = scalar_select %p1701, %s18, 1
      %s1703 = smul.addr %s1702, 8
      %s1704 = smul.addr %s1703, 8
      %s1705 = scalar_lea.vmem %s5, %s1704
      %p1706 = scmp.lt.s32.totalorder %s18, 1
      %s1707 = scalar_select %p1706, %s18, 1
      %s1708 = smul.addr %s1707, 2
      %s1709 = scalar_lea.vmem %s6, %s1708
      // Predicated region
      $region41: #{model_forward.5} parent=39 // pred_check
        %p1710 = pneg %p146
      $region42: #{model_forward.5} parent=39 // pred_check_branch
        %1712 = sbr.rel (%p1710) target = $region44
      $region43: #{model_forward.5} parent=39 // pred_region
        _
      $region44: #{model_forward.5} parent=39 // pred_fallthru
        _
      // Predicated region
      $region45: #{model_forward.5} parent=39 // pred_check
        %p1713 = pneg %p172
      $region46: #{model_forward.5} parent=39 // pred_check_branch
        %1715 = sbr.rel (%p1713) target = $region48
      $region47: #{model_forward.5} parent=39 // pred_region
        _
      $region48: #{model_forward.5} parent=39 // pred_fallthru
        _
    $region40: #{model_forward.5} parent=5 // pred_fallthru
      _
    %p1716 = scmp.le.s32.totalorder 2, %s13
    // Predicated region
    $region49: #{model_forward.5} parent=5 // pred_check
      %p1717 = pneg %p1716
    $region50: #{model_forward.5} parent=5 // pred_check_branch
      %1719 = sbr.rel (%p1717) target = $region52
    $region51: #{model_forward.5} parent=5 // pred_region
      %s1720 = ssub.s32 %s13, 2
      // Predicated region
      $region53: #{model_forward.5} parent=51 // pred_check
        %p1721 = pneg %p152
      $region54: #{model_forward.5} parent=51 // pred_check_branch
        %1723 = sbr.rel (%p1721) target = $region56
      $region55: #{model_forward.5} parent=51 // pred_region
        %p1724 = scmp.lt.s32.totalorder %s19, 1
        %s1725 = scalar_select %p1724, %s19, 1
        %s1726 = smul.addr %s1725, 8
        %s1727 = smul.addr %s1726, 8
        %s1728 = scalar_lea.vmem %s5, %s1727
      $region56: #{model_forward.5} parent=51 // pred_fallthru
        _
      // Predicated region
      $region57: #{model_forward.5} parent=51 // pred_check
        %p1729 = pneg %p178
      $region58: #{model_forward.5} parent=51 // pred_check_branch
        %1731 = sbr.rel (%p1729) target = $region60
      $region59: #{model_forward.5} parent=51 // pred_region
        %p1732 = scmp.lt.s32.totalorder %s19, 1
        %s1733 = scalar_select %p1732, %s19, 1
        %s1734 = smul.addr %s1733, 2
        %s1735 = scalar_lea.vmem %s6, %s1734
      $region60: #{model_forward.5} parent=51 // pred_fallthru
        _
    $region52: #{model_forward.5} parent=5 // pred_fallthru
      _
  $region6: #{model_forward.5} parent=0 // loop_footer
    %s17 = sadd.s32 1, %s13
  $region7: #{model_forward.5} parent=0 // loop_footer_branch
    %12 = sbr.rel target = $region3
  $region8: #{model_forward.5} parent=0 // loop_exit
    _

// kernel: model_forward.4
$region0: #{model_forward.4}
  #allocation0 [shape = 'u32[]', space=smem, size = 0x4, offset = 0x4, fixed_abs, tag = 'smem constant byte address 0x4 - core index']
  #allocation1 [shape = 'u32[144,128]{1,0:T(1,128)}', space=vmem, size = 0x12000, scoped, tag = 'internal scratch']
  #allocation2 [shape = 'f32[1,16,32,32]{3,2,1,0:T(8,128)}', space=vmem, size = 0x40000, scoped, tag = 'scratch operand']
  %s0 = inlined_call_operand.vmem [shape: bf16[2,32,32,27], index: 0, kind: input, shape index: {}]
  %s1 = inlined_call_operand.vmem [shape: f32[1,27], index: 1, kind: input, shape index: {}]
  %s2 = inlined_call_operand.vmem [shape: f32[1,27], index: 2, kind: input, shape index: {}]
  %s3 = inlined_call_operand.vmem [shape: bf16[1,27,32], index: 3, kind: input, shape index: {}]
  %s4 = inlined_call_operand.vmem [shape: f32[1,32], index: 4, kind: input, shape index: {}]
  %s5 = inlined_call_operand.vmem [shape: f32[2,16,16,32], index: 5, kind: output, shape index: {0}]
  %s6 = inlined_call_operand.vmem [shape: f32[2,2,32], index: 6, kind: output, shape index: {1}]
  %7 = xla_tuple %s5, %s6
  %s8 = sld [smem:[#allocation0]]
  $region61: #{model_forward.4} parent=0
    _
  %s10 = ssub.s32 1, %s8
  %s11 = scalar_select 0, %s10, %s8
  loop: start=0, step=1, limit=4
  $region2: #{model_forward.4} parent=0 // loop_pre_header
    _
  $region3: #{model_forward.4} parent=0 // loop_header
    %s13 = sphi 0, %s17
    %p14 = scmp.ge.s32.totalorder %s13, 4
    %s23 = sphi 0, %s25
    %s26 = sphi 0, %s23
    %s27 = sphi 0, %s26
    %s43 = sphi 0, %s27
    %s47 = sphi 0, %s47
    %s49 = sphi 0, %s47
    %s50 = sphi 0, %s49
    %s64 = sphi 0, %s50
    %s68 = sphi 0, %s68
    %s70 = sphi 0, %s68
    %s71 = sphi 0, %s70
    %s85 = sphi 0, %s71
    %s89 = sphi 0, %s89
    %s91 = sphi 0, %s89
    %s92 = sphi 0, %s91
    %s106 = sphi 0, %s92
    %s110 = sphi 0, %s110
    %s112 = sphi 0, %s110
    %s113 = sphi 0, %s112
    %s127 = sphi 0, %s113
    %s133 = sphi 0, %s135
    %s136 = sphi 0, %s133
    %s137 = sphi 0, %s136
    %s153 = sphi 0, %s137
    %s159 = sphi 0, %s161
    %s162 = sphi 0, %s159
    %s163 = sphi 0, %s162
    %s179 = sphi 0, %s163
  $region4: #{model_forward.4} parent=0 // loop_header_branch
    %16 = sbr.rel (%p14) target = $region8
  $region5: #{model_forward.4} parent=0 // loop_body
    %s18 = ssub.s32 %s13, 1
    %s19 = ssub.s32 %s13, 2
    %s20 = sadd.s32 %s13, 1
    %s21 = ssub.s32 %s13, %s20
    %p22 = scmp.eq.s32.totalorder %s21, 0
    %s24 = sadd.s32 %s23, 1
    %s25 = scalar_select %p22, %s23, %s24
    %p28 = pneg %p22
    %p29 = scmp.eq.s32.totalorder %s13, 1
    %p30 = por %p28, %p29
    %p31 = scmp.ne.s32.totalorder %s23, %s26
    %p32 = scmp.eq.s32.totalorder %s13, 0
    %p33 = por %p31, %p32
    %p34 = scmp.ne.s32.totalorder %s23, %s26
    %p35 = scmp.eq.s32.totalorder %s18, 1
    %p36 = por %p34, %p35
    %p37 = scmp.ne.s32.totalorder %s26, %s27
    %p38 = scmp.eq.s32.totalorder %s18, 0
    %p39 = por %p37, %p38
    %p40 = scmp.ne.s32.totalorder %s26, %s27
    %p41 = scmp.eq.s32.totalorder %s19, 1
    %p42 = por %p40, %p41
    %p44 = scmp.ne.s32.totalorder %s27, %s43
    %p45 = scmp.eq.s32.totalorder %s19, 0
    %p46 = por %p44, %p45
    %s48 = sadd.s32 %s47, 1
    %p51 = scmp.eq.s32.totalorder %s13, 1
    %p52 = scmp.ne.s32.totalorder %s47, %s49
    %p53 = scmp.eq.s32.totalorder %s13, 0
    %p54 = por %p52, %p53
    %p55 = scmp.ne.s32.totalorder %s47, %s49
    %p56 = scmp.eq.s32.totalorder %s18, 1
    %p57 = por %p55, %p56
    %p58 = scmp.ne.s32.totalorder %s49, %s50
    %p59 = scmp.eq.s32.totalorder %s18, 0
    %p60 = por %p58, %p59
    %p61 = scmp.ne.s32.totalorder %s49, %s50
    %p62 = scmp.eq.s32.totalorder %s19, 1
    %p63 = por %p61, %p62
    %p65 = scmp.ne.s32.totalorder %s50, %s64
    %p66 = scmp.eq.s32.totalorder %s19, 0
    %p67 = por %p65, %p66
    %s69 = sadd.s32 %s68, 1
    %p72 = scmp.eq.s32.totalorder %s13, 1
    %p73 = scmp.ne.s32.totalorder %s68, %s70
    %p74 = scmp.eq.s32.totalorder %s13, 0
    %p75 = por %p73, %p74
    %p76 = scmp.ne.s32.totalorder %s68, %s70
    %p77 = scmp.eq.s32.totalorder %s18, 1
    %p78 = por %p76, %p77
    %p79 = scmp.ne.s32.totalorder %s70, %s71
    %p80 = scmp.eq.s32.totalorder %s18, 0
    %p81 = por %p79, %p80
    %p82 = scmp.ne.s32.totalorder %s70, %s71
    %p83 = scmp.eq.s32.totalorder %s19, 1
    %p84 = por %p82, %p83
    %p86 = scmp.ne.s32.totalorder %s71, %s85
    %p87 = scmp.eq.s32.totalorder %s19, 0
    %p88 = por %p86, %p87
    %s90 = sadd.s32 %s89, 1
    %p93 = scmp.eq.s32.totalorder %s13, 1
    %p94 = scmp.ne.s32.totalorder %s89, %s91
    %p95 = scmp.eq.s32.totalorder %s13, 0
    %p96 = por %p94, %p95
    %p97 = scmp.ne.s32.totalorder %s89, %s91
    %p98 = scmp.eq.s32.totalorder %s18, 1
    %p99 = por %p97, %p98
    %p100 = scmp.ne.s32.totalorder %s91, %s92
    %p101 = scmp.eq.s32.totalorder %s18, 0
    %p102 = por %p100, %p101
    %p103 = scmp.ne.s32.totalorder %s91, %s92
    %p104 = scmp.eq.s32.totalorder %s19, 1
    %p105 = por %p103, %p104
    %p107 = scmp.ne.s32.totalorder %s92, %s106
    %p108 = scmp.eq.s32.totalorder %s19, 0
    %p109 = por %p107, %p108
    %s111 = sadd.s32 %s110, 1
    %p114 = scmp.eq.s32.totalorder %s13, 1
    %p115 = scmp.ne.s32.totalorder %s110, %s112
    %p116 = scmp.eq.s32.totalorder %s13, 0
    %p117 = por %p115, %p116
    %p118 = scmp.ne.s32.totalorder %s110, %s112
    %p119 = scmp.eq.s32.totalorder %s18, 1
    %p120 = por %p118, %p119
    %p121 = scmp.ne.s32.totalorder %s112, %s113
    %p122 = scmp.eq.s32.totalorder %s18, 0
    %p123 = por %p121, %p122
    %p124 = scmp.ne.s32.totalorder %s112, %s113
    %p125 = scmp.eq.s32.totalorder %s19, 1
    %p126 = por %p124, %p125
    %p128 = scmp.ne.s32.totalorder %s113, %s127
    %p129 = scmp.eq.s32.totalorder %s19, 0
    %p130 = por %p128, %p129
    %s131 = ssub.s32 %s13, %s20
    %p132 = scmp.eq.s32.totalorder %s131, 0
    %s134 = sadd.s32 %s133, 1
    %s135 = scalar_select %p132, %s133, %s134
    %p138 = pneg %p132
    %p139 = scmp.eq.s32.totalorder %s13, 1
    %p140 = por %p138, %p139
    %p141 = scmp.ne.s32.totalorder %s133, %s136
    %p142 = scmp.eq.s32.totalorder %s13, 0
    %p143 = por %p141, %p142
    %p144 = scmp.ne.s32.totalorder %s133, %s136
    %p145 = scmp.eq.s32.totalorder %s18, 1
    %p146 = por %p144, %p145
    %p147 = scmp.ne.s32.totalorder %s136, %s137
    %p148 = scmp.eq.s32.totalorder %s18, 0
    %p149 = por %p147, %p148
    %p150 = scmp.ne.s32.totalorder %s136, %s137
    %p151 = scmp.eq.s32.totalorder %s19, 1
    %p152 = por %p150, %p151
    %p154 = scmp.ne.s32.totalorder %s137, %s153
    %p155 = scmp.eq.s32.totalorder %s19, 0
    %p156 = por %p154, %p155
    %s157 = ssub.s32 %s13, %s20
    %p158 = scmp.eq.s32.totalorder %s157, 0
    %s160 = sadd.s32 %s159, 1
    %s161 = scalar_select %p158, %s159, %s160
    %p164 = pneg %p158
    %p165 = scmp.eq.s32.totalorder %s13, 1
    %p166 = por %p164, %p165
    %p167 = scmp.ne.s32.totalorder %s159, %s162
    %p168 = scmp.eq.s32.totalorder %s13, 0
    %p169 = por %p167, %p168
    %p170 = scmp.ne.s32.totalorder %s159, %s162
    %p171 = scmp.eq.s32.totalorder %s18, 1
    %p172 = por %p170, %p171
    %p173 = scmp.ne.s32.totalorder %s162, %s163
    %p174 = scmp.eq.s32.totalorder %s18, 0
    %p175 = por %p173, %p174
    %p176 = scmp.ne.s32.totalorder %s162, %s163
    %p177 = scmp.eq.s32.totalorder %s19, 1
    %p178 = por %p176, %p177
    %p180 = scmp.ne.s32.totalorder %s163, %s179
    %p181 = scmp.eq.s32.totalorder %s19, 0
    %p182 = por %p180, %p181
    %p183 = scmp.le.s32.totalorder 1, %s13
    %p184 = scmp.lt.s32.totalorder %s13, 3
    %p185 = pnand %p183, %p184
    %p186 = pneg %p185
    // Predicated region
    $region9: #{model_forward.4} parent=5 // pred_check
      _
    $region10: #{model_forward.4} parent=5 // pred_check_branch
      %188 = sbr.rel (%p185) target = $region12
    $region11: #{model_forward.4} parent=5 // pred_region
      %s189 = ssub.s32 %s13, 1
      // Predicated region
      $region13: #{model_forward.4} parent=11 // pred_check
        %p190 = pneg %p60
      $region14: #{model_forward.4} parent=11 // pred_check_branch
        %192 = sbr.rel (%p190) target = $region16
      $region15: #{model_forward.4} parent=11 // pred_region
        _
      $region16: #{model_forward.4} parent=11 // pred_fallthru
        _
      // Predicated region
      $region17: #{model_forward.4} parent=11 // pred_check
        %p193 = pneg %p81
      $region18: #{model_forward.4} parent=11 // pred_check_branch
        %195 = sbr.rel (%p193) target = $region20
      $region19: #{model_forward.4} parent=11 // pred_region
        _
      $region20: #{model_forward.4} parent=11 // pred_fallthru
        _
      // Predicated region
      $region21: #{model_forward.4} parent=11 // pred_check
        %p196 = pneg %p102
      $region22: #{model_forward.4} parent=11 // pred_check_branch
        %198 = sbr.rel (%p196) target = $region24
      $region23: #{model_forward.4} parent=11 // pred_region
        _
      $region24: #{model_forward.4} parent=11 // pred_fallthru
        _
      // Predicated region
      $region25: #{model_forward.4} parent=11 // pred_check
        %p199 = pneg %p123
      $region26: #{model_forward.4} parent=11 // pred_check_branch
        %201 = sbr.rel (%p199) target = $region28
      $region27: #{model_forward.4} parent=11 // pred_region
        _
      $region28: #{model_forward.4} parent=11 // pred_fallthru
        _
    $region12: #{model_forward.4} parent=5 // pred_fallthru
      _
    %p202 = scmp.lt.s32.totalorder %s13, 2
    // Predicated region
    $region29: #{model_forward.4} parent=5 // pred_check
      %p203 = pneg %p202
    $region30: #{model_forward.4} parent=5 // pred_check_branch
      %205 = sbr.rel (%p203) target = $region32
    $region31: #{model_forward.4} parent=5 // pred_region
      // Predicated region
      $region33: #{model_forward.4} parent=31 // pred_check
        %p206 = pneg %p33
      $region34: #{model_forward.4} parent=31 // pred_check_branch
        %208 = sbr.rel (%p206) target = $region36
      $region35: #{model_forward.4} parent=31 // pred_region
        %p209 = scmp.lt.s32.totalorder %s13, 1
        %s210 = scalar_select %p209, %s13, 1
        %s211 = smul.addr %s210, 128
        %s212 = smul.addr %s211, 4
        %s213 = scalar_lea.vmem %s0, %s212
      $region36: #{model_forward.4} parent=31 // pred_fallthru
        _
    $region32: #{model_forward.4} parent=5 // pred_fallthru
      _
    %p214 = scmp.le.s32.totalorder 1, %s13
    %p215 = scmp.lt.s32.totalorder %s13, 3
    %p216 = pnand %p214, %p215
    %p217 = pneg %p216
    // Predicated region
    $region37: #{model_forward.4} parent=5 // pred_check
      _
    $region38: #{model_forward.4} parent=5 // pred_check_branch
      %219 = sbr.rel (%p216) target = $region40
    $region39: #{model_forward.4} parent=5 // pred_region
      %s220 = ssub.s32 %s13, 1
      %p221 = scmp.lt.s32.totalorder %s18, 1
      %s222 = scalar_select %p221, %s18, 1
      %s223 = smul.addr %s222, 128
      %s224 = smul.addr %s223, 4
      %s225 = scalar_lea.vmem %s0, %s224
      %p226 = pneg %p39
      %p227 = pneg %p36
      %p228 = pneg %p60
      %p229 = pneg %p57
      %p230 = pneg %p81
      %p231 = pneg %p78
      %p232 = pneg %p102
      %p233 = pneg %p99
      %p234 = pneg %p123
      %p235 = pneg %p120
      %p236 = pneg %p149
      %p237 = pneg %p146
      %p238 = scmp.lt.s32.totalorder %s18, 1
      %s239 = scalar_select %p238, %s18, 1
      %s240 = smul.addr %s239, 32
      %s241 = smul.addr %s240, 8
      %s242 = scalar_lea.vmem %s5, %s241
      %p243 = pneg %p175
      %p244 = pneg %p172
      %p245 = scmp.lt.s32.totalorder %s18, 1
      %s246 = scalar_select %p245, %s18, 1
      %s247 = smul.addr %s246, 2
      %s248 = scalar_lea.vmem %s6, %s247
      %p249 = scmp.lt.s32.totalorder %s18, 1
      %s250 = scalar_select %p249, %s18, 1
      %s251 = smul.addr %s250, 128
      %s252 = smul.addr %s251, 4
      %s253 = scalar_lea.vmem %s0, %s252
      %p254 = scmp.lt.s32.totalorder %s18, 1
      %s255 = scalar_select %p254, %s18, 1
      %s256 = smul.addr %s255, 32
      %s257 = smul.addr %s256, 8
      %s258 = scalar_lea.vmem %s5, %s257
      %p259 = scmp.lt.s32.totalorder %s18, 1
      %s260 = scalar_select %p259, %s18, 1
      %s261 = smul.addr %s260, 2
      %s262 = scalar_lea.vmem %s6, %s261
      %v264 = vld [vmem:[%s253] sm:$0xf]
      %v265 = vld [vmem:[%s253 + $0x4] sm:$0xf]
      %v266 = vld [vmem:[%s253 + $0x8] sm:$0xf]
      %v267 = vld [vmem:[%s253 + $0xc] sm:$0xf]
      %v268 = vld [vmem:[%s253 + $0x10] sm:$0xf]
      %v269 = vld [vmem:[%s253 + $0x14] sm:$0xf]
      %v270 = vld [vmem:[%s253 + $0x18] sm:$0xf]
      %v271 = vld [vmem:[%s253 + $0x1c] sm:$0xf]
      %v272 = vld [vmem:[%s253 + $0x20] sm:$0xf]
      %v273 = vld [vmem:[%s253 + $0x24] sm:$0xf]
      %v274 = vld [vmem:[%s253 + $0x28] sm:$0xf]
      %v275 = vld [vmem:[%s253 + $0x2c] sm:$0xf]
      %v276 = vld [vmem:[%s253 + $0x30] sm:$0xf]
      %v277 = vld [vmem:[%s253 + $0x34] sm:$0xf]
      %v278 = vld [vmem:[%s253 + $0x38] sm:$0xf]
      %v279 = vld [vmem:[%s253 + $0x3c] sm:$0xf]
      %v280 = vld [vmem:[%s253 + $0x40] sm:$0xf]
      %v281 = vld [vmem:[%s253 + $0x44] sm:$0xf]
      %v282 = vld [vmem:[%s253 + $0x48] sm:$0xf]
      %v283 = vld [vmem:[%s253 + $0x4c] sm:$0xf]
      %v284 = vld [vmem:[%s253 + $0x50] sm:$0xf]
      %v285 = vld [vmem:[%s253 + $0x54] sm:$0xf]
      %v286 = vld [vmem:[%s253 + $0x58] sm:$0xf]
      %v287 = vld [vmem:[%s253 + $0x5c] sm:$0xf]
      %v288 = vld [vmem:[%s253 + $0x60] sm:$0xf]
      %v289 = vld [vmem:[%s253 + $0x64] sm:$0xf]
      %v290 = vld [vmem:[%s253 + $0x68] sm:$0xf]
      %v291 = vld [vmem:[%s253 + $0x6c] sm:$0xf]
      %v292 = vld [vmem:[%s253 + $0x70] sm:$0xf]
      %v293 = vld [vmem:[%s253 + $0x74] sm:$0xf]
      %v294 = vld [vmem:[%s253 + $0x78] sm:$0xf]
      %v295 = vld [vmem:[%s253 + $0x7c] sm:$0xf]
      %v296 = vld [vmem:[%s253 + $0x80] sm:$0xf]
      %v297 = vld [vmem:[%s253 + $0x84] sm:$0xf]
      %v298 = vld [vmem:[%s253 + $0x88] sm:$0xf]
      %v299 = vld [vmem:[%s253 + $0x8c] sm:$0xf]
      %v300 = vld [vmem:[%s253 + $0x90] sm:$0xf]
      %v301 = vld [vmem:[%s253 + $0x94] sm:$0xf]
      %v302 = vld [vmem:[%s253 + $0x98] sm:$0xf]
      %v303 = vld [vmem:[%s253 + $0x9c] sm:$0xf]
      %v304 = vld [vmem:[%s253 + $0xa0] sm:$0xf]
      %v305 = vld [vmem:[%s253 + $0xa4] sm:$0xf]
      %v306 = vld [vmem:[%s253 + $0xa8] sm:$0xf]
      %v307 = vld [vmem:[%s253 + $0xac] sm:$0xf]
      %v308 = vld [vmem:[%s253 + $0xb0] sm:$0xf]
      %v309 = vld [vmem:[%s253 + $0xb4] sm:$0xf]
      %v310 = vld [vmem:[%s253 + $0xb8] sm:$0xf]
      %v311 = vld [vmem:[%s253 + $0xbc] sm:$0xf]
      %v312 = vld [vmem:[%s253 + $0xc0] sm:$0xf]
      %v313 = vld [vmem:[%s253 + $0xc4] sm:$0xf]
      %v314 = vld [vmem:[%s253 + $0xc8] sm:$0xf]
      %v315 = vld [vmem:[%s253 + $0xcc] sm:$0xf]
      %v316 = vld [vmem:[%s253 + $0xd0] sm:$0xf]
      %v317 = vld [vmem:[%s253 + $0xd4] sm:$0xf]
      %v318 = vld [vmem:[%s253 + $0xd8] sm:$0xf]
      %v319 = vld [vmem:[%s253 + $0xdc] sm:$0xf]
      %v320 = vld [vmem:[%s253 + $0xe0] sm:$0xf]
      %v321 = vld [vmem:[%s253 + $0xe4] sm:$0xf]
      %v322 = vld [vmem:[%s253 + $0xe8] sm:$0xf]
      %v323 = vld [vmem:[%s253 + $0xec] sm:$0xf]
      %v324 = vld [vmem:[%s253 + $0xf0] sm:$0xf]
      %v325 = vld [vmem:[%s253 + $0xf4] sm:$0xf]
      %v326 = vld [vmem:[%s253 + $0xf8] sm:$0xf]
      %v327 = vld [vmem:[%s253 + $0xfc] sm:$0xf]
      %v328 = vld [vmem:[%s253 + $0x100] sm:$0xf]
      %v329 = vld [vmem:[%s253 + $0x104] sm:$0xf]
      %v330 = vld [vmem:[%s253 + $0x108] sm:$0xf]
      %v331 = vld [vmem:[%s253 + $0x10c] sm:$0xf]
      %v332 = vld [vmem:[%s253 + $0x110] sm:$0xf]
      %v333 = vld [vmem:[%s253 + $0x114] sm:$0xf]
      %v334 = vld [vmem:[%s253 + $0x118] sm:$0xf]
      %v335 = vld [vmem:[%s253 + $0x11c] sm:$0xf]
      %v336 = vld [vmem:[%s253 + $0x120] sm:$0xf]
      %v337 = vld [vmem:[%s253 + $0x124] sm:$0xf]
      %v338 = vld [vmem:[%s253 + $0x128] sm:$0xf]
      %v339 = vld [vmem:[%s253 + $0x12c] sm:$0xf]
      %v340 = vld [vmem:[%s253 + $0x130] sm:$0xf]
      %v341 = vld [vmem:[%s253 + $0x134] sm:$0xf]
      %v342 = vld [vmem:[%s253 + $0x138] sm:$0xf]
      %v343 = vld [vmem:[%s253 + $0x13c] sm:$0xf]
      %v344 = vld [vmem:[%s253 + $0x140] sm:$0xf]
      %v345 = vld [vmem:[%s253 + $0x144] sm:$0xf]
      %v346 = vld [vmem:[%s253 + $0x148] sm:$0xf]
      %v347 = vld [vmem:[%s253 + $0x14c] sm:$0xf]
      %v348 = vld [vmem:[%s253 + $0x150] sm:$0xf]
      %v349 = vld [vmem:[%s253 + $0x154] sm:$0xf]
      %v350 = vld [vmem:[%s253 + $0x158] sm:$0xf]
      %v351 = vld [vmem:[%s253 + $0x15c] sm:$0xf]
      %v352 = vld [vmem:[%s253 + $0x160] sm:$0xf]
      %v353 = vld [vmem:[%s253 + $0x164] sm:$0xf]
      %v354 = vld [vmem:[%s253 + $0x168] sm:$0xf]
      %v355 = vld [vmem:[%s253 + $0x16c] sm:$0xf]
      %v356 = vld [vmem:[%s253 + $0x170] sm:$0xf]
      %v357 = vld [vmem:[%s253 + $0x174] sm:$0xf]
      %v358 = vld [vmem:[%s253 + $0x178] sm:$0xf]
      %v359 = vld [vmem:[%s253 + $0x17c] sm:$0xf]
      %v360 = vld [vmem:[%s253 + $0x180] sm:$0xf]
      %v361 = vld [vmem:[%s253 + $0x184] sm:$0xf]
      %v362 = vld [vmem:[%s253 + $0x188] sm:$0xf]
      %v363 = vld [vmem:[%s253 + $0x18c] sm:$0xf]
      %v364 = vld [vmem:[%s253 + $0x190] sm:$0xf]
      %v365 = vld [vmem:[%s253 + $0x194] sm:$0xf]
      %v366 = vld [vmem:[%s253 + $0x198] sm:$0xf]
      %v367 = vld [vmem:[%s253 + $0x19c] sm:$0xf]
      %v368 = vld [vmem:[%s253 + $0x1a0] sm:$0xf]
      %v369 = vld [vmem:[%s253 + $0x1a4] sm:$0xf]
      %v370 = vld [vmem:[%s253 + $0x1a8] sm:$0xf]
      %v371 = vld [vmem:[%s253 + $0x1ac] sm:$0xf]
      %v372 = vld [vmem:[%s253 + $0x1b0] sm:$0xf]
      %v373 = vld [vmem:[%s253 + $0x1b4] sm:$0xf]
      %v374 = vld [vmem:[%s253 + $0x1b8] sm:$0xf]
      %v375 = vld [vmem:[%s253 + $0x1bc] sm:$0xf]
      %v376 = vld [vmem:[%s253 + $0x1c0] sm:$0xf]
      %v377 = vld [vmem:[%s253 + $0x1c4] sm:$0xf]
      %v378 = vld [vmem:[%s253 + $0x1c8] sm:$0xf]
      %v379 = vld [vmem:[%s253 + $0x1cc] sm:$0xf]
      %v380 = vld [vmem:[%s253 + $0x1d0] sm:$0xf]
      %v381 = vld [vmem:[%s253 + $0x1d4] sm:$0xf]
      %v382 = vld [vmem:[%s253 + $0x1d8] sm:$0xf]
      %v383 = vld [vmem:[%s253 + $0x1dc] sm:$0xf]
      %v384 = vld [vmem:[%s253 + $0x1e0] sm:$0xf]
      %v385 = vld [vmem:[%s253 + $0x1e4] sm:$0xf]
      %v386 = vld [vmem:[%s253 + $0x1e8] sm:$0xf]
      %v387 = vld [vmem:[%s253 + $0x1ec] sm:$0xf]
      %v388 = vld [vmem:[%s253 + $0x1f0] sm:$0xf]
      %v389 = vld [vmem:[%s253 + $0x1f4] sm:$0xf]
      %v390 = vld [vmem:[%s253 + $0x1f8] sm:$0xf]
      %v391 = vld [vmem:[%s253 + $0x1fc] sm:$0xf]
      %v392 = vld [vmem:[%s3] sm:$0xf]
      %v393 = vld [vmem:[%s3 + $0x4] sm:$0xf]
      %v394 = vld [vmem:[%s3 + $0x8] sm:$0xf]
      %v395 = vld [vmem:[%s3 + $0xc] sm:$0x3]
      %v396 = vld [vmem:[%s4] sm:$0x1]
      %v398 = vlaneseq
      %v399 = vshrl.u32 %v398, 7
      %v400 = vsub.s32 0, %v399
      %v401 = vrot.slane %v396, %v400
      %v531 = vunpack.c.l.b16 %v264
      %v532 = vunpack.c.l.b16 %v265
      %v533 = vunpack.c.l.b16 %v266
      %v534 = vunpack.c.l.b16 %v267
      %v535 = vunpack.c.l.b16 %v268
      %v536 = vunpack.c.l.b16 %v269
      %v537 = vunpack.c.l.b16 %v270
      %v538 = vunpack.c.l.b16 %v271
      %v539 = vunpack.c.l.b16 %v272
      %v540 = vunpack.c.l.b16 %v273
      %v541 = vunpack.c.l.b16 %v274
      %v542 = vunpack.c.l.b16 %v275
      %v543 = vunpack.c.l.b16 %v276
      %v544 = vunpack.c.l.b16 %v277
      %v545 = vunpack.c.l.b16 %v278
      %v546 = vunpack.c.l.b16 %v279
      %v547 = vunpack.c.l.b16 %v280
      %v548 = vunpack.c.l.b16 %v281
      %v549 = vunpack.c.l.b16 %v282
      %v550 = vunpack.c.l.b16 %v283
      %v551 = vunpack.c.l.b16 %v284
      %v552 = vunpack.c.l.b16 %v285
      %v553 = vunpack.c.l.b16 %v286
      %v554 = vunpack.c.l.b16 %v287
      %v555 = vunpack.c.l.b16 %v288
      %v556 = vunpack.c.l.b16 %v289
      %v557 = vunpack.c.l.b16 %v290
      %v558 = vunpack.c.l.b16 %v291
      %v559 = vunpack.c.l.b16 %v292
      %v560 = vunpack.c.l.b16 %v293
      %v561 = vunpack.c.l.b16 %v294
      %v562 = vunpack.c.l.b16 %v295
      %v563 = vunpack.c.l.b16 %v296
      %v564 = vunpack.c.l.b16 %v297
      %v565 = vunpack.c.l.b16 %v298
      %v566 = vunpack.c.l.b16 %v299
      %v567 = vunpack.c.l.b16 %v300
      %v568 = vunpack.c.l.b16 %v301
      %v569 = vunpack.c.l.b16 %v302
      %v570 = vunpack.c.l.b16 %v303
      %v571 = vunpack.c.l.b16 %v304
      %v572 = vunpack.c.l.b16 %v305
      %v573 = vunpack.c.l.b16 %v306
      %v574 = vunpack.c.l.b16 %v307
      %v575 = vunpack.c.l.b16 %v308
      %v576 = vunpack.c.l.b16 %v309
      %v577 = vunpack.c.l.b16 %v310
      %v578 = vunpack.c.l.b16 %v311
      %v579 = vunpack.c.l.b16 %v312
      %v580 = vunpack.c.l.b16 %v313
      %v581 = vunpack.c.l.b16 %v314
      %v582 = vunpack.c.l.b16 %v315
      %v583 = vunpack.c.l.b16 %v316
      %v584 = vunpack.c.l.b16 %v317
      %v585 = vunpack.c.l.b16 %v318
      %v586 = vunpack.c.l.b16 %v319
      %v587 = vunpack.c.l.b16 %v320
      %v588 = vunpack.c.l.b16 %v321
      %v589 = vunpack.c.l.b16 %v322
      %v590 = vunpack.c.l.b16 %v323
      %v591 = vunpack.c.l.b16 %v324
      %v592 = vunpack.c.l.b16 %v325
      %v593 = vunpack.c.l.b16 %v326
      %v594 = vunpack.c.l.b16 %v327
      %v595 = vunpack.c.l.b16 %v328
      %v596 = vunpack.c.l.b16 %v329
      %v597 = vunpack.c.l.b16 %v330
      %v598 = vunpack.c.l.b16 %v331
      %v599 = vunpack.c.l.b16 %v332
      %v600 = vunpack.c.l.b16 %v333
      %v601 = vunpack.c.l.b16 %v334
      %v602 = vunpack.c.l.b16 %v335
      %v603 = vunpack.c.l.b16 %v336
      %v604 = vunpack.c.l.b16 %v337
      %v605 = vunpack.c.l.b16 %v338
      %v606 = vunpack.c.l.b16 %v339
      %v607 = vunpack.c.l.b16 %v340
      %v608 = vunpack.c.l.b16 %v341
      %v609 = vunpack.c.l.b16 %v342
      %v610 = vunpack.c.l.b16 %v343
      %v611 = vunpack.c.l.b16 %v344
      %v612 = vunpack.c.l.b16 %v345
      %v613 = vunpack.c.l.b16 %v346
      %v614 = vunpack.c.l.b16 %v347
      %v615 = vunpack.c.l.b16 %v348
      %v616 = vunpack.c.l.b16 %v349
      %v617 = vunpack.c.l.b16 %v350
      %v618 = vunpack.c.l.b16 %v351
      %v619 = vunpack.c.l.b16 %v352
      %v620 = vunpack.c.l.b16 %v353
      %v621 = vunpack.c.l.b16 %v354
      %v622 = vunpack.c.l.b16 %v355
      %v623 = vunpack.c.l.b16 %v356
      %v624 = vunpack.c.l.b16 %v357
      %v625 = vunpack.c.l.b16 %v358
      %v626 = vunpack.c.l.b16 %v359
      %v627 = vunpack.c.l.b16 %v360
      %v628 = vunpack.c.l.b16 %v361
      %v629 = vunpack.c.l.b16 %v362
      %v630 = vunpack.c.l.b16 %v363
      %v631 = vunpack.c.l.b16 %v364
      %v632 = vunpack.c.l.b16 %v365
      %v633 = vunpack.c.l.b16 %v366
      %v634 = vunpack.c.l.b16 %v367
      %v635 = vunpack.c.l.b16 %v368
      %v636 = vunpack.c.l.b16 %v369
      %v637 = vunpack.c.l.b16 %v370
      %v638 = vunpack.c.l.b16 %v371
      %v639 = vunpack.c.l.b16 %v372
      %v640 = vunpack.c.l.b16 %v373
      %v641 = vunpack.c.l.b16 %v374
      %v642 = vunpack.c.l.b16 %v375
      %v643 = vunpack.c.l.b16 %v376
      %v644 = vunpack.c.l.b16 %v377
      %v645 = vunpack.c.l.b16 %v378
      %v646 = vunpack.c.l.b16 %v379
      %v647 = vunpack.c.l.b16 %v380
      %v648 = vunpack.c.l.b16 %v381
      %v649 = vunpack.c.l.b16 %v382
      %v650 = vunpack.c.l.b16 %v383
      %v651 = vunpack.c.l.b16 %v384
      %v652 = vunpack.c.l.b16 %v385
      %v653 = vunpack.c.l.b16 %v386
      %v654 = vunpack.c.l.b16 %v387
      %v655 = vunpack.c.l.b16 %v388
      %v656 = vunpack.c.l.b16 %v389
      %v657 = vunpack.c.l.b16 %v390
      %v658 = vunpack.c.l.b16 %v391
      %v659 = vpack.c.b16 %v532, %v531
      %v660 = vpack.c.b16 %v534, %v533
      %v661 = vpack.c.b16 %v536, %v535
      %v662 = vpack.c.b16 %v538, %v537
      %v663 = vpack.c.b16 %v540, %v539
      %v664 = vpack.c.b16 %v542, %v541
      %v665 = vpack.c.b16 %v544, %v543
      %v666 = vpack.c.b16 %v546, %v545
      %v667 = vpack.c.b16 %v548, %v547
      %v668 = vpack.c.b16 %v550, %v549
      %v669 = vpack.c.b16 %v552, %v551
      %v670 = vpack.c.b16 %v554, %v553
      %v671 = vpack.c.b16 %v556, %v555
      %v672 = vpack.c.b16 %v558, %v557
      %v673 = vpack.c.b16 %v560, %v559
      %v674 = vpack.c.b16 %v562, %v561
      %v675 = vpack.c.b16 %v564, %v563
      %v676 = vpack.c.b16 %v566, %v565
      %v677 = vpack.c.b16 %v568, %v567
      %v678 = vpack.c.b16 %v570, %v569
      %v679 = vpack.c.b16 %v572, %v571
      %v680 = vpack.c.b16 %v574, %v573
      %v681 = vpack.c.b16 %v576, %v575
      %v682 = vpack.c.b16 %v578, %v577
      %v683 = vpack.c.b16 %v580, %v579
      %v684 = vpack.c.b16 %v582, %v581
      %v685 = vpack.c.b16 %v584, %v583
      %v686 = vpack.c.b16 %v586, %v585
      %v687 = vpack.c.b16 %v588, %v587
      %v688 = vpack.c.b16 %v590, %v589
      %v689 = vpack.c.b16 %v592, %v591
      %v690 = vpack.c.b16 %v594, %v593
      %v691 = vpack.c.b16 %v596, %v595
      %v692 = vpack.c.b16 %v598, %v597
      %v693 = vpack.c.b16 %v600, %v599
      %v694 = vpack.c.b16 %v602, %v601
      %v695 = vpack.c.b16 %v604, %v603
      %v696 = vpack.c.b16 %v606, %v605
      %v697 = vpack.c.b16 %v608, %v607
      %v698 = vpack.c.b16 %v610, %v609
      %v699 = vpack.c.b16 %v612, %v611
      %v700 = vpack.c.b16 %v614, %v613
      %v701 = vpack.c.b16 %v616, %v615
      %v702 = vpack.c.b16 %v618, %v617
      %v703 = vpack.c.b16 %v620, %v619
      %v704 = vpack.c.b16 %v622, %v621
      %v705 = vpack.c.b16 %v624, %v623
      %v706 = vpack.c.b16 %v626, %v625
      %v707 = vpack.c.b16 %v628, %v627
      %v708 = vpack.c.b16 %v630, %v629
      %v709 = vpack.c.b16 %v632, %v631
      %v710 = vpack.c.b16 %v634, %v633
      %v711 = vpack.c.b16 %v636, %v635
      %v712 = vpack.c.b16 %v638, %v637
      %v713 = vpack.c.b16 %v640, %v639
      %v714 = vpack.c.b16 %v642, %v641
      %v715 = vpack.c.b16 %v644, %v643
      %v716 = vpack.c.b16 %v646, %v645
      %v717 = vpack.c.b16 %v648, %v647
      %v718 = vpack.c.b16 %v650, %v649
      %v719 = vpack.c.b16 %v652, %v651
      %v720 = vpack.c.b16 %v654, %v653
      %v721 = vpack.c.b16 %v656, %v655
      %v722 = vpack.c.b16 %v658, %v657
      %v727 = vunpack.c.l.b16 %v392
      %v728 = vunpack.c.l.b16 %v393
      %v729 = vunpack.c.l.b16 %v394
      %v730 = vunpack.c.l.b16 %v395
      %v731 = vpack.c.b16 %v728, %v727
      %v732 = vpack.c.b16 %v730, %v729
      %vm734 = vcmask 220160
      %v736 = vsel %vm734, %v659, 0
      %v739 = vsel %vm734, %v660, 0
      %v742 = vsel %vm734, %v661, 0
      %v745 = vsel %vm734, %v662, 0
      %v748 = vsel %vm734, %v663, 0
      %v751 = vsel %vm734, %v664, 0
      %v754 = vsel %vm734, %v665, 0
      %v757 = vsel %vm734, %v666, 0
      %v760 = vsel %vm734, %v667, 0
      %v763 = vsel %vm734, %v668, 0
      %v766 = vsel %vm734, %v669, 0
      %v769 = vsel %vm734, %v670, 0
      %v772 = vsel %vm734, %v671, 0
      %v775 = vsel %vm734, %v672, 0
      %v778 = vsel %vm734, %v673, 0
      %v781 = vsel %vm734, %v674, 0
      %v784 = vsel %vm734, %v675, 0
      %v787 = vsel %vm734, %v676, 0
      %v790 = vsel %vm734, %v677, 0
      %v793 = vsel %vm734, %v678, 0
      %v796 = vsel %vm734, %v679, 0
      %v799 = vsel %vm734, %v680, 0
      %v802 = vsel %vm734, %v681, 0
      %v805 = vsel %vm734, %v682, 0
      %v808 = vsel %vm734, %v683, 0
      %v811 = vsel %vm734, %v684, 0
      %v814 = vsel %vm734, %v685, 0
      %v817 = vsel %vm734, %v686, 0
      %v820 = vsel %vm734, %v687, 0
      %v823 = vsel %vm734, %v688, 0
      %v826 = vsel %vm734, %v689, 0
      %v829 = vsel %vm734, %v690, 0
      %v832 = vsel %vm734, %v691, 0
      %v835 = vsel %vm734, %v692, 0
      %v838 = vsel %vm734, %v693, 0
      %v841 = vsel %vm734, %v694, 0
      %v844 = vsel %vm734, %v695, 0
      %v847 = vsel %vm734, %v696, 0
      %v850 = vsel %vm734, %v697, 0
      %v853 = vsel %vm734, %v698, 0
      %v856 = vsel %vm734, %v699, 0
      %v859 = vsel %vm734, %v700, 0
      %v862 = vsel %vm734, %v701, 0
      %v865 = vsel %vm734, %v702, 0
      %v868 = vsel %vm734, %v703, 0
      %v871 = vsel %vm734, %v704, 0
      %v874 = vsel %vm734, %v705, 0
      %v877 = vsel %vm734, %v706, 0
      %v880 = vsel %vm734, %v707, 0
      %v883 = vsel %vm734, %v708, 0
      %v886 = vsel %vm734, %v709, 0
      %v889 = vsel %vm734, %v710, 0
      %v892 = vsel %vm734, %v711, 0
      %v895 = vsel %vm734, %v712, 0
      %v898 = vsel %vm734, %v713, 0
      %v901 = vsel %vm734, %v714, 0
      %v904 = vsel %vm734, %v715, 0
      %v907 = vsel %vm734, %v716, 0
      %v910 = vsel %vm734, %v717, 0
      %v913 = vsel %vm734, %v718, 0
      %v916 = vsel %vm734, %v719, 0
      %v919 = vsel %vm734, %v720, 0
      %v922 = vsel %vm734, %v721, 0
      %v925 = vsel %vm734, %v722, 0
      %vm927 = vcmask 1044480
      %vm928 = vcmask 1045504
      %v929 = vsel %vm927, 4294967295, 65535
      %v930 = vsel %vm928, %v929, 0
      %v932 = vand.u32 %v732, %v930
      %934 = vmatprep.subr.bf16.mxu0 0
      %935 = vmatpush1.bf16.msra.mxu0 %v731
      %936 = vmatprep.subr.bf16.mxu0 0
      %937 = vmatpush1.bf16.msra.mxu0 %v932
      %938 = vmatprep.subr.bf16.mxu0 0
      %939 = vmatpush1.bf16.msra.mxu0 0
      %940 = vmatprep.subr.bf16.mxu0 0
      %941 = vmatpush1.bf16.msra.mxu0 0
      %942 = vmatprep.subr.bf16.mxu0 0
      %943 = vmatpush1.bf16.msra.mxu0 0
      %944 = vmatprep.subr.bf16.mxu0 0
      %945 = vmatpush1.bf16.msra.mxu0 0
      %946 = vmatprep.subr.bf16.mxu0 0
      %947 = vmatpush1.bf16.msra.mxu0 0
      %948 = vmatprep.subr.bf16.mxu0 0
      %949 = vmatpush1.bf16.msra.mxu0 0
      %950 = vmatprep.subr.bf16.mxu0 0
      %951 = vmatpush1.bf16.msra.mxu0 0
      %952 = vmatprep.subr.bf16.mxu0 0
      %953 = vmatpush1.bf16.msra.mxu0 0
      %954 = vmatprep.subr.bf16.mxu0 0
      %955 = vmatpush1.bf16.msra.mxu0 0
      %956 = vmatprep.subr.bf16.mxu0 0
      %957 = vmatpush1.bf16.msra.mxu0 0
      %958 = vmatprep.subr.bf16.mxu0 0
      %959 = vmatpush1.bf16.msra.mxu0 0
      %960 = vmatprep.subr.bf16.mxu0 0
      %961 = vmatpush1.bf16.msra.mxu0 0
      %962 = vmatprep.subr.bf16.mxu0 0
      %963 = vmatpush1.bf16.msra.mxu0 0
      %964 = vmatprep.subr.bf16.mxu0 0
      %965 = vmatpush1.bf16.msra.mxu0 0
      %966 = vmatprep.mubr.bf16.mxu0 0
      %967 = vmatmul.mubr.bf16.gmra.mrb[0].mxu0 %v736
      %v968 = vpop.f32.mrb[0].mxu0
      %v969 = vadd.f32 %v401, %v968
      %v970 = vpop.f32.mrb[0].mxu0
      %v971 = vpop.f32.mrb[0].mxu0
      %v972 = vadd.f32 %v401, %v971
      %v973 = vpop.f32.mrb[0].mxu0
      %974 = vmatprep.mubr.bf16.mxu0 0
      %975 = vmatmul.mubr.bf16.gmra.mrb[0].mxu0 %v739
      %v976 = vpop.f32.mrb[0].mxu0
      %v977 = vadd.f32 %v401, %v976
      %v978 = vpop.f32.mrb[0].mxu0
      %v979 = vpop.f32.mrb[0].mxu0
      %v980 = vadd.f32 %v401, %v979
      %v981 = vpop.f32.mrb[0].mxu0
      %982 = vmatprep.mubr.bf16.mxu0 0
      %983 = vmatmul.mubr.bf16.gmra.mrb[0].mxu0 %v742
      %v984 = vpop.f32.mrb[0].mxu0
      %v985 = vadd.f32 %v401, %v984
      %v986 = vpop.f32.mrb[0].mxu0
      %v987 = vpop.f32.mrb[0].mxu0
      %v988 = vadd.f32 %v401, %v987
      %v989 = vpop.f32.mrb[0].mxu0
      %990 = vmatprep.mubr.bf16.mxu0 0
      %991 = vmatmul.mubr.bf16.gmra.mrb[0].mxu0 %v745
      %v992 = vpop.f32.mrb[0].mxu0
      %v993 = vadd.f32 %v401, %v992
      %v994 = vpop.f32.mrb[0].mxu0
      %v995 = vpop.f32.mrb[0].mxu0
      %v996 = vadd.f32 %v401, %v995
      %v997 = vpop.f32.mrb[0].mxu0
      %998 = vmatprep.mubr.bf16.mxu0 0
      %999 = vmatmul.mubr.bf16.gmra.mrb[0].mxu0 %v748
      %v1000 = vpop.f32.mrb[0].mxu0
      %v1001 = vadd.f32 %v401, %v1000
      %v1002 = vpop.f32.mrb[0].mxu0
      %v1003 = vpop.f32.mrb[0].mxu0
      %v1004 = vadd.f32 %v401, %v1003
      %v1005 = vpop.f32.mrb[0].mxu0
      %1006 = vmatprep.mubr.bf16.mxu0 0
      %1007 = vmatmul.mubr.bf16.gmra.mrb[0].mxu0 %v751
      %v1008 = vpop.f32.mrb[0].mxu0
      %v1009 = vadd.f32 %v401, %v1008
      %v1010 = vpop.f32.mrb[0].mxu0
      %v1011 = vpop.f32.mrb[0].mxu0
      %v1012 = vadd.f32 %v401, %v1011
      %v1013 = vpop.f32.mrb[0].mxu0
      %1014 = vmatprep.mubr.bf16.mxu0 0
      %1015 = vmatmul.mubr.bf16.gmra.mrb[0].mxu0 %v754
      %v1016 = vpop.f32.mrb[0].mxu0
      %v1017 = vadd.f32 %v401, %v1016
      %v1018 = vpop.f32.mrb[0].mxu0
      %v1019 = vpop.f32.mrb[0].mxu0
      %v1020 = vadd.f32 %v401, %v1019
      %v1021 = vpop.f32.mrb[0].mxu0
      %1022 = vmatprep.mubr.bf16.mxu0 0
      %1023 = vmatmul.mubr.bf16.gmra.mrb[0].mxu0 %v757
      %v1024 = vpop.f32.mrb[0].mxu0
      %v1025 = vadd.f32 %v401, %v1024
      %v1026 = vpop.f32.mrb[0].mxu0
      %v1027 = vpop.f32.mrb[0].mxu0
      %v1028 = vadd.f32 %v401, %v1027
      %v1029 = vpop.f32.mrb[0].mxu0
      %1030 = vmatprep.mubr.bf16.mxu0 0
      %1031 = vmatmul.mubr.bf16.gmra.mrb[0].mxu0 %v760
      %v1032 = vpop.f32.mrb[0].mxu0
      %v1033 = vadd.f32 %v401, %v1032
      %v1034 = vpop.f32.mrb[0].mxu0
      %v1035 = vpop.f32.mrb[0].mxu0
      %v1036 = vadd.f32 %v401, %v1035
      %v1037 = vpop.f32.mrb[0].mxu0
      %1038 = vmatprep.mubr.bf16.mxu0 0
      %1039 = vmatmul.mubr.bf16.gmra.mrb[0].mxu0 %v763
      %v1040 = vpop.f32.mrb[0].mxu0
      %v1041 = vadd.f32 %v401, %v1040
      %v1042 = vpop.f32.mrb[0].mxu0
      %v1043 = vpop.f32.mrb[0].mxu0
      %v1044 = vadd.f32 %v401, %v1043
      %v1045 = vpop.f32.mrb[0].mxu0
      %1046 = vmatprep.mubr.bf16.mxu0 0
      %1047 = vmatmul.mubr.bf16.gmra.mrb[0].mxu0 %v766
      %v1048 = vpop.f32.mrb[0].mxu0
      %v1049 = vadd.f32 %v401, %v1048
      %v1050 = vpop.f32.mrb[0].mxu0
      %v1051 = vpop.f32.mrb[0].mxu0
      %v1052 = vadd.f32 %v401, %v1051
      %v1053 = vpop.f32.mrb[0].mxu0
      %1054 = vmatprep.mubr.bf16.mxu0 0
      %1055 = vmatmul.mubr.bf16.gmra.mrb[0].mxu0 %v769
      %v1056 = vpop.f32.mrb[0].mxu0
      %v1057 = vadd.f32 %v401, %v1056
      %v1058 = vpop.f32.mrb[0].mxu0
      %v1059 = vpop.f32.mrb[0].mxu0
      %v1060 = vadd.f32 %v401, %v1059
      %v1061 = vpop.f32.mrb[0].mxu0
      %1062 = vmatprep.mubr.bf16.mxu0 0
      %1063 = vmatmul.mubr.bf16.gmra.mrb[0].mxu0 %v772
      %v1064 = vpop.f32.mrb[0].mxu0
      %v1065 = vadd.f32 %v401, %v1064
      %v1066 = vpop.f32.mrb[0].mxu0
      %v1067 = vpop.f32.mrb[0].mxu0
      %v1068 = vadd.f32 %v401, %v1067
      %v1069 = vpop.f32.mrb[0].mxu0
      %1070 = vmatprep.mubr.bf16.mxu0 0
      %1071 = vmatmul.mubr.bf16.gmra.mrb[0].mxu0 %v775
      %v1072 = vpop.f32.mrb[0].mxu0
      %v1073 = vadd.f32 %v401, %v1072
      %v1074 = vpop.f32.mrb[0].mxu0
      %v1075 = vpop.f32.mrb[0].mxu0
      %v1076 = vadd.f32 %v401, %v1075
      %v1077 = vpop.f32.mrb[0].mxu0
      %1078 = vmatprep.mubr.bf16.mxu0 0
      %1079 = vmatmul.mubr.bf16.gmra.mrb[0].mxu0 %v778
      %v1080 = vpop.f32.mrb[0].mxu0
      %v1081 = vadd.f32 %v401, %v1080
      %v1082 = vpop.f32.mrb[0].mxu0
      %v1083 = vpop.f32.mrb[0].mxu0
      %v1084 = vadd.f32 %v401, %v1083
      %v1085 = vpop.f32.mrb[0].mxu0
      %1086 = vmatprep.mubr.bf16.mxu0 0
      %1087 = vmatmul.mubr.bf16.gmra.mrb[0].mxu0 %v781
      %v1088 = vpop.f32.mrb[0].mxu0
      %v1089 = vadd.f32 %v401, %v1088
      %v1090 = vpop.f32.mrb[0].mxu0
      %v1091 = vpop.f32.mrb[0].mxu0
      %v1092 = vadd.f32 %v401, %v1091
      %v1093 = vpop.f32.mrb[0].mxu0
      %1094 = vmatprep.mubr.bf16.mxu0 0
      %1095 = vmatmul.mubr.bf16.gmra.mrb[0].mxu0 %v784
      %v1096 = vpop.f32.mrb[0].mxu0
      %v1097 = vadd.f32 %v401, %v1096
      %v1098 = vpop.f32.mrb[0].mxu0
      %v1099 = vpop.f32.mrb[0].mxu0
      %v1100 = vadd.f32 %v401, %v1099
      %v1101 = vpop.f32.mrb[0].mxu0
      %1102 = vmatprep.mubr.bf16.mxu0 0
      %1103 = vmatmul.mubr.bf16.gmra.mrb[0].mxu0 %v787
      %v1104 = vpop.f32.mrb[0].mxu0
      %v1105 = vadd.f32 %v401, %v1104
      %v1106 = vpop.f32.mrb[0].mxu0
      %v1107 = vpop.f32.mrb[0].mxu0
      %v1108 = vadd.f32 %v401, %v1107
      %v1109 = vpop.f32.mrb[0].mxu0
      %1110 = vmatprep.mubr.bf16.mxu0 0
      %1111 = vmatmul.mubr.bf16.gmra.mrb[0].mxu0 %v790
      %v1112 = vpop.f32.mrb[0].mxu0
      %v1113 = vadd.f32 %v401, %v1112
      %v1114 = vpop.f32.mrb[0].mxu0
      %v1115 = vpop.f32.mrb[0].mxu0
      %v1116 = vadd.f32 %v401, %v1115
      %v1117 = vpop.f32.mrb[0].mxu0
      %1118 = vmatprep.mubr.bf16.mxu0 0
      %1119 = vmatmul.mubr.bf16.gmra.mrb[0].mxu0 %v793
      %v1120 = vpop.f32.mrb[0].mxu0
      %v1121 = vadd.f32 %v401, %v1120
      %v1122 = vpop.f32.mrb[0].mxu0
      %v1123 = vpop.f32.mrb[0].mxu0
      %v1124 = vadd.f32 %v401, %v1123
      %v1125 = vpop.f32.mrb[0].mxu0
      %1126 = vmatprep.mubr.bf16.mxu0 0
      %1127 = vmatmul.mubr.bf16.gmra.mrb[0].mxu0 %v796
      %v1128 = vpop.f32.mrb[0].mxu0
      %v1129 = vadd.f32 %v401, %v1128
      %v1130 = vpop.f32.mrb[0].mxu0
      %v1131 = vpop.f32.mrb[0].mxu0
      %v1132 = vadd.f32 %v401, %v1131
      %v1133 = vpop.f32.mrb[0].mxu0
      %1134 = vmatprep.mubr.bf16.mxu0 0
      %1135 = vmatmul.mubr.bf16.gmra.mrb[0].mxu0 %v799
      %v1136 = vpop.f32.mrb[0].mxu0
      %v1137 = vadd.f32 %v401, %v1136
      %v1138 = vpop.f32.mrb[0].mxu0
      %v1139 = vpop.f32.mrb[0].mxu0
      %v1140 = vadd.f32 %v401, %v1139
      %v1141 = vpop.f32.mrb[0].mxu0
      %1142 = vmatprep.mubr.bf16.mxu0 0
      %1143 = vmatmul.mubr.bf16.gmra.mrb[0].mxu0 %v802
      %v1144 = vpop.f32.mrb[0].mxu0
      %v1145 = vadd.f32 %v401, %v1144
      %v1146 = vpop.f32.mrb[0].mxu0
      %v1147 = vpop.f32.mrb[0].mxu0
      %v1148 = vadd.f32 %v401, %v1147
      %v1149 = vpop.f32.mrb[0].mxu0
      %1150 = vmatprep.mubr.bf16.mxu0 0
      %1151 = vmatmul.mubr.bf16.gmra.mrb[0].mxu0 %v805
      %v1152 = vpop.f32.mrb[0].mxu0
      %v1153 = vadd.f32 %v401, %v1152
      %v1154 = vpop.f32.mrb[0].mxu0
      %v1155 = vpop.f32.mrb[0].mxu0
      %v1156 = vadd.f32 %v401, %v1155
      %v1157 = vpop.f32.mrb[0].mxu0
      %1158 = vmatprep.mubr.bf16.mxu0 0
      %1159 = vmatmul.mubr.bf16.gmra.mrb[0].mxu0 %v808
      %v1160 = vpop.f32.mrb[0].mxu0
      %v1161 = vadd.f32 %v401, %v1160
      %v1162 = vpop.f32.mrb[0].mxu0
      %v1163 = vpop.f32.mrb[0].mxu0
      %v1164 = vadd.f32 %v401, %v1163
      %v1165 = vpop.f32.mrb[0].mxu0
      %1166 = vmatprep.mubr.bf16.mxu0 0
      %1167 = vmatmul.mubr.bf16.gmra.mrb[0].mxu0 %v811
      %v1168 = vpop.f32.mrb[0].mxu0
      %v1169 = vadd.f32 %v401, %v1168
      %v1170 = vpop.f32.mrb[0].mxu0
      %v1171 = vpop.f32.mrb[0].mxu0
      %v1172 = vadd.f32 %v401, %v1171
      %v1173 = vpop.f32.mrb[0].mxu0
      %1174 = vmatprep.mubr.bf16.mxu0 0
      %1175 = vmatmul.mubr.bf16.gmra.mrb[0].mxu0 %v814
      %v1176 = vpop.f32.mrb[0].mxu0
      %v1177 = vadd.f32 %v401, %v1176
      %v1178 = vpop.f32.mrb[0].mxu0
      %v1179 = vpop.f32.mrb[0].mxu0
      %v1180 = vadd.f32 %v401, %v1179
      %v1181 = vpop.f32.mrb[0].mxu0
      %1182 = vmatprep.mubr.bf16.mxu0 0
      %1183 = vmatmul.mubr.bf16.gmra.mrb[0].mxu0 %v817
      %v1184 = vpop.f32.mrb[0].mxu0
      %v1185 = vadd.f32 %v401, %v1184
      %v1186 = vpop.f32.mrb[0].mxu0
      %v1187 = vpop.f32.mrb[0].mxu0
      %v1188 = vadd.f32 %v401, %v1187
      %v1189 = vpop.f32.mrb[0].mxu0
      %1190 = vmatprep.mubr.bf16.mxu0 0
      %1191 = vmatmul.mubr.bf16.gmra.mrb[0].mxu0 %v820
      %v1192 = vpop.f32.mrb[0].mxu0
      %v1193 = vadd.f32 %v401, %v1192
      %v1194 = vpop.f32.mrb[0].mxu0
      %v1195 = vpop.f32.mrb[0].mxu0
      %v1196 = vadd.f32 %v401, %v1195
      %v1197 = vpop.f32.mrb[0].mxu0
      %1198 = vmatprep.mubr.bf16.mxu0 0
      %1199 = vmatmul.mubr.bf16.gmra.mrb[0].mxu0 %v823
      %v1200 = vpop.f32.mrb[0].mxu0
      %v1201 = vadd.f32 %v401, %v1200
      %v1202 = vpop.f32.mrb[0].mxu0
      %v1203 = vpop.f32.mrb[0].mxu0
      %v1204 = vadd.f32 %v401, %v1203
      %v1205 = vpop.f32.mrb[0].mxu0
      %1206 = vmatprep.mubr.bf16.mxu0 0
      %1207 = vmatmul.mubr.bf16.gmra.mrb[0].mxu0 %v826
      %v1208 = vpop.f32.mrb[0].mxu0
      %v1209 = vadd.f32 %v401, %v1208
      %v1210 = vpop.f32.mrb[0].mxu0
      %v1211 = vpop.f32.mrb[0].mxu0
      %v1212 = vadd.f32 %v401, %v1211
      %v1213 = vpop.f32.mrb[0].mxu0
      %1214 = vmatprep.mubr.bf16.mxu0 0
      %1215 = vmatmul.mubr.bf16.gmra.mrb[0].mxu0 %v829
      %v1216 = vpop.f32.mrb[0].mxu0
      %v1217 = vadd.f32 %v401, %v1216
      %v1218 = vpop.f32.mrb[0].mxu0
      %v1219 = vpop.f32.mrb[0].mxu0
      %v1220 = vadd.f32 %v401, %v1219
      %v1221 = vpop.f32.mrb[0].mxu0
      %1222 = vmatprep.mubr.bf16.mxu0 0
      %1223 = vmatmul.mubr.bf16.gmra.mrb[0].mxu0 %v832
      %v1224 = vpop.f32.mrb[0].mxu0
      %v1225 = vadd.f32 %v401, %v1224
      %v1226 = vpop.f32.mrb[0].mxu0
      %v1227 = vpop.f32.mrb[0].mxu0
      %v1228 = vadd.f32 %v401, %v1227
      %v1229 = vpop.f32.mrb[0].mxu0
      %1230 = vmatprep.mubr.bf16.mxu0 0
      %1231 = vmatmul.mubr.bf16.gmra.mrb[0].mxu0 %v835
      %v1232 = vpop.f32.mrb[0].mxu0
      %v1233 = vadd.f32 %v401, %v1232
      %v1234 = vpop.f32.mrb[0].mxu0
      %v1235 = vpop.f32.mrb[0].mxu0
      %v1236 = vadd.f32 %v401, %v1235
      %v1237 = vpop.f32.mrb[0].mxu0
      %1238 = vmatprep.mubr.bf16.mxu0 0
      %1239 = vmatmul.mubr.bf16.gmra.mrb[0].mxu0 %v838
      %v1240 = vpop.f32.mrb[0].mxu0
      %v1241 = vadd.f32 %v401, %v1240
      %v1242 = vpop.f32.mrb[0].mxu0
      %v1243 = vpop.f32.mrb[0].mxu0
      %v1244 = vadd.f32 %v401, %v1243
      %v1245 = vpop.f32.mrb[0].mxu0
      %1246 = vmatprep.mubr.bf16.mxu0 0
      %1247 = vmatmul.mubr.bf16.gmra.mrb[0].mxu0 %v841
      %v1248 = vpop.f32.mrb[0].mxu0
      %v1249 = vadd.f32 %v401, %v1248
      %v1250 = vpop.f32.mrb[0].mxu0
      %v1251 = vpop.f32.mrb[0].mxu0
      %v1252 = vadd.f32 %v401, %v1251
      %v1253 = vpop.f32.mrb[0].mxu0
      %1254 = vmatprep.mubr.bf16.mxu0 0
      %1255 = vmatmul.mubr.bf16.gmra.mrb[0].mxu0 %v844
      %v1256 = vpop.f32.mrb[0].mxu0
      %v1257 = vadd.f32 %v401, %v1256
      %v1258 = vpop.f32.mrb[0].mxu0
      %v1259 = vpop.f32.mrb[0].mxu0
      %v1260 = vadd.f32 %v401, %v1259
      %v1261 = vpop.f32.mrb[0].mxu0
      %1262 = vmatprep.mubr.bf16.mxu0 0
      %1263 = vmatmul.mubr.bf16.gmra.mrb[0].mxu0 %v847
      %v1264 = vpop.f32.mrb[0].mxu0
      %v1265 = vadd.f32 %v401, %v1264
      %v1266 = vpop.f32.mrb[0].mxu0
      %v1267 = vpop.f32.mrb[0].mxu0
      %v1268 = vadd.f32 %v401, %v1267
      %v1269 = vpop.f32.mrb[0].mxu0
      %1270 = vmatprep.mubr.bf16.mxu0 0
      %1271 = vmatmul.mubr.bf16.gmra.mrb[0].mxu0 %v850
      %v1272 = vpop.f32.mrb[0].mxu0
      %v1273 = vadd.f32 %v401, %v1272
      %v1274 = vpop.f32.mrb[0].mxu0
      %v1275 = vpop.f32.mrb[0].mxu0
      %v1276 = vadd.f32 %v401, %v1275
      %v1277 = vpop.f32.mrb[0].mxu0
      %1278 = vmatprep.mubr.bf16.mxu0 0
      %1279 = vmatmul.mubr.bf16.gmra.mrb[0].mxu0 %v853
      %v1280 = vpop.f32.mrb[0].mxu0
      %v1281 = vadd.f32 %v401, %v1280
      %v1282 = vpop.f32.mrb[0].mxu0
      %v1283 = vpop.f32.mrb[0].mxu0
      %v1284 = vadd.f32 %v401, %v1283
      %v1285 = vpop.f32.mrb[0].mxu0
      %1286 = vmatprep.mubr.bf16.mxu0 0
      %1287 = vmatmul.mubr.bf16.gmra.mrb[0].mxu0 %v856
      %v1288 = vpop.f32.mrb[0].mxu0
      %v1289 = vadd.f32 %v401, %v1288
      %v1290 = vpop.f32.mrb[0].mxu0
      %v1291 = vpop.f32.mrb[0].mxu0
      %v1292 = vadd.f32 %v401, %v1291
      %v1293 = vpop.f32.mrb[0].mxu0
      %1294 = vmatprep.mubr.bf16.mxu0 0
      %1295 = vmatmul.mubr.bf16.gmra.mrb[0].mxu0 %v859
      %v1296 = vpop.f32.mrb[0].mxu0
      %v1297 = vadd.f32 %v401, %v1296
      %v1298 = vpop.f32.mrb[0].mxu0
      %v1299 = vpop.f32.mrb[0].mxu0
      %v1300 = vadd.f32 %v401, %v1299
      %v1301 = vpop.f32.mrb[0].mxu0
      %1302 = vmatprep.mubr.bf16.mxu0 0
      %1303 = vmatmul.mubr.bf16.gmra.mrb[0].mxu0 %v862
      %v1304 = vpop.f32.mrb[0].mxu0
      %v1305 = vadd.f32 %v401, %v1304
      %v1306 = vpop.f32.mrb[0].mxu0
      %v1307 = vpop.f32.mrb[0].mxu0
      %v1308 = vadd.f32 %v401, %v1307
      %v1309 = vpop.f32.mrb[0].mxu0
      %1310 = vmatprep.mubr.bf16.mxu0 0
      %1311 = vmatmul.mubr.bf16.gmra.mrb[0].mxu0 %v865
      %v1312 = vpop.f32.mrb[0].mxu0
      %v1313 = vadd.f32 %v401, %v1312
      %v1314 = vpop.f32.mrb[0].mxu0
      %v1315 = vpop.f32.mrb[0].mxu0
      %v1316 = vadd.f32 %v401, %v1315
      %v1317 = vpop.f32.mrb[0].mxu0
      %1318 = vmatprep.mubr.bf16.mxu0 0
      %1319 = vmatmul.mubr.bf16.gmra.mrb[0].mxu0 %v868
      %v1320 = vpop.f32.mrb[0].mxu0
      %v1321 = vadd.f32 %v401, %v1320
      %v1322 = vpop.f32.mrb[0].mxu0
      %v1323 = vpop.f32.mrb[0].mxu0
      %v1324 = vadd.f32 %v401, %v1323
      %v1325 = vpop.f32.mrb[0].mxu0
      %1326 = vmatprep.mubr.bf16.mxu0 0
      %1327 = vmatmul.mubr.bf16.gmra.mrb[0].mxu0 %v871
      %v1328 = vpop.f32.mrb[0].mxu0
      %v1329 = vadd.f32 %v401, %v1328
      %v1330 = vpop.f32.mrb[0].mxu0
      %v1331 = vpop.f32.mrb[0].mxu0
      %v1332 = vadd.f32 %v401, %v1331
      %v1333 = vpop.f32.mrb[0].mxu0
      %1334 = vmatprep.mubr.bf16.mxu0 0
      %1335 = vmatmul.mubr.bf16.gmra.mrb[0].mxu0 %v874
      %v1336 = vpop.f32.mrb[0].mxu0
      %v1337 = vadd.f32 %v401, %v1336
      %v1338 = vpop.f32.mrb[0].mxu0
      %v1339 = vpop.f32.mrb[0].mxu0
      %v1340 = vadd.f32 %v401, %v1339
      %v1341 = vpop.f32.mrb[0].mxu0
      %1342 = vmatprep.mubr.bf16.mxu0 0
      %1343 = vmatmul.mubr.bf16.gmra.mrb[0].mxu0 %v877
      %v1344 = vpop.f32.mrb[0].mxu0
      %v1345 = vadd.f32 %v401, %v1344
      %v1346 = vpop.f32.mrb[0].mxu0
      %v1347 = vpop.f32.mrb[0].mxu0
      %v1348 = vadd.f32 %v401, %v1347
      %v1349 = vpop.f32.mrb[0].mxu0
      %1350 = vmatprep.mubr.bf16.mxu0 0
      %1351 = vmatmul.mubr.bf16.gmra.mrb[0].mxu0 %v880
      %v1352 = vpop.f32.mrb[0].mxu0
      %v1353 = vadd.f32 %v401, %v1352
      %v1354 = vpop.f32.mrb[0].mxu0
      %v1355 = vpop.f32.mrb[0].mxu0
      %v1356 = vadd.f32 %v401, %v1355
      %v1357 = vpop.f32.mrb[0].mxu0
      %1358 = vmatprep.mubr.bf16.mxu0 0
      %1359 = vmatmul.mubr.bf16.gmra.mrb[0].mxu0 %v883
      %v1360 = vpop.f32.mrb[0].mxu0
      %v1361 = vadd.f32 %v401, %v1360
      %v1362 = vpop.f32.mrb[0].mxu0
      %v1363 = vpop.f32.mrb[0].mxu0
      %v1364 = vadd.f32 %v401, %v1363
      %v1365 = vpop.f32.mrb[0].mxu0
      %1366 = vmatprep.mubr.bf16.mxu0 0
      %1367 = vmatmul.mubr.bf16.gmra.mrb[0].mxu0 %v886
      %v1368 = vpop.f32.mrb[0].mxu0
      %v1369 = vadd.f32 %v401, %v1368
      %v1370 = vpop.f32.mrb[0].mxu0
      %v1371 = vpop.f32.mrb[0].mxu0
      %v1372 = vadd.f32 %v401, %v1371
      %v1373 = vpop.f32.mrb[0].mxu0
      %1374 = vmatprep.mubr.bf16.mxu0 0
      %1375 = vmatmul.mubr.bf16.gmra.mrb[0].mxu0 %v889
      %v1376 = vpop.f32.mrb[0].mxu0
      %v1377 = vadd.f32 %v401, %v1376
      %v1378 = vpop.f32.mrb[0].mxu0
      %v1379 = vpop.f32.mrb[0].mxu0
      %v1380 = vadd.f32 %v401, %v1379
      %v1381 = vpop.f32.mrb[0].mxu0
      %1382 = vmatprep.mubr.bf16.mxu0 0
      %1383 = vmatmul.mubr.bf16.gmra.mrb[0].mxu0 %v892
      %v1384 = vpop.f32.mrb[0].mxu0
      %v1385 = vadd.f32 %v401, %v1384
      %v1386 = vpop.f32.mrb[0].mxu0
      %v1387 = vpop.f32.mrb[0].mxu0
      %v1388 = vadd.f32 %v401, %v1387
      %v1389 = vpop.f32.mrb[0].mxu0
      %1390 = vmatprep.mubr.bf16.mxu0 0
      %1391 = vmatmul.mubr.bf16.gmra.mrb[0].mxu0 %v895
      %v1392 = vpop.f32.mrb[0].mxu0
      %v1393 = vadd.f32 %v401, %v1392
      %v1394 = vpop.f32.mrb[0].mxu0
      %v1395 = vpop.f32.mrb[0].mxu0
      %v1396 = vadd.f32 %v401, %v1395
      %v1397 = vpop.f32.mrb[0].mxu0
      %1398 = vmatprep.mubr.bf16.mxu0 0
      %1399 = vmatmul.mubr.bf16.gmra.mrb[0].mxu0 %v898
      %v1400 = vpop.f32.mrb[0].mxu0
      %v1401 = vadd.f32 %v401, %v1400
      %v1402 = vpop.f32.mrb[0].mxu0
      %v1403 = vpop.f32.mrb[0].mxu0
      %v1404 = vadd.f32 %v401, %v1403
      %v1405 = vpop.f32.mrb[0].mxu0
      %1406 = vmatprep.mubr.bf16.mxu0 0
      %1407 = vmatmul.mubr.bf16.gmra.mrb[0].mxu0 %v901
      %v1408 = vpop.f32.mrb[0].mxu0
      %v1409 = vadd.f32 %v401, %v1408
      %v1410 = vpop.f32.mrb[0].mxu0
      %v1411 = vpop.f32.mrb[0].mxu0
      %v1412 = vadd.f32 %v401, %v1411
      %v1413 = vpop.f32.mrb[0].mxu0
      %1414 = vmatprep.mubr.bf16.mxu0 0
      %1415 = vmatmul.mubr.bf16.gmra.mrb[0].mxu0 %v904
      %v1416 = vpop.f32.mrb[0].mxu0
      %v1417 = vadd.f32 %v401, %v1416
      %v1418 = vpop.f32.mrb[0].mxu0
      %v1419 = vpop.f32.mrb[0].mxu0
      %v1420 = vadd.f32 %v401, %v1419
      %v1421 = vpop.f32.mrb[0].mxu0
      %1422 = vmatprep.mubr.bf16.mxu0 0
      %1423 = vmatmul.mubr.bf16.gmra.mrb[0].mxu0 %v907
      %v1424 = vpop.f32.mrb[0].mxu0
      %v1425 = vadd.f32 %v401, %v1424
      %v1426 = vpop.f32.mrb[0].mxu0
      %v1427 = vpop.f32.mrb[0].mxu0
      %v1428 = vadd.f32 %v401, %v1427
      %v1429 = vpop.f32.mrb[0].mxu0
      %1430 = vmatprep.mubr.bf16.mxu0 0
      %1431 = vmatmul.mubr.bf16.gmra.mrb[0].mxu0 %v910
      %v1432 = vpop.f32.mrb[0].mxu0
      %v1433 = vadd.f32 %v401, %v1432
      %v1434 = vpop.f32.mrb[0].mxu0
      %v1435 = vpop.f32.mrb[0].mxu0
      %v1436 = vadd.f32 %v401, %v1435
      %v1437 = vpop.f32.mrb[0].mxu0
      %1438 = vmatprep.mubr.bf16.mxu0 0
      %1439 = vmatmul.mubr.bf16.gmra.mrb[0].mxu0 %v913
      %v1440 = vpop.f32.mrb[0].mxu0
      %v1441 = vadd.f32 %v401, %v1440
      %v1442 = vpop.f32.mrb[0].mxu0
      %v1443 = vpop.f32.mrb[0].mxu0
      %v1444 = vadd.f32 %v401, %v1443
      %v1445 = vpop.f32.mrb[0].mxu0
      %1446 = vmatprep.mubr.bf16.mxu0 0
      %1447 = vmatmul.mubr.bf16.gmra.mrb[0].mxu0 %v916
      %v1448 = vpop.f32.mrb[0].mxu0
      %v1449 = vadd.f32 %v401, %v1448
      %v1450 = vpop.f32.mrb[0].mxu0
      %v1451 = vpop.f32.mrb[0].mxu0
      %v1452 = vadd.f32 %v401, %v1451
      %v1453 = vpop.f32.mrb[0].mxu0
      %1454 = vmatprep.mubr.bf16.mxu0 0
      %1455 = vmatmul.mubr.bf16.gmra.mrb[0].mxu0 %v919
      %v1456 = vpop.f32.mrb[0].mxu0
      %v1457 = vadd.f32 %v401, %v1456
      %v1458 = vpop.f32.mrb[0].mxu0
      %v1459 = vpop.f32.mrb[0].mxu0
      %v1460 = vadd.f32 %v401, %v1459
      %v1461 = vpop.f32.mrb[0].mxu0
      %1462 = vmatprep.mubr.bf16.mxu0 0
      %1463 = vmatmul.mubr.bf16.gmra.mrb[0].mxu0 %v922
      %v1464 = vpop.f32.mrb[0].mxu0
      %v1465 = vadd.f32 %v401, %v1464
      %v1466 = vpop.f32.mrb[0].mxu0
      %v1467 = vpop.f32.mrb[0].mxu0
      %v1468 = vadd.f32 %v401, %v1467
      %v1469 = vpop.f32.mrb[0].mxu0
      %1470 = vmatprep.mubr.bf16.mxu0 0
      %1471 = vmatmul.mubr.bf16.gmra.mrb[0].mxu0 %v925
      %v1472 = vpop.f32.mrb[0].mxu0
      %v1473 = vadd.f32 %v401, %v1472
      %v1474 = vpop.f32.mrb[0].mxu0
      %v1475 = vpop.f32.mrb[0].mxu0
      %v1476 = vadd.f32 %v401, %v1475
      %v1477 = vpop.f32.mrb[0].mxu0
      %1478 = vdwg.mxu0
      %v1479 = vmax.f32 %v969, 0.0
      %v1480 = vmax.f32 %v972, 0.0
      %v1481 = vmax.f32 %v977, 0.0
      %v1482 = vmax.f32 %v980, 0.0
      %v1483 = vmax.f32 %v985, 0.0
      %v1484 = vmax.f32 %v988, 0.0
      %v1485 = vmax.f32 %v993, 0.0
      %v1486 = vmax.f32 %v996, 0.0
      %v1487 = vmax.f32 %v1001, 0.0
      %v1488 = vmax.f32 %v1004, 0.0
      %v1489 = vmax.f32 %v1009, 0.0
      %v1490 = vmax.f32 %v1012, 0.0
      %v1491 = vmax.f32 %v1017, 0.0
      %v1492 = vmax.f32 %v1020, 0.0
      %v1493 = vmax.f32 %v1025, 0.0
      %v1494 = vmax.f32 %v1028, 0.0
      %v1495 = vmax.f32 %v1033, 0.0
      %v1496 = vmax.f32 %v1036, 0.0
      %v1497 = vmax.f32 %v1041, 0.0
      %v1498 = vmax.f32 %v1044, 0.0
      %v1499 = vmax.f32 %v1049, 0.0
      %v1500 = vmax.f32 %v1052, 0.0
      %v1501 = vmax.f32 %v1057, 0.0
      %v1502 = vmax.f32 %v1060, 0.0
      %v1503 = vmax.f32 %v1065, 0.0
      %v1504 = vmax.f32 %v1068, 0.0
      %v1505 = vmax.f32 %v1073, 0.0
      %v1506 = vmax.f32 %v1076, 0.0
      %v1507 = vmax.f32 %v1081, 0.0
      %v1508 = vmax.f32 %v1084, 0.0
      %v1509 = vmax.f32 %v1089, 0.0
      %v1510 = vmax.f32 %v1092, 0.0
      %v1511 = vmax.f32 %v1097, 0.0
      %v1512 = vmax.f32 %v1100, 0.0
      %v1513 = vmax.f32 %v1105, 0.0
      %v1514 = vmax.f32 %v1108, 0.0
      %v1515 = vmax.f32 %v1113, 0.0
      %v1516 = vmax.f32 %v1116, 0.0
      %v1517 = vmax.f32 %v1121, 0.0
      %v1518 = vmax.f32 %v1124, 0.0
      %v1519 = vmax.f32 %v1129, 0.0
      %v1520 = vmax.f32 %v1132, 0.0
      %v1521 = vmax.f32 %v1137, 0.0
      %v1522 = vmax.f32 %v1140, 0.0
      %v1523 = vmax.f32 %v1145, 0.0
      %v1524 = vmax.f32 %v1148, 0.0
      %v1525 = vmax.f32 %v1153, 0.0
      %v1526 = vmax.f32 %v1156, 0.0
      %v1527 = vmax.f32 %v1161, 0.0
      %v1528 = vmax.f32 %v1164, 0.0
      %v1529 = vmax.f32 %v1169, 0.0
      %v1530 = vmax.f32 %v1172, 0.0
      %v1531 = vmax.f32 %v1177, 0.0
      %v1532 = vmax.f32 %v1180, 0.0
      %v1533 = vmax.f32 %v1185, 0.0
      %v1534 = vmax.f32 %v1188, 0.0
      %v1535 = vmax.f32 %v1193, 0.0
      %v1536 = vmax.f32 %v1196, 0.0
      %v1537 = vmax.f32 %v1201, 0.0
      %v1538 = vmax.f32 %v1204, 0.0
      %v1539 = vmax.f32 %v1209, 0.0
      %v1540 = vmax.f32 %v1212, 0.0
      %v1541 = vmax.f32 %v1217, 0.0
      %v1542 = vmax.f32 %v1220, 0.0
      %v1543 = vmax.f32 %v1225, 0.0
      %v1544 = vmax.f32 %v1228, 0.0
      %v1545 = vmax.f32 %v1233, 0.0
      %v1546 = vmax.f32 %v1236, 0.0
      %v1547 = vmax.f32 %v1241, 0.0
      %v1548 = vmax.f32 %v1244, 0.0
      %v1549 = vmax.f32 %v1249, 0.0
      %v1550 = vmax.f32 %v1252, 0.0
      %v1551 = vmax.f32 %v1257, 0.0
      %v1552 = vmax.f32 %v1260, 0.0
      %v1553 = vmax.f32 %v1265, 0.0
      %v1554 = vmax.f32 %v1268, 0.0
      %v1555 = vmax.f32 %v1273, 0.0
      %v1556 = vmax.f32 %v1276, 0.0
      %v1557 = vmax.f32 %v1281, 0.0
      %v1558 = vmax.f32 %v1284, 0.0
      %v1559 = vmax.f32 %v1289, 0.0
      %v1560 = vmax.f32 %v1292, 0.0
      %v1561 = vmax.f32 %v1297, 0.0
      %v1562 = vmax.f32 %v1300, 0.0
      %v1563 = vmax.f32 %v1305, 0.0
      %v1564 = vmax.f32 %v1308, 0.0
      %v1565 = vmax.f32 %v1313, 0.0
      %v1566 = vmax.f32 %v1316, 0.0
      %v1567 = vmax.f32 %v1321, 0.0
      %v1568 = vmax.f32 %v1324, 0.0
      %v1569 = vmax.f32 %v1329, 0.0
      %v1570 = vmax.f32 %v1332, 0.0
      %v1571 = vmax.f32 %v1337, 0.0
      %v1572 = vmax.f32 %v1340, 0.0
      %v1573 = vmax.f32 %v1345, 0.0
      %v1574 = vmax.f32 %v1348, 0.0
      %v1575 = vmax.f32 %v1353, 0.0
      %v1576 = vmax.f32 %v1356, 0.0
      %v1577 = vmax.f32 %v1361, 0.0
      %v1578 = vmax.f32 %v1364, 0.0
      %v1579 = vmax.f32 %v1369, 0.0
      %v1580 = vmax.f32 %v1372, 0.0
      %v1581 = vmax.f32 %v1377, 0.0
      %v1582 = vmax.f32 %v1380, 0.0
      %v1583 = vmax.f32 %v1385, 0.0
      %v1584 = vmax.f32 %v1388, 0.0
      %v1585 = vmax.f32 %v1393, 0.0
      %v1586 = vmax.f32 %v1396, 0.0
      %v1587 = vmax.f32 %v1401, 0.0
      %v1588 = vmax.f32 %v1404, 0.0
      %v1589 = vmax.f32 %v1409, 0.0
      %v1590 = vmax.f32 %v1412, 0.0
      %v1591 = vmax.f32 %v1417, 0.0
      %v1592 = vmax.f32 %v1420, 0.0
      %v1593 = vmax.f32 %v1425, 0.0
      %v1594 = vmax.f32 %v1428, 0.0
      %v1595 = vmax.f32 %v1433, 0.0
      %v1596 = vmax.f32 %v1436, 0.0
      %v1597 = vmax.f32 %v1441, 0.0
      %v1598 = vmax.f32 %v1444, 0.0
      %v1599 = vmax.f32 %v1449, 0.0
      %v1600 = vmax.f32 %v1452, 0.0
      %v1601 = vmax.f32 %v1457, 0.0
      %v1602 = vmax.f32 %v1460, 0.0
      %v1603 = vmax.f32 %v1465, 0.0
      %v1604 = vmax.f32 %v1468, 0.0
      %v1605 = vmax.f32 %v1473, 0.0
      %v1606 = vmax.f32 %v1476, 0.0
      %v1607 = vmax.f32 %v1479, %v1483
      %v1608 = vmax.f32 %v1480, %v1484
      %v1609 = vmax.f32 %v1481, %v1485
      %v1610 = vmax.f32 %v1482, %v1486
      %v1611 = vmax.f32 %v1487, %v1491
      %v1612 = vmax.f32 %v1488, %v1492
      %v1613 = vmax.f32 %v1489, %v1493
      %v1614 = vmax.f32 %v1490, %v1494
      %v1615 = vmax.f32 %v1495, %v1499
      %v1616 = vmax.f32 %v1496, %v1500
      %v1617 = vmax.f32 %v1497, %v1501
      %v1618 = vmax.f32 %v1498, %v1502
      %v1619 = vmax.f32 %v1503, %v1507
      %v1620 = vmax.f32 %v1504, %v1508
      %v1621 = vmax.f32 %v1505, %v1509
      %v1622 = vmax.f32 %v1506, %v1510
      %v1623 = vmax.f32 %v1511, %v1515
      %v1624 = vmax.f32 %v1512, %v1516
      %v1625 = vmax.f32 %v1513, %v1517
      %v1626 = vmax.f32 %v1514, %v1518
      %v1627 = vmax.f32 %v1519, %v1523
      %v1628 = vmax.f32 %v1520, %v1524
      %v1629 = vmax.f32 %v1521, %v1525
      %v1630 = vmax.f32 %v1522, %v1526
      %v1631 = vmax.f32 %v1527, %v1531
      %v1632 = vmax.f32 %v1528, %v1532
      %v1633 = vmax.f32 %v1529, %v1533
      %v1634 = vmax.f32 %v1530, %v1534
      %v1635 = vmax.f32 %v1535, %v1539
      %v1636 = vmax.f32 %v1536, %v1540
      %v1637 = vmax.f32 %v1537, %v1541
      %v1638 = vmax.f32 %v1538, %v1542
      %v1639 = vmax.f32 %v1543, %v1547
      %v1640 = vmax.f32 %v1544, %v1548
      %v1641 = vmax.f32 %v1545, %v1549
      %v1642 = vmax.f32 %v1546, %v1550
      %v1643 = vmax.f32 %v1551, %v1555
      %v1644 = vmax.f32 %v1552, %v1556
      %v1645 = vmax.f32 %v1553, %v1557
      %v1646 = vmax.f32 %v1554, %v1558
      %v1647 = vmax.f32 %v1559, %v1563
      %v1648 = vmax.f32 %v1560, %v1564
      %v1649 = vmax.f32 %v1561, %v1565
      %v1650 = vmax.f32 %v1562, %v1566
      %v1651 = vmax.f32 %v1567, %v1571
      %v1652 = vmax.f32 %v1568, %v1572
      %v1653 = vmax.f32 %v1569, %v1573
      %v1654 = vmax.f32 %v1570, %v1574
      %v1655 = vmax.f32 %v1575, %v1579
      %v1656 = vmax.f32 %v1576, %v1580
      %v1657 = vmax.f32 %v1577, %v1581
      %v1658 = vmax.f32 %v1578, %v1582
      %v1659 = vmax.f32 %v1583, %v1587
      %v1660 = vmax.f32 %v1584, %v1588
      %v1661 = vmax.f32 %v1585, %v1589
      %v1662 = vmax.f32 %v1586, %v1590
      %v1663 = vmax.f32 %v1591, %v1595
      %v1664 = vmax.f32 %v1592, %v1596
      %v1665 = vmax.f32 %v1593, %v1597
      %v1666 = vmax.f32 %v1594, %v1598
      %v1667 = vmax.f32 %v1599, %v1603
      %v1668 = vmax.f32 %v1600, %v1604
      %v1669 = vmax.f32 %v1601, %v1605
      %v1670 = vmax.f32 %v1602, %v1606
      %vm1671 = vcmask 261120
      %1672 = vst.msk [vmem:[#allocation2] sm:$0xff] %vm1671, %v1607
      %1673 = vst.msk [vmem:[#allocation2 + $0x8] sm:$0xff] %vm1671, %v1608
      %1674 = vst.msk [vmem:[#allocation2 + $0x10] sm:$0xff] %vm1671, %v1609
      %1675 = vst.msk [vmem:[#allocation2 + $0x18] sm:$0xff] %vm1671, %v1610
      %1676 = vst.msk [vmem:[#allocation2 + $0x20] sm:$0xff] %vm1671, %v1611
      %1677 = vst.msk [vmem:[#allocation2 + $0x28] sm:$0xff] %vm1671, %v1612
      %1678 = vst.msk [vmem:[#allocation2 + $0x30] sm:$0xff] %vm1671, %v1613
      %1679 = vst.msk [vmem:[#allocation2 + $0x38] sm:$0xff] %vm1671, %v1614
      %1680 = vst.msk [vmem:[#allocation2 + $0x40] sm:$0xff] %vm1671, %v1615
      %1681 = vst.msk [vmem:[#allocation2 + $0x48] sm:$0xff] %vm1671, %v1616
      %1682 = vst.msk [vmem:[#allocation2 + $0x50] sm:$0xff] %vm1671, %v1617
      %1683 = vst.msk [vmem:[#allocation2 + $0x58] sm:$0xff] %vm1671, %v1618
      %1684 = vst.msk [vmem:[#allocation2 + $0x60] sm:$0xff] %vm1671, %v1619
      %1685 = vst.msk [vmem:[#allocation2 + $0x68] sm:$0xff] %vm1671, %v1620
      %1686 = vst.msk [vmem:[#allocation2 + $0x70] sm:$0xff] %vm1671, %v1621
      %1687 = vst.msk [vmem:[#allocation2 + $0x78] sm:$0xff] %vm1671, %v1622
      %1688 = vst.msk [vmem:[#allocation2 + $0x80] sm:$0xff] %vm1671, %v1623
      %1689 = vst.msk [vmem:[#allocation2 + $0x88] sm:$0xff] %vm1671, %v1624
      %1690 = vst.msk [vmem:[#allocation2 + $0x90] sm:$0xff] %vm1671, %v1625
      %1691 = vst.msk [vmem:[#allocation2 + $0x98] sm:$0xff] %vm1671, %v1626
      %1692 = vst.msk [vmem:[#allocation2 + $0xa0] sm:$0xff] %vm1671, %v1627
      %1693 = vst.msk [vmem:[#allocation2 + $0xa8] sm:$0xff] %vm1671, %v1628
      %1694 = vst.msk [vmem:[#allocation2 + $0xb0] sm:$0xff] %vm1671, %v1629
      %1695 = vst.msk [vmem:[#allocation2 + $0xb8] sm:$0xff] %vm1671, %v1630
      %1696 = vst.msk [vmem:[#allocation2 + $0xc0] sm:$0xff] %vm1671, %v1631
      %1697 = vst.msk [vmem:[#allocation2 + $0xc8] sm:$0xff] %vm1671, %v1632
      %1698 = vst.msk [vmem:[#allocation2 + $0xd0] sm:$0xff] %vm1671, %v1633
      %1699 = vst.msk [vmem:[#allocation2 + $0xd8] sm:$0xff] %vm1671, %v1634
      %1700 = vst.msk [vmem:[#allocation2 + $0xe0] sm:$0xff] %vm1671, %v1635
      %1701 = vst.msk [vmem:[#allocation2 + $0xe8] sm:$0xff] %vm1671, %v1636
      %1702 = vst.msk [vmem:[#allocation2 + $0xf0] sm:$0xff] %vm1671, %v1637
      %1703 = vst.msk [vmem:[#allocation2 + $0xf8] sm:$0xff] %vm1671, %v1638
      %1704 = vst.msk [vmem:[#allocation2 + $0x100] sm:$0xff] %vm1671, %v1639
      %1705 = vst.msk [vmem:[#allocation2 + $0x108] sm:$0xff] %vm1671, %v1640
      %1706 = vst.msk [vmem:[#allocation2 + $0x110] sm:$0xff] %vm1671, %v1641
      %1707 = vst.msk [vmem:[#allocation2 + $0x118] sm:$0xff] %vm1671, %v1642
      %1708 = vst.msk [vmem:[#allocation2 + $0x120] sm:$0xff] %vm1671, %v1643
      %1709 = vst.msk [vmem:[#allocation2 + $0x128] sm:$0xff] %vm1671, %v1644
      %1710 = vst.msk [vmem:[#allocation2 + $0x130] sm:$0xff] %vm1671, %v1645
      %1711 = vst.msk [vmem:[#allocation2 + $0x138] sm:$0xff] %vm1671, %v1646
      %1712 = vst.msk [vmem:[#allocation2 + $0x140] sm:$0xff] %vm1671, %v1647
      %1713 = vst.msk [vmem:[#allocation2 + $0x148] sm:$0xff] %vm1671, %v1648
      %1714 = vst.msk [vmem:[#allocation2 + $0x150] sm:$0xff] %vm1671, %v1649
      %1715 = vst.msk [vmem:[#allocation2 + $0x158] sm:$0xff] %vm1671, %v1650
      %1716 = vst.msk [vmem:[#allocation2 + $0x160] sm:$0xff] %vm1671, %v1651
      %1717 = vst.msk [vmem:[#allocation2 + $0x168] sm:$0xff] %vm1671, %v1652
      %1718 = vst.msk [vmem:[#allocation2 + $0x170] sm:$0xff] %vm1671, %v1653
      %1719 = vst.msk [vmem:[#allocation2 + $0x178] sm:$0xff] %vm1671, %v1654
      %1720 = vst.msk [vmem:[#allocation2 + $0x180] sm:$0xff] %vm1671, %v1655
      %1721 = vst.msk [vmem:[#allocation2 + $0x188] sm:$0xff] %vm1671, %v1656
      %1722 = vst.msk [vmem:[#allocation2 + $0x190] sm:$0xff] %vm1671, %v1657
      %1723 = vst.msk [vmem:[#allocation2 + $0x198] sm:$0xff] %vm1671, %v1658
      %1724 = vst.msk [vmem:[#allocation2 + $0x1a0] sm:$0xff] %vm1671, %v1659
      %1725 = vst.msk [vmem:[#allocation2 + $0x1a8] sm:$0xff] %vm1671, %v1660
      %1726 = vst.msk [vmem:[#allocation2 + $0x1b0] sm:$0xff] %vm1671, %v1661
      %1727 = vst.msk [vmem:[#allocation2 + $0x1b8] sm:$0xff] %vm1671, %v1662
      %1728 = vst.msk [vmem:[#allocation2 + $0x1c0] sm:$0xff] %vm1671, %v1663
      %1729 = vst.msk [vmem:[#allocation2 + $0x1c8] sm:$0xff] %vm1671, %v1664
      %1730 = vst.msk [vmem:[#allocation2 + $0x1d0] sm:$0xff] %vm1671, %v1665
      %1731 = vst.msk [vmem:[#allocation2 + $0x1d8] sm:$0xff] %vm1671, %v1666
      %1732 = vst.msk [vmem:[#allocation2 + $0x1e0] sm:$0xff] %vm1671, %v1667
      %1733 = vst.msk [vmem:[#allocation2 + $0x1e8] sm:$0xff] %vm1671, %v1668
      %1734 = vst.msk [vmem:[#allocation2 + $0x1f0] sm:$0xff] %vm1671, %v1669
      %1735 = vst.msk [vmem:[#allocation2 + $0x1f8] sm:$0xff] %vm1671, %v1670
      %v1736 = vld [vmem:[#allocation2] ss:$2 sm:$0xff]
      %s1737 = scalar_lea.vmem [#allocation2], 16
      %v1738 = vld [vmem:[%s1737] ss:$2 sm:$0xff]
      %s1739 = scalar_lea.vmem [#allocation2], 32
      %v1740 = vld [vmem:[%s1739] ss:$2 sm:$0xff]
      %s1741 = scalar_lea.vmem [#allocation2], 48
      %v1742 = vld [vmem:[%s1741] ss:$2 sm:$0xff]
      %s1743 = scalar_lea.vmem [#allocation2], 64
      %v1744 = vld [vmem:[%s1743] ss:$2 sm:$0xff]
      %s1745 = scalar_lea.vmem [#allocation2], 80
      %v1746 = vld [vmem:[%s1745] ss:$2 sm:$0xff]
      %s1747 = scalar_lea.vmem [#allocation2], 96
      %v1748 = vld [vmem:[%s1747] ss:$2 sm:$0xff]
      %s1749 = scalar_lea.vmem [#allocation2], 112
      %v1750 = vld [vmem:[%s1749] ss:$2 sm:$0xff]
      %s1751 = scalar_lea.vmem [#allocation2], 128
      %v1752 = vld [vmem:[%s1751] ss:$2 sm:$0xff]
      %s1753 = scalar_lea.vmem [#allocation2], 144
      %v1754 = vld [vmem:[%s1753] ss:$2 sm:$0xff]
      %s1755 = scalar_lea.vmem [#allocation2], 160
      %v1756 = vld [vmem:[%s1755] ss:$2 sm:$0xff]
      %s1757 = scalar_lea.vmem [#allocation2], 176
      %v1758 = vld [vmem:[%s1757] ss:$2 sm:$0xff]
      %s1759 = scalar_lea.vmem [#allocation2], 192
      %v1760 = vld [vmem:[%s1759] ss:$2 sm:$0xff]
      %s1761 = scalar_lea.vmem [#allocation2], 208
      %v1762 = vld [vmem:[%s1761] ss:$2 sm:$0xff]
      %s1763 = scalar_lea.vmem [#allocation2], 224
      %v1764 = vld [vmem:[%s1763] ss:$2 sm:$0xff]
      %s1765 = scalar_lea.vmem [#allocation2], 240
      %v1766 = vld [vmem:[%s1765] ss:$2 sm:$0xff]
      %s1767 = scalar_lea.vmem [#allocation2], 256
      %v1768 = vld [vmem:[%s1767] ss:$2 sm:$0xff]
      %s1769 = scalar_lea.vmem [#allocation2], 272
      %v1770 = vld [vmem:[%s1769] ss:$2 sm:$0xff]
      %s1771 = scalar_lea.vmem [#allocation2], 288
      %v1772 = vld [vmem:[%s1771] ss:$2 sm:$0xff]
      %s1773 = scalar_lea.vmem [#allocation2], 304
      %v1774 = vld [vmem:[%s1773] ss:$2 sm:$0xff]
      %s1775 = scalar_lea.vmem [#allocation2], 320
      %v1776 = vld [vmem:[%s1775] ss:$2 sm:$0xff]
      %s1777 = scalar_lea.vmem [#allocation2], 336
      %v1778 = vld [vmem:[%s1777] ss:$2 sm:$0xff]
      %s1779 = scalar_lea.vmem [#allocation2], 352
      %v1780 = vld [vmem:[%s1779] ss:$2 sm:$0xff]
      %s1781 = scalar_lea.vmem [#allocation2], 368
      %v1782 = vld [vmem:[%s1781] ss:$2 sm:$0xff]
      %s1783 = scalar_lea.vmem [#allocation2], 384
      %v1784 = vld [vmem:[%s1783] ss:$2 sm:$0xff]
      %s1785 = scalar_lea.vmem [#allocation2], 400
      %v1786 = vld [vmem:[%s1785] ss:$2 sm:$0xff]
      %s1787 = scalar_lea.vmem [#allocation2], 416
      %v1788 = vld [vmem:[%s1787] ss:$2 sm:$0xff]
      %s1789 = scalar_lea.vmem [#allocation2], 432
      %v1790 = vld [vmem:[%s1789] ss:$2 sm:$0xff]
      %s1791 = scalar_lea.vmem [#allocation2], 448
      %v1792 = vld [vmem:[%s1791] ss:$2 sm:$0xff]
      %s1793 = scalar_lea.vmem [#allocation2], 464
      %v1794 = vld [vmem:[%s1793] ss:$2 sm:$0xff]
      %s1795 = scalar_lea.vmem [#allocation2], 480
      %v1796 = vld [vmem:[%s1795] ss:$2 sm:$0xff]
      %s1797 = scalar_lea.vmem [#allocation2], 496
      %v1798 = vld [vmem:[%s1797] ss:$2 sm:$0xff]
      %s1799 = scalar_lea.vmem [#allocation2], 1
      %v1800 = vld [vmem:[%s1799] ss:$2 sm:$0xff]
      %s1801 = scalar_lea.vmem [#allocation2], 17
      %v1802 = vld [vmem:[%s1801] ss:$2 sm:$0xff]
      %s1803 = scalar_lea.vmem [#allocation2], 33
      %v1804 = vld [vmem:[%s1803] ss:$2 sm:$0xff]
      %s1805 = scalar_lea.vmem [#allocation2], 49
      %v1806 = vld [vmem:[%s1805] ss:$2 sm:$0xff]
      %s1807 = scalar_lea.vmem [#allocation2], 65
      %v1808 = vld [vmem:[%s1807] ss:$2 sm:$0xff]
      %s1809 = scalar_lea.vmem [#allocation2], 81
      %v1810 = vld [vmem:[%s1809] ss:$2 sm:$0xff]
      %s1811 = scalar_lea.vmem [#allocation2], 97
      %v1812 = vld [vmem:[%s1811] ss:$2 sm:$0xff]
      %s1813 = scalar_lea.vmem [#allocation2], 113
      %v1814 = vld [vmem:[%s1813] ss:$2 sm:$0xff]
      %s1815 = scalar_lea.vmem [#allocation2], 129
      %v1816 = vld [vmem:[%s1815] ss:$2 sm:$0xff]
      %s1817 = scalar_lea.vmem [#allocation2], 145
      %v1818 = vld [vmem:[%s1817] ss:$2 sm:$0xff]
      %s1819 = scalar_lea.vmem [#allocation2], 161
      %v1820 = vld [vmem:[%s1819] ss:$2 sm:$0xff]
      %s1821 = scalar_lea.vmem [#allocation2], 177
      %v1822 = vld [vmem:[%s1821] ss:$2 sm:$0xff]
      %s1823 = scalar_lea.vmem [#allocation2], 193
      %v1824 = vld [vmem:[%s1823] ss:$2 sm:$0xff]
      %s1825 = scalar_lea.vmem [#allocation2], 209
      %v1826 = vld [vmem:[%s1825] ss:$2 sm:$0xff]
      %s1827 = scalar_lea.vmem [#allocation2], 225
      %v1828 = vld [vmem:[%s1827] ss:$2 sm:$0xff]
      %s1829 = scalar_lea.vmem [#allocation2], 241
      %v1830 = vld [vmem:[%s1829] ss:$2 sm:$0xff]
      %s1831 = scalar_lea.vmem [#allocation2], 257
      %v1832 = vld [vmem:[%s1831] ss:$2 sm:$0xff]
      %s1833 = scalar_lea.vmem [#allocation2], 273
      %v1834 = vld [vmem:[%s1833] ss:$2 sm:$0xff]
      %s1835 = scalar_lea.vmem [#allocation2], 289
      %v1836 = vld [vmem:[%s1835] ss:$2 sm:$0xff]
      %s1837 = scalar_lea.vmem [#allocation2], 305
      %v1838 = vld [vmem:[%s1837] ss:$2 sm:$0xff]
      %s1839 = scalar_lea.vmem [#allocation2], 321
      %v1840 = vld [vmem:[%s1839] ss:$2 sm:$0xff]
      %s1841 = scalar_lea.vmem [#allocation2], 337
      %v1842 = vld [vmem:[%s1841] ss:$2 sm:$0xff]
      %s1843 = scalar_lea.vmem [#allocation2], 353
      %v1844 = vld [vmem:[%s1843] ss:$2 sm:$0xff]
      %s1845 = scalar_lea.vmem [#allocation2], 369
      %v1846 = vld [vmem:[%s1845] ss:$2 sm:$0xff]
      %s1847 = scalar_lea.vmem [#allocation2], 385
      %v1848 = vld [vmem:[%s1847] ss:$2 sm:$0xff]
      %s1849 = scalar_lea.vmem [#allocation2], 401
      %v1850 = vld [vmem:[%s1849] ss:$2 sm:$0xff]
      %s1851 = scalar_lea.vmem [#allocation2], 417
      %v1852 = vld [vmem:[%s1851] ss:$2 sm:$0xff]
      %s1853 = scalar_lea.vmem [#allocation2], 433
      %v1854 = vld [vmem:[%s1853] ss:$2 sm:$0xff]
      %s1855 = scalar_lea.vmem [#allocation2], 449
      %v1856 = vld [vmem:[%s1855] ss:$2 sm:$0xff]
      %s1857 = scalar_lea.vmem [#allocation2], 465
      %v1858 = vld [vmem:[%s1857] ss:$2 sm:$0xff]
      %s1859 = scalar_lea.vmem [#allocation2], 481
      %v1860 = vld [vmem:[%s1859] ss:$2 sm:$0xff]
      %s1861 = scalar_lea.vmem [#allocation2], 497
      %v1862 = vld [vmem:[%s1861] ss:$2 sm:$0xff]
      %v1863 = vmax.f32 %v1736, %v1800
      %v1864 = vmax.f32 %v1738, %v1802
      %v1865 = vmax.f32 %v1740, %v1804
      %v1866 = vmax.f32 %v1742, %v1806
      %v1867 = vmax.f32 %v1744, %v1808
      %v1868 = vmax.f32 %v1746, %v1810
      %v1869 = vmax.f32 %v1748, %v1812
      %v1870 = vmax.f32 %v1750, %v1814
      %v1871 = vmax.f32 %v1752, %v1816
      %v1872 = vmax.f32 %v1754, %v1818
      %v1873 = vmax.f32 %v1756, %v1820
      %v1874 = vmax.f32 %v1758, %v1822
      %v1875 = vmax.f32 %v1760, %v1824
      %v1876 = vmax.f32 %v1762, %v1826
      %v1877 = vmax.f32 %v1764, %v1828
      %v1878 = vmax.f32 %v1766, %v1830
      %v1879 = vmax.f32 %v1768, %v1832
      %v1880 = vmax.f32 %v1770, %v1834
      %v1881 = vmax.f32 %v1772, %v1836
      %v1882 = vmax.f32 %v1774, %v1838
      %v1883 = vmax.f32 %v1776, %v1840
      %v1884 = vmax.f32 %v1778, %v1842
      %v1885 = vmax.f32 %v1780, %v1844
      %v1886 = vmax.f32 %v1782, %v1846
      %v1887 = vmax.f32 %v1784, %v1848
      %v1888 = vmax.f32 %v1786, %v1850
      %v1889 = vmax.f32 %v1788, %v1852
      %v1890 = vmax.f32 %v1790, %v1854
      %v1891 = vmax.f32 %v1792, %v1856
      %v1892 = vmax.f32 %v1794, %v1858
      %v1893 = vmax.f32 %v1796, %v1860
      %v1894 = vmax.f32 %v1798, %v1862
      %1895 = vst.msk [vmem:[%s258] sm:$0xff] %vm1671, %v1863
      %1896 = vst.msk [vmem:[%s258 + $0x8] sm:$0xff] %vm1671, %v1864
      %1897 = vst.msk [vmem:[%s258 + $0x10] sm:$0xff] %vm1671, %v1865
      %1898 = vst.msk [vmem:[%s258 + $0x18] sm:$0xff] %vm1671, %v1866
      %1899 = vst.msk [vmem:[%s258 + $0x20] sm:$0xff] %vm1671, %v1867
      %1900 = vst.msk [vmem:[%s258 + $0x28] sm:$0xff] %vm1671, %v1868
      %1901 = vst.msk [vmem:[%s258 + $0x30] sm:$0xff] %vm1671, %v1869
      %1902 = vst.msk [vmem:[%s258 + $0x38] sm:$0xff] %vm1671, %v1870
      %1903 = vst.msk [vmem:[%s258 + $0x40] sm:$0xff] %vm1671, %v1871
      %1904 = vst.msk [vmem:[%s258 + $0x48] sm:$0xff] %vm1671, %v1872
      %1905 = vst.msk [vmem:[%s258 + $0x50] sm:$0xff] %vm1671, %v1873
      %1906 = vst.msk [vmem:[%s258 + $0x58] sm:$0xff] %vm1671, %v1874
      %1907 = vst.msk [vmem:[%s258 + $0x60] sm:$0xff] %vm1671, %v1875
      %1908 = vst.msk [vmem:[%s258 + $0x68] sm:$0xff] %vm1671, %v1876
      %1909 = vst.msk [vmem:[%s258 + $0x70] sm:$0xff] %vm1671, %v1877
      %1910 = vst.msk [vmem:[%s258 + $0x78] sm:$0xff] %vm1671, %v1878
      %1911 = vst.msk [vmem:[%s258 + $0x80] sm:$0xff] %vm1671, %v1879
      %1912 = vst.msk [vmem:[%s258 + $0x88] sm:$0xff] %vm1671, %v1880
      %1913 = vst.msk [vmem:[%s258 + $0x90] sm:$0xff] %vm1671, %v1881
      %1914 = vst.msk [vmem:[%s258 + $0x98] sm:$0xff] %vm1671, %v1882
      %1915 = vst.msk [vmem:[%s258 + $0xa0] sm:$0xff] %vm1671, %v1883
      %1916 = vst.msk [vmem:[%s258 + $0xa8] sm:$0xff] %vm1671, %v1884
      %1917 = vst.msk [vmem:[%s258 + $0xb0] sm:$0xff] %vm1671, %v1885
      %1918 = vst.msk [vmem:[%s258 + $0xb8] sm:$0xff] %vm1671, %v1886
      %1919 = vst.msk [vmem:[%s258 + $0xc0] sm:$0xff] %vm1671, %v1887
      %1920 = vst.msk [vmem:[%s258 + $0xc8] sm:$0xff] %vm1671, %v1888
      %1921 = vst.msk [vmem:[%s258 + $0xd0] sm:$0xff] %vm1671, %v1889
      %1922 = vst.msk [vmem:[%s258 + $0xd8] sm:$0xff] %vm1671, %v1890
      %1923 = vst.msk [vmem:[%s258 + $0xe0] sm:$0xff] %vm1671, %v1891
      %1924 = vst.msk [vmem:[%s258 + $0xe8] sm:$0xff] %vm1671, %v1892
      %1925 = vst.msk [vmem:[%s258 + $0xf0] sm:$0xff] %vm1671, %v1893
      %1926 = vst.msk [vmem:[%s258 + $0xf8] sm:$0xff] %vm1671, %v1894
      %v1927 = vadd.f32 %v1863, 0.0
      %v1928 = vadd.f32 %v1864, 0.0
      %v1929 = vadd.f32 %v1865, 0.0
      %v1930 = vadd.f32 %v1866, 0.0
      %v1931 = vadd.f32 %v1867, 0.0
      %v1932 = vadd.f32 %v1868, 0.0
      %v1933 = vadd.f32 %v1869, 0.0
      %v1934 = vadd.f32 %v1870, 0.0
      %v1935 = vadd.f32 %v1871, 0.0
      %v1936 = vadd.f32 %v1872, 0.0
      %v1937 = vadd.f32 %v1873, 0.0
      %v1938 = vadd.f32 %v1874, 0.0
      %v1939 = vadd.f32 %v1875, 0.0
      %v1940 = vadd.f32 %v1876, 0.0
      %v1941 = vadd.f32 %v1877, 0.0
      %v1942 = vadd.f32 %v1878, 0.0
      %v1943 = vadd.f32 %v1879, 0.0
      %v1944 = vadd.f32 %v1880, 0.0
      %v1945 = vadd.f32 %v1881, 0.0
      %v1946 = vadd.f32 %v1882, 0.0
      %v1947 = vadd.f32 %v1883, 0.0
      %v1948 = vadd.f32 %v1884, 0.0
      %v1949 = vadd.f32 %v1885, 0.0
      %v1950 = vadd.f32 %v1886, 0.0
      %v1951 = vadd.f32 %v1887, 0.0
      %v1952 = vadd.f32 %v1888, 0.0
      %v1953 = vadd.f32 %v1889, 0.0
      %v1954 = vadd.f32 %v1890, 0.0
      %v1955 = vadd.f32 %v1891, 0.0
      %v1956 = vadd.f32 %v1892, 0.0
      %v1957 = vadd.f32 %v1893, 0.0
      %v1958 = vadd.f32 %v1894, 0.0
      %v1959 = vsel %vm1671, %v1927, 0.0
      %v1960 = vsel %vm1671, %v1929, 0.0
      %v1961 = vadd.f32 %v1959, %v1960
      %v1962 = vsel %vm1671, %v1931, 0.0
      %v1963 = vadd.f32 %v1961, %v1962
      %v1964 = vsel %vm1671, %v1933, 0.0
      %v1965 = vadd.f32 %v1963, %v1964
      %v1966 = vsel %vm1671, %v1935, 0.0
      %v1967 = vadd.f32 %v1965, %v1966
      %v1968 = vsel %vm1671, %v1937, 0.0
      %v1969 = vadd.f32 %v1967, %v1968
      %v1970 = vsel %vm1671, %v1939, 0.0
      %v1971 = vadd.f32 %v1969, %v1970
      %v1972 = vsel %vm1671, %v1941, 0.0
      %v1973 = vadd.f32 %v1971, %v1972
      %v1974 = vsel %vm1671, %v1943, 0.0
      %v1975 = vadd.f32 %v1973, %v1974
      %v1976 = vsel %vm1671, %v1945, 0.0
      %v1977 = vadd.f32 %v1975, %v1976
      %v1978 = vsel %vm1671, %v1947, 0.0
      %v1979 = vadd.f32 %v1977, %v1978
      %v1980 = vsel %vm1671, %v1949, 0.0
      %v1981 = vadd.f32 %v1979, %v1980
      %v1982 = vsel %vm1671, %v1951, 0.0
      %v1983 = vadd.f32 %v1981, %v1982
      %v1984 = vsel %vm1671, %v1953, 0.0
      %v1985 = vadd.f32 %v1983, %v1984
      %v1986 = vsel %vm1671, %v1955, 0.0
      %v1987 = vadd.f32 %v1985, %v1986
      %v1988 = vsel %vm1671, %v1957, 0.0
      %v1989 = vadd.f32 %v1987, %v1988
      %v1990 = vsel %vm1671, %v1928, 0.0
      %v1991 = vsel %vm1671, %v1930, 0.0
      %v1992 = vadd.f32 %v1990, %v1991
      %v1993 = vsel %vm1671, %v1932, 0.0
      %v1994 = vadd.f32 %v1992, %v1993
      %v1995 = vsel %vm1671, %v1934, 0.0
      %v1996 = vadd.f32 %v1994, %v1995
      %v1997 = vsel %vm1671, %v1936, 0.0
      %v1998 = vadd.f32 %v1996, %v1997
      %v1999 = vsel %vm1671, %v1938, 0.0
      %v2000 = vadd.f32 %v1998, %v1999
      %v2001 = vsel %vm1671, %v1940, 0.0
      %v2002 = vadd.f32 %v2000, %v2001
      %v2003 = vsel %vm1671, %v1942, 0.0
      %v2004 = vadd.f32 %v2002, %v2003
      %v2005 = vsel %vm1671, %v1944, 0.0
      %v2006 = vadd.f32 %v2004, %v2005
      %v2007 = vsel %vm1671, %v1946, 0.0
      %v2008 = vadd.f32 %v2006, %v2007
      %v2009 = vsel %vm1671, %v1948, 0.0
      %v2010 = vadd.f32 %v2008, %v2009
      %v2011 = vsel %vm1671, %v1950, 0.0
      %v2012 = vadd.f32 %v2010, %v2011
      %v2013 = vsel %vm1671, %v1952, 0.0
      %v2014 = vadd.f32 %v2012, %v2013
      %v2015 = vsel %vm1671, %v1954, 0.0
      %v2016 = vadd.f32 %v2014, %v2015
      %v2017 = vsel %vm1671, %v1956, 0.0
      %v2018 = vadd.f32 %v2016, %v2017
      %v2019 = vsel %vm1671, %v1958, 0.0
      %v2020 = vadd.f32 %v2018, %v2019
      %v2021 = vsel %vm1671, %v1989, 0.0
      %v2022 = vsel %vm1671, %v2020, 0.0
      %v2023 = vadd.f32 %v2021, %v2022
      %v2024 = vrot.slane %v2023, 4
      %v2025 = vadd.f32 %v2023, %v2024
      %v2026 = vrot.slane %v2025, 2
      %v2027 = vadd.f32 %v2025, %v2026
      %v2028 = vrot.slane %v2027, 1
      %v2029 = vadd.f32 %v2027, %v2028
      %v2030 = vmul.f32 %v1863, %v1863
      %v2031 = vmul.f32 %v1864, %v1864
      %v2032 = vmul.f32 %v1865, %v1865
      %v2033 = vmul.f32 %v1866, %v1866
      %v2034 = vmul.f32 %v1867, %v1867
      %v2035 = vmul.f32 %v1868, %v1868
      %v2036 = vmul.f32 %v1869, %v1869
      %v2037 = vmul.f32 %v1870, %v1870
      %v2038 = vmul.f32 %v1871, %v1871
      %v2039 = vmul.f32 %v1872, %v1872
      %v2040 = vmul.f32 %v1873, %v1873
      %v2041 = vmul.f32 %v1874, %v1874
      %v2042 = vmul.f32 %v1875, %v1875
      %v2043 = vmul.f32 %v1876, %v1876
      %v2044 = vmul.f32 %v1877, %v1877
      %v2045 = vmul.f32 %v1878, %v1878
      %v2046 = vmul.f32 %v1879, %v1879
      %v2047 = vmul.f32 %v1880, %v1880
      %v2048 = vmul.f32 %v1881, %v1881
      %v2049 = vmul.f32 %v1882, %v1882
      %v2050 = vmul.f32 %v1883, %v1883
      %v2051 = vmul.f32 %v1884, %v1884
      %v2052 = vmul.f32 %v1885, %v1885
      %v2053 = vmul.f32 %v1886, %v1886
      %v2054 = vmul.f32 %v1887, %v1887
      %v2055 = vmul.f32 %v1888, %v1888
      %v2056 = vmul.f32 %v1889, %v1889
      %v2057 = vmul.f32 %v1890, %v1890
      %v2058 = vmul.f32 %v1891, %v1891
      %v2059 = vmul.f32 %v1892, %v1892
      %v2060 = vmul.f32 %v1893, %v1893
      %v2061 = vmul.f32 %v1894, %v1894
      %v2062 = vadd.f32 %v2030, 0.0
      %v2063 = vadd.f32 %v2031, 0.0
      %v2064 = vadd.f32 %v2032, 0.0
      %v2065 = vadd.f32 %v2033, 0.0
      %v2066 = vadd.f32 %v2034, 0.0
      %v2067 = vadd.f32 %v2035, 0.0
      %v2068 = vadd.f32 %v2036, 0.0
      %v2069 = vadd.f32 %v2037, 0.0
      %v2070 = vadd.f32 %v2038, 0.0
      %v2071 = vadd.f32 %v2039, 0.0
      %v2072 = vadd.f32 %v2040, 0.0
      %v2073 = vadd.f32 %v2041, 0.0
      %v2074 = vadd.f32 %v2042, 0.0
      %v2075 = vadd.f32 %v2043, 0.0
      %v2076 = vadd.f32 %v2044, 0.0
      %v2077 = vadd.f32 %v2045, 0.0
      %v2078 = vadd.f32 %v2046, 0.0
      %v2079 = vadd.f32 %v2047, 0.0
      %v2080 = vadd.f32 %v2048, 0.0
      %v2081 = vadd.f32 %v2049, 0.0
      %v2082 = vadd.f32 %v2050, 0.0
      %v2083 = vadd.f32 %v2051, 0.0
      %v2084 = vadd.f32 %v2052, 0.0
      %v2085 = vadd.f32 %v2053, 0.0
      %v2086 = vadd.f32 %v2054, 0.0
      %v2087 = vadd.f32 %v2055, 0.0
      %v2088 = vadd.f32 %v2056, 0.0
      %v2089 = vadd.f32 %v2057, 0.0
      %v2090 = vadd.f32 %v2058, 0.0
      %v2091 = vadd.f32 %v2059, 0.0
      %v2092 = vadd.f32 %v2060, 0.0
      %v2093 = vadd.f32 %v2061, 0.0
      %v2094 = vsel %vm1671, %v2062, 0.0
      %v2095 = vsel %vm1671, %v2064, 0.0
      %v2096 = vadd.f32 %v2094, %v2095
      %v2097 = vsel %vm1671, %v2066, 0.0
      %v2098 = vadd.f32 %v2096, %v2097
      %v2099 = vsel %vm1671, %v2068, 0.0
      %v2100 = vadd.f32 %v2098, %v2099
      %v2101 = vsel %vm1671, %v2070, 0.0
      %v2102 = vadd.f32 %v2100, %v2101
      %v2103 = vsel %vm1671, %v2072, 0.0
      %v2104 = vadd.f32 %v2102, %v2103
      %v2105 = vsel %vm1671, %v2074, 0.0
      %v2106 = vadd.f32 %v2104, %v2105
      %v2107 = vsel %vm1671, %v2076, 0.0
      %v2108 = vadd.f32 %v2106, %v2107
      %v2109 = vsel %vm1671, %v2078, 0.0
      %v2110 = vadd.f32 %v2108, %v2109
      %v2111 = vsel %vm1671, %v2080, 0.0
      %v2112 = vadd.f32 %v2110, %v2111
      %v2113 = vsel %vm1671, %v2082, 0.0
      %v2114 = vadd.f32 %v2112, %v2113
      %v2115 = vsel %vm1671, %v2084, 0.0
      %v2116 = vadd.f32 %v2114, %v2115
      %v2117 = vsel %vm1671, %v2086, 0.0
      %v2118 = vadd.f32 %v2116, %v2117
      %v2119 = vsel %vm1671, %v2088, 0.0
      %v2120 = vadd.f32 %v2118, %v2119
      %v2121 = vsel %vm1671, %v2090, 0.0
      %v2122 = vadd.f32 %v2120, %v2121
      %v2123 = vsel %vm1671, %v2092, 0.0
      %v2124 = vadd.f32 %v2122, %v2123
      %v2125 = vsel %vm1671, %v2063, 0.0
      %v2126 = vsel %vm1671, %v2065, 0.0
      %v2127 = vadd.f32 %v2125, %v2126
      %v2128 = vsel %vm1671, %v2067, 0.0
      %v2129 = vadd.f32 %v2127, %v2128
      %v2130 = vsel %vm1671, %v2069, 0.0
      %v2131 = vadd.f32 %v2129, %v2130
      %v2132 = vsel %vm1671, %v2071, 0.0
      %v2133 = vadd.f32 %v2131, %v2132
      %v2134 = vsel %vm1671, %v2073, 0.0
      %v2135 = vadd.f32 %v2133, %v2134
      %v2136 = vsel %vm1671, %v2075, 0.0
      %v2137 = vadd.f32 %v2135, %v2136
      %v2138 = vsel %vm1671, %v2077, 0.0
      %v2139 = vadd.f32 %v2137, %v2138
      %v2140 = vsel %vm1671, %v2079, 0.0
      %v2141 = vadd.f32 %v2139, %v2140
      %v2142 = vsel %vm1671, %v2081, 0.0
      %v2143 = vadd.f32 %v2141, %v2142
      %v2144 = vsel %vm1671, %v2083, 0.0
      %v2145 = vadd.f32 %v2143, %v2144
      %v2146 = vsel %vm1671, %v2085, 0.0
      %v2147 = vadd.f32 %v2145, %v2146
      %v2148 = vsel %vm1671, %v2087, 0.0
      %v2149 = vadd.f32 %v2147, %v2148
      %v2150 = vsel %vm1671, %v2089, 0.0
      %v2151 = vadd.f32 %v2149, %v2150
      %v2152 = vsel %vm1671, %v2091, 0.0
      %v2153 = vadd.f32 %v2151, %v2152
      %v2154 = vsel %vm1671, %v2093, 0.0
      %v2155 = vadd.f32 %v2153, %v2154
      %v2156 = vsel %vm1671, %v2124, 0.0
      %v2157 = vsel %vm1671, %v2155, 0.0
      %v2158 = vadd.f32 %v2156, %v2157
      %v2159 = vrot.slane %v2158, 4
      %v2160 = vadd.f32 %v2158, %v2159
      %v2161 = vrot.slane %v2160, 2
      %v2162 = vadd.f32 %v2160, %v2161
      %v2163 = vrot.slane %v2162, 1
      %v2164 = vadd.f32 %v2162, %v2163
      %vm2165 = vcmask 1040384
      %v2166 = vsel %vm2165, %v2029, %v2164
      %vm2167 = vcmask 254976
      %2168 = vst.msk [vmem:[%s262] sm:$0x3] %vm2167, %v2166
      %p2169 = scmp.lt.s32.totalorder %s18, 1
      %s2170 = scalar_select %p2169, %s18, 1
      %s2171 = smul.addr %s2170, 32
      %s2172 = smul.addr %s2171, 8
      %s2173 = scalar_lea.vmem %s5, %s2172
      %p2174 = scmp.lt.s32.totalorder %s18, 1
      %s2175 = scalar_select %p2174, %s18, 1
      %s2176 = smul.addr %s2175, 2
      %s2177 = scalar_lea.vmem %s6, %s2176
      // Predicated region
      $region41: #{model_forward.4} parent=39 // pred_check
        %p2178 = pneg %p146
      $region42: #{model_forward.4} parent=39 // pred_check_branch
        %2180 = sbr.rel (%p2178) target = $region44
      $region43: #{model_forward.4} parent=39 // pred_region
        _
      $region44: #{model_forward.4} parent=39 // pred_fallthru
        _
      // Predicated region
      $region45: #{model_forward.4} parent=39 // pred_check
        %p2181 = pneg %p172
      $region46: #{model_forward.4} parent=39 // pred_check_branch
        %2183 = sbr.rel (%p2181) target = $region48
      $region47: #{model_forward.4} parent=39 // pred_region
        _
      $region48: #{model_forward.4} parent=39 // pred_fallthru
        _
    $region40: #{model_forward.4} parent=5 // pred_fallthru
      _
    %p2184 = scmp.le.s32.totalorder 2, %s13
    // Predicated region
    $region49: #{model_forward.4} parent=5 // pred_check
      %p2185 = pneg %p2184
    $region50: #{model_forward.4} parent=5 // pred_check_branch
      %2187 = sbr.rel (%p2185) target = $region52
    $region51: #{model_forward.4} parent=5 // pred_region
      %s2188 = ssub.s32 %s13, 2
      // Predicated region
      $region53: #{model_forward.4} parent=51 // pred_check
        %p2189 = pneg %p152
      $region54: #{model_forward.4} parent=51 // pred_check_branch
        %2191 = sbr.rel (%p2189) target = $region56
      $region55: #{model_forward.4} parent=51 // pred_region
        %p2192 = scmp.lt.s32.totalorder %s19, 1
        %s2193 = scalar_select %p2192, %s19, 1
        %s2194 = smul.addr %s2193, 32
        %s2195 = smul.addr %s2194, 8
        %s2196 = scalar_lea.vmem %s5, %s2195
      $region56: #{model_forward.4} parent=51 // pred_fallthru
        _
      // Predicated region
      $region57: #{model_forward.4} parent=51 // pred_check
        %p2197 = pneg %p178
      $region58: #{model_forward.4} parent=51 // pred_check_branch
        %2199 = sbr.rel (%p2197) target = $region60
      $region59: #{model_forward.4} parent=51 // pred_region
        %p2200 = scmp.lt.s32.totalorder %s19, 1
        %s2201 = scalar_select %p2200, %s19, 1
        %s2202 = smul.addr %s2201, 2
        %s2203 = scalar_lea.vmem %s6, %s2202
      $region60: #{model_forward.4} parent=51 // pred_fallthru
        _
    $region52: #{model_forward.4} parent=5 // pred_fallthru
      _
  $region6: #{model_forward.4} parent=0 // loop_footer
    %s17 = sadd.s32 1, %s13
  $region7: #{model_forward.4} parent=0 // loop_footer_branch
    %12 = sbr.rel target = $region3
  $region8: #{model_forward.4} parent=0 // loop_exit
    _

// kernel: model_forward.6
$region0: #{model_forward.6}
  #allocation0 [shape = 'u32[]', space=smem, size = 0x4, offset = 0x4, fixed_abs, tag = 'smem constant byte address 0x4 - core index']
  #allocation1 [shape = 'u32[144,128]{1,0:T(1,128)}', space=vmem, size = 0x12000, scoped, tag = 'internal scratch']
  #allocation2 [shape = 'f32[1,4,8,128]{3,2,1,0:T(8,128)}', space=vmem, size = 0x4000, scoped, tag = 'scratch operand']
  %s0 = inlined_call_operand.vmem [shape: f32[2,8,8,64], index: 0, kind: input, shape index: {}]
  %s1 = inlined_call_operand.vmem [shape: f32[1,64], index: 1, kind: input, shape index: {}]
  %s2 = inlined_call_operand.vmem [shape: f32[1,64], index: 2, kind: input, shape index: {}]
  %s3 = inlined_call_operand.vmem [shape: f32[3,192,128], index: 3, kind: input, shape index: {}]
  %s4 = inlined_call_operand.vmem [shape: f32[1,128], index: 4, kind: input, shape index: {}]
  %s5 = inlined_call_operand.vmem [shape: f32[2,4,4,128], index: 5, kind: output, shape index: {0}]
  %s6 = inlined_call_operand.vmem [shape: f32[2,2,128], index: 6, kind: output, shape index: {1}]
  %7 = xla_tuple %s5, %s6
  %s8 = sld [smem:[#allocation0]]
  $region61: #{model_forward.6} parent=0
    _
  %s10 = ssub.s32 1, %s8
  %s11 = scalar_select 0, %s10, %s8
  loop: start=0, step=1, limit=4
  $region2: #{model_forward.6} parent=0 // loop_pre_header
    _
  $region3: #{model_forward.6} parent=0 // loop_header
    %s13 = sphi 0, %s17
    %p14 = scmp.ge.s32.totalorder %s13, 4
    %s23 = sphi 0, %s25
    %s26 = sphi 0, %s23
    %s27 = sphi 0, %s26
    %s43 = sphi 0, %s27
    %s47 = sphi 0, %s47
    %s49 = sphi 0, %s47
    %s50 = sphi 0, %s49
    %s64 = sphi 0, %s50
    %s68 = sphi 0, %s68
    %s70 = sphi 0, %s68
    %s71 = sphi 0, %s70
    %s85 = sphi 0, %s71
    %s89 = sphi 0, %s89
    %s91 = sphi 0, %s89
    %s92 = sphi 0, %s91
    %s106 = sphi 0, %s92
    %s110 = sphi 0, %s110
    %s112 = sphi 0, %s110
    %s113 = sphi 0, %s112
    %s127 = sphi 0, %s113
    %s133 = sphi 0, %s135
    %s136 = sphi 0, %s133
    %s137 = sphi 0, %s136
    %s153 = sphi 0, %s137
    %s159 = sphi 0, %s161
    %s162 = sphi 0, %s159
    %s163 = sphi 0, %s162
    %s179 = sphi 0, %s163
  $region4: #{model_forward.6} parent=0 // loop_header_branch
    %16 = sbr.rel (%p14) target = $region8
  $region5: #{model_forward.6} parent=0 // loop_body
    %s18 = ssub.s32 %s13, 1
    %s19 = ssub.s32 %s13, 2
    %s20 = sadd.s32 %s13, 1
    %s21 = ssub.s32 %s13, %s20
    %p22 = scmp.eq.s32.totalorder %s21, 0
    %s24 = sadd.s32 %s23, 1
    %s25 = scalar_select %p22, %s23, %s24
    %p28 = pneg %p22
    %p29 = scmp.eq.s32.totalorder %s13, 1
    %p30 = por %p28, %p29
    %p31 = scmp.ne.s32.totalorder %s23, %s26
    %p32 = scmp.eq.s32.totalorder %s13, 0
    %p33 = por %p31, %p32
    %p34 = scmp.ne.s32.totalorder %s23, %s26
    %p35 = scmp.eq.s32.totalorder %s18, 1
    %p36 = por %p34, %p35
    %p37 = scmp.ne.s32.totalorder %s26, %s27
    %p38 = scmp.eq.s32.totalorder %s18, 0
    %p39 = por %p37, %p38
    %p40 = scmp.ne.s32.totalorder %s26, %s27
    %p41 = scmp.eq.s32.totalorder %s19, 1
    %p42 = por %p40, %p41
    %p44 = scmp.ne.s32.totalorder %s27, %s43
    %p45 = scmp.eq.s32.totalorder %s19, 0
    %p46 = por %p44, %p45
    %s48 = sadd.s32 %s47, 1
    %p51 = scmp.eq.s32.totalorder %s13, 1
    %p52 = scmp.ne.s32.totalorder %s47, %s49
    %p53 = scmp.eq.s32.totalorder %s13, 0
    %p54 = por %p52, %p53
    %p55 = scmp.ne.s32.totalorder %s47, %s49
    %p56 = scmp.eq.s32.totalorder %s18, 1
    %p57 = por %p55, %p56
    %p58 = scmp.ne.s32.totalorder %s49, %s50
    %p59 = scmp.eq.s32.totalorder %s18, 0
    %p60 = por %p58, %p59
    %p61 = scmp.ne.s32.totalorder %s49, %s50
    %p62 = scmp.eq.s32.totalorder %s19, 1
    %p63 = por %p61, %p62
    %p65 = scmp.ne.s32.totalorder %s50, %s64
    %p66 = scmp.eq.s32.totalorder %s19, 0
    %p67 = por %p65, %p66
    %s69 = sadd.s32 %s68, 1
    %p72 = scmp.eq.s32.totalorder %s13, 1
    %p73 = scmp.ne.s32.totalorder %s68, %s70
    %p74 = scmp.eq.s32.totalorder %s13, 0
    %p75 = por %p73, %p74
    %p76 = scmp.ne.s32.totalorder %s68, %s70
    %p77 = scmp.eq.s32.totalorder %s18, 1
    %p78 = por %p76, %p77
    %p79 = scmp.ne.s32.totalorder %s70, %s71
    %p80 = scmp.eq.s32.totalorder %s18, 0
    %p81 = por %p79, %p80
    %p82 = scmp.ne.s32.totalorder %s70, %s71
    %p83 = scmp.eq.s32.totalorder %s19, 1
    %p84 = por %p82, %p83
    %p86 = scmp.ne.s32.totalorder %s71, %s85
    %p87 = scmp.eq.s32.totalorder %s19, 0
    %p88 = por %p86, %p87
    %s90 = sadd.s32 %s89, 1
    %p93 = scmp.eq.s32.totalorder %s13, 1
    %p94 = scmp.ne.s32.totalorder %s89, %s91
    %p95 = scmp.eq.s32.totalorder %s13, 0
    %p96 = por %p94, %p95
    %p97 = scmp.ne.s32.totalorder %s89, %s91
    %p98 = scmp.eq.s32.totalorder %s18, 1
    %p99 = por %p97, %p98
    %p100 = scmp.ne.s32.totalorder %s91, %s92
    %p101 = scmp.eq.s32.totalorder %s18, 0
    %p102 = por %p100, %p101
    %p103 = scmp.ne.s32.totalorder %s91, %s92
    %p104 = scmp.eq.s32.totalorder %s19, 1
    %p105 = por %p103, %p104
    %p107 = scmp.ne.s32.totalorder %s92, %s106
    %p108 = scmp.eq.s32.totalorder %s19, 0
    %p109 = por %p107, %p108
    %s111 = sadd.s32 %s110, 1
    %p114 = scmp.eq.s32.totalorder %s13, 1
    %p115 = scmp.ne.s32.totalorder %s110, %s112
    %p116 = scmp.eq.s32.totalorder %s13, 0
    %p117 = por %p115, %p116
    %p118 = scmp.ne.s32.totalorder %s110, %s112
    %p119 = scmp.eq.s32.totalorder %s18, 1
    %p120 = por %p118, %p119
    %p121 = scmp.ne.s32.totalorder %s112, %s113
    %p122 = scmp.eq.s32.totalorder %s18, 0
    %p123 = por %p121, %p122
    %p124 = scmp.ne.s32.totalorder %s112, %s113
    %p125 = scmp.eq.s32.totalorder %s19, 1
    %p126 = por %p124, %p125
    %p128 = scmp.ne.s32.totalorder %s113, %s127
    %p129 = scmp.eq.s32.totalorder %s19, 0
    %p130 = por %p128, %p129
    %s131 = ssub.s32 %s13, %s20
    %p132 = scmp.eq.s32.totalorder %s131, 0
    %s134 = sadd.s32 %s133, 1
    %s135 = scalar_select %p132, %s133, %s134
    %p138 = pneg %p132
    %p139 = scmp.eq.s32.totalorder %s13, 1
    %p140 = por %p138, %p139
    %p141 = scmp.ne.s32.totalorder %s133, %s136
    %p142 = scmp.eq.s32.totalorder %s13, 0
    %p143 = por %p141, %p142
    %p144 = scmp.ne.s32.totalorder %s133, %s136
    %p145 = scmp.eq.s32.totalorder %s18, 1
    %p146 = por %p144, %p145
    %p147 = scmp.ne.s32.totalorder %s136, %s137
    %p148 = scmp.eq.s32.totalorder %s18, 0
    %p149 = por %p147, %p148
    %p150 = scmp.ne.s32.totalorder %s136, %s137
    %p151 = scmp.eq.s32.totalorder %s19, 1
    %p152 = por %p150, %p151
    %p154 = scmp.ne.s32.totalorder %s137, %s153
    %p155 = scmp.eq.s32.totalorder %s19, 0
    %p156 = por %p154, %p155
    %s157 = ssub.s32 %s13, %s20
    %p158 = scmp.eq.s32.totalorder %s157, 0
    %s160 = sadd.s32 %s159, 1
    %s161 = scalar_select %p158, %s159, %s160
    %p164 = pneg %p158
    %p165 = scmp.eq.s32.totalorder %s13, 1
    %p166 = por %p164, %p165
    %p167 = scmp.ne.s32.totalorder %s159, %s162
    %p168 = scmp.eq.s32.totalorder %s13, 0
    %p169 = por %p167, %p168
    %p170 = scmp.ne.s32.totalorder %s159, %s162
    %p171 = scmp.eq.s32.totalorder %s18, 1
    %p172 = por %p170, %p171
    %p173 = scmp.ne.s32.totalorder %s162, %s163
    %p174 = scmp.eq.s32.totalorder %s18, 0
    %p175 = por %p173, %p174
    %p176 = scmp.ne.s32.totalorder %s162, %s163
    %p177 = scmp.eq.s32.totalorder %s19, 1
    %p178 = por %p176, %p177
    %p180 = scmp.ne.s32.totalorder %s163, %s179
    %p181 = scmp.eq.s32.totalorder %s19, 0
    %p182 = por %p180, %p181
    %p183 = scmp.le.s32.totalorder 1, %s13
    %p184 = scmp.lt.s32.totalorder %s13, 3
    %p185 = pnand %p183, %p184
    %p186 = pneg %p185
    // Predicated region
    $region9: #{model_forward.6} parent=5 // pred_check
      _
    $region10: #{model_forward.6} parent=5 // pred_check_branch
      %188 = sbr.rel (%p185) target = $region12
    $region11: #{model_forward.6} parent=5 // pred_region
      %s189 = ssub.s32 %s13, 1
      // Predicated region
      $region13: #{model_forward.6} parent=11 // pred_check
        %p190 = pneg %p60
      $region14: #{model_forward.6} parent=11 // pred_check_branch
        %192 = sbr.rel (%p190) target = $region16
      $region15: #{model_forward.6} parent=11 // pred_region
        _
      $region16: #{model_forward.6} parent=11 // pred_fallthru
        _
      // Predicated region
      $region17: #{model_forward.6} parent=11 // pred_check
        %p193 = pneg %p81
      $region18: #{model_forward.6} parent=11 // pred_check_branch
        %195 = sbr.rel (%p193) target = $region20
      $region19: #{model_forward.6} parent=11 // pred_region
        _
      $region20: #{model_forward.6} parent=11 // pred_fallthru
        _
      // Predicated region
      $region21: #{model_forward.6} parent=11 // pred_check
        %p196 = pneg %p102
      $region22: #{model_forward.6} parent=11 // pred_check_branch
        %198 = sbr.rel (%p196) target = $region24
      $region23: #{model_forward.6} parent=11 // pred_region
        _
      $region24: #{model_forward.6} parent=11 // pred_fallthru
        _
      // Predicated region
      $region25: #{model_forward.6} parent=11 // pred_check
        %p199 = pneg %p123
      $region26: #{model_forward.6} parent=11 // pred_check_branch
        %201 = sbr.rel (%p199) target = $region28
      $region27: #{model_forward.6} parent=11 // pred_region
        _
      $region28: #{model_forward.6} parent=11 // pred_fallthru
        _
    $region12: #{model_forward.6} parent=5 // pred_fallthru
      _
    %p202 = scmp.lt.s32.totalorder %s13, 2
    // Predicated region
    $region29: #{model_forward.6} parent=5 // pred_check
      %p203 = pneg %p202
    $region30: #{model_forward.6} parent=5 // pred_check_branch
      %205 = sbr.rel (%p203) target = $region32
    $region31: #{model_forward.6} parent=5 // pred_region
      // Predicated region
      $region33: #{model_forward.6} parent=31 // pred_check
        %p206 = pneg %p33
      $region34: #{model_forward.6} parent=31 // pred_check_branch
        %208 = sbr.rel (%p206) target = $region36
      $region35: #{model_forward.6} parent=31 // pred_region
        %p209 = scmp.lt.s32.totalorder %s13, 1
        %s210 = scalar_select %p209, %s13, 1
        %s211 = smul.addr %s210, 8
        %s212 = smul.addr %s211, 8
        %s213 = scalar_lea.vmem %s0, %s212
      $region36: #{model_forward.6} parent=31 // pred_fallthru
        _
    $region32: #{model_forward.6} parent=5 // pred_fallthru
      _
    %p214 = scmp.le.s32.totalorder 1, %s13
    %p215 = scmp.lt.s32.totalorder %s13, 3
    %p216 = pnand %p214, %p215
    %p217 = pneg %p216
    // Predicated region
    $region37: #{model_forward.6} parent=5 // pred_check
      _
    $region38: #{model_forward.6} parent=5 // pred_check_branch
      %219 = sbr.rel (%p216) target = $region40
    $region39: #{model_forward.6} parent=5 // pred_region
      %s220 = ssub.s32 %s13, 1
      %p221 = scmp.lt.s32.totalorder %s18, 1
      %s222 = scalar_select %p221, %s18, 1
      %s223 = smul.addr %s222, 8
      %s224 = smul.addr %s223, 8
      %s225 = scalar_lea.vmem %s0, %s224
      %p226 = pneg %p39
      %p227 = pneg %p36
      %p228 = pneg %p60
      %p229 = pneg %p57
      %p230 = pneg %p81
      %p231 = pneg %p78
      %p232 = pneg %p102
      %p233 = pneg %p99
      %p234 = pneg %p123
      %p235 = pneg %p120
      %p236 = pneg %p149
      %p237 = pneg %p146
      %p238 = scmp.lt.s32.totalorder %s18, 1
      %s239 = scalar_select %p238, %s18, 1
      %s240 = smul.addr %s239, 4
      %s241 = smul.addr %s240, 4
      %s242 = scalar_lea.vmem %s5, %s241
      %p243 = pneg %p175
      %p244 = pneg %p172
      %p245 = scmp.lt.s32.totalorder %s18, 1
      %s246 = scalar_select %p245, %s18, 1
      %s247 = smul.addr %s246, 2
      %s248 = scalar_lea.vmem %s6, %s247
      %p249 = scmp.lt.s32.totalorder %s18, 1
      %s250 = scalar_select %p249, %s18, 1
      %s251 = smul.addr %s250, 8
      %s252 = smul.addr %s251, 8
      %s253 = scalar_lea.vmem %s0, %s252
      %p254 = scmp.lt.s32.totalorder %s18, 1
      %s255 = scalar_select %p254, %s18, 1
      %s256 = smul.addr %s255, 4
      %s257 = smul.addr %s256, 4
      %s258 = scalar_lea.vmem %s5, %s257
      %p259 = scmp.lt.s32.totalorder %s18, 1
      %s260 = scalar_select %p259, %s18, 1
      %s261 = smul.addr %s260, 2
      %s262 = scalar_lea.vmem %s6, %s261
      %v263 = vld [vmem:[%s253] sm:$0xff]
      %v264 = vld [vmem:[%s253 + $0x8] sm:$0xff]
      %v265 = vld [vmem:[%s253 + $0x10] sm:$0xff]
      %v266 = vld [vmem:[%s253 + $0x18] sm:$0xff]
      %v267 = vld [vmem:[%s253 + $0x20] sm:$0xff]
      %v268 = vld [vmem:[%s253 + $0x28] sm:$0xff]
      %v269 = vld [vmem:[%s253 + $0x30] sm:$0xff]
      %v270 = vld [vmem:[%s253 + $0x38] sm:$0xff]
      %v271 = vld [vmem:[%s1] sm:$0x1]
      %v273 = vlaneseq
      %v274 = vshrl.u32 %v273, 7
      %v275 = vsub.s32 0, %v274
      %v276 = vrot.slane %v271, %v275
      %v278 = vmul.f32 %v263, %v276
      %v279 = vmul.f32 %v264, %v276
      %v280 = vmul.f32 %v265, %v276
      %v281 = vmul.f32 %v266, %v276
      %v282 = vmul.f32 %v267, %v276
      %v283 = vmul.f32 %v268, %v276
      %v284 = vmul.f32 %v269, %v276
      %v285 = vmul.f32 %v270, %v276
      %v286 = vld [vmem:[%s2] sm:$0x1]
      %v288 = vlaneseq
      %v289 = vshrl.u32 %v288, 7
      %v290 = vsub.s32 0, %v289
      %v291 = vrot.slane %v286, %v290
      %v293 = vadd.f32 %v278, %v291
      %v294 = vadd.f32 %v279, %v291
      %v295 = vadd.f32 %v280, %v291
      %v296 = vadd.f32 %v281, %v291
      %v297 = vadd.f32 %v282, %v291
      %v298 = vadd.f32 %v283, %v291
      %v299 = vadd.f32 %v284, %v291
      %v300 = vadd.f32 %v285, %v291
      %v309 = vrot.slane %v293, 7
      %v310 = vrot.slane %v294, 7
      %v311 = vrot.slane %v295, 7
      %v312 = vrot.slane %v296, 7
      %v313 = vrot.slane %v297, 7
      %v314 = vrot.slane %v298, 7
      %v315 = vrot.slane %v299, 7
      %v316 = vrot.slane %v300, 7
      %vm325 = vcmask 1040384
      %v326 = vsel %vm325, 0.0, %v309
      %v327 = vsel %vm325, 0.0, %v310
      %v328 = vsel %vm325, 0.0, %v311
      %v329 = vsel %vm325, 0.0, %v312
      %v330 = vsel %vm325, 0.0, %v313
      %v331 = vsel %vm325, 0.0, %v314
      %v332 = vsel %vm325, 0.0, %v315
      %v333 = vsel %vm325, 0.0, %v316
      %v334 = vrot.slane %v293, 1
      %v335 = vrot.slane %v294, 1
      %v336 = vrot.slane %v295, 1
      %v337 = vrot.slane %v296, 1
      %v338 = vrot.slane %v297, 1
      %v339 = vrot.slane %v298, 1
      %v340 = vrot.slane %v299, 1
      %v341 = vrot.slane %v300, 1
      %vm350 = vcmask 1046528
      %v351 = vsel %vm350, %v334, 0.0
      %v352 = vsel %vm350, %v335, 0.0
      %v353 = vsel %vm350, %v336, 0.0
      %v354 = vsel %vm350, %v337, 0.0
      %v355 = vsel %vm350, %v338, 0.0
      %v356 = vsel %vm350, %v339, 0.0
      %v357 = vsel %vm350, %v340, 0.0
      %v358 = vsel %vm350, %v341, 0.0
      %359 = vrot.lane.b32.xlu0 %v293, 64
      %v360 = vpop.permute.xlu0 %359
      %361 = vrot.lane.b32.xlu0 %v294, 64
      %v362 = vpop.permute.xlu0 %361
      %363 = vrot.lane.b32.xlu0 %v295, 64
      %v364 = vpop.permute.xlu0 %363
      %365 = vrot.lane.b32.xlu0 %v296, 64
      %v366 = vpop.permute.xlu0 %365
      %367 = vrot.lane.b32.xlu0 %v297, 64
      %v368 = vpop.permute.xlu0 %367
      %369 = vrot.lane.b32.xlu0 %v298, 64
      %v370 = vpop.permute.xlu0 %369
      %371 = vrot.lane.b32.xlu0 %v299, 64
      %v372 = vpop.permute.xlu0 %371
      %373 = vrot.lane.b32.xlu0 %v300, 64
      %v374 = vpop.permute.xlu0 %373
      %vm383 = vcmask 523264
      %v384 = vsel %vm383, %v326, %v360
      %v385 = vsel %vm383, %v327, %v362
      %v386 = vsel %vm383, %v328, %v364
      %v387 = vsel %vm383, %v329, %v366
      %v388 = vsel %vm383, %v330, %v368
      %v389 = vsel %vm383, %v331, %v370
      %v390 = vsel %vm383, %v332, %v372
      %v391 = vsel %vm383, %v333, %v374
      %v392 = vld [vmem:[%s3] sm:$0xff]
      %v393 = vld [vmem:[%s3 + $0x8] sm:$0xff]
      %v394 = vld [vmem:[%s3 + $0x10] sm:$0xff]
      %v395 = vld [vmem:[%s3 + $0x18] sm:$0xff]
      %v396 = vld [vmem:[%s3 + $0x20] sm:$0xff]
      %v397 = vld [vmem:[%s3 + $0x28] sm:$0xff]
      %v398 = vld [vmem:[%s3 + $0x30] sm:$0xff]
      %v399 = vld [vmem:[%s3 + $0x38] sm:$0xff]
      %v400 = vld [vmem:[%s3 + $0x40] sm:$0xff]
      %v401 = vld [vmem:[%s3 + $0x48] sm:$0xff]
      %v402 = vld [vmem:[%s3 + $0x50] sm:$0xff]
      %v403 = vld [vmem:[%s3 + $0x58] sm:$0xff]
      %v404 = vld [vmem:[%s3 + $0x60] sm:$0xff]
      %v405 = vld [vmem:[%s3 + $0x68] sm:$0xff]
      %v406 = vld [vmem:[%s3 + $0x70] sm:$0xff]
      %v407 = vld [vmem:[%s3 + $0x78] sm:$0xff]
      %v408 = vld [vmem:[%s3 + $0x80] sm:$0xff]
      %v409 = vld [vmem:[%s3 + $0x88] sm:$0xff]
      %v410 = vld [vmem:[%s3 + $0x90] sm:$0xff]
      %v411 = vld [vmem:[%s3 + $0x98] sm:$0xff]
      %v412 = vld [vmem:[%s3 + $0xa0] sm:$0xff]
      %v413 = vld [vmem:[%s3 + $0xa8] sm:$0xff]
      %v414 = vld [vmem:[%s3 + $0xb0] sm:$0xff]
      %v415 = vld [vmem:[%s3 + $0xb8] sm:$0xff]
      %s416 = scalar_lea.vmem %s3, 192
      %v417 = vld [vmem:[%s416] sm:$0xff]
      %v418 = vld [vmem:[%s416 + $0x8] sm:$0xff]
      %v419 = vld [vmem:[%s416 + $0x10] sm:$0xff]
      %v420 = vld [vmem:[%s416 + $0x18] sm:$0xff]
      %v421 = vld [vmem:[%s416 + $0x20] sm:$0xff]
      %v422 = vld [vmem:[%s416 + $0x28] sm:$0xff]
      %v423 = vld [vmem:[%s416 + $0x30] sm:$0xff]
      %v424 = vld [vmem:[%s416 + $0x38] sm:$0xff]
      %v425 = vld [vmem:[%s416 + $0x40] sm:$0xff]
      %v426 = vld [vmem:[%s416 + $0x48] sm:$0xff]
      %v427 = vld [vmem:[%s416 + $0x50] sm:$0xff]
      %v428 = vld [vmem:[%s416 + $0x58] sm:$0xff]
      %v429 = vld [vmem:[%s416 + $0x60] sm:$0xff]
      %v430 = vld [vmem:[%s416 + $0x68] sm:$0xff]
      %v431 = vld [vmem:[%s416 + $0x70] sm:$0xff]
      %v432 = vld [vmem:[%s416 + $0x78] sm:$0xff]
      %v433 = vld [vmem:[%s416 + $0x80] sm:$0xff]
      %v434 = vld [vmem:[%s416 + $0x88] sm:$0xff]
      %v435 = vld [vmem:[%s416 + $0x90] sm:$0xff]
      %v436 = vld [vmem:[%s416 + $0x98] sm:$0xff]
      %v437 = vld [vmem:[%s416 + $0xa0] sm:$0xff]
      %v438 = vld [vmem:[%s416 + $0xa8] sm:$0xff]
      %v439 = vld [vmem:[%s416 + $0xb0] sm:$0xff]
      %v440 = vld [vmem:[%s416 + $0xb8] sm:$0xff]
      %v442 = vsel %vm383, %v351, 0
      %v445 = vsel %vm383, %v352, 0
      %v448 = vsel %vm383, %v353, 0
      %v451 = vsel %vm383, %v354, 0
      %v454 = vsel %vm383, %v355, 0
      %v457 = vsel %vm383, %v356, 0
      %v460 = vsel %vm383, %v357, 0
      %v463 = vsel %vm383, %v358, 0
      %465 = vmatprep.subr.mxu0 0.0
      %466 = vmatpush1.msra.mxu0 %v417
      %467 = vmatprep.subr.mxu0 0.0
      %468 = vmatpush1.msra.mxu0 %v418
      %469 = vmatprep.subr.mxu0 0.0
      %470 = vmatpush1.msra.mxu0 %v419
      %471 = vmatprep.subr.mxu0 0.0
      %472 = vmatpush1.msra.mxu0 %v420
      %473 = vmatprep.subr.mxu0 0.0
      %474 = vmatpush1.msra.mxu0 %v421
      %475 = vmatprep.subr.mxu0 0.0
      %476 = vmatpush1.msra.mxu0 %v422
      %477 = vmatprep.subr.mxu0 0.0
      %478 = vmatpush1.msra.mxu0 %v423
      %479 = vmatprep.subr.mxu0 0.0
      %480 = vmatpush1.msra.mxu0 %v424
      %481 = vmatprep.subr.mxu0 0.0
      %482 = vmatpush1.msra.mxu0 %v425
      %483 = vmatprep.subr.mxu0 0.0
      %484 = vmatpush1.msra.mxu0 %v426
      %485 = vmatprep.subr.mxu0 0.0
      %486 = vmatpush1.msra.mxu0 %v427
      %487 = vmatprep.subr.mxu0 0.0
      %488 = vmatpush1.msra.mxu0 %v428
      %489 = vmatprep.subr.mxu0 0.0
      %490 = vmatpush1.msra.mxu0 %v429
      %491 = vmatprep.subr.mxu0 0.0
      %492 = vmatpush1.msra.mxu0 %v430
      %493 = vmatprep.subr.mxu0 0.0
      %494 = vmatpush1.msra.mxu0 %v431
      %495 = vmatprep.subr.mxu0 0.0
      %496 = vmatpush1.msra.mxu0 %v432
      %497 = vmatprep.subr.mxu0 0.0
      %498 = vmatpush1.msra.mxu0 %v433
      %499 = vmatprep.subr.mxu0 0.0
      %500 = vmatpush1.msra.mxu0 %v434
      %501 = vmatprep.subr.mxu0 0.0
      %502 = vmatpush1.msra.mxu0 %v435
      %503 = vmatprep.subr.mxu0 0.0
      %504 = vmatpush1.msra.mxu0 %v436
      %505 = vmatprep.subr.mxu0 0.0
      %506 = vmatpush1.msra.mxu0 %v437
      %507 = vmatprep.subr.mxu0 0.0
      %508 = vmatpush1.msra.mxu0 %v438
      %509 = vmatprep.subr.mxu0 0.0
      %510 = vmatpush1.msra.mxu0 %v439
      %511 = vmatprep.subr.mxu0 0.0
      %512 = vmatpush1.msra.mxu0 %v440
      %513 = vmatprep.subr.mxu0 0.0
      %514 = vmatpush1.msra.mxu0 0.0
      %515 = vmatprep.subr.mxu0 0.0
      %516 = vmatpush1.msra.mxu0 0.0
      %517 = vmatprep.subr.mxu0 0.0
      %518 = vmatpush1.msra.mxu0 0.0
      %519 = vmatprep.subr.mxu0 0.0
      %520 = vmatpush1.msra.mxu0 0.0
      %521 = vmatprep.subr.mxu0 0.0
      %522 = vmatpush1.msra.mxu0 0.0
      %523 = vmatprep.subr.mxu0 0.0
      %524 = vmatpush1.msra.mxu0 0.0
      %525 = vmatprep.subr.mxu0 0.0
      %526 = vmatpush1.msra.mxu0 0.0
      %527 = vmatprep.subr.mxu0 0.0
      %528 = vmatpush1.msra.mxu0 0.0
      %529 = vmatprep.mubr.f32.mxu0 %v442
      %530 = vmatmul.mubr.f32.gmra.mrb[0].mxu0 %v384
      %v531 = vpop.f32.mrb[0].mxu0
      %v532 = vadd.f32 0.0, %v531
      %v533 = vpop.f32.mrb[0].mxu0
      %534 = vmatprep.mubr.f32.mxu0 %v445
      %535 = vmatmul.mubr.f32.gmra.mrb[0].mxu0 %v385
      %v536 = vpop.f32.mrb[0].mxu0
      %v537 = vadd.f32 0.0, %v536
      %v538 = vpop.f32.mrb[0].mxu0
      %539 = vmatprep.mubr.f32.mxu0 %v448
      %540 = vmatmul.mubr.f32.gmra.mrb[0].mxu0 %v386
      %v541 = vpop.f32.mrb[0].mxu0
      %v542 = vadd.f32 0.0, %v541
      %v543 = vpop.f32.mrb[0].mxu0
      %544 = vmatprep.mubr.f32.mxu0 %v451
      %545 = vmatmul.mubr.f32.gmra.mrb[0].mxu0 %v387
      %v546 = vpop.f32.mrb[0].mxu0
      %v547 = vadd.f32 0.0, %v546
      %v548 = vpop.f32.mrb[0].mxu0
      %549 = vmatprep.mubr.f32.mxu0 %v454
      %550 = vmatmul.mubr.f32.gmra.mrb[0].mxu0 %v388
      %v551 = vpop.f32.mrb[0].mxu0
      %v552 = vadd.f32 0.0, %v551
      %v553 = vpop.f32.mrb[0].mxu0
      %554 = vmatprep.mubr.f32.mxu0 %v457
      %555 = vmatmul.mubr.f32.gmra.mrb[0].mxu0 %v389
      %v556 = vpop.f32.mrb[0].mxu0
      %v557 = vadd.f32 0.0, %v556
      %v558 = vpop.f32.mrb[0].mxu0
      %559 = vmatprep.mubr.f32.mxu0 %v460
      %560 = vmatmul.mubr.f32.gmra.mrb[0].mxu0 %v390
      %v561 = vpop.f32.mrb[0].mxu0
      %v562 = vadd.f32 0.0, %v561
      %v563 = vpop.f32.mrb[0].mxu0
      %564 = vmatprep.mubr.f32.mxu0 %v463
      %565 = vmatmul.mubr.f32.gmra.mrb[0].mxu0 %v391
      %v566 = vpop.f32.mrb[0].mxu0
      %v567 = vadd.f32 0.0, %v566
      %v568 = vpop.f32.mrb[0].mxu0
      %569 = vdwg.mxu0
      %v571 = vsel %vm383, 0.0, 0
      %573 = vmatprep.subr.mxu0 0.0
      %574 = vmatpush1.msra.mxu0 %v392
      %575 = vmatprep.subr.mxu0 0.0
      %576 = vmatpush1.msra.mxu0 %v393
      %577 = vmatprep.subr.mxu0 0.0
      %578 = vmatpush1.msra.mxu0 %v394
      %579 = vmatprep.subr.mxu0 0.0
      %580 = vmatpush1.msra.mxu0 %v395
      %581 = vmatprep.subr.mxu0 0.0
      %582 = vmatpush1.msra.mxu0 %v396
      %583 = vmatprep.subr.mxu0 0.0
      %584 = vmatpush1.msra.mxu0 %v397
      %585 = vmatprep.subr.mxu0 0.0
      %586 = vmatpush1.msra.mxu0 %v398
      %587 = vmatprep.subr.mxu0 0.0
      %588 = vmatpush1.msra.mxu0 %v399
      %589 = vmatprep.subr.mxu0 0.0
      %590 = vmatpush1.msra.mxu0 %v400
      %591 = vmatprep.subr.mxu0 0.0
      %592 = vmatpush1.msra.mxu0 %v401
      %593 = vmatprep.subr.mxu0 0.0
      %594 = vmatpush1.msra.mxu0 %v402
      %595 = vmatprep.subr.mxu0 0.0
      %596 = vmatpush1.msra.mxu0 %v403
      %597 = vmatprep.subr.mxu0 0.0
      %598 = vmatpush1.msra.mxu0 %v404
      %599 = vmatprep.subr.mxu0 0.0
      %600 = vmatpush1.msra.mxu0 %v405
      %601 = vmatprep.subr.mxu0 0.0
      %602 = vmatpush1.msra.mxu0 %v406
      %603 = vmatprep.subr.mxu0 0.0
      %604 = vmatpush1.msra.mxu0 %v407
      %605 = vmatprep.subr.mxu0 0.0
      %606 = vmatpush1.msra.mxu0 %v408
      %607 = vmatprep.subr.mxu0 0.0
      %608 = vmatpush1.msra.mxu0 %v409
      %609 = vmatprep.subr.mxu0 0.0
      %610 = vmatpush1.msra.mxu0 %v410
      %611 = vmatprep.subr.mxu0 0.0
      %612 = vmatpush1.msra.mxu0 %v411
      %613 = vmatprep.subr.mxu0 0.0
      %614 = vmatpush1.msra.mxu0 %v412
      %615 = vmatprep.subr.mxu0 0.0
      %616 = vmatpush1.msra.mxu0 %v413
      %617 = vmatprep.subr.mxu0 0.0
      %618 = vmatpush1.msra.mxu0 %v414
      %619 = vmatprep.subr.mxu0 0.0
      %620 = vmatpush1.msra.mxu0 %v415
      %621 = vmatprep.subr.mxu0 0.0
      %622 = vmatpush1.msra.mxu0 0.0
      %623 = vmatprep.subr.mxu0 0.0
      %624 = vmatpush1.msra.mxu0 0.0
      %625 = vmatprep.subr.mxu0 0.0
      %626 = vmatpush1.msra.mxu0 0.0
      %627 = vmatprep.subr.mxu0 0.0
      %628 = vmatpush1.msra.mxu0 0.0
      %629 = vmatprep.subr.mxu0 0.0
      %630 = vmatpush1.msra.mxu0 0.0
      %631 = vmatprep.subr.mxu0 0.0
      %632 = vmatpush1.msra.mxu0 0.0
      %633 = vmatprep.subr.mxu0 0.0
      %634 = vmatpush1.msra.mxu0 0.0
      %635 = vmatprep.subr.mxu0 0.0
      %636 = vmatpush1.msra.mxu0 0.0
      %637 = vmatprep.mubr.f32.mxu0 %v571
      %638 = vmatmul.mubr.f32.gmra.mrb[0].mxu0 0.0
      %v639 = vpop.f32.mrb[0].mxu0
      %v640 = vadd.f32 %v532, %v639
      %v641 = vpop.f32.mrb[0].mxu0
      %642 = vmatprep.mubr.f32.mxu0 %v442
      %643 = vmatmul.mubr.f32.gmra.mrb[0].mxu0 %v384
      %v644 = vpop.f32.mrb[0].mxu0
      %v645 = vadd.f32 %v537, %v644
      %v646 = vpop.f32.mrb[0].mxu0
      %647 = vmatprep.mubr.f32.mxu0 %v445
      %648 = vmatmul.mubr.f32.gmra.mrb[0].mxu0 %v385
      %v649 = vpop.f32.mrb[0].mxu0
      %v650 = vadd.f32 %v542, %v649
      %v651 = vpop.f32.mrb[0].mxu0
      %652 = vmatprep.mubr.f32.mxu0 %v448
      %653 = vmatmul.mubr.f32.gmra.mrb[0].mxu0 %v386
      %v654 = vpop.f32.mrb[0].mxu0
      %v655 = vadd.f32 %v547, %v654
      %v656 = vpop.f32.mrb[0].mxu0
      %657 = vmatprep.mubr.f32.mxu0 %v451
      %658 = vmatmul.mubr.f32.gmra.mrb[0].mxu0 %v387
      %v659 = vpop.f32.mrb[0].mxu0
      %v660 = vadd.f32 %v552, %v659
      %v661 = vpop.f32.mrb[0].mxu0
      %662 = vmatprep.mubr.f32.mxu0 %v454
      %663 = vmatmul.mubr.f32.gmra.mrb[0].mxu0 %v388
      %v664 = vpop.f32.mrb[0].mxu0
      %v665 = vadd.f32 %v557, %v664
      %v666 = vpop.f32.mrb[0].mxu0
      %667 = vmatprep.mubr.f32.mxu0 %v457
      %668 = vmatmul.mubr.f32.gmra.mrb[0].mxu0 %v389
      %v669 = vpop.f32.mrb[0].mxu0
      %v670 = vadd.f32 %v562, %v669
      %v671 = vpop.f32.mrb[0].mxu0
      %672 = vmatprep.mubr.f32.mxu0 %v460
      %673 = vmatmul.mubr.f32.gmra.mrb[0].mxu0 %v390
      %v674 = vpop.f32.mrb[0].mxu0
      %v675 = vadd.f32 %v567, %v674
      %v676 = vpop.f32.mrb[0].mxu0
      %677 = vdwg.mxu0
      %s678 = scalar_lea.vmem %s3, 384
      %v679 = vld [vmem:[%s678] sm:$0xff]
      %v680 = vld [vmem:[%s678 + $0x8] sm:$0xff]
      %v681 = vld [vmem:[%s678 + $0x10] sm:$0xff]
      %v682 = vld [vmem:[%s678 + $0x18] sm:$0xff]
      %v683 = vld [vmem:[%s678 + $0x20] sm:$0xff]
      %v684 = vld [vmem:[%s678 + $0x28] sm:$0xff]
      %v685 = vld [vmem:[%s678 + $0x30] sm:$0xff]
      %v686 = vld [vmem:[%s678 + $0x38] sm:$0xff]
      %v687 = vld [vmem:[%s678 + $0x40] sm:$0xff]
      %v688 = vld [vmem:[%s678 + $0x48] sm:$0xff]
      %v689 = vld [vmem:[%s678 + $0x50] sm:$0xff]
      %v690 = vld [vmem:[%s678 + $0x58] sm:$0xff]
      %v691 = vld [vmem:[%s678 + $0x60] sm:$0xff]
      %v692 = vld [vmem:[%s678 + $0x68] sm:$0xff]
      %v693 = vld [vmem:[%s678 + $0x70] sm:$0xff]
      %v694 = vld [vmem:[%s678 + $0x78] sm:$0xff]
      %v695 = vld [vmem:[%s678 + $0x80] sm:$0xff]
      %v696 = vld [vmem:[%s678 + $0x88] sm:$0xff]
      %v697 = vld [vmem:[%s678 + $0x90] sm:$0xff]
      %v698 = vld [vmem:[%s678 + $0x98] sm:$0xff]
      %v699 = vld [vmem:[%s678 + $0xa0] sm:$0xff]
      %v700 = vld [vmem:[%s678 + $0xa8] sm:$0xff]
      %v701 = vld [vmem:[%s678 + $0xb0] sm:$0xff]
      %v702 = vld [vmem:[%s678 + $0xb8] sm:$0xff]
      %703 = vmatprep.subr.mxu0 0.0
      %704 = vmatpush1.msra.mxu0 %v679
      %705 = vmatprep.subr.mxu0 0.0
      %706 = vmatpush1.msra.mxu0 %v680
      %707 = vmatprep.subr.mxu0 0.0
      %708 = vmatpush1.msra.mxu0 %v681
      %709 = vmatprep.subr.mxu0 0.0
      %710 = vmatpush1.msra.mxu0 %v682
      %711 = vmatprep.subr.mxu0 0.0
      %712 = vmatpush1.msra.mxu0 %v683
      %713 = vmatprep.subr.mxu0 0.0
      %714 = vmatpush1.msra.mxu0 %v684
      %715 = vmatprep.subr.mxu0 0.0
      %716 = vmatpush1.msra.mxu0 %v685
      %717 = vmatprep.subr.mxu0 0.0
      %718 = vmatpush1.msra.mxu0 %v686
      %719 = vmatprep.subr.mxu0 0.0
      %720 = vmatpush1.msra.mxu0 %v687
      %721 = vmatprep.subr.mxu0 0.0
      %722 = vmatpush1.msra.mxu0 %v688
      %723 = vmatprep.subr.mxu0 0.0
      %724 = vmatpush1.msra.mxu0 %v689
      %725 = vmatprep.subr.mxu0 0.0
      %726 = vmatpush1.msra.mxu0 %v690
      %727 = vmatprep.subr.mxu0 0.0
      %728 = vmatpush1.msra.mxu0 %v691
      %729 = vmatprep.subr.mxu0 0.0
      %730 = vmatpush1.msra.mxu0 %v692
      %731 = vmatprep.subr.mxu0 0.0
      %732 = vmatpush1.msra.mxu0 %v693
      %733 = vmatprep.subr.mxu0 0.0
      %734 = vmatpush1.msra.mxu0 %v694
      %735 = vmatprep.subr.mxu0 0.0
      %736 = vmatpush1.msra.mxu0 %v695
      %737 = vmatprep.subr.mxu0 0.0
      %738 = vmatpush1.msra.mxu0 %v696
      %739 = vmatprep.subr.mxu0 0.0
      %740 = vmatpush1.msra.mxu0 %v697
      %741 = vmatprep.subr.mxu0 0.0
      %742 = vmatpush1.msra.mxu0 %v698
      %743 = vmatprep.subr.mxu0 0.0
      %744 = vmatpush1.msra.mxu0 %v699
      %745 = vmatprep.subr.mxu0 0.0
      %746 = vmatpush1.msra.mxu0 %v700
      %747 = vmatprep.subr.mxu0 0.0
      %748 = vmatpush1.msra.mxu0 %v701
      %749 = vmatprep.subr.mxu0 0.0
      %750 = vmatpush1.msra.mxu0 %v702
      %751 = vmatprep.subr.mxu0 0.0
      %752 = vmatpush1.msra.mxu0 0.0
      %753 = vmatprep.subr.mxu0 0.0
      %754 = vmatpush1.msra.mxu0 0.0
      %755 = vmatprep.subr.mxu0 0.0
      %756 = vmatpush1.msra.mxu0 0.0
      %757 = vmatprep.subr.mxu0 0.0
      %758 = vmatpush1.msra.mxu0 0.0
      %759 = vmatprep.subr.mxu0 0.0
      %760 = vmatpush1.msra.mxu0 0.0
      %761 = vmatprep.subr.mxu0 0.0
      %762 = vmatpush1.msra.mxu0 0.0
      %763 = vmatprep.subr.mxu0 0.0
      %764 = vmatpush1.msra.mxu0 0.0
      %765 = vmatprep.subr.mxu0 0.0
      %766 = vmatpush1.msra.mxu0 0.0
      %767 = vmatprep.mubr.f32.mxu0 %v445
      %768 = vmatmul.mubr.f32.gmra.mrb[0].mxu0 %v385
      %v769 = vpop.f32.mrb[0].mxu0
      %v770 = vadd.f32 0.0, %v769
      %v771 = vpop.f32.mrb[0].mxu0
      %772 = vmatprep.mubr.f32.mxu0 %v448
      %773 = vmatmul.mubr.f32.gmra.mrb[0].mxu0 %v386
      %v774 = vpop.f32.mrb[0].mxu0
      %v775 = vadd.f32 0.0, %v774
      %v776 = vpop.f32.mrb[0].mxu0
      %777 = vmatprep.mubr.f32.mxu0 %v451
      %778 = vmatmul.mubr.f32.gmra.mrb[0].mxu0 %v387
      %v779 = vpop.f32.mrb[0].mxu0
      %v780 = vadd.f32 0.0, %v779
      %v781 = vpop.f32.mrb[0].mxu0
      %782 = vmatprep.mubr.f32.mxu0 %v454
      %783 = vmatmul.mubr.f32.gmra.mrb[0].mxu0 %v388
      %v784 = vpop.f32.mrb[0].mxu0
      %v785 = vadd.f32 0.0, %v784
      %v786 = vpop.f32.mrb[0].mxu0
      %787 = vmatprep.mubr.f32.mxu0 %v457
      %788 = vmatmul.mubr.f32.gmra.mrb[0].mxu0 %v389
      %v789 = vpop.f32.mrb[0].mxu0
      %v790 = vadd.f32 0.0, %v789
      %v791 = vpop.f32.mrb[0].mxu0
      %792 = vmatprep.mubr.f32.mxu0 %v460
      %793 = vmatmul.mubr.f32.gmra.mrb[0].mxu0 %v390
      %v794 = vpop.f32.mrb[0].mxu0
      %v795 = vadd.f32 0.0, %v794
      %v796 = vpop.f32.mrb[0].mxu0
      %797 = vmatprep.mubr.f32.mxu0 %v463
      %798 = vmatmul.mubr.f32.gmra.mrb[0].mxu0 %v391
      %v799 = vpop.f32.mrb[0].mxu0
      %v800 = vadd.f32 0.0, %v799
      %v801 = vpop.f32.mrb[0].mxu0
      %802 = vmatprep.mubr.f32.mxu0 %v571
      %803 = vmatmul.mubr.f32.gmra.mrb[0].mxu0 0.0
      %v804 = vpop.f32.mrb[0].mxu0
      %v805 = vadd.f32 0.0, %v804
      %v806 = vpop.f32.mrb[0].mxu0
      %807 = vdwg.mxu0
      %v808 = vadd.f32 %v640, %v770
      %v809 = vadd.f32 %v645, %v775
      %v810 = vadd.f32 %v650, %v780
      %v811 = vadd.f32 %v655, %v785
      %v812 = vadd.f32 %v660, %v790
      %v813 = vadd.f32 %v665, %v795
      %v814 = vadd.f32 %v670, %v800
      %v815 = vadd.f32 %v675, %v805
      %v816 = vld [vmem:[%s4] sm:$0x1]
      %v818 = vlaneseq
      %v819 = vshrl.u32 %v818, 7
      %v820 = vsub.s32 0, %v819
      %v821 = vrot.slane %v816, %v820
      %v823 = vadd.f32 %v808, %v821
      %v824 = vadd.f32 %v809, %v821
      %v825 = vadd.f32 %v810, %v821
      %v826 = vadd.f32 %v811, %v821
      %v827 = vadd.f32 %v812, %v821
      %v828 = vadd.f32 %v813, %v821
      %v829 = vadd.f32 %v814, %v821
      %v830 = vadd.f32 %v815, %v821
      %v831 = vmax.f32 %v823, 0.0
      %v832 = vmax.f32 %v824, 0.0
      %v833 = vmax.f32 %v825, 0.0
      %v834 = vmax.f32 %v826, 0.0
      %v835 = vmax.f32 %v827, 0.0
      %v836 = vmax.f32 %v828, 0.0
      %v837 = vmax.f32 %v829, 0.0
      %v838 = vmax.f32 %v830, 0.0
      %v839 = vmax.f32 %v831, %v832
      %v840 = vmax.f32 %v833, %v834
      %v841 = vmax.f32 %v835, %v836
      %v842 = vmax.f32 %v837, %v838
      %843 = vst [vmem:[#allocation2] sm:$0xff] %v839
      %844 = vst [vmem:[#allocation2 + $0x8] sm:$0xff] %v840
      %845 = vst [vmem:[#allocation2 + $0x10] sm:$0xff] %v841
      %846 = vst [vmem:[#allocation2 + $0x18] sm:$0xff] %v842
      %v847 = vld [vmem:[#allocation2] ss:$2 sm:$0xf]
      %s848 = scalar_lea.vmem [#allocation2], 8
      %v849 = vld [vmem:[%s848] ss:$2 sm:$0xf]
      %s850 = scalar_lea.vmem [#allocation2], 16
      %v851 = vld [vmem:[%s850] ss:$2 sm:$0xf]
      %s852 = scalar_lea.vmem [#allocation2], 24
      %v853 = vld [vmem:[%s852] ss:$2 sm:$0xf]
      %s854 = scalar_lea.vmem [#allocation2], 1
      %v855 = vld [vmem:[%s854] ss:$2 sm:$0xf]
      %s856 = scalar_lea.vmem [#allocation2], 9
      %v857 = vld [vmem:[%s856] ss:$2 sm:$0xf]
      %s858 = scalar_lea.vmem [#allocation2], 17
      %v859 = vld [vmem:[%s858] ss:$2 sm:$0xf]
      %s860 = scalar_lea.vmem [#allocation2], 25
      %v861 = vld [vmem:[%s860] ss:$2 sm:$0xf]
      %v862 = vmax.f32 %v847, %v855
      %v863 = vmax.f32 %v849, %v857
      %v864 = vmax.f32 %v851, %v859
      %v865 = vmax.f32 %v853, %v861
      %866 = vst [vmem:[%s258] sm:$0xf] %v862
      %867 = vst [vmem:[%s258 + $0x4] sm:$0xf] %v863
      %868 = vst [vmem:[%s258 + $0x8] sm:$0xf] %v864
      %869 = vst [vmem:[%s258 + $0xc] sm:$0xf] %v865
      %v870 = vadd.f32 %v862, 0.0
      %v871 = vadd.f32 %v863, 0.0
      %v872 = vadd.f32 %v864, 0.0
      %v873 = vadd.f32 %v865, 0.0
      %vm874 = vcmask 1043456
      %v875 = vsel %vm874, %v870, 0.0
      %v876 = vsel %vm874, %v871, 0.0
      %v877 = vadd.f32 %v875, %v876
      %v878 = vsel %vm874, %v872, 0.0
      %v879 = vadd.f32 %v877, %v878
      %v880 = vsel %vm874, %v873, 0.0
      %v881 = vadd.f32 %v879, %v880
      %v882 = vsel %vm874, %v881, 0.0
      %v883 = vrot.slane %v882, 4
      %v884 = vadd.f32 %v882, %v883
      %v885 = vrot.slane %v884, 2
      %v886 = vadd.f32 %v884, %v885
      %v887 = vrot.slane %v886, 1
      %v888 = vadd.f32 %v886, %v887
      %v889 = vmul.f32 %v862, %v862
      %v890 = vmul.f32 %v863, %v863
      %v891 = vmul.f32 %v864, %v864
      %v892 = vmul.f32 %v865, %v865
      %v893 = vadd.f32 %v889, 0.0
      %v894 = vadd.f32 %v890, 0.0
      %v895 = vadd.f32 %v891, 0.0
      %v896 = vadd.f32 %v892, 0.0
      %v897 = vsel %vm874, %v893, 0.0
      %v898 = vsel %vm874, %v894, 0.0
      %v899 = vadd.f32 %v897, %v898
      %v900 = vsel %vm874, %v895, 0.0
      %v901 = vadd.f32 %v899, %v900
      %v902 = vsel %vm874, %v896, 0.0
      %v903 = vadd.f32 %v901, %v902
      %v904 = vsel %vm874, %v903, 0.0
      %v905 = vrot.slane %v904, 4
      %v906 = vadd.f32 %v904, %v905
      %v907 = vrot.slane %v906, 2
      %v908 = vadd.f32 %v906, %v907
      %v909 = vrot.slane %v908, 1
      %v910 = vadd.f32 %v908, %v909
      %v911 = vsel %vm325, %v888, %v910
      %912 = vst [vmem:[%s262] sm:$0x3] %v911
      %p913 = scmp.lt.s32.totalorder %s18, 1
      %s914 = scalar_select %p913, %s18, 1
      %s915 = smul.addr %s914, 4
      %s916 = smul.addr %s915, 4
      %s917 = scalar_lea.vmem %s5, %s916
      %p918 = scmp.lt.s32.totalorder %s18, 1
      %s919 = scalar_select %p918, %s18, 1
      %s920 = smul.addr %s919, 2
      %s921 = scalar_lea.vmem %s6, %s920
      // Predicated region
      $region41: #{model_forward.6} parent=39 // pred_check
        %p922 = pneg %p146
      $region42: #{model_forward.6} parent=39 // pred_check_branch
        %924 = sbr.rel (%p922) target = $region44
      $region43: #{model_forward.6} parent=39 // pred_region
        _
      $region44: #{model_forward.6} parent=39 // pred_fallthru
        _
      // Predicated region
      $region45: #{model_forward.6} parent=39 // pred_check
        %p925 = pneg %p172
      $region46: #{model_forward.6} parent=39 // pred_check_branch
        %927 = sbr.rel (%p925) target = $region48
      $region47: #{model_forward.6} parent=39 // pred_region
        _
      $region48: #{model_forward.6} parent=39 // pred_fallthru
        _
    $region40: #{model_forward.6} parent=5 // pred_fallthru
      _
    %p928 = scmp.le.s32.totalorder 2, %s13
    // Predicated region
    $region49: #{model_forward.6} parent=5 // pred_check
      %p929 = pneg %p928
    $region50: #{model_forward.6} parent=5 // pred_check_branch
      %931 = sbr.rel (%p929) target = $region52
    $region51: #{model_forward.6} parent=5 // pred_region
      %s932 = ssub.s32 %s13, 2
      // Predicated region
      $region53: #{model_forward.6} parent=51 // pred_check
        %p933 = pneg %p152
      $region54: #{model_forward.6} parent=51 // pred_check_branch
        %935 = sbr.rel (%p933) target = $region56
      $region55: #{model_forward.6} parent=51 // pred_region
        %p936 = scmp.lt.s32.totalorder %s19, 1
        %s937 = scalar_select %p936, %s19, 1
        %s938 = smul.addr %s937, 4
        %s939 = smul.addr %s938, 4
        %s940 = scalar_lea.vmem %s5, %s939
      $region56: #{model_forward.6} parent=51 // pred_fallthru
        _
      // Predicated region
      $region57: #{model_forward.6} parent=51 // pred_check
        %p941 = pneg %p178
      $region58: #{model_forward.6} parent=51 // pred_check_branch
        %943 = sbr.rel (%p941) target = $region60
      $region59: #{model_forward.6} parent=51 // pred_region
        %p944 = scmp.lt.s32.totalorder %s19, 1
        %s945 = scalar_select %p944, %s19, 1
        %s946 = smul.addr %s945, 2
        %s947 = scalar_lea.vmem %s6, %s946
      $region60: #{model_forward.6} parent=51 // pred_fallthru
        _
    $region52: #{model_forward.6} parent=5 // pred_fallthru
      _
  $region6: #{model_forward.6} parent=0 // loop_footer
    %s17 = sadd.s32 1, %s13
  $region7: #{model_forward.6} parent=0 // loop_footer_branch
    %12 = sbr.rel target = $region3
  $region8: #{model_forward.6} parent=0 // loop_exit
    _

// kernel: model_forward.7
$region0: #{model_forward.7}
  #allocation0 [shape = 'u32[]', space=smem, size = 0x4, offset = 0x4, fixed_abs, tag = 'smem constant byte address 0x4 - core index']
  #allocation1 [shape = 'u32[144,128]{1,0:T(1,128)}', space=vmem, size = 0x12000, scoped, tag = 'internal scratch']
  %s0 = inlined_call_operand.vmem [shape: f32[2,2048], index: 0, kind: input, shape index: {}]
  %s1 = inlined_call_operand.vmem [shape: f32[1,2048], index: 1, kind: input, shape index: {}]
  %s2 = inlined_call_operand.vmem [shape: f32[1,2048], index: 2, kind: input, shape index: {}]
  %s3 = inlined_call_operand.vmem [shape: bf16[2048,128], index: 3, kind: input, shape index: {}]
  %s4 = inlined_call_operand.vmem [shape: f32[1,128], index: 4, kind: input, shape index: {}]
  %s5 = inlined_call_operand.vmem [shape: bf16[128,64], index: 5, kind: input, shape index: {}]
  %s6 = inlined_call_operand.vmem [shape: f32[1,64], index: 6, kind: input, shape index: {}]
  %s7 = inlined_call_operand.vmem [shape: bf16[64,10], index: 7, kind: input, shape index: {}]
  %s8 = inlined_call_operand.vmem [shape: f32[1,10], index: 8, kind: input, shape index: {}]
  %s9 = inlined_call_operand.hbm [shape: f32[2,10], index: 9, kind: output, shape index: {}]
  %s10 = sld [smem:[#allocation0]]
  $region46: #{model_forward.7} parent=0
    _
  %s12 = ssub.s32 1, %s10
  %s13 = scalar_select 0, %s12, %s10
  $region1: #{model_forward.7} parent=0
    #allocation2 [shape = 'u8[1024]{0}', space=vmem, size = 0x400, scoped, tag = 'output window, operand 0, single buffered']
    #allocation3 [shape = 's32[1]{0}', space=sflag, size = 0x4, scoped, tag = 'scoped memory for model_forward.7']
    %14 = vsyncpa [#allocation3], 0
    // Predicated region
    $region2: #{model_forward.7} parent=1 // pred_check
      _
    $region3: #{model_forward.7} parent=1 // pred_check_branch
      %16 = sbr.rel (0) target = $region5
    $region4: #{model_forward.7} parent=1 // pred_region
      _
    $region5: #{model_forward.7} parent=1 // pred_fallthru
      _
    // Predicated region
    $region6: #{model_forward.7} parent=1 // pred_check
      _
    $region7: #{model_forward.7} parent=1 // pred_check_branch
      %18 = sbr.rel (0) target = $region9
    $region8: #{model_forward.7} parent=1 // pred_region
      _
    $region9: #{model_forward.7} parent=1 // pred_fallthru
      _
    // Predicated region
    $region10: #{model_forward.7} parent=1 // pred_check
      _
    $region11: #{model_forward.7} parent=1 // pred_check_branch
      %20 = sbr.rel (0) target = $region13
    $region12: #{model_forward.7} parent=1 // pred_region
      _
    $region13: #{model_forward.7} parent=1 // pred_fallthru
      _
    // Predicated region
    $region14: #{model_forward.7} parent=1 // pred_check
      _
    $region15: #{model_forward.7} parent=1 // pred_check_branch
      %22 = sbr.rel (0) target = $region17
    $region16: #{model_forward.7} parent=1 // pred_region
      _
    $region17: #{model_forward.7} parent=1 // pred_fallthru
      _
    // Predicated region
    $region18: #{model_forward.7} parent=1 // pred_check
      _
    $region19: #{model_forward.7} parent=1 // pred_check_branch
      %24 = sbr.rel (0) target = $region21
    $region20: #{model_forward.7} parent=1 // pred_region
      _
    $region21: #{model_forward.7} parent=1 // pred_fallthru
      _
    // Predicated region
    $region22: #{model_forward.7} parent=1 // pred_check
      _
    $region23: #{model_forward.7} parent=1 // pred_check_branch
      %26 = sbr.rel (0) target = $region25
    $region24: #{model_forward.7} parent=1 // pred_region
      _
    $region25: #{model_forward.7} parent=1 // pred_fallthru
      _
    // Predicated region
    $region26: #{model_forward.7} parent=1 // pred_check
      _
    $region27: #{model_forward.7} parent=1 // pred_check_branch
      %28 = sbr.rel (0) target = $region29
    $region28: #{model_forward.7} parent=1 // pred_region
      _
    $region29: #{model_forward.7} parent=1 // pred_fallthru
      _
    // Predicated region
    $region30: #{model_forward.7} parent=1 // pred_check
      _
    $region31: #{model_forward.7} parent=1 // pred_check_branch
      %30 = sbr.rel (0) target = $region33
    $region32: #{model_forward.7} parent=1 // pred_region
      _
    $region33: #{model_forward.7} parent=1 // pred_fallthru
      _
    // Predicated region
    $region34: #{model_forward.7} parent=1 // pred_check
      _
    $region35: #{model_forward.7} parent=1 // pred_check_branch
      %32 = sbr.rel (0) target = $region37
    $region36: #{model_forward.7} parent=1 // pred_region
      _
    $region37: #{model_forward.7} parent=1 // pred_fallthru
      _
    %v34 = vld [vmem:[%s0] sm:$0xff]
    %v35 = vld [vmem:[%s0 + $0x8] sm:$0xff]
    %v36 = vld [vmem:[%s0 + $0x10] sm:$0xff]
    %v37 = vld [vmem:[%s0 + $0x18] sm:$0xff]
    %v38 = vld [vmem:[%s1] sm:$0xff]
    %v39 = vld [vmem:[%s1 + $0x8] sm:$0xff]
    %v42 = vlaneseq
    %v43 = vshrl.u32 %v42, 7
    %v44 = vsub.s32 0, %v43
    %v45 = vrot.slane %v38, %v44
    %v46 = vlaneseq
    %v47 = vshrl.u32 %v46, 7
    %v48 = vsub.s32 1, %v47
    %v49 = vrot.slane %v38, %v48
    %v50 = vlaneseq
    %v51 = vshrl.u32 %v50, 7
    %v52 = vsub.s32 2, %v51
    %v53 = vrot.slane %v38, %v52
    %v54 = vlaneseq
    %v55 = vshrl.u32 %v54, 7
    %v56 = vsub.s32 3, %v55
    %v57 = vrot.slane %v38, %v56
    %v58 = vlaneseq
    %v59 = vshrl.u32 %v58, 7
    %v60 = vsub.s32 4, %v59
    %v61 = vrot.slane %v38, %v60
    %v62 = vlaneseq
    %v63 = vshrl.u32 %v62, 7
    %v64 = vsub.s32 5, %v63
    %v65 = vrot.slane %v38, %v64
    %v66 = vlaneseq
    %v67 = vshrl.u32 %v66, 7
    %v68 = vsub.s32 6, %v67
    %v69 = vrot.slane %v38, %v68
    %v70 = vlaneseq
    %v71 = vshrl.u32 %v70, 7
    %v72 = vsub.s32 7, %v71
    %v73 = vrot.slane %v38, %v72
    %v74 = vlaneseq
    %v75 = vshrl.u32 %v74, 7
    %v76 = vsub.s32 0, %v75
    %v77 = vrot.slane %v39, %v76
    %v78 = vlaneseq
    %v79 = vshrl.u32 %v78, 7
    %v80 = vsub.s32 1, %v79
    %v81 = vrot.slane %v39, %v80
    %v82 = vlaneseq
    %v83 = vshrl.u32 %v82, 7
    %v84 = vsub.s32 2, %v83
    %v85 = vrot.slane %v39, %v84
    %v86 = vlaneseq
    %v87 = vshrl.u32 %v86, 7
    %v88 = vsub.s32 3, %v87
    %v89 = vrot.slane %v39, %v88
    %v90 = vlaneseq
    %v91 = vshrl.u32 %v90, 7
    %v92 = vsub.s32 4, %v91
    %v93 = vrot.slane %v39, %v92
    %v94 = vlaneseq
    %v95 = vshrl.u32 %v94, 7
    %v96 = vsub.s32 5, %v95
    %v97 = vrot.slane %v39, %v96
    %v98 = vlaneseq
    %v99 = vshrl.u32 %v98, 7
    %v100 = vsub.s32 6, %v99
    %v101 = vrot.slane %v39, %v100
    %v102 = vlaneseq
    %v103 = vshrl.u32 %v102, 7
    %v104 = vsub.s32 7, %v103
    %v105 = vrot.slane %v39, %v104
    %v106 = vcombine.low %v45, %v49
    %v107 = vcombine.low %v53, %v57
    %v109 = vunpack.c.l.s4 1983009808
    %v110 = vunpack.c.0.s8 %v109
    %v111 = vlaneseq
    %v112 = vshrl.u32 %v111, 7
    %v113 = vsub.s32 %v110, %v112
    %v114 = vrot.slane %v106, %v113
    %v116 = vunpack.c.l.s4 1983009808
    %v117 = vunpack.c.0.s8 %v116
    %v118 = vlaneseq
    %v119 = vshrl.u32 %v118, 7
    %v120 = vsub.s32 %v117, %v119
    %v121 = vrot.slane %v107, %v120
    %v122 = vcombine.low %v114, %v121
    %v123 = vcombine.low %v61, %v65
    %v124 = vcombine.low %v69, %v73
    %v126 = vunpack.c.l.s4 1983009808
    %v127 = vunpack.c.0.s8 %v126
    %v128 = vlaneseq
    %v129 = vshrl.u32 %v128, 7
    %v130 = vsub.s32 %v127, %v129
    %v131 = vrot.slane %v123, %v130
    %v133 = vunpack.c.l.s4 1983009808
    %v134 = vunpack.c.0.s8 %v133
    %v135 = vlaneseq
    %v136 = vshrl.u32 %v135, 7
    %v137 = vsub.s32 %v134, %v136
    %v138 = vrot.slane %v124, %v137
    %v139 = vcombine.low %v131, %v138
    %v140 = vcombine.low %v77, %v81
    %v141 = vcombine.low %v85, %v89
    %v143 = vunpack.c.l.s4 1983009808
    %v144 = vunpack.c.0.s8 %v143
    %v145 = vlaneseq
    %v146 = vshrl.u32 %v145, 7
    %v147 = vsub.s32 %v144, %v146
    %v148 = vrot.slane %v140, %v147
    %v150 = vunpack.c.l.s4 1983009808
    %v151 = vunpack.c.0.s8 %v150
    %v152 = vlaneseq
    %v153 = vshrl.u32 %v152, 7
    %v154 = vsub.s32 %v151, %v153
    %v155 = vrot.slane %v141, %v154
    %v156 = vcombine.low %v148, %v155
    %v157 = vcombine.low %v93, %v97
    %v158 = vcombine.low %v101, %v105
    %v160 = vunpack.c.l.s4 1983009808
    %v161 = vunpack.c.0.s8 %v160
    %v162 = vlaneseq
    %v163 = vshrl.u32 %v162, 7
    %v164 = vsub.s32 %v161, %v163
    %v165 = vrot.slane %v157, %v164
    %v167 = vunpack.c.l.s4 1983009808
    %v168 = vunpack.c.0.s8 %v167
    %v169 = vlaneseq
    %v170 = vshrl.u32 %v169, 7
    %v171 = vsub.s32 %v168, %v170
    %v172 = vrot.slane %v158, %v171
    %v173 = vcombine.low %v165, %v172
    %v178 = vmul.f32 %v34, %v122
    %v179 = vmul.f32 %v35, %v139
    %v180 = vmul.f32 %v36, %v156
    %v181 = vmul.f32 %v37, %v173
    %v182 = vld [vmem:[%s2] sm:$0xff]
    %v183 = vld [vmem:[%s2 + $0x8] sm:$0xff]
    %v186 = vlaneseq
    %v187 = vshrl.u32 %v186, 7
    %v188 = vsub.s32 0, %v187
    %v189 = vrot.slane %v182, %v188
    %v190 = vlaneseq
    %v191 = vshrl.u32 %v190, 7
    %v192 = vsub.s32 1, %v191
    %v193 = vrot.slane %v182, %v192
    %v194 = vlaneseq
    %v195 = vshrl.u32 %v194, 7
    %v196 = vsub.s32 2, %v195
    %v197 = vrot.slane %v182, %v196
    %v198 = vlaneseq
    %v199 = vshrl.u32 %v198, 7
    %v200 = vsub.s32 3, %v199
    %v201 = vrot.slane %v182, %v200
    %v202 = vlaneseq
    %v203 = vshrl.u32 %v202, 7
    %v204 = vsub.s32 4, %v203
    %v205 = vrot.slane %v182, %v204
    %v206 = vlaneseq
    %v207 = vshrl.u32 %v206, 7
    %v208 = vsub.s32 5, %v207
    %v209 = vrot.slane %v182, %v208
    %v210 = vlaneseq
    %v211 = vshrl.u32 %v210, 7
    %v212 = vsub.s32 6, %v211
    %v213 = vrot.slane %v182, %v212
    %v214 = vlaneseq
    %v215 = vshrl.u32 %v214, 7
    %v216 = vsub.s32 7, %v215
    %v217 = vrot.slane %v182, %v216
    %v218 = vlaneseq
    %v219 = vshrl.u32 %v218, 7
    %v220 = vsub.s32 0, %v219
    %v221 = vrot.slane %v183, %v220
    %v222 = vlaneseq
    %v223 = vshrl.u32 %v222, 7
    %v224 = vsub.s32 1, %v223
    %v225 = vrot.slane %v183, %v224
    %v226 = vlaneseq
    %v227 = vshrl.u32 %v226, 7
    %v228 = vsub.s32 2, %v227
    %v229 = vrot.slane %v183, %v228
    %v230 = vlaneseq
    %v231 = vshrl.u32 %v230, 7
    %v232 = vsub.s32 3, %v231
    %v233 = vrot.slane %v183, %v232
    %v234 = vlaneseq
    %v235 = vshrl.u32 %v234, 7
    %v236 = vsub.s32 4, %v235
    %v237 = vrot.slane %v183, %v236
    %v238 = vlaneseq
    %v239 = vshrl.u32 %v238, 7
    %v240 = vsub.s32 5, %v239
    %v241 = vrot.slane %v183, %v240
    %v242 = vlaneseq
    %v243 = vshrl.u32 %v242, 7
    %v244 = vsub.s32 6, %v243
    %v245 = vrot.slane %v183, %v244
    %v246 = vlaneseq
    %v247 = vshrl.u32 %v246, 7
    %v248 = vsub.s32 7, %v247
    %v249 = vrot.slane %v183, %v248
    %v250 = vcombine.low %v189, %v193
    %v251 = vcombine.low %v197, %v201
    %v253 = vunpack.c.l.s4 1983009808
    %v254 = vunpack.c.0.s8 %v253
    %v255 = vlaneseq
    %v256 = vshrl.u32 %v255, 7
    %v257 = vsub.s32 %v254, %v256
    %v258 = vrot.slane %v250, %v257
    %v260 = vunpack.c.l.s4 1983009808
    %v261 = vunpack.c.0.s8 %v260
    %v262 = vlaneseq
    %v263 = vshrl.u32 %v262, 7
    %v264 = vsub.s32 %v261, %v263
    %v265 = vrot.slane %v251, %v264
    %v266 = vcombine.low %v258, %v265
    %v267 = vcombine.low %v205, %v209
    %v268 = vcombine.low %v213, %v217
    %v270 = vunpack.c.l.s4 1983009808
    %v271 = vunpack.c.0.s8 %v270
    %v272 = vlaneseq
    %v273 = vshrl.u32 %v272, 7
    %v274 = vsub.s32 %v271, %v273
    %v275 = vrot.slane %v267, %v274
    %v277 = vunpack.c.l.s4 1983009808
    %v278 = vunpack.c.0.s8 %v277
    %v279 = vlaneseq
    %v280 = vshrl.u32 %v279, 7
    %v281 = vsub.s32 %v278, %v280
    %v282 = vrot.slane %v268, %v281
    %v283 = vcombine.low %v275, %v282
    %v284 = vcombine.low %v221, %v225
    %v285 = vcombine.low %v229, %v233
    %v287 = vunpack.c.l.s4 1983009808
    %v288 = vunpack.c.0.s8 %v287
    %v289 = vlaneseq
    %v290 = vshrl.u32 %v289, 7
    %v291 = vsub.s32 %v288, %v290
    %v292 = vrot.slane %v284, %v291
    %v294 = vunpack.c.l.s4 1983009808
    %v295 = vunpack.c.0.s8 %v294
    %v296 = vlaneseq
    %v297 = vshrl.u32 %v296, 7
    %v298 = vsub.s32 %v295, %v297
    %v299 = vrot.slane %v285, %v298
    %v300 = vcombine.low %v292, %v299
    %v301 = vcombine.low %v237, %v241
    %v302 = vcombine.low %v245, %v249
    %v304 = vunpack.c.l.s4 1983009808
    %v305 = vunpack.c.0.s8 %v304
    %v306 = vlaneseq
    %v307 = vshrl.u32 %v306, 7
    %v308 = vsub.s32 %v305, %v307
    %v309 = vrot.slane %v301, %v308
    %v311 = vunpack.c.l.s4 1983009808
    %v312 = vunpack.c.0.s8 %v311
    %v313 = vlaneseq
    %v314 = vshrl.u32 %v313, 7
    %v315 = vsub.s32 %v312, %v314
    %v316 = vrot.slane %v302, %v315
    %v317 = vcombine.low %v309, %v316
    %v322 = vadd.f32 %v178, %v266
    %v323 = vadd.f32 %v179, %v283
    %v324 = vadd.f32 %v180, %v300
    %v325 = vadd.f32 %v181, %v317
    %v330 = vcombine.high %v322, %v322
    %v332 = vunpack.c.l.s4 1983009808
    %v333 = vunpack.c.0.s8 %v332
    %v334 = vlaneseq
    %v335 = vshrl.u32 %v334, 7
    %v336 = vsub.s32 %v333, %v335
    %v337 = vrot.slane %v322, %v336
    %v339 = vunpack.c.l.s4 1983009808
    %v340 = vunpack.c.0.s8 %v339
    %v341 = vlaneseq
    %v342 = vshrl.u32 %v341, 7
    %v343 = vsub.s32 %v340, %v342
    %v344 = vrot.slane %v330, %v343
    %v345 = vcombine.high %v337, %v337
    %v346 = vcombine.high %v344, %v344
    %v347 = vcombine.high %v323, %v323
    %v349 = vunpack.c.l.s4 1983009808
    %v350 = vunpack.c.0.s8 %v349
    %v351 = vlaneseq
    %v352 = vshrl.u32 %v351, 7
    %v353 = vsub.s32 %v350, %v352
    %v354 = vrot.slane %v323, %v353
    %v356 = vunpack.c.l.s4 1983009808
    %v357 = vunpack.c.0.s8 %v356
    %v358 = vlaneseq
    %v359 = vshrl.u32 %v358, 7
    %v360 = vsub.s32 %v357, %v359
    %v361 = vrot.slane %v347, %v360
    %v362 = vcombine.high %v354, %v354
    %v363 = vcombine.high %v361, %v361
    %v364 = vcombine.high %v324, %v324
    %v366 = vunpack.c.l.s4 1983009808
    %v367 = vunpack.c.0.s8 %v366
    %v368 = vlaneseq
    %v369 = vshrl.u32 %v368, 7
    %v370 = vsub.s32 %v367, %v369
    %v371 = vrot.slane %v324, %v370
    %v373 = vunpack.c.l.s4 1983009808
    %v374 = vunpack.c.0.s8 %v373
    %v375 = vlaneseq
    %v376 = vshrl.u32 %v375, 7
    %v377 = vsub.s32 %v374, %v376
    %v378 = vrot.slane %v364, %v377
    %v379 = vcombine.high %v371, %v371
    %v380 = vcombine.high %v378, %v378
    %v381 = vcombine.high %v325, %v325
    %v383 = vunpack.c.l.s4 1983009808
    %v384 = vunpack.c.0.s8 %v383
    %v385 = vlaneseq
    %v386 = vshrl.u32 %v385, 7
    %v387 = vsub.s32 %v384, %v386
    %v388 = vrot.slane %v325, %v387
    %v390 = vunpack.c.l.s4 1983009808
    %v391 = vunpack.c.0.s8 %v390
    %v392 = vlaneseq
    %v393 = vshrl.u32 %v392, 7
    %v394 = vsub.s32 %v391, %v393
    %v395 = vrot.slane %v381, %v394
    %v396 = vcombine.high %v388, %v388
    %v397 = vcombine.high %v395, %v395
    %v414 = vpack.c.bf16 %v337, %v337
    %v415 = vpack.c.bf16 %v345, %v345
    %v416 = vpack.c.bf16 %v344, %v344
    %v417 = vpack.c.bf16 %v346, %v346
    %v418 = vpack.c.bf16 %v354, %v354
    %v419 = vpack.c.bf16 %v362, %v362
    %v420 = vpack.c.bf16 %v361, %v361
    %v421 = vpack.c.bf16 %v363, %v363
    %v422 = vpack.c.bf16 %v371, %v371
    %v423 = vpack.c.bf16 %v379, %v379
    %v424 = vpack.c.bf16 %v378, %v378
    %v425 = vpack.c.bf16 %v380, %v380
    %v426 = vpack.c.bf16 %v388, %v388
    %v427 = vpack.c.bf16 %v396, %v396
    %v428 = vpack.c.bf16 %v395, %v395
    %v429 = vpack.c.bf16 %v397, %v397
    %v430 = vld [vmem:[%s3] sm:$0xf]
    %v431 = vld [vmem:[%s3 + $0x4] sm:$0xf]
    %v432 = vld [vmem:[%s3 + $0x8] sm:$0xf]
    %v433 = vld [vmem:[%s3 + $0xc] sm:$0xf]
    %v434 = vld [vmem:[%s3 + $0x10] sm:$0xf]
    %v435 = vld [vmem:[%s3 + $0x14] sm:$0xf]
    %v436 = vld [vmem:[%s3 + $0x18] sm:$0xf]
    %v437 = vld [vmem:[%s3 + $0x1c] sm:$0xf]
    %v438 = vld [vmem:[%s3 + $0x20] sm:$0xf]
    %v439 = vld [vmem:[%s3 + $0x24] sm:$0xf]
    %v440 = vld [vmem:[%s3 + $0x28] sm:$0xf]
    %v441 = vld [vmem:[%s3 + $0x2c] sm:$0xf]
    %v442 = vld [vmem:[%s3 + $0x30] sm:$0xf]
    %v443 = vld [vmem:[%s3 + $0x34] sm:$0xf]
    %v444 = vld [vmem:[%s3 + $0x38] sm:$0xf]
    %v445 = vld [vmem:[%s3 + $0x3c] sm:$0xf]
    %v446 = vld [vmem:[%s3 + $0x40] sm:$0xf]
    %v447 = vld [vmem:[%s3 + $0x44] sm:$0xf]
    %v448 = vld [vmem:[%s3 + $0x48] sm:$0xf]
    %v449 = vld [vmem:[%s3 + $0x4c] sm:$0xf]
    %v450 = vld [vmem:[%s3 + $0x50] sm:$0xf]
    %v451 = vld [vmem:[%s3 + $0x54] sm:$0xf]
    %v452 = vld [vmem:[%s3 + $0x58] sm:$0xf]
    %v453 = vld [vmem:[%s3 + $0x5c] sm:$0xf]
    %v454 = vld [vmem:[%s3 + $0x60] sm:$0xf]
    %v455 = vld [vmem:[%s3 + $0x64] sm:$0xf]
    %v456 = vld [vmem:[%s3 + $0x68] sm:$0xf]
    %v457 = vld [vmem:[%s3 + $0x6c] sm:$0xf]
    %v458 = vld [vmem:[%s3 + $0x70] sm:$0xf]
    %v459 = vld [vmem:[%s3 + $0x74] sm:$0xf]
    %v460 = vld [vmem:[%s3 + $0x78] sm:$0xf]
    %v461 = vld [vmem:[%s3 + $0x7c] sm:$0xf]
    %v462 = vld [vmem:[%s3 + $0x80] sm:$0xf]
    %v463 = vld [vmem:[%s3 + $0x84] sm:$0xf]
    %v464 = vld [vmem:[%s3 + $0x88] sm:$0xf]
    %v465 = vld [vmem:[%s3 + $0x8c] sm:$0xf]
    %v466 = vld [vmem:[%s3 + $0x90] sm:$0xf]
    %v467 = vld [vmem:[%s3 + $0x94] sm:$0xf]
    %v468 = vld [vmem:[%s3 + $0x98] sm:$0xf]
    %v469 = vld [vmem:[%s3 + $0x9c] sm:$0xf]
    %v470 = vld [vmem:[%s3 + $0xa0] sm:$0xf]
    %v471 = vld [vmem:[%s3 + $0xa4] sm:$0xf]
    %v472 = vld [vmem:[%s3 + $0xa8] sm:$0xf]
    %v473 = vld [vmem:[%s3 + $0xac] sm:$0xf]
    %v474 = vld [vmem:[%s3 + $0xb0] sm:$0xf]
    %v475 = vld [vmem:[%s3 + $0xb4] sm:$0xf]
    %v476 = vld [vmem:[%s3 + $0xb8] sm:$0xf]
    %v477 = vld [vmem:[%s3 + $0xbc] sm:$0xf]
    %v478 = vld [vmem:[%s3 + $0xc0] sm:$0xf]
    %v479 = vld [vmem:[%s3 + $0xc4] sm:$0xf]
    %v480 = vld [vmem:[%s3 + $0xc8] sm:$0xf]
    %v481 = vld [vmem:[%s3 + $0xcc] sm:$0xf]
    %v482 = vld [vmem:[%s3 + $0xd0] sm:$0xf]
    %v483 = vld [vmem:[%s3 + $0xd4] sm:$0xf]
    %v484 = vld [vmem:[%s3 + $0xd8] sm:$0xf]
    %v485 = vld [vmem:[%s3 + $0xdc] sm:$0xf]
    %v486 = vld [vmem:[%s3 + $0xe0] sm:$0xf]
    %v487 = vld [vmem:[%s3 + $0xe4] sm:$0xf]
    %v488 = vld [vmem:[%s3 + $0xe8] sm:$0xf]
    %v489 = vld [vmem:[%s3 + $0xec] sm:$0xf]
    %v490 = vld [vmem:[%s3 + $0xf0] sm:$0xf]
    %v491 = vld [vmem:[%s3 + $0xf4] sm:$0xf]
    %v492 = vld [vmem:[%s3 + $0xf8] sm:$0xf]
    %v493 = vld [vmem:[%s3 + $0xfc] sm:$0xf]
    %v494 = vld [vmem:[%s3 + $0x100] sm:$0xf]
    %v495 = vld [vmem:[%s3 + $0x104] sm:$0xf]
    %v496 = vld [vmem:[%s3 + $0x108] sm:$0xf]
    %v497 = vld [vmem:[%s3 + $0x10c] sm:$0xf]
    %v498 = vld [vmem:[%s3 + $0x110] sm:$0xf]
    %v499 = vld [vmem:[%s3 + $0x114] sm:$0xf]
    %v500 = vld [vmem:[%s3 + $0x118] sm:$0xf]
    %v501 = vld [vmem:[%s3 + $0x11c] sm:$0xf]
    %v502 = vld [vmem:[%s3 + $0x120] sm:$0xf]
    %v503 = vld [vmem:[%s3 + $0x124] sm:$0xf]
    %v504 = vld [vmem:[%s3 + $0x128] sm:$0xf]
    %v505 = vld [vmem:[%s3 + $0x12c] sm:$0xf]
    %v506 = vld [vmem:[%s3 + $0x130] sm:$0xf]
    %v507 = vld [vmem:[%s3 + $0x134] sm:$0xf]
    %v508 = vld [vmem:[%s3 + $0x138] sm:$0xf]
    %v509 = vld [vmem:[%s3 + $0x13c] sm:$0xf]
    %v510 = vld [vmem:[%s3 + $0x140] sm:$0xf]
    %v511 = vld [vmem:[%s3 + $0x144] sm:$0xf]
    %v512 = vld [vmem:[%s3 + $0x148] sm:$0xf]
    %v513 = vld [vmem:[%s3 + $0x14c] sm:$0xf]
    %v514 = vld [vmem:[%s3 + $0x150] sm:$0xf]
    %v515 = vld [vmem:[%s3 + $0x154] sm:$0xf]
    %v516 = vld [vmem:[%s3 + $0x158] sm:$0xf]
    %v517 = vld [vmem:[%s3 + $0x15c] sm:$0xf]
    %v518 = vld [vmem:[%s3 + $0x160] sm:$0xf]
    %v519 = vld [vmem:[%s3 + $0x164] sm:$0xf]
    %v520 = vld [vmem:[%s3 + $0x168] sm:$0xf]
    %v521 = vld [vmem:[%s3 + $0x16c] sm:$0xf]
    %v522 = vld [vmem:[%s3 + $0x170] sm:$0xf]
    %v523 = vld [vmem:[%s3 + $0x174] sm:$0xf]
    %v524 = vld [vmem:[%s3 + $0x178] sm:$0xf]
    %v525 = vld [vmem:[%s3 + $0x17c] sm:$0xf]
    %v526 = vld [vmem:[%s3 + $0x180] sm:$0xf]
    %v527 = vld [vmem:[%s3 + $0x184] sm:$0xf]
    %v528 = vld [vmem:[%s3 + $0x188] sm:$0xf]
    %v529 = vld [vmem:[%s3 + $0x18c] sm:$0xf]
    %v530 = vld [vmem:[%s3 + $0x190] sm:$0xf]
    %v531 = vld [vmem:[%s3 + $0x194] sm:$0xf]
    %v532 = vld [vmem:[%s3 + $0x198] sm:$0xf]
    %v533 = vld [vmem:[%s3 + $0x19c] sm:$0xf]
    %v534 = vld [vmem:[%s3 + $0x1a0] sm:$0xf]
    %v535 = vld [vmem:[%s3 + $0x1a4] sm:$0xf]
    %v536 = vld [vmem:[%s3 + $0x1a8] sm:$0xf]
    %v537 = vld [vmem:[%s3 + $0x1ac] sm:$0xf]
    %v538 = vld [vmem:[%s3 + $0x1b0] sm:$0xf]
    %v539 = vld [vmem:[%s3 + $0x1b4] sm:$0xf]
    %v540 = vld [vmem:[%s3 + $0x1b8] sm:$0xf]
    %v541 = vld [vmem:[%s3 + $0x1bc] sm:$0xf]
    %v542 = vld [vmem:[%s3 + $0x1c0] sm:$0xf]
    %v543 = vld [vmem:[%s3 + $0x1c4] sm:$0xf]
    %v544 = vld [vmem:[%s3 + $0x1c8] sm:$0xf]
    %v545 = vld [vmem:[%s3 + $0x1cc] sm:$0xf]
    %v546 = vld [vmem:[%s3 + $0x1d0] sm:$0xf]
    %v547 = vld [vmem:[%s3 + $0x1d4] sm:$0xf]
    %v548 = vld [vmem:[%s3 + $0x1d8] sm:$0xf]
    %v549 = vld [vmem:[%s3 + $0x1dc] sm:$0xf]
    %v550 = vld [vmem:[%s3 + $0x1e0] sm:$0xf]
    %v551 = vld [vmem:[%s3 + $0x1e4] sm:$0xf]
    %v552 = vld [vmem:[%s3 + $0x1e8] sm:$0xf]
    %v553 = vld [vmem:[%s3 + $0x1ec] sm:$0xf]
    %v554 = vld [vmem:[%s3 + $0x1f0] sm:$0xf]
    %v555 = vld [vmem:[%s3 + $0x1f4] sm:$0xf]
    %v556 = vld [vmem:[%s3 + $0x1f8] sm:$0xf]
    %v557 = vld [vmem:[%s3 + $0x1fc] sm:$0xf]
    %v558 = vld [vmem:[%s3 + $0x200] sm:$0xf]
    %v559 = vld [vmem:[%s3 + $0x204] sm:$0xf]
    %v560 = vld [vmem:[%s3 + $0x208] sm:$0xf]
    %v561 = vld [vmem:[%s3 + $0x20c] sm:$0xf]
    %v562 = vld [vmem:[%s3 + $0x210] sm:$0xf]
    %v563 = vld [vmem:[%s3 + $0x214] sm:$0xf]
    %v564 = vld [vmem:[%s3 + $0x218] sm:$0xf]
    %v565 = vld [vmem:[%s3 + $0x21c] sm:$0xf]
    %v566 = vld [vmem:[%s3 + $0x220] sm:$0xf]
    %v567 = vld [vmem:[%s3 + $0x224] sm:$0xf]
    %v568 = vld [vmem:[%s3 + $0x228] sm:$0xf]
    %v569 = vld [vmem:[%s3 + $0x22c] sm:$0xf]
    %v570 = vld [vmem:[%s3 + $0x230] sm:$0xf]
    %v571 = vld [vmem:[%s3 + $0x234] sm:$0xf]
    %v572 = vld [vmem:[%s3 + $0x238] sm:$0xf]
    %v573 = vld [vmem:[%s3 + $0x23c] sm:$0xf]
    %v574 = vld [vmem:[%s3 + $0x240] sm:$0xf]
    %v575 = vld [vmem:[%s3 + $0x244] sm:$0xf]
    %v576 = vld [vmem:[%s3 + $0x248] sm:$0xf]
    %v577 = vld [vmem:[%s3 + $0x24c] sm:$0xf]
    %v578 = vld [vmem:[%s3 + $0x250] sm:$0xf]
    %v579 = vld [vmem:[%s3 + $0x254] sm:$0xf]
    %v580 = vld [vmem:[%s3 + $0x258] sm:$0xf]
    %v581 = vld [vmem:[%s3 + $0x25c] sm:$0xf]
    %v582 = vld [vmem:[%s3 + $0x260] sm:$0xf]
    %v583 = vld [vmem:[%s3 + $0x264] sm:$0xf]
    %v584 = vld [vmem:[%s3 + $0x268] sm:$0xf]
    %v585 = vld [vmem:[%s3 + $0x26c] sm:$0xf]
    %v586 = vld [vmem:[%s3 + $0x270] sm:$0xf]
    %v587 = vld [vmem:[%s3 + $0x274] sm:$0xf]
    %v588 = vld [vmem:[%s3 + $0x278] sm:$0xf]
    %v589 = vld [vmem:[%s3 + $0x27c] sm:$0xf]
    %v590 = vld [vmem:[%s3 + $0x280] sm:$0xf]
    %v591 = vld [vmem:[%s3 + $0x284] sm:$0xf]
    %v592 = vld [vmem:[%s3 + $0x288] sm:$0xf]
    %v593 = vld [vmem:[%s3 + $0x28c] sm:$0xf]
    %v594 = vld [vmem:[%s3 + $0x290] sm:$0xf]
    %v595 = vld [vmem:[%s3 + $0x294] sm:$0xf]
    %v596 = vld [vmem:[%s3 + $0x298] sm:$0xf]
    %v597 = vld [vmem:[%s3 + $0x29c] sm:$0xf]
    %v598 = vld [vmem:[%s3 + $0x2a0] sm:$0xf]
    %v599 = vld [vmem:[%s3 + $0x2a4] sm:$0xf]
    %v600 = vld [vmem:[%s3 + $0x2a8] sm:$0xf]
    %v601 = vld [vmem:[%s3 + $0x2ac] sm:$0xf]
    %v602 = vld [vmem:[%s3 + $0x2b0] sm:$0xf]
    %v603 = vld [vmem:[%s3 + $0x2b4] sm:$0xf]
    %v604 = vld [vmem:[%s3 + $0x2b8] sm:$0xf]
    %v605 = vld [vmem:[%s3 + $0x2bc] sm:$0xf]
    %v606 = vld [vmem:[%s3 + $0x2c0] sm:$0xf]
    %v607 = vld [vmem:[%s3 + $0x2c4] sm:$0xf]
    %v608 = vld [vmem:[%s3 + $0x2c8] sm:$0xf]
    %v609 = vld [vmem:[%s3 + $0x2cc] sm:$0xf]
    %v610 = vld [vmem:[%s3 + $0x2d0] sm:$0xf]
    %v611 = vld [vmem:[%s3 + $0x2d4] sm:$0xf]
    %v612 = vld [vmem:[%s3 + $0x2d8] sm:$0xf]
    %v613 = vld [vmem:[%s3 + $0x2dc] sm:$0xf]
    %v614 = vld [vmem:[%s3 + $0x2e0] sm:$0xf]
    %v615 = vld [vmem:[%s3 + $0x2e4] sm:$0xf]
    %v616 = vld [vmem:[%s3 + $0x2e8] sm:$0xf]
    %v617 = vld [vmem:[%s3 + $0x2ec] sm:$0xf]
    %v618 = vld [vmem:[%s3 + $0x2f0] sm:$0xf]
    %v619 = vld [vmem:[%s3 + $0x2f4] sm:$0xf]
    %v620 = vld [vmem:[%s3 + $0x2f8] sm:$0xf]
    %v621 = vld [vmem:[%s3 + $0x2fc] sm:$0xf]
    %v622 = vld [vmem:[%s3 + $0x300] sm:$0xf]
    %v623 = vld [vmem:[%s3 + $0x304] sm:$0xf]
    %v624 = vld [vmem:[%s3 + $0x308] sm:$0xf]
    %v625 = vld [vmem:[%s3 + $0x30c] sm:$0xf]
    %v626 = vld [vmem:[%s3 + $0x310] sm:$0xf]
    %v627 = vld [vmem:[%s3 + $0x314] sm:$0xf]
    %v628 = vld [vmem:[%s3 + $0x318] sm:$0xf]
    %v629 = vld [vmem:[%s3 + $0x31c] sm:$0xf]
    %v630 = vld [vmem:[%s3 + $0x320] sm:$0xf]
    %v631 = vld [vmem:[%s3 + $0x324] sm:$0xf]
    %v632 = vld [vmem:[%s3 + $0x328] sm:$0xf]
    %v633 = vld [vmem:[%s3 + $0x32c] sm:$0xf]
    %v634 = vld [vmem:[%s3 + $0x330] sm:$0xf]
    %v635 = vld [vmem:[%s3 + $0x334] sm:$0xf]
    %v636 = vld [vmem:[%s3 + $0x338] sm:$0xf]
    %v637 = vld [vmem:[%s3 + $0x33c] sm:$0xf]
    %v638 = vld [vmem:[%s3 + $0x340] sm:$0xf]
    %v639 = vld [vmem:[%s3 + $0x344] sm:$0xf]
    %v640 = vld [vmem:[%s3 + $0x348] sm:$0xf]
    %v641 = vld [vmem:[%s3 + $0x34c] sm:$0xf]
    %v642 = vld [vmem:[%s3 + $0x350] sm:$0xf]
    %v643 = vld [vmem:[%s3 + $0x354] sm:$0xf]
    %v644 = vld [vmem:[%s3 + $0x358] sm:$0xf]
    %v645 = vld [vmem:[%s3 + $0x35c] sm:$0xf]
    %v646 = vld [vmem:[%s3 + $0x360] sm:$0xf]
    %v647 = vld [vmem:[%s3 + $0x364] sm:$0xf]
    %v648 = vld [vmem:[%s3 + $0x368] sm:$0xf]
    %v649 = vld [vmem:[%s3 + $0x36c] sm:$0xf]
    %v650 = vld [vmem:[%s3 + $0x370] sm:$0xf]
    %v651 = vld [vmem:[%s3 + $0x374] sm:$0xf]
    %v652 = vld [vmem:[%s3 + $0x378] sm:$0xf]
    %v653 = vld [vmem:[%s3 + $0x37c] sm:$0xf]
    %v654 = vld [vmem:[%s3 + $0x380] sm:$0xf]
    %v655 = vld [vmem:[%s3 + $0x384] sm:$0xf]
    %v656 = vld [vmem:[%s3 + $0x388] sm:$0xf]
    %v657 = vld [vmem:[%s3 + $0x38c] sm:$0xf]
    %v658 = vld [vmem:[%s3 + $0x390] sm:$0xf]
    %v659 = vld [vmem:[%s3 + $0x394] sm:$0xf]
    %v660 = vld [vmem:[%s3 + $0x398] sm:$0xf]
    %v661 = vld [vmem:[%s3 + $0x39c] sm:$0xf]
    %v662 = vld [vmem:[%s3 + $0x3a0] sm:$0xf]
    %v663 = vld [vmem:[%s3 + $0x3a4] sm:$0xf]
    %v664 = vld [vmem:[%s3 + $0x3a8] sm:$0xf]
    %v665 = vld [vmem:[%s3 + $0x3ac] sm:$0xf]
    %v666 = vld [vmem:[%s3 + $0x3b0] sm:$0xf]
    %v667 = vld [vmem:[%s3 + $0x3b4] sm:$0xf]
    %v668 = vld [vmem:[%s3 + $0x3b8] sm:$0xf]
    %v669 = vld [vmem:[%s3 + $0x3bc] sm:$0xf]
    %v670 = vld [vmem:[%s3 + $0x3c0] sm:$0xf]
    %v671 = vld [vmem:[%s3 + $0x3c4] sm:$0xf]
    %v672 = vld [vmem:[%s3 + $0x3c8] sm:$0xf]
    %v673 = vld [vmem:[%s3 + $0x3cc] sm:$0xf]
    %v674 = vld [vmem:[%s3 + $0x3d0] sm:$0xf]
    %v675 = vld [vmem:[%s3 + $0x3d4] sm:$0xf]
    %v676 = vld [vmem:[%s3 + $0x3d8] sm:$0xf]
    %v677 = vld [vmem:[%s3 + $0x3dc] sm:$0xf]
    %v678 = vld [vmem:[%s3 + $0x3e0] sm:$0xf]
    %v679 = vld [vmem:[%s3 + $0x3e4] sm:$0xf]
    %v680 = vld [vmem:[%s3 + $0x3e8] sm:$0xf]
    %v681 = vld [vmem:[%s3 + $0x3ec] sm:$0xf]
    %v682 = vld [vmem:[%s3 + $0x3f0] sm:$0xf]
    %v683 = vld [vmem:[%s3 + $0x3f4] sm:$0xf]
    %v684 = vld [vmem:[%s3 + $0x3f8] sm:$0xf]
    %v685 = vld [vmem:[%s3 + $0x3fc] sm:$0xf]
    %v686 = vld [vmem:[%s4] sm:$0x1]
    %v688 = vlaneseq
    %v689 = vshrl.u32 %v688, 7
    %v690 = vsub.s32 0, %v689
    %v691 = vrot.slane %v686, %v690
    %v949 = vunpack.c.l.b16 %v430
    %v950 = vunpack.c.l.b16 %v431
    %v951 = vunpack.c.l.b16 %v432
    %v952 = vunpack.c.l.b16 %v433
    %v953 = vunpack.c.l.b16 %v434
    %v954 = vunpack.c.l.b16 %v435
    %v955 = vunpack.c.l.b16 %v436
    %v956 = vunpack.c.l.b16 %v437
    %v957 = vunpack.c.l.b16 %v438
    %v958 = vunpack.c.l.b16 %v439
    %v959 = vunpack.c.l.b16 %v440
    %v960 = vunpack.c.l.b16 %v441
    %v961 = vunpack.c.l.b16 %v442
    %v962 = vunpack.c.l.b16 %v443
    %v963 = vunpack.c.l.b16 %v444
    %v964 = vunpack.c.l.b16 %v445
    %v965 = vunpack.c.l.b16 %v446
    %v966 = vunpack.c.l.b16 %v447
    %v967 = vunpack.c.l.b16 %v448
    %v968 = vunpack.c.l.b16 %v449
    %v969 = vunpack.c.l.b16 %v450
    %v970 = vunpack.c.l.b16 %v451
    %v971 = vunpack.c.l.b16 %v452
    %v972 = vunpack.c.l.b16 %v453
    %v973 = vunpack.c.l.b16 %v454
    %v974 = vunpack.c.l.b16 %v455
    %v975 = vunpack.c.l.b16 %v456
    %v976 = vunpack.c.l.b16 %v457
    %v977 = vunpack.c.l.b16 %v458
    %v978 = vunpack.c.l.b16 %v459
    %v979 = vunpack.c.l.b16 %v460
    %v980 = vunpack.c.l.b16 %v461
    %v981 = vunpack.c.l.b16 %v462
    %v982 = vunpack.c.l.b16 %v463
    %v983 = vunpack.c.l.b16 %v464
    %v984 = vunpack.c.l.b16 %v465
    %v985 = vunpack.c.l.b16 %v466
    %v986 = vunpack.c.l.b16 %v467
    %v987 = vunpack.c.l.b16 %v468
    %v988 = vunpack.c.l.b16 %v469
    %v989 = vunpack.c.l.b16 %v470
    %v990 = vunpack.c.l.b16 %v471
    %v991 = vunpack.c.l.b16 %v472
    %v992 = vunpack.c.l.b16 %v473
    %v993 = vunpack.c.l.b16 %v474
    %v994 = vunpack.c.l.b16 %v475
    %v995 = vunpack.c.l.b16 %v476
    %v996 = vunpack.c.l.b16 %v477
    %v997 = vunpack.c.l.b16 %v478
    %v998 = vunpack.c.l.b16 %v479
    %v999 = vunpack.c.l.b16 %v480
    %v1000 = vunpack.c.l.b16 %v481
    %v1001 = vunpack.c.l.b16 %v482
    %v1002 = vunpack.c.l.b16 %v483
    %v1003 = vunpack.c.l.b16 %v484
    %v1004 = vunpack.c.l.b16 %v485
    %v1005 = vunpack.c.l.b16 %v486
    %v1006 = vunpack.c.l.b16 %v487
    %v1007 = vunpack.c.l.b16 %v488
    %v1008 = vunpack.c.l.b16 %v489
    %v1009 = vunpack.c.l.b16 %v490
    %v1010 = vunpack.c.l.b16 %v491
    %v1011 = vunpack.c.l.b16 %v492
    %v1012 = vunpack.c.l.b16 %v493
    %v1013 = vunpack.c.l.b16 %v494
    %v1014 = vunpack.c.l.b16 %v495
    %v1015 = vunpack.c.l.b16 %v496
    %v1016 = vunpack.c.l.b16 %v497
    %v1017 = vunpack.c.l.b16 %v498
    %v1018 = vunpack.c.l.b16 %v499
    %v1019 = vunpack.c.l.b16 %v500
    %v1020 = vunpack.c.l.b16 %v501
    %v1021 = vunpack.c.l.b16 %v502
    %v1022 = vunpack.c.l.b16 %v503
    %v1023 = vunpack.c.l.b16 %v504
    %v1024 = vunpack.c.l.b16 %v505
    %v1025 = vunpack.c.l.b16 %v506
    %v1026 = vunpack.c.l.b16 %v507
    %v1027 = vunpack.c.l.b16 %v508
    %v1028 = vunpack.c.l.b16 %v509
    %v1029 = vunpack.c.l.b16 %v510
    %v1030 = vunpack.c.l.b16 %v511
    %v1031 = vunpack.c.l.b16 %v512
    %v1032 = vunpack.c.l.b16 %v513
    %v1033 = vunpack.c.l.b16 %v514
    %v1034 = vunpack.c.l.b16 %v515
    %v1035 = vunpack.c.l.b16 %v516
    %v1036 = vunpack.c.l.b16 %v517
    %v1037 = vunpack.c.l.b16 %v518
    %v1038 = vunpack.c.l.b16 %v519
    %v1039 = vunpack.c.l.b16 %v520
    %v1040 = vunpack.c.l.b16 %v521
    %v1041 = vunpack.c.l.b16 %v522
    %v1042 = vunpack.c.l.b16 %v523
    %v1043 = vunpack.c.l.b16 %v524
    %v1044 = vunpack.c.l.b16 %v525
    %v1045 = vunpack.c.l.b16 %v526
    %v1046 = vunpack.c.l.b16 %v527
    %v1047 = vunpack.c.l.b16 %v528
    %v1048 = vunpack.c.l.b16 %v529
    %v1049 = vunpack.c.l.b16 %v530
    %v1050 = vunpack.c.l.b16 %v531
    %v1051 = vunpack.c.l.b16 %v532
    %v1052 = vunpack.c.l.b16 %v533
    %v1053 = vunpack.c.l.b16 %v534
    %v1054 = vunpack.c.l.b16 %v535
    %v1055 = vunpack.c.l.b16 %v536
    %v1056 = vunpack.c.l.b16 %v537
    %v1057 = vunpack.c.l.b16 %v538
    %v1058 = vunpack.c.l.b16 %v539
    %v1059 = vunpack.c.l.b16 %v540
    %v1060 = vunpack.c.l.b16 %v541
    %v1061 = vunpack.c.l.b16 %v542
    %v1062 = vunpack.c.l.b16 %v543
    %v1063 = vunpack.c.l.b16 %v544
    %v1064 = vunpack.c.l.b16 %v545
    %v1065 = vunpack.c.l.b16 %v546
    %v1066 = vunpack.c.l.b16 %v547
    %v1067 = vunpack.c.l.b16 %v548
    %v1068 = vunpack.c.l.b16 %v549
    %v1069 = vunpack.c.l.b16 %v550
    %v1070 = vunpack.c.l.b16 %v551
    %v1071 = vunpack.c.l.b16 %v552
    %v1072 = vunpack.c.l.b16 %v553
    %v1073 = vunpack.c.l.b16 %v554
    %v1074 = vunpack.c.l.b16 %v555
    %v1075 = vunpack.c.l.b16 %v556
    %v1076 = vunpack.c.l.b16 %v557
    %v1077 = vunpack.c.l.b16 %v558
    %v1078 = vunpack.c.l.b16 %v559
    %v1079 = vunpack.c.l.b16 %v560
    %v1080 = vunpack.c.l.b16 %v561
    %v1081 = vunpack.c.l.b16 %v562
    %v1082 = vunpack.c.l.b16 %v563
    %v1083 = vunpack.c.l.b16 %v564
    %v1084 = vunpack.c.l.b16 %v565
    %v1085 = vunpack.c.l.b16 %v566
    %v1086 = vunpack.c.l.b16 %v567
    %v1087 = vunpack.c.l.b16 %v568
    %v1088 = vunpack.c.l.b16 %v569
    %v1089 = vunpack.c.l.b16 %v570
    %v1090 = vunpack.c.l.b16 %v571
    %v1091 = vunpack.c.l.b16 %v572
    %v1092 = vunpack.c.l.b16 %v573
    %v1093 = vunpack.c.l.b16 %v574
    %v1094 = vunpack.c.l.b16 %v575
    %v1095 = vunpack.c.l.b16 %v576
    %v1096 = vunpack.c.l.b16 %v577
    %v1097 = vunpack.c.l.b16 %v578
    %v1098 = vunpack.c.l.b16 %v579
    %v1099 = vunpack.c.l.b16 %v580
    %v1100 = vunpack.c.l.b16 %v581
    %v1101 = vunpack.c.l.b16 %v582
    %v1102 = vunpack.c.l.b16 %v583
    %v1103 = vunpack.c.l.b16 %v584
    %v1104 = vunpack.c.l.b16 %v585
    %v1105 = vunpack.c.l.b16 %v586
    %v1106 = vunpack.c.l.b16 %v587
    %v1107 = vunpack.c.l.b16 %v588
    %v1108 = vunpack.c.l.b16 %v589
    %v1109 = vunpack.c.l.b16 %v590
    %v1110 = vunpack.c.l.b16 %v591
    %v1111 = vunpack.c.l.b16 %v592
    %v1112 = vunpack.c.l.b16 %v593
    %v1113 = vunpack.c.l.b16 %v594
    %v1114 = vunpack.c.l.b16 %v595
    %v1115 = vunpack.c.l.b16 %v596
    %v1116 = vunpack.c.l.b16 %v597
    %v1117 = vunpack.c.l.b16 %v598
    %v1118 = vunpack.c.l.b16 %v599
    %v1119 = vunpack.c.l.b16 %v600
    %v1120 = vunpack.c.l.b16 %v601
    %v1121 = vunpack.c.l.b16 %v602
    %v1122 = vunpack.c.l.b16 %v603
    %v1123 = vunpack.c.l.b16 %v604
    %v1124 = vunpack.c.l.b16 %v605
    %v1125 = vunpack.c.l.b16 %v606
    %v1126 = vunpack.c.l.b16 %v607
    %v1127 = vunpack.c.l.b16 %v608
    %v1128 = vunpack.c.l.b16 %v609
    %v1129 = vunpack.c.l.b16 %v610
    %v1130 = vunpack.c.l.b16 %v611
    %v1131 = vunpack.c.l.b16 %v612
    %v1132 = vunpack.c.l.b16 %v613
    %v1133 = vunpack.c.l.b16 %v614
    %v1134 = vunpack.c.l.b16 %v615
    %v1135 = vunpack.c.l.b16 %v616
    %v1136 = vunpack.c.l.b16 %v617
    %v1137 = vunpack.c.l.b16 %v618
    %v1138 = vunpack.c.l.b16 %v619
    %v1139 = vunpack.c.l.b16 %v620
    %v1140 = vunpack.c.l.b16 %v621
    %v1141 = vunpack.c.l.b16 %v622
    %v1142 = vunpack.c.l.b16 %v623
    %v1143 = vunpack.c.l.b16 %v624
    %v1144 = vunpack.c.l.b16 %v625
    %v1145 = vunpack.c.l.b16 %v626
    %v1146 = vunpack.c.l.b16 %v627
    %v1147 = vunpack.c.l.b16 %v628
    %v1148 = vunpack.c.l.b16 %v629
    %v1149 = vunpack.c.l.b16 %v630
    %v1150 = vunpack.c.l.b16 %v631
    %v1151 = vunpack.c.l.b16 %v632
    %v1152 = vunpack.c.l.b16 %v633
    %v1153 = vunpack.c.l.b16 %v634
    %v1154 = vunpack.c.l.b16 %v635
    %v1155 = vunpack.c.l.b16 %v636
    %v1156 = vunpack.c.l.b16 %v637
    %v1157 = vunpack.c.l.b16 %v638
    %v1158 = vunpack.c.l.b16 %v639
    %v1159 = vunpack.c.l.b16 %v640
    %v1160 = vunpack.c.l.b16 %v641
    %v1161 = vunpack.c.l.b16 %v642
    %v1162 = vunpack.c.l.b16 %v643
    %v1163 = vunpack.c.l.b16 %v644
    %v1164 = vunpack.c.l.b16 %v645
    %v1165 = vunpack.c.l.b16 %v646
    %v1166 = vunpack.c.l.b16 %v647
    %v1167 = vunpack.c.l.b16 %v648
    %v1168 = vunpack.c.l.b16 %v649
    %v1169 = vunpack.c.l.b16 %v650
    %v1170 = vunpack.c.l.b16 %v651
    %v1171 = vunpack.c.l.b16 %v652
    %v1172 = vunpack.c.l.b16 %v653
    %v1173 = vunpack.c.l.b16 %v654
    %v1174 = vunpack.c.l.b16 %v655
    %v1175 = vunpack.c.l.b16 %v656
    %v1176 = vunpack.c.l.b16 %v657
    %v1177 = vunpack.c.l.b16 %v658
    %v1178 = vunpack.c.l.b16 %v659
    %v1179 = vunpack.c.l.b16 %v660
    %v1180 = vunpack.c.l.b16 %v661
    %v1181 = vunpack.c.l.b16 %v662
    %v1182 = vunpack.c.l.b16 %v663
    %v1183 = vunpack.c.l.b16 %v664
    %v1184 = vunpack.c.l.b16 %v665
    %v1185 = vunpack.c.l.b16 %v666
    %v1186 = vunpack.c.l.b16 %v667
    %v1187 = vunpack.c.l.b16 %v668
    %v1188 = vunpack.c.l.b16 %v669
    %v1189 = vunpack.c.l.b16 %v670
    %v1190 = vunpack.c.l.b16 %v671
    %v1191 = vunpack.c.l.b16 %v672
    %v1192 = vunpack.c.l.b16 %v673
    %v1193 = vunpack.c.l.b16 %v674
    %v1194 = vunpack.c.l.b16 %v675
    %v1195 = vunpack.c.l.b16 %v676
    %v1196 = vunpack.c.l.b16 %v677
    %v1197 = vunpack.c.l.b16 %v678
    %v1198 = vunpack.c.l.b16 %v679
    %v1199 = vunpack.c.l.b16 %v680
    %v1200 = vunpack.c.l.b16 %v681
    %v1201 = vunpack.c.l.b16 %v682
    %v1202 = vunpack.c.l.b16 %v683
    %v1203 = vunpack.c.l.b16 %v684
    %v1204 = vunpack.c.l.b16 %v685
    %v1205 = vpack.c.b16 %v950, %v949
    %v1206 = vpack.c.b16 %v952, %v951
    %v1207 = vpack.c.b16 %v954, %v953
    %v1208 = vpack.c.b16 %v956, %v955
    %v1209 = vpack.c.b16 %v958, %v957
    %v1210 = vpack.c.b16 %v960, %v959
    %v1211 = vpack.c.b16 %v962, %v961
    %v1212 = vpack.c.b16 %v964, %v963
    %v1213 = vpack.c.b16 %v966, %v965
    %v1214 = vpack.c.b16 %v968, %v967
    %v1215 = vpack.c.b16 %v970, %v969
    %v1216 = vpack.c.b16 %v972, %v971
    %v1217 = vpack.c.b16 %v974, %v973
    %v1218 = vpack.c.b16 %v976, %v975
    %v1219 = vpack.c.b16 %v978, %v977
    %v1220 = vpack.c.b16 %v980, %v979
    %v1221 = vpack.c.b16 %v982, %v981
    %v1222 = vpack.c.b16 %v984, %v983
    %v1223 = vpack.c.b16 %v986, %v985
    %v1224 = vpack.c.b16 %v988, %v987
    %v1225 = vpack.c.b16 %v990, %v989
    %v1226 = vpack.c.b16 %v992, %v991
    %v1227 = vpack.c.b16 %v994, %v993
    %v1228 = vpack.c.b16 %v996, %v995
    %v1229 = vpack.c.b16 %v998, %v997
    %v1230 = vpack.c.b16 %v1000, %v999
    %v1231 = vpack.c.b16 %v1002, %v1001
    %v1232 = vpack.c.b16 %v1004, %v1003
    %v1233 = vpack.c.b16 %v1006, %v1005
    %v1234 = vpack.c.b16 %v1008, %v1007
    %v1235 = vpack.c.b16 %v1010, %v1009
    %v1236 = vpack.c.b16 %v1012, %v1011
    %v1237 = vpack.c.b16 %v1014, %v1013
    %v1238 = vpack.c.b16 %v1016, %v1015
    %v1239 = vpack.c.b16 %v1018, %v1017
    %v1240 = vpack.c.b16 %v1020, %v1019
    %v1241 = vpack.c.b16 %v1022, %v1021
    %v1242 = vpack.c.b16 %v1024, %v1023
    %v1243 = vpack.c.b16 %v1026, %v1025
    %v1244 = vpack.c.b16 %v1028, %v1027
    %v1245 = vpack.c.b16 %v1030, %v1029
    %v1246 = vpack.c.b16 %v1032, %v1031
    %v1247 = vpack.c.b16 %v1034, %v1033
    %v1248 = vpack.c.b16 %v1036, %v1035
    %v1249 = vpack.c.b16 %v1038, %v1037
    %v1250 = vpack.c.b16 %v1040, %v1039
    %v1251 = vpack.c.b16 %v1042, %v1041
    %v1252 = vpack.c.b16 %v1044, %v1043
    %v1253 = vpack.c.b16 %v1046, %v1045
    %v1254 = vpack.c.b16 %v1048, %v1047
    %v1255 = vpack.c.b16 %v1050, %v1049
    %v1256 = vpack.c.b16 %v1052, %v1051
    %v1257 = vpack.c.b16 %v1054, %v1053
    %v1258 = vpack.c.b16 %v1056, %v1055
    %v1259 = vpack.c.b16 %v1058, %v1057
    %v1260 = vpack.c.b16 %v1060, %v1059
    %v1261 = vpack.c.b16 %v1062, %v1061
    %v1262 = vpack.c.b16 %v1064, %v1063
    %v1263 = vpack.c.b16 %v1066, %v1065
    %v1264 = vpack.c.b16 %v1068, %v1067
    %v1265 = vpack.c.b16 %v1070, %v1069
    %v1266 = vpack.c.b16 %v1072, %v1071
    %v1267 = vpack.c.b16 %v1074, %v1073
    %v1268 = vpack.c.b16 %v1076, %v1075
    %v1269 = vpack.c.b16 %v1078, %v1077
    %v1270 = vpack.c.b16 %v1080, %v1079
    %v1271 = vpack.c.b16 %v1082, %v1081
    %v1272 = vpack.c.b16 %v1084, %v1083
    %v1273 = vpack.c.b16 %v1086, %v1085
    %v1274 = vpack.c.b16 %v1088, %v1087
    %v1275 = vpack.c.b16 %v1090, %v1089
    %v1276 = vpack.c.b16 %v1092, %v1091
    %v1277 = vpack.c.b16 %v1094, %v1093
    %v1278 = vpack.c.b16 %v1096, %v1095
    %v1279 = vpack.c.b16 %v1098, %v1097
    %v1280 = vpack.c.b16 %v1100, %v1099
    %v1281 = vpack.c.b16 %v1102, %v1101
    %v1282 = vpack.c.b16 %v1104, %v1103
    %v1283 = vpack.c.b16 %v1106, %v1105
    %v1284 = vpack.c.b16 %v1108, %v1107
    %v1285 = vpack.c.b16 %v1110, %v1109
    %v1286 = vpack.c.b16 %v1112, %v1111
    %v1287 = vpack.c.b16 %v1114, %v1113
    %v1288 = vpack.c.b16 %v1116, %v1115
    %v1289 = vpack.c.b16 %v1118, %v1117
    %v1290 = vpack.c.b16 %v1120, %v1119
    %v1291 = vpack.c.b16 %v1122, %v1121
    %v1292 = vpack.c.b16 %v1124, %v1123
    %v1293 = vpack.c.b16 %v1126, %v1125
    %v1294 = vpack.c.b16 %v1128, %v1127
    %v1295 = vpack.c.b16 %v1130, %v1129
    %v1296 = vpack.c.b16 %v1132, %v1131
    %v1297 = vpack.c.b16 %v1134, %v1133
    %v1298 = vpack.c.b16 %v1136, %v1135
    %v1299 = vpack.c.b16 %v1138, %v1137
    %v1300 = vpack.c.b16 %v1140, %v1139
    %v1301 = vpack.c.b16 %v1142, %v1141
    %v1302 = vpack.c.b16 %v1144, %v1143
    %v1303 = vpack.c.b16 %v1146, %v1145
    %v1304 = vpack.c.b16 %v1148, %v1147
    %v1305 = vpack.c.b16 %v1150, %v1149
    %v1306 = vpack.c.b16 %v1152, %v1151
    %v1307 = vpack.c.b16 %v1154, %v1153
    %v1308 = vpack.c.b16 %v1156, %v1155
    %v1309 = vpack.c.b16 %v1158, %v1157
    %v1310 = vpack.c.b16 %v1160, %v1159
    %v1311 = vpack.c.b16 %v1162, %v1161
    %v1312 = vpack.c.b16 %v1164, %v1163
    %v1313 = vpack.c.b16 %v1166, %v1165
    %v1314 = vpack.c.b16 %v1168, %v1167
    %v1315 = vpack.c.b16 %v1170, %v1169
    %v1316 = vpack.c.b16 %v1172, %v1171
    %v1317 = vpack.c.b16 %v1174, %v1173
    %v1318 = vpack.c.b16 %v1176, %v1175
    %v1319 = vpack.c.b16 %v1178, %v1177
    %v1320 = vpack.c.b16 %v1180, %v1179
    %v1321 = vpack.c.b16 %v1182, %v1181
    %v1322 = vpack.c.b16 %v1184, %v1183
    %v1323 = vpack.c.b16 %v1186, %v1185
    %v1324 = vpack.c.b16 %v1188, %v1187
    %v1325 = vpack.c.b16 %v1190, %v1189
    %v1326 = vpack.c.b16 %v1192, %v1191
    %v1327 = vpack.c.b16 %v1194, %v1193
    %v1328 = vpack.c.b16 %v1196, %v1195
    %v1329 = vpack.c.b16 %v1198, %v1197
    %v1330 = vpack.c.b16 %v1200, %v1199
    %v1331 = vpack.c.b16 %v1202, %v1201
    %v1332 = vpack.c.b16 %v1204, %v1203
    %1461 = vmatprep.subr.bf16.mxu0 0
    %1462 = vmatpush1.bf16.msra.mxu0 %v1205
    %1463 = vmatprep.subr.bf16.mxu0 0
    %1464 = vmatpush1.bf16.msra.mxu0 %v1206
    %1465 = vmatprep.subr.bf16.mxu0 0
    %1466 = vmatpush1.bf16.msra.mxu0 %v1207
    %1467 = vmatprep.subr.bf16.mxu0 0
    %1468 = vmatpush1.bf16.msra.mxu0 %v1208
    %1469 = vmatprep.subr.bf16.mxu0 0
    %1470 = vmatpush1.bf16.msra.mxu0 %v1209
    %1471 = vmatprep.subr.bf16.mxu0 0
    %1472 = vmatpush1.bf16.msra.mxu0 %v1210
    %1473 = vmatprep.subr.bf16.mxu0 0
    %1474 = vmatpush1.bf16.msra.mxu0 %v1211
    %1475 = vmatprep.subr.bf16.mxu0 0
    %1476 = vmatpush1.bf16.msra.mxu0 %v1212
    %1477 = vmatprep.subr.bf16.mxu0 0
    %1478 = vmatpush1.bf16.msra.mxu0 %v1213
    %1479 = vmatprep.subr.bf16.mxu0 0
    %1480 = vmatpush1.bf16.msra.mxu0 %v1214
    %1481 = vmatprep.subr.bf16.mxu0 0
    %1482 = vmatpush1.bf16.msra.mxu0 %v1215
    %1483 = vmatprep.subr.bf16.mxu0 0
    %1484 = vmatpush1.bf16.msra.mxu0 %v1216
    %1485 = vmatprep.subr.bf16.mxu0 0
    %1486 = vmatpush1.bf16.msra.mxu0 %v1217
    %1487 = vmatprep.subr.bf16.mxu0 0
    %1488 = vmatpush1.bf16.msra.mxu0 %v1218
    %1489 = vmatprep.subr.bf16.mxu0 0
    %1490 = vmatpush1.bf16.msra.mxu0 %v1219
    %1491 = vmatprep.subr.bf16.mxu0 0
    %1492 = vmatpush1.bf16.msra.mxu0 %v1220
    %1493 = vmatprep.mubr.bf16.mxu0 %v415
    %1494 = vmatmul.mubr.bf16.gmra.mrb[0].mxu0 %v414
    %v1495 = vpop.f32.mrb[0].mxu0
    %v1496 = vadd.f32 %v691, %v1495
    %v1497 = vpop.f32.mrb[0].mxu0
    %v1498 = vpop.f32.mrb[0].mxu0
    %v1499 = vpop.f32.mrb[0].mxu0
    %1500 = vdwg.mxu0
    %1501 = vmatprep.subr.bf16.mxu0 0
    %1502 = vmatpush1.bf16.msra.mxu0 %v1221
    %1503 = vmatprep.subr.bf16.mxu0 0
    %1504 = vmatpush1.bf16.msra.mxu0 %v1222
    %1505 = vmatprep.subr.bf16.mxu0 0
    %1506 = vmatpush1.bf16.msra.mxu0 %v1223
    %1507 = vmatprep.subr.bf16.mxu0 0
    %1508 = vmatpush1.bf16.msra.mxu0 %v1224
    %1509 = vmatprep.subr.bf16.mxu0 0
    %1510 = vmatpush1.bf16.msra.mxu0 %v1225
    %1511 = vmatprep.subr.bf16.mxu0 0
    %1512 = vmatpush1.bf16.msra.mxu0 %v1226
    %1513 = vmatprep.subr.bf16.mxu0 0
    %1514 = vmatpush1.bf16.msra.mxu0 %v1227
    %1515 = vmatprep.subr.bf16.mxu0 0
    %1516 = vmatpush1.bf16.msra.mxu0 %v1228
    %1517 = vmatprep.subr.bf16.mxu0 0
    %1518 = vmatpush1.bf16.msra.mxu0 %v1229
    %1519 = vmatprep.subr.bf16.mxu0 0
    %1520 = vmatpush1.bf16.msra.mxu0 %v1230
    %1521 = vmatprep.subr.bf16.mxu0 0
    %1522 = vmatpush1.bf16.msra.mxu0 %v1231
    %1523 = vmatprep.subr.bf16.mxu0 0
    %1524 = vmatpush1.bf16.msra.mxu0 %v1232
    %1525 = vmatprep.subr.bf16.mxu0 0
    %1526 = vmatpush1.bf16.msra.mxu0 %v1233
    %1527 = vmatprep.subr.bf16.mxu0 0
    %1528 = vmatpush1.bf16.msra.mxu0 %v1234
    %1529 = vmatprep.subr.bf16.mxu0 0
    %1530 = vmatpush1.bf16.msra.mxu0 %v1235
    %1531 = vmatprep.subr.bf16.mxu0 0
    %1532 = vmatpush1.bf16.msra.mxu0 %v1236
    %1533 = vmatprep.mubr.bf16.mxu0 %v417
    %1534 = vmatmul.mubr.bf16.gmra.mrb[0].mxu0 %v416
    %v1535 = vpop.f32.mrb[0].mxu0
    %v1536 = vadd.f32 %v1496, %v1535
    %v1537 = vpop.f32.mrb[0].mxu0
    %v1538 = vpop.f32.mrb[0].mxu0
    %v1539 = vpop.f32.mrb[0].mxu0
    %1540 = vdwg.mxu0
    %1541 = vmatprep.subr.bf16.mxu0 0
    %1542 = vmatpush1.bf16.msra.mxu0 %v1237
    %1543 = vmatprep.subr.bf16.mxu0 0
    %1544 = vmatpush1.bf16.msra.mxu0 %v1238
    %1545 = vmatprep.subr.bf16.mxu0 0
    %1546 = vmatpush1.bf16.msra.mxu0 %v1239
    %1547 = vmatprep.subr.bf16.mxu0 0
    %1548 = vmatpush1.bf16.msra.mxu0 %v1240
    %1549 = vmatprep.subr.bf16.mxu0 0
    %1550 = vmatpush1.bf16.msra.mxu0 %v1241
    %1551 = vmatprep.subr.bf16.mxu0 0
    %1552 = vmatpush1.bf16.msra.mxu0 %v1242
    %1553 = vmatprep.subr.bf16.mxu0 0
    %1554 = vmatpush1.bf16.msra.mxu0 %v1243
    %1555 = vmatprep.subr.bf16.mxu0 0
    %1556 = vmatpush1.bf16.msra.mxu0 %v1244
    %1557 = vmatprep.subr.bf16.mxu0 0
    %1558 = vmatpush1.bf16.msra.mxu0 %v1245
    %1559 = vmatprep.subr.bf16.mxu0 0
    %1560 = vmatpush1.bf16.msra.mxu0 %v1246
    %1561 = vmatprep.subr.bf16.mxu0 0
    %1562 = vmatpush1.bf16.msra.mxu0 %v1247
    %1563 = vmatprep.subr.bf16.mxu0 0
    %1564 = vmatpush1.bf16.msra.mxu0 %v1248
    %1565 = vmatprep.subr.bf16.mxu0 0
    %1566 = vmatpush1.bf16.msra.mxu0 %v1249
    %1567 = vmatprep.subr.bf16.mxu0 0
    %1568 = vmatpush1.bf16.msra.mxu0 %v1250
    %1569 = vmatprep.subr.bf16.mxu0 0
    %1570 = vmatpush1.bf16.msra.mxu0 %v1251
    %1571 = vmatprep.subr.bf16.mxu0 0
    %1572 = vmatpush1.bf16.msra.mxu0 %v1252
    %1573 = vmatprep.mubr.bf16.mxu0 %v419
    %1574 = vmatmul.mubr.bf16.gmra.mrb[0].mxu0 %v418
    %v1575 = vpop.f32.mrb[0].mxu0
    %v1576 = vadd.f32 %v1536, %v1575
    %v1577 = vpop.f32.mrb[0].mxu0
    %v1578 = vpop.f32.mrb[0].mxu0
    %v1579 = vpop.f32.mrb[0].mxu0
    %1580 = vdwg.mxu0
    %1581 = vmatprep.subr.bf16.mxu0 0
    %1582 = vmatpush1.bf16.msra.mxu0 %v1253
    %1583 = vmatprep.subr.bf16.mxu0 0
    %1584 = vmatpush1.bf16.msra.mxu0 %v1254
    %1585 = vmatprep.subr.bf16.mxu0 0
    %1586 = vmatpush1.bf16.msra.mxu0 %v1255
    %1587 = vmatprep.subr.bf16.mxu0 0
    %1588 = vmatpush1.bf16.msra.mxu0 %v1256
    %1589 = vmatprep.subr.bf16.mxu0 0
    %1590 = vmatpush1.bf16.msra.mxu0 %v1257
    %1591 = vmatprep.subr.bf16.mxu0 0
    %1592 = vmatpush1.bf16.msra.mxu0 %v1258
    %1593 = vmatprep.subr.bf16.mxu0 0
    %1594 = vmatpush1.bf16.msra.mxu0 %v1259
    %1595 = vmatprep.subr.bf16.mxu0 0
    %1596 = vmatpush1.bf16.msra.mxu0 %v1260
    %1597 = vmatprep.subr.bf16.mxu0 0
    %1598 = vmatpush1.bf16.msra.mxu0 %v1261
    %1599 = vmatprep.subr.bf16.mxu0 0
    %1600 = vmatpush1.bf16.msra.mxu0 %v1262
    %1601 = vmatprep.subr.bf16.mxu0 0
    %1602 = vmatpush1.bf16.msra.mxu0 %v1263
    %1603 = vmatprep.subr.bf16.mxu0 0
    %1604 = vmatpush1.bf16.msra.mxu0 %v1264
    %1605 = vmatprep.subr.bf16.mxu0 0
    %1606 = vmatpush1.bf16.msra.mxu0 %v1265
    %1607 = vmatprep.subr.bf16.mxu0 0
    %1608 = vmatpush1.bf16.msra.mxu0 %v1266
    %1609 = vmatprep.subr.bf16.mxu0 0
    %1610 = vmatpush1.bf16.msra.mxu0 %v1267
    %1611 = vmatprep.subr.bf16.mxu0 0
    %1612 = vmatpush1.bf16.msra.mxu0 %v1268
    %1613 = vmatprep.mubr.bf16.mxu0 %v421
    %1614 = vmatmul.mubr.bf16.gmra.mrb[0].mxu0 %v420
    %v1615 = vpop.f32.mrb[0].mxu0
    %v1616 = vadd.f32 %v1576, %v1615
    %v1617 = vpop.f32.mrb[0].mxu0
    %v1618 = vpop.f32.mrb[0].mxu0
    %v1619 = vpop.f32.mrb[0].mxu0
    %1620 = vdwg.mxu0
    %1621 = vmatprep.subr.bf16.mxu0 0
    %1622 = vmatpush1.bf16.msra.mxu0 %v1269
    %1623 = vmatprep.subr.bf16.mxu0 0
    %1624 = vmatpush1.bf16.msra.mxu0 %v1270
    %1625 = vmatprep.subr.bf16.mxu0 0
    %1626 = vmatpush1.bf16.msra.mxu0 %v1271
    %1627 = vmatprep.subr.bf16.mxu0 0
    %1628 = vmatpush1.bf16.msra.mxu0 %v1272
    %1629 = vmatprep.subr.bf16.mxu0 0
    %1630 = vmatpush1.bf16.msra.mxu0 %v1273
    %1631 = vmatprep.subr.bf16.mxu0 0
    %1632 = vmatpush1.bf16.msra.mxu0 %v1274
    %1633 = vmatprep.subr.bf16.mxu0 0
    %1634 = vmatpush1.bf16.msra.mxu0 %v1275
    %1635 = vmatprep.subr.bf16.mxu0 0
    %1636 = vmatpush1.bf16.msra.mxu0 %v1276
    %1637 = vmatprep.subr.bf16.mxu0 0
    %1638 = vmatpush1.bf16.msra.mxu0 %v1277
    %1639 = vmatprep.subr.bf16.mxu0 0
    %1640 = vmatpush1.bf16.msra.mxu0 %v1278
    %1641 = vmatprep.subr.bf16.mxu0 0
    %1642 = vmatpush1.bf16.msra.mxu0 %v1279
    %1643 = vmatprep.subr.bf16.mxu0 0
    %1644 = vmatpush1.bf16.msra.mxu0 %v1280
    %1645 = vmatprep.subr.bf16.mxu0 0
    %1646 = vmatpush1.bf16.msra.mxu0 %v1281
    %1647 = vmatprep.subr.bf16.mxu0 0
    %1648 = vmatpush1.bf16.msra.mxu0 %v1282
    %1649 = vmatprep.subr.bf16.mxu0 0
    %1650 = vmatpush1.bf16.msra.mxu0 %v1283
    %1651 = vmatprep.subr.bf16.mxu0 0
    %1652 = vmatpush1.bf16.msra.mxu0 %v1284
    %1653 = vmatprep.mubr.bf16.mxu0 %v423
    %1654 = vmatmul.mubr.bf16.gmra.mrb[0].mxu0 %v422
    %v1655 = vpop.f32.mrb[0].mxu0
    %v1656 = vadd.f32 %v1616, %v1655
    %v1657 = vpop.f32.mrb[0].mxu0
    %v1658 = vpop.f32.mrb[0].mxu0
    %v1659 = vpop.f32.mrb[0].mxu0
    %1660 = vdwg.mxu0
    %1661 = vmatprep.subr.bf16.mxu0 0
    %1662 = vmatpush1.bf16.msra.mxu0 %v1285
    %1663 = vmatprep.subr.bf16.mxu0 0
    %1664 = vmatpush1.bf16.msra.mxu0 %v1286
    %1665 = vmatprep.subr.bf16.mxu0 0
    %1666 = vmatpush1.bf16.msra.mxu0 %v1287
    %1667 = vmatprep.subr.bf16.mxu0 0
    %1668 = vmatpush1.bf16.msra.mxu0 %v1288
    %1669 = vmatprep.subr.bf16.mxu0 0
    %1670 = vmatpush1.bf16.msra.mxu0 %v1289
    %1671 = vmatprep.subr.bf16.mxu0 0
    %1672 = vmatpush1.bf16.msra.mxu0 %v1290
    %1673 = vmatprep.subr.bf16.mxu0 0
    %1674 = vmatpush1.bf16.msra.mxu0 %v1291
    %1675 = vmatprep.subr.bf16.mxu0 0
    %1676 = vmatpush1.bf16.msra.mxu0 %v1292
    %1677 = vmatprep.subr.bf16.mxu0 0
    %1678 = vmatpush1.bf16.msra.mxu0 %v1293
    %1679 = vmatprep.subr.bf16.mxu0 0
    %1680 = vmatpush1.bf16.msra.mxu0 %v1294
    %1681 = vmatprep.subr.bf16.mxu0 0
    %1682 = vmatpush1.bf16.msra.mxu0 %v1295
    %1683 = vmatprep.subr.bf16.mxu0 0
    %1684 = vmatpush1.bf16.msra.mxu0 %v1296
    %1685 = vmatprep.subr.bf16.mxu0 0
    %1686 = vmatpush1.bf16.msra.mxu0 %v1297
    %1687 = vmatprep.subr.bf16.mxu0 0
    %1688 = vmatpush1.bf16.msra.mxu0 %v1298
    %1689 = vmatprep.subr.bf16.mxu0 0
    %1690 = vmatpush1.bf16.msra.mxu0 %v1299
    %1691 = vmatprep.subr.bf16.mxu0 0
    %1692 = vmatpush1.bf16.msra.mxu0 %v1300
    %1693 = vmatprep.mubr.bf16.mxu0 %v425
    %1694 = vmatmul.mubr.bf16.gmra.mrb[0].mxu0 %v424
    %v1695 = vpop.f32.mrb[0].mxu0
    %v1696 = vadd.f32 %v1656, %v1695
    %v1697 = vpop.f32.mrb[0].mxu0
    %v1698 = vpop.f32.mrb[0].mxu0
    %v1699 = vpop.f32.mrb[0].mxu0
    %1700 = vdwg.mxu0
    %1701 = vmatprep.subr.bf16.mxu0 0
    %1702 = vmatpush1.bf16.msra.mxu0 %v1301
    %1703 = vmatprep.subr.bf16.mxu0 0
    %1704 = vmatpush1.bf16.msra.mxu0 %v1302
    %1705 = vmatprep.subr.bf16.mxu0 0
    %1706 = vmatpush1.bf16.msra.mxu0 %v1303
    %1707 = vmatprep.subr.bf16.mxu0 0
    %1708 = vmatpush1.bf16.msra.mxu0 %v1304
    %1709 = vmatprep.subr.bf16.mxu0 0
    %1710 = vmatpush1.bf16.msra.mxu0 %v1305
    %1711 = vmatprep.subr.bf16.mxu0 0
    %1712 = vmatpush1.bf16.msra.mxu0 %v1306
    %1713 = vmatprep.subr.bf16.mxu0 0
    %1714 = vmatpush1.bf16.msra.mxu0 %v1307
    %1715 = vmatprep.subr.bf16.mxu0 0
    %1716 = vmatpush1.bf16.msra.mxu0 %v1308
    %1717 = vmatprep.subr.bf16.mxu0 0
    %1718 = vmatpush1.bf16.msra.mxu0 %v1309
    %1719 = vmatprep.subr.bf16.mxu0 0
    %1720 = vmatpush1.bf16.msra.mxu0 %v1310
    %1721 = vmatprep.subr.bf16.mxu0 0
    %1722 = vmatpush1.bf16.msra.mxu0 %v1311
    %1723 = vmatprep.subr.bf16.mxu0 0
    %1724 = vmatpush1.bf16.msra.mxu0 %v1312
    %1725 = vmatprep.subr.bf16.mxu0 0
    %1726 = vmatpush1.bf16.msra.mxu0 %v1313
    %1727 = vmatprep.subr.bf16.mxu0 0
    %1728 = vmatpush1.bf16.msra.mxu0 %v1314
    %1729 = vmatprep.subr.bf16.mxu0 0
    %1730 = vmatpush1.bf16.msra.mxu0 %v1315
    %1731 = vmatprep.subr.bf16.mxu0 0
    %1732 = vmatpush1.bf16.msra.mxu0 %v1316
    %1733 = vmatprep.mubr.bf16.mxu0 %v427
    %1734 = vmatmul.mubr.bf16.gmra.mrb[0].mxu0 %v426
    %v1735 = vpop.f32.mrb[0].mxu0
    %v1736 = vadd.f32 %v1696, %v1735
    %v1737 = vpop.f32.mrb[0].mxu0
    %v1738 = vpop.f32.mrb[0].mxu0
    %v1739 = vpop.f32.mrb[0].mxu0
    %1740 = vdwg.mxu0
    %1741 = vmatprep.subr.bf16.mxu0 0
    %1742 = vmatpush1.bf16.msra.mxu0 %v1317
    %1743 = vmatprep.subr.bf16.mxu0 0
    %1744 = vmatpush1.bf16.msra.mxu0 %v1318
    %1745 = vmatprep.subr.bf16.mxu0 0
    %1746 = vmatpush1.bf16.msra.mxu0 %v1319
    %1747 = vmatprep.subr.bf16.mxu0 0
    %1748 = vmatpush1.bf16.msra.mxu0 %v1320
    %1749 = vmatprep.subr.bf16.mxu0 0
    %1750 = vmatpush1.bf16.msra.mxu0 %v1321
    %1751 = vmatprep.subr.bf16.mxu0 0
    %1752 = vmatpush1.bf16.msra.mxu0 %v1322
    %1753 = vmatprep.subr.bf16.mxu0 0
    %1754 = vmatpush1.bf16.msra.mxu0 %v1323
    %1755 = vmatprep.subr.bf16.mxu0 0
    %1756 = vmatpush1.bf16.msra.mxu0 %v1324
    %1757 = vmatprep.subr.bf16.mxu0 0
    %1758 = vmatpush1.bf16.msra.mxu0 %v1325
    %1759 = vmatprep.subr.bf16.mxu0 0
    %1760 = vmatpush1.bf16.msra.mxu0 %v1326
    %1761 = vmatprep.subr.bf16.mxu0 0
    %1762 = vmatpush1.bf16.msra.mxu0 %v1327
    %1763 = vmatprep.subr.bf16.mxu0 0
    %1764 = vmatpush1.bf16.msra.mxu0 %v1328
    %1765 = vmatprep.subr.bf16.mxu0 0
    %1766 = vmatpush1.bf16.msra.mxu0 %v1329
    %1767 = vmatprep.subr.bf16.mxu0 0
    %1768 = vmatpush1.bf16.msra.mxu0 %v1330
    %1769 = vmatprep.subr.bf16.mxu0 0
    %1770 = vmatpush1.bf16.msra.mxu0 %v1331
    %1771 = vmatprep.subr.bf16.mxu0 0
    %1772 = vmatpush1.bf16.msra.mxu0 %v1332
    %1773 = vmatprep.mubr.bf16.mxu0 %v429
    %1774 = vmatmul.mubr.bf16.gmra.mrb[0].mxu0 %v428
    %v1775 = vpop.f32.mrb[0].mxu0
    %v1776 = vadd.f32 %v1736, %v1775
    %v1777 = vpop.f32.mrb[0].mxu0
    %v1778 = vpop.f32.mrb[0].mxu0
    %v1779 = vpop.f32.mrb[0].mxu0
    %1780 = vdwg.mxu0
    %v1781 = vmax.f32 %v1776, 0.0
    %v1782 = vpack.c.bf16 %v1781, %v1781
    %v1783 = vld [vmem:[%s5] sm:$0xf]
    %v1784 = vld [vmem:[%s5 + $0x4] sm:$0xf]
    %v1785 = vld [vmem:[%s5 + $0x8] sm:$0xf]
    %v1786 = vld [vmem:[%s5 + $0xc] sm:$0xf]
    %v1787 = vld [vmem:[%s5 + $0x10] sm:$0xf]
    %v1788 = vld [vmem:[%s5 + $0x14] sm:$0xf]
    %v1789 = vld [vmem:[%s5 + $0x18] sm:$0xf]
    %v1790 = vld [vmem:[%s5 + $0x1c] sm:$0xf]
    %v1791 = vld [vmem:[%s5 + $0x20] sm:$0xf]
    %v1792 = vld [vmem:[%s5 + $0x24] sm:$0xf]
    %v1793 = vld [vmem:[%s5 + $0x28] sm:$0xf]
    %v1794 = vld [vmem:[%s5 + $0x2c] sm:$0xf]
    %v1795 = vld [vmem:[%s5 + $0x30] sm:$0xf]
    %v1796 = vld [vmem:[%s5 + $0x34] sm:$0xf]
    %v1797 = vld [vmem:[%s5 + $0x38] sm:$0xf]
    %v1798 = vld [vmem:[%s5 + $0x3c] sm:$0xf]
    %v1799 = vld [vmem:[%s6] sm:$0x1]
    %v1801 = vlaneseq
    %v1802 = vshrl.u32 %v1801, 7
    %v1803 = vsub.s32 0, %v1802
    %v1804 = vrot.slane %v1799, %v1803
    %v1822 = vunpack.c.l.b16 %v1783
    %v1823 = vunpack.c.l.b16 %v1784
    %v1824 = vunpack.c.l.b16 %v1785
    %v1825 = vunpack.c.l.b16 %v1786
    %v1826 = vunpack.c.l.b16 %v1787
    %v1827 = vunpack.c.l.b16 %v1788
    %v1828 = vunpack.c.l.b16 %v1789
    %v1829 = vunpack.c.l.b16 %v1790
    %v1830 = vunpack.c.l.b16 %v1791
    %v1831 = vunpack.c.l.b16 %v1792
    %v1832 = vunpack.c.l.b16 %v1793
    %v1833 = vunpack.c.l.b16 %v1794
    %v1834 = vunpack.c.l.b16 %v1795
    %v1835 = vunpack.c.l.b16 %v1796
    %v1836 = vunpack.c.l.b16 %v1797
    %v1837 = vunpack.c.l.b16 %v1798
    %v1838 = vpack.c.b16 %v1823, %v1822
    %v1839 = vpack.c.b16 %v1825, %v1824
    %v1840 = vpack.c.b16 %v1827, %v1826
    %v1841 = vpack.c.b16 %v1829, %v1828
    %v1842 = vpack.c.b16 %v1831, %v1830
    %v1843 = vpack.c.b16 %v1833, %v1832
    %v1844 = vpack.c.b16 %v1835, %v1834
    %v1845 = vpack.c.b16 %v1837, %v1836
    %1854 = vmatprep.subr.bf16.mxu0 0
    %1855 = vmatpush1.bf16.msra.mxu0 %v1838
    %1856 = vmatprep.subr.bf16.mxu0 0
    %1857 = vmatpush1.bf16.msra.mxu0 %v1839
    %1858 = vmatprep.subr.bf16.mxu0 0
    %1859 = vmatpush1.bf16.msra.mxu0 %v1840
    %1860 = vmatprep.subr.bf16.mxu0 0
    %1861 = vmatpush1.bf16.msra.mxu0 %v1841
    %1862 = vmatprep.subr.bf16.mxu0 0
    %1863 = vmatpush1.bf16.msra.mxu0 %v1842
    %1864 = vmatprep.subr.bf16.mxu0 0
    %1865 = vmatpush1.bf16.msra.mxu0 %v1843
    %1866 = vmatprep.subr.bf16.mxu0 0
    %1867 = vmatpush1.bf16.msra.mxu0 %v1844
    %1868 = vmatprep.subr.bf16.mxu0 0
    %1869 = vmatpush1.bf16.msra.mxu0 %v1845
    %1870 = vmatprep.subr.bf16.mxu0 0
    %1871 = vmatpush1.bf16.msra.mxu0 0
    %1872 = vmatprep.subr.bf16.mxu0 0
    %1873 = vmatpush1.bf16.msra.mxu0 0
    %1874 = vmatprep.subr.bf16.mxu0 0
    %1875 = vmatpush1.bf16.msra.mxu0 0
    %1876 = vmatprep.subr.bf16.mxu0 0
    %1877 = vmatpush1.bf16.msra.mxu0 0
    %1878 = vmatprep.subr.bf16.mxu0 0
    %1879 = vmatpush1.bf16.msra.mxu0 0
    %1880 = vmatprep.subr.bf16.mxu0 0
    %1881 = vmatpush1.bf16.msra.mxu0 0
    %1882 = vmatprep.subr.bf16.mxu0 0
    %1883 = vmatpush1.bf16.msra.mxu0 0
    %1884 = vmatprep.subr.bf16.mxu0 0
    %1885 = vmatpush1.bf16.msra.mxu0 0
    %1886 = vmatprep.mubr.bf16.mxu0 0
    %1887 = vmatmul.mubr.bf16.gmra.mrb[0].mxu0 %v1782
    %v1888 = vpop.f32.mrb[0].mxu0
    %v1889 = vadd.f32 %v1804, %v1888
    %v1890 = vpop.f32.mrb[0].mxu0
    %v1891 = vpop.f32.mrb[0].mxu0
    %v1892 = vpop.f32.mrb[0].mxu0
    %1893 = vdwg.mxu0
    %v1894 = vmax.f32 %v1889, 0.0
    %v1895 = vpack.c.bf16 %v1894, %v1894
    %v1896 = vld [vmem:[%s7] sm:$0xf]
    %v1897 = vld [vmem:[%s7 + $0x4] sm:$0xf]
    %v1898 = vld [vmem:[%s7 + $0x8] sm:$0xf]
    %v1899 = vld [vmem:[%s7 + $0xc] sm:$0xf]
    %v1900 = vld [vmem:[%s7 + $0x10] sm:$0xf]
    %v1901 = vld [vmem:[%s7 + $0x14] sm:$0xf]
    %v1902 = vld [vmem:[%s7 + $0x18] sm:$0xf]
    %v1903 = vld [vmem:[%s7 + $0x1c] sm:$0xf]
    %v1904 = vld [vmem:[%s8] sm:$0x1]
    %v1906 = vlaneseq
    %v1907 = vshrl.u32 %v1906, 7
    %v1908 = vsub.s32 0, %v1907
    %v1909 = vrot.slane %v1904, %v1908
    %v1919 = vunpack.c.l.b16 %v1896
    %v1920 = vunpack.c.l.b16 %v1897
    %v1921 = vunpack.c.l.b16 %v1898
    %v1922 = vunpack.c.l.b16 %v1899
    %v1923 = vunpack.c.l.b16 %v1900
    %v1924 = vunpack.c.l.b16 %v1901
    %v1925 = vunpack.c.l.b16 %v1902
    %v1926 = vunpack.c.l.b16 %v1903
    %v1927 = vpack.c.b16 %v1920, %v1919
    %v1928 = vpack.c.b16 %v1922, %v1921
    %v1929 = vpack.c.b16 %v1924, %v1923
    %v1930 = vpack.c.b16 %v1926, %v1925
    %vm1935 = vcmask 523264
    %v1937 = vsel %vm1935, %v1895, 0
    %1939 = vmatprep.subr.bf16.mxu0 0
    %1940 = vmatpush1.bf16.msra.mxu0 %v1927
    %1941 = vmatprep.subr.bf16.mxu0 0
    %1942 = vmatpush1.bf16.msra.mxu0 %v1928
    %1943 = vmatprep.subr.bf16.mxu0 0
    %1944 = vmatpush1.bf16.msra.mxu0 %v1929
    %1945 = vmatprep.subr.bf16.mxu0 0
    %1946 = vmatpush1.bf16.msra.mxu0 %v1930
    %1947 = vmatprep.subr.bf16.mxu0 0
    %1948 = vmatpush1.bf16.msra.mxu0 0
    %1949 = vmatprep.subr.bf16.mxu0 0
    %1950 = vmatpush1.bf16.msra.mxu0 0
    %1951 = vmatprep.subr.bf16.mxu0 0
    %1952 = vmatpush1.bf16.msra.mxu0 0
    %1953 = vmatprep.subr.bf16.mxu0 0
    %1954 = vmatpush1.bf16.msra.mxu0 0
    %1955 = vmatprep.subr.bf16.mxu0 0
    %1956 = vmatpush1.bf16.msra.mxu0 0
    %1957 = vmatprep.subr.bf16.mxu0 0
    %1958 = vmatpush1.bf16.msra.mxu0 0
    %1959 = vmatprep.subr.bf16.mxu0 0
    %1960 = vmatpush1.bf16.msra.mxu0 0
    %1961 = vmatprep.subr.bf16.mxu0 0
    %1962 = vmatpush1.bf16.msra.mxu0 0
    %1963 = vmatprep.subr.bf16.mxu0 0
    %1964 = vmatpush1.bf16.msra.mxu0 0
    %1965 = vmatprep.subr.bf16.mxu0 0
    %1966 = vmatpush1.bf16.msra.mxu0 0
    %1967 = vmatprep.subr.bf16.mxu0 0
    %1968 = vmatpush1.bf16.msra.mxu0 0
    %1969 = vmatprep.subr.bf16.mxu0 0
    %1970 = vmatpush1.bf16.msra.mxu0 0
    %1971 = vmatprep.mubr.bf16.mxu0 0
    %1972 = vmatmul.mubr.bf16.gmra.mrb[0].mxu0 %v1937
    %v1973 = vpop.f32.mrb[0].mxu0
    %v1974 = vadd.f32 %v1909, %v1973
    %v1975 = vpop.f32.mrb[0].mxu0
    %v1976 = vpop.f32.mrb[0].mxu0
    %v1977 = vpop.f32.mrb[0].mxu0
    %1978 = vdwg.mxu0
    %vm1979 = vcmask 74752
    %1980 = vst.msk [vmem:[#allocation2] sm:$0x3] %vm1979, %v1974
    // Predicated region
    $region38: #{model_forward.7} parent=1 // pred_check
      _
    $region39: #{model_forward.7} parent=1 // pred_check_branch
      %1982 = sbr.rel (0) target = $region41
    $region40: #{model_forward.7} parent=1 // pred_region
      %s1984 = ssub.s32 32, 32
      %1985 = vsyncadd [#allocation3], %s1984
      %s1987 = sshll.u32 [#allocation2], 4
      %s1988 = int_to_ptr.vmem [resolvable:$true] %s1987
      %1990 = dma.vmem_to_hbm [thread:$0]  %s1988, 32, %s9, [#allocation3]
    $region41: #{model_forward.7} parent=1 // pred_fallthru
      _
    // Predicated region
    $region42: #{model_forward.7} parent=1 // pred_check
      _
    $region43: #{model_forward.7} parent=1 // pred_check_branch
      %1992 = sbr.rel (0) target = $region45
    $region44: #{model_forward.7} parent=1 // pred_region
      %1993 = dma.done [#allocation3], 32
    $region45: #{model_forward.7} parent=1 // pred_fallthru
      _
    %1994 = vsyncpa [#allocation3], 1

</llo_original>
